<compile_context>
chip_gen: v7x
topology: tpu7x:2x2x1
jax: 0.10.0
libtpu: 0.0.40
codegen_flags: <defaults>
</compile_context>

<pallas_src>
import jax
import jax.numpy as jnp
from jax.experimental import pallas as pl
from jax.experimental.pallas import tpu as pltpu

_BN_EPS = 1e-5


# ----------------------------------------------------------------------------
# Kernel 1: 3x3 conv (pad=1) + bias as one im2col matmul, per-image centered
#           BatchNorm partial statistics, bf16 intermediate output.
# ----------------------------------------------------------------------------
def _conv3x3_bias_stats_kernel(x_ref, w_ref, b_ref, y_ref, st_ref,
                               pad_ref, col_ref):
    # x_ref  : (1, H, W, Cin)   un-padded NHWC image tile (fp32)
    # w_ref  : (9*Cin, Cmid)    conv taps, row = (dy*3+dx)*Cin + ci (bf16)
    # b_ref  : (1, Cmid)        conv bias (fp32)
    # y_ref  : (1, H*W, Cmid)   raw conv+bias output, pre-BN (bf16)
    # st_ref : (1, 2, Cmid)     [sum, centered sum-of-squares] (fp32)
    # pad_ref: (H+2, W+2, Cin)  VMEM scratch: zero halo + image interior
    # col_ref: (H*W, 9*Cin)     VMEM scratch: im2col patch matrix
    hp, wp, cin = pad_ref.shape
    h, w = hp - 2, wp - 2
    hw = h * w

    # Zero only the 1-pixel halo; the interior is fully overwritten each step.
    # (A zero-once-per-grid guard is unsafe under megacore batch sharding.)
    pad_ref[0:1, :, :] = jnp.zeros((1, wp, cin), jnp.float32)
    pad_ref[hp - 1:hp, :, :] = jnp.zeros((1, wp, cin), jnp.float32)
    pad_ref[:, 0:1, :] = jnp.zeros((hp, 1, cin), jnp.float32)
    pad_ref[:, wp - 1:wp, :] = jnp.zeros((hp, 1, cin), jnp.float32)
    pad_ref[1:h + 1, 1:w + 1, :] = x_ref[0]

    # im2col: column block (dy*3+dx) holds the (dy,dx)-shifted image.
    for dy in range(3):
        for dx in range(3):
            t = dy * 3 + dx
            col_ref[:, t * cin:(t + 1) * cin] = (
                pad_ref[dy:dy + h, dx:dx + w, :].reshape(hw, cin))

    # Single MXU matmul, K = 9*Cin, bf16 operands, fp32 accumulation.
    acc = jnp.dot(col_ref[...].astype(jnp.bfloat16), w_ref[...],
                  preferred_element_type=jnp.float32)
    acc = acc + b_ref[...]

    # Per-image centered BN partials from the fp32 accumulator (pre-downcast).
    s = jnp.sum(acc, axis=0, keepdims=True)            # (1, Cmid)
    mean_i = s * (1.0 / hw)
    d = acc - mean_i
    css = jnp.sum(d * d, axis=0, keepdims=True)        # (1, Cmid)
    st_ref[0] = jnp.concatenate([s, css], axis=0)      # one (2, Cmid) store

    y_ref[0] = acc.astype(y_ref.dtype)                 # bf16 HBM round trip


# ----------------------------------------------------------------------------
# Kernel 2: fused BN affine + ReLU, then ConvTranspose2d(4,2,1) as 4 exact
#           per-phase 2x2 convs (one K=4*Cmid matmul each), then ReLU.
# ----------------------------------------------------------------------------
def _bn_relu_deconv_relu_kernel(y_ref, sc_ref, sh_ref, w_ref, b_ref, o_ref,
                                pad_ref, col_ref):
    # y_ref  : (1, H*W, Cmid)   raw conv+bias activation (bf16)
    # sc_ref : (1, Cmid)        BN scale = gamma * rsqrt(var + eps) (fp32)
    # sh_ref : (1, Cmid)        BN shift = beta - mean * scale (fp32)
    # w_ref  : (4, 4*Cmid, Cout) per-phase deconv taps, phase = py*2+px (bf16)
    # b_ref  : (1, Cout)        deconv bias (fp32)
    # o_ref  : (1, H*W, 4*Cout) phase-packed output, col = (py*2+px)*Cout + c
    # pad_ref: (H+2, W+2, Cmid) VMEM scratch: zero halo + BN'd activation
    # col_ref: (H*W, 4*Cmid)    VMEM scratch: per-phase patch matrix
    hp, wp, cmid = pad_ref.shape
    h, w = hp - 2, wp - 2
    hw = h * w

    # Fused BatchNorm affine + ReLU in fp32 while the tile is VMEM-resident.
    act = jnp.maximum(
        y_ref[0].astype(jnp.float32) * sc_ref[...] + sh_ref[...], 0.0)

    pad_ref[0:1, :, :] = jnp.zeros((1, wp, cmid), jnp.float32)
    pad_ref[hp - 1:hp, :, :] = jnp.zeros((1, wp, cmid), jnp.float32)
    pad_ref[:, 0:1, :] = jnp.zeros((hp, 1, cmid), jnp.float32)
    pad_ref[:, wp - 1:wp, :] = jnp.zeros((hp, 1, cmid), jnp.float32)
    pad_ref[1:h + 1, 1:w + 1, :] = act.reshape(h, w, cmid)

    # ConvTranspose2d(k=4, s=2, p=1) == 4 output-parity 2x2 convs over the
    # 1-padded activation; each phase is exactly the 16/4 nonzero taps.
    outs = []
    for py in range(2):
        for px in range(2):
            for dy in range(2):
                for dx in range(2):
                    r = dy * 2 + dx
                    col_ref[:, r * cmid:(r + 1) * cmid] = (
                        pad_ref[py + dy:py + dy + h,
                                px + dx:px + dx + w, :].reshape(hw, cmid))
            ph = jnp.dot(col_ref[...].astype(jnp.bfloat16),
                         w_ref[py * 2 + px],
                         preferred_element_type=jnp.float32)
            outs.append(jnp.maximum(ph + b_ref[...], 0.0))
    # Single store of all 4 phases for this image.
    o_ref[0] = jnp.concatenate(outs, axis=1).astype(o_ref.dtype)


# ----------------------------------------------------------------------------
# Wrapper: weight repacking, BN stats combine, layout conversion.
# ----------------------------------------------------------------------------
def _phase_deconv_weights(w2):
    """(Cmid, Cout, 4, 4) ConvTranspose2d weight -> (4, 4*Cmid, Cout).

    Output phase (py, px) at pixel (y, x):
      sum_{dy,dx in {0,1}} act_pad[y+py+dy, x+px+dx] * w2[:, :, 3-py-2dy, 3-px-2dx]
    with act_pad the 1-padded activation.  Row block r = dy*2+dx of phase
    p = py*2+px holds tap (3-py-2dy, 3-px-2dx); only the 16 nonzero tap/phase
    products are kept (no structural-zero columns).
    """
    phases = []
    for py in range(2):
        for px in range(2):
            blocks = []
            for dy in range(2):
                for dx in range(2):
                    ky, kx = 3 - py - 2 * dy, 3 - px - 2 * dx
                    blocks.append(w2[:, :, ky, kx])           # (Cmid, Cout)
            phases.append(jnp.concatenate(blocks, axis=0))    # (4*Cmid, Cout)
    return jnp.stack(phases, axis=0).astype(jnp.bfloat16)


def decoder_block_forward(x_nchw, params):
    w1, b1, gamma, beta, w2, b2 = (params[k] for k in
                                   ("w1", "b1", "gamma", "beta", "w2", "b2"))
    n, cin, h, w = x_nchw.shape
    cmid = w1.shape[0]           # Conv2d weight: (Cmid, Cin, 3, 3)
    cout = w2.shape[1]           # ConvTranspose2d weight: (Cmid, Cout, 4, 4)
    hw = h * w

    compiler_params = pltpu.CompilerParams(
        dimension_semantics=("parallel",),          # batch axis -> megacore
        vmem_limit_bytes=32 * 1024 * 1024)

    # --- Kernel 1: conv3x3 + bias (im2col matmul), per-image BN partials ---
    x = jnp.transpose(x_nchw, (0, 2, 3, 1)).astype(jnp.float32)   # NCHW->NHWC
    w1_taps = (jnp.transpose(w1, (2, 3, 1, 0))
               .reshape(9 * cin, cmid).astype(jnp.bfloat16))

    y_raw, stats = pl.pallas_call(
        _conv3x3_bias_stats_kernel,
        grid=(n,),
        in_specs=[
            pl.BlockSpec((1, h, w, cin), lambda i: (i, 0, 0, 0)),
            pl.BlockSpec((9 * cin, cmid), lambda i: (0, 0)),
            pl.BlockSpec((1, cmid), lambda i: (0, 0)),
        ],
        out_specs=(
            pl.BlockSpec((1, hw, cmid), lambda i: (i, 0, 0)),
            pl.BlockSpec((1, 2, cmid), lambda i: (i, 0, 0)),
        ),
        out_shape=(
            jax.ShapeDtypeStruct((n, hw, cmid), jnp.bfloat16),
            jax.ShapeDtypeStruct((n, 2, cmid), jnp.float32),
        ),
        scratch_shapes=[
            pltpu.VMEM((h + 2, w + 2, cin), jnp.float32),
            pltpu.VMEM((hw, 9 * cin), jnp.float32),
        ],
        compiler_params=compiler_params,
    )(x, w1_taps, b1.reshape(1, cmid).astype(jnp.float32))

    # --- Global BatchNorm statistics (training mode, biased variance) ------
    # Chan combine of per-image centered partials (no E[x^2]-E[x]^2).
    cnt_img = jnp.float32(hw)
    cnt = jnp.float32(n * hw)
    s_img = stats[:, 0, :]                                   # (N, Cmid)
    css_img = stats[:, 1, :]                                 # (N, Cmid)
    mean = jnp.sum(s_img, axis=0) / cnt
    mean_img = s_img / cnt_img
    var = (jnp.sum(css_img, axis=0)
           + cnt_img * jnp.sum((mean_img - mean[None, :]) ** 2, axis=0)) / cnt
    var = jnp.maximum(var, 0.0)
    scale = gamma * jax.lax.rsqrt(var + _BN_EPS)
    shift = beta - mean * scale

    # --- Kernel 2: BN apply + ReLU + per-phase deconv + ReLU ---------------
    w2_phases = _phase_deconv_weights(w2)                    # (4, 4*Cmid, Cout)

    z_flat = pl.pallas_call(
        _bn_relu_deconv_relu_kernel,
        grid=(n,),
        in_specs=[
            pl.BlockSpec((1, hw, cmid), lambda i: (i, 0, 0)),
            pl.BlockSpec((1, cmid), lambda i: (0, 0)),
            pl.BlockSpec((1, cmid), lambda i: (0, 0)),
            pl.BlockSpec((4, 4 * cmid, cout), lambda i: (0, 0, 0)),
            pl.BlockSpec((1, cout), lambda i: (0, 0)),
        ],
        out_specs=pl.BlockSpec((1, hw, 4 * cout), lambda i: (i, 0, 0)),
        out_shape=jax.ShapeDtypeStruct((n, hw, 4 * cout), jnp.float32),
        scratch_shapes=[
            pltpu.VMEM((h + 2, w + 2, cmid), jnp.float32),
            pltpu.VMEM((hw, 4 * cmid), jnp.float32),
        ],
        compiler_params=compiler_params,
    )(y_raw, scale.reshape(1, cmid), shift.reshape(1, cmid),
      w2_phases, b2.reshape(1, cout).astype(jnp.float32))

    # Phase interleave folded into the NHWC->NCHW layout change:
    # (n, h, w, py, px, cout) -> (n, cout, 2h, 2w).
    z = z_flat.reshape(n, h, w, 2, 2, cout)
    z = jnp.transpose(z, (0, 5, 1, 3, 2, 4))
    return z.reshape(n, cout, 2 * h, 2 * w)


# ----------------------------------------------------------------------------
# Pure-JAX reference (XLA convs) for a correctness check
# ----------------------------------------------------------------------------
def _reference(x_nchw, params):
    w1, b1, gamma, beta, w2, b2 = (params[k] for k in
                                   ("w1", "b1", "gamma", "beta", "w2", "b2"))
    y = jax.lax.conv_general_dilated(
        x_nchw, w1, window_strides=(1, 1), padding=((1, 1), (1, 1)),
        dimension_numbers=("NCHW", "OIHW", "NCHW"))
    y = y + b1[None, :, None, None]
    mean = jnp.mean(y, axis=(0, 2, 3), keepdims=True)
    var = jnp.mean((y - mean) ** 2, axis=(0, 2, 3), keepdims=True)
    y = (y - mean) * jax.lax.rsqrt(var + _BN_EPS)
    y = y * gamma[None, :, None, None] + beta[None, :, None, None]
    y = jnp.maximum(y, 0.0)

    w2_conv = jnp.transpose(w2[:, :, ::-1, ::-1], (1, 0, 2, 3))  # (Cout,Cmid,4,4)
    z = jax.lax.conv_general_dilated(
        y, w2_conv, window_strides=(1, 1), padding=((2, 2), (2, 2)),
        lhs_dilation=(2, 2), dimension_numbers=("NCHW", "OIHW", "NCHW"))
    z = z + b2[None, :, None, None]
    return jnp.maximum(z, 0.0)


if __name__ == "__main__":
    # DecoderBlock(in=4, mid=8, out=4, is_deconv=True), small deterministic cfg.
    N, CIN, CMID, COUT, H, W = 2, 4, 8, 4, 16, 16

    key = jax.random.PRNGKey(0)
    k1, k2, k3, k4, k5, k6, kx = jax.random.split(key, 7)
    params = {
        "w1":    0.1 * jax.random.normal(k1, (CMID, CIN, 3, 3), jnp.float32),
        "b1":    0.1 * jax.random.normal(k2, (CMID,), jnp.float32),
        "gamma": 1.0 + 0.1 * jax.random.normal(k3, (CMID,), jnp.float32),
        "beta":  0.1 * jax.random.normal(k4, (CMID,), jnp.float32),
        "w2":    0.1 * jax.random.normal(k5, (CMID, COUT, 4, 4), jnp.float32),
        "b2":    0.1 * jax.random.normal(k6, (COUT,), jnp.float32),
    }
    x = jax.random.normal(kx, (N, CIN, H, W), jnp.float32)

    fwd = jax.jit(decoder_block_forward)
    out = jax.block_until_ready(fwd(x, params))
    assert out.shape == (N, COUT, 2 * H, 2 * W), out.shape

    ref = jax.block_until_ready(jax.jit(_reference)(x, params))
    # bf16 MXU operands + bf16 intermediate storage (fp32 accumulate): compare
    # against the fp32 XLA reference at a bf16-appropriate tolerance.
    err = float(jnp.max(jnp.abs(out - ref)))
    assert jnp.allclose(out, ref, rtol=2e-2, atol=2e-2), err

    print("KERNEL_OK")
</pallas_src>

<mosaic_0001>
module attributes {stable_mosaic.version = 11 : i64} {
  func.func @_conv3x3_bias_stats_kernel(%arg0: i32, %arg1: memref<1x16x16x4xf32, #tpu.memory_space<vmem>>, %arg2: memref<36x8xbf16, #tpu.memory_space<vmem>>, %arg3: memref<1x8xf32, #tpu.memory_space<vmem>>, %arg4: memref<1x256x8xbf16, #tpu.memory_space<vmem>>, %arg5: memref<1x2x8xf32, #tpu.memory_space<vmem>>, %arg6: memref<18x18x4xf32, #tpu.memory_space<vmem>>, %arg7: memref<256x36xf32, #tpu.memory_space<vmem>>) attributes {dimension_semantics = [#tpu.dimension_semantics<parallel>], iteration_bounds = array<i64: 2>, scalar_prefetch = 0 : i64, scratch_operands = 2 : i64, tpu.core_type = #tpu.core_type<tc>, window_params = [{transform_indices = @transform_0, window_bounds = array<i64: 1, 16, 16, 4>}, {pipeline_mode = #tpu.pipeline_mode<synchronous>, transform_indices = @transform_1, window_bounds = array<i64: 36, 8>}, {pipeline_mode = #tpu.pipeline_mode<synchronous>, transform_indices = @transform_2, window_bounds = array<i64: 1, 8>}, {transform_indices = @transform_3, window_bounds = array<i64: 1, 256, 8>}, {transform_indices = @transform_4, window_bounds = array<i64: 1, 2, 8>}]} {
    %cst = arith.constant 0.000000e+00 : f32
    %0 = vector.broadcast %cst : f32 to vector<1x18x4xf32>
    %c0 = arith.constant 0 : index
    %c0_0 = arith.constant 0 : index
    %c0_1 = arith.constant 0 : index
    %1 = vector.load %arg6[%c0, %c0_0, %c0_1] : memref<18x18x4xf32, #tpu.memory_space<vmem>>, vector<1x18x4xf32>
    tpu.vector_store %arg6[%c0, %c0_0, %c0_1], %0 {strides = array<i32>} : memref<18x18x4xf32, #tpu.memory_space<vmem>>, vector<1x18x4xf32>,
    %cst_2 = arith.constant 0.000000e+00 : f32
    %2 = vector.broadcast %cst_2 : f32 to vector<1x18x4xf32>
    %c17 = arith.constant 17 : index
    %c0_3 = arith.constant 0 : index
    %c0_4 = arith.constant 0 : index
    %3 = vector.load %arg6[%c17, %c0_3, %c0_4] : memref<18x18x4xf32, #tpu.memory_space<vmem>>, vector<1x18x4xf32>
    tpu.vector_store %arg6[%c17, %c0_3, %c0_4], %2 {strides = array<i32>} : memref<18x18x4xf32, #tpu.memory_space<vmem>>, vector<1x18x4xf32>,
    %cst_5 = arith.constant 0.000000e+00 : f32
    %4 = vector.broadcast %cst_5 : f32 to vector<18x1x4xf32>
    %c0_6 = arith.constant 0 : index
    %c0_7 = arith.constant 0 : index
    %c0_8 = arith.constant 0 : index
    %5 = vector.load %arg6[%c0_6, %c0_7, %c0_8] : memref<18x18x4xf32, #tpu.memory_space<vmem>>, vector<18x1x4xf32>
    tpu.vector_store %arg6[%c0_6, %c0_7, %c0_8], %4 {strides = array<i32>} : memref<18x18x4xf32, #tpu.memory_space<vmem>>, vector<18x1x4xf32>,
    %cst_9 = arith.constant 0.000000e+00 : f32
    %6 = vector.broadcast %cst_9 : f32 to vector<18x1x4xf32>
    %c0_10 = arith.constant 0 : index
    %c17_11 = arith.constant 17 : index
    %c0_12 = arith.constant 0 : index
    %7 = vector.load %arg6[%c0_10, %c17_11, %c0_12] : memref<18x18x4xf32, #tpu.memory_space<vmem>>, vector<18x1x4xf32>
    tpu.vector_store %arg6[%c0_10, %c17_11, %c0_12], %6 {strides = array<i32>} : memref<18x18x4xf32, #tpu.memory_space<vmem>>, vector<18x1x4xf32>,
    %c0_13 = arith.constant 0 : index
    %c0_14 = arith.constant 0 : index
    %c0_15 = arith.constant 0 : index
    %c0_16 = arith.constant 0 : index
    %8 = vector.load %arg1[%c0_13, %c0_14, %c0_15, %c0_16] : memref<1x16x16x4xf32, #tpu.memory_space<vmem>>, vector<1x16x16x4xf32>
    %9 = vector.shape_cast %8 : vector<1x16x16x4xf32> to vector<16x16x4xf32>
    %c1 = arith.constant 1 : index
    %c1_17 = arith.constant 1 : index
    %c0_18 = arith.constant 0 : index
    %10 = vector.load %arg6[%c1, %c1_17, %c0_18] : memref<18x18x4xf32, #tpu.memory_space<vmem>>, vector<16x16x4xf32>
    tpu.vector_store %arg6[%c1, %c1_17, %c0_18], %9 {strides = array<i32>} : memref<18x18x4xf32, #tpu.memory_space<vmem>>, vector<16x16x4xf32>,
    %c0_19 = arith.constant 0 : index
    %c0_20 = arith.constant 0 : index
    %c0_21 = arith.constant 0 : index
    %11 = vector.load %arg6[%c0_19, %c0_20, %c0_21] : memref<18x18x4xf32, #tpu.memory_space<vmem>>, vector<16x16x4xf32>
    %12 = vector.shape_cast %11 : vector<16x16x4xf32> to vector<256x4xf32>
    %c0_22 = arith.constant 0 : index
    %c0_23 = arith.constant 0 : index
    %13 = vector.load %arg7[%c0_22, %c0_23] : memref<256x36xf32, #tpu.memory_space<vmem>>, vector<256x4xf32>
    tpu.vector_store %arg7[%c0_22, %c0_23], %12 {strides = array<i32>} : memref<256x36xf32, #tpu.memory_space<vmem>>, vector<256x4xf32>,
    %c0_24 = arith.constant 0 : index
    %c1_25 = arith.constant 1 : index
    %c0_26 = arith.constant 0 : index
    %14 = vector.load %arg6[%c0_24, %c1_25, %c0_26] : memref<18x18x4xf32, #tpu.memory_space<vmem>>, vector<16x16x4xf32>
    %15 = vector.shape_cast %14 : vector<16x16x4xf32> to vector<256x4xf32>
    %c0_27 = arith.constant 0 : index
    %c4 = arith.constant 4 : index
    %16 = vector.load %arg7[%c0_27, %c4] : memref<256x36xf32, #tpu.memory_space<vmem>>, vector<256x4xf32>
    tpu.vector_store %arg7[%c0_27, %c4], %15 {strides = array<i32>} : memref<256x36xf32, #tpu.memory_space<vmem>>, vector<256x4xf32>,
    %c0_28 = arith.constant 0 : index
    %c2 = arith.constant 2 : index
    %c0_29 = arith.constant 0 : index
    %17 = vector.load %arg6[%c0_28, %c2, %c0_29] : memref<18x18x4xf32, #tpu.memory_space<vmem>>, vector<16x16x4xf32>
    %18 = vector.shape_cast %17 : vector<16x16x4xf32> to vector<256x4xf32>
    %c0_30 = arith.constant 0 : index
    %c8 = arith.constant 8 : index
    %19 = vector.load %arg7[%c0_30, %c8] : memref<256x36xf32, #tpu.memory_space<vmem>>, vector<256x4xf32>
    tpu.vector_store %arg7[%c0_30, %c8], %18 {strides = array<i32>} : memref<256x36xf32, #tpu.memory_space<vmem>>, vector<256x4xf32>,
    %c1_31 = arith.constant 1 : index
    %c0_32 = arith.constant 0 : index
    %c0_33 = arith.constant 0 : index
    %20 = vector.load %arg6[%c1_31, %c0_32, %c0_33] : memref<18x18x4xf32, #tpu.memory_space<vmem>>, vector<16x16x4xf32>
    %21 = vector.shape_cast %20 : vector<16x16x4xf32> to vector<256x4xf32>
    %c0_34 = arith.constant 0 : index
    %c12 = arith.constant 12 : index
    %22 = vector.load %arg7[%c0_34, %c12] : memref<256x36xf32, #tpu.memory_space<vmem>>, vector<256x4xf32>
    tpu.vector_store %arg7[%c0_34, %c12], %21 {strides = array<i32>} : memref<256x36xf32, #tpu.memory_space<vmem>>, vector<256x4xf32>,
    %c1_35 = arith.constant 1 : index
    %c1_36 = arith.constant 1 : index
    %c0_37 = arith.constant 0 : index
    %23 = vector.load %arg6[%c1_35, %c1_36, %c0_37] : memref<18x18x4xf32, #tpu.memory_space<vmem>>, vector<16x16x4xf32>
    %24 = vector.shape_cast %23 : vector<16x16x4xf32> to vector<256x4xf32>
    %c0_38 = arith.constant 0 : index
    %c16 = arith.constant 16 : index
    %25 = vector.load %arg7[%c0_38, %c16] : memref<256x36xf32, #tpu.memory_space<vmem>>, vector<256x4xf32>
    tpu.vector_store %arg7[%c0_38, %c16], %24 {strides = array<i32>} : memref<256x36xf32, #tpu.memory_space<vmem>>, vector<256x4xf32>,
    %c1_39 = arith.constant 1 : index
    %c2_40 = arith.constant 2 : index
    %c0_41 = arith.constant 0 : index
    %26 = vector.load %arg6[%c1_39, %c2_40, %c0_41] : memref<18x18x4xf32, #tpu.memory_space<vmem>>, vector<16x16x4xf32>
    %27 = vector.shape_cast %26 : vector<16x16x4xf32> to vector<256x4xf32>
    %c0_42 = arith.constant 0 : index
    %c20 = arith.constant 20 : index
    %28 = vector.load %arg7[%c0_42, %c20] : memref<256x36xf32, #tpu.memory_space<vmem>>, vector<256x4xf32>
    tpu.vector_store %arg7[%c0_42, %c20], %27 {strides = array<i32>} : memref<256x36xf32, #tpu.memory_space<vmem>>, vector<256x4xf32>,
    %c2_43 = arith.constant 2 : index
    %c0_44 = arith.constant 0 : index
    %c0_45 = arith.constant 0 : index
    %29 = vector.load %arg6[%c2_43, %c0_44, %c0_45] : memref<18x18x4xf32, #tpu.memory_space<vmem>>, vector<16x16x4xf32>
    %30 = vector.shape_cast %29 : vector<16x16x4xf32> to vector<256x4xf32>
    %c0_46 = arith.constant 0 : index
    %c24 = arith.constant 24 : index
    %31 = vector.load %arg7[%c0_46, %c24] : memref<256x36xf32, #tpu.memory_space<vmem>>, vector<256x4xf32>
    tpu.vector_store %arg7[%c0_46, %c24], %30 {strides = array<i32>} : memref<256x36xf32, #tpu.memory_space<vmem>>, vector<256x4xf32>,
    %c2_47 = arith.constant 2 : index
    %c1_48 = arith.constant 1 : index
    %c0_49 = arith.constant 0 : index
    %32 = vector.load %arg6[%c2_47, %c1_48, %c0_49] : memref<18x18x4xf32, #tpu.memory_space<vmem>>, vector<16x16x4xf32>
    %33 = vector.shape_cast %32 : vector<16x16x4xf32> to vector<256x4xf32>
    %c0_50 = arith.constant 0 : index
    %c28 = arith.constant 28 : index
    %34 = vector.load %arg7[%c0_50, %c28] : memref<256x36xf32, #tpu.memory_space<vmem>>, vector<256x4xf32>
    tpu.vector_store %arg7[%c0_50, %c28], %33 {strides = array<i32>} : memref<256x36xf32, #tpu.memory_space<vmem>>, vector<256x4xf32>,
    %c2_51 = arith.constant 2 : index
    %c2_52 = arith.constant 2 : index
    %c0_53 = arith.constant 0 : index
    %35 = vector.load %arg6[%c2_51, %c2_52, %c0_53] : memref<18x18x4xf32, #tpu.memory_space<vmem>>, vector<16x16x4xf32>
    %36 = vector.shape_cast %35 : vector<16x16x4xf32> to vector<256x4xf32>
    %c0_54 = arith.constant 0 : index
    %c32 = arith.constant 32 : index
    %37 = vector.load %arg7[%c0_54, %c32] : memref<256x36xf32, #tpu.memory_space<vmem>>, vector<256x4xf32>
    tpu.vector_store %arg7[%c0_54, %c32], %36 {strides = array<i32>} : memref<256x36xf32, #tpu.memory_space<vmem>>, vector<256x4xf32>,
    %c0_55 = arith.constant 0 : index
    %c0_56 = arith.constant 0 : index
    %38 = vector.load %arg7[%c0_55, %c0_56] : memref<256x36xf32, #tpu.memory_space<vmem>>, vector<256x36xf32>
    %39 = arith.truncf %38 : vector<256x36xf32> to vector<256x36xbf16>
    %c0_57 = arith.constant 0 : index
    %c0_58 = arith.constant 0 : index
    %40 = vector.load %arg2[%c0_57, %c0_58] : memref<36x8xbf16, #tpu.memory_space<vmem>>, vector<36x8xbf16>
    %cst_59 = arith.constant dense<0.000000e+00> : vector<256x8xf32>
    %41 = tpu.matmul %39, %40, %cst_59 {dimension_numbers = #tpu.dot_dimension_numbers<[1], [0], [0], [1], [0, 0, 1, 1], [], []>} : vector<256x36xbf16>, vector<36x8xbf16>, vector<256x8xf32> -> vector<256x8xf32>
    %c0_60 = arith.constant 0 : index
    %c0_61 = arith.constant 0 : index
    %42 = vector.load %arg3[%c0_60, %c0_61] : memref<1x8xf32, #tpu.memory_space<vmem>>, vector<1x8xf32>
    %43 = vector.broadcast %42 : vector<1x8xf32> to vector<256x8xf32>
    %44 = arith.addf %41, %43 : vector<256x8xf32>
    %cst_62 = arith.constant dense<0.000000e+00> : vector<8xf32>
    %45 = vector.multi_reduction <add>, %44, %cst_62 [0] : vector<256x8xf32> to vector<8xf32>
    %46 = vector.shape_cast %45 : vector<8xf32> to vector<1x8xf32>
    %cst_63 = arith.constant 3.906250e-03 : f32
    %47 = vector.broadcast %cst_63 : f32 to vector<1x8xf32>
    %48 = arith.mulf %46, %47 : vector<1x8xf32>
    %49 = vector.broadcast %48 : vector<1x8xf32> to vector<256x8xf32>
    %50 = arith.subf %44, %49 : vector<256x8xf32>
    %51 = arith.mulf %50, %50 : vector<256x8xf32>
    %cst_64 = arith.constant dense<0.000000e+00> : vector<8xf32>
    %52 = vector.multi_reduction <add>, %51, %cst_64 [0] : vector<256x8xf32> to vector<8xf32>
    %53 = vector.shape_cast %52 : vector<8xf32> to vector<1x8xf32>
    %54 = tpu.concatenate %46, %53 in 0 : vector<1x8xf32>, vector<1x8xf32> -> vector<2x8xf32>
    %c0_65 = arith.constant 0 : index
    %c0_66 = arith.constant 0 : index
    %c0_67 = arith.constant 0 : index
    %55 = vector.load %arg5[%c0_65, %c0_66, %c0_67] : memref<1x2x8xf32, #tpu.memory_space<vmem>>, vector<1x2x8xf32>
    %56 = vector.shape_cast %55 : vector<1x2x8xf32> to vector<2x8xf32>
    %57 = vector.shape_cast %54 : vector<2x8xf32> to vector<1x2x8xf32>
    tpu.vector_store %arg5[%c0_65, %c0_66, %c0_67], %57 {strides = array<i32>} : memref<1x2x8xf32, #tpu.memory_space<vmem>>, vector<1x2x8xf32>,
    %58 = arith.truncf %44 : vector<256x8xf32> to vector<256x8xbf16>
    %c0_68 = arith.constant 0 : index
    %c0_69 = arith.constant 0 : index
    %c0_70 = arith.constant 0 : index
    %59 = vector.load %arg4[%c0_68, %c0_69, %c0_70] : memref<1x256x8xbf16, #tpu.memory_space<vmem>>, vector<1x256x8xbf16>
    %60 = vector.shape_cast %59 : vector<1x256x8xbf16> to vector<256x8xbf16>
    %61 = vector.shape_cast %58 : vector<256x8xbf16> to vector<1x256x8xbf16>
    tpu.vector_store %arg4[%c0_68, %c0_69, %c0_70], %61 {strides = array<i32>} : memref<1x256x8xbf16, #tpu.memory_space<vmem>>, vector<1x256x8xbf16>,
    return
  }
  func.func @transform_0(%arg0: i32) -> (i32, i32, i32, i32) {
    %c0_i32 = arith.constant 0 : i32
    %c0_i32_0 = arith.constant 0 : i32
    %c0_i32_1 = arith.constant 0 : i32
    %c0_i32_2 = arith.constant 0 : i32
    return %arg0, %c0_i32, %c0_i32_0, %c0_i32_1 : i32, i32, i32, i32
  }
  func.func @transform_1(%arg0: i32) -> (i32, i32) {
    %c0_i32 = arith.constant 0 : i32
    %c0_i32_0 = arith.constant 0 : i32
    %c0_i32_1 = arith.constant 0 : i32
    return %c0_i32, %c0_i32_0 : i32, i32
  }
  func.func @transform_2(%arg0: i32) -> (i32, i32) {
    %c0_i32 = arith.constant 0 : i32
    %c0_i32_0 = arith.constant 0 : i32
    %c0_i32_1 = arith.constant 0 : i32
    return %c0_i32, %c0_i32_0 : i32, i32
  }
  func.func @transform_3(%arg0: i32) -> (i32, i32, i32) {
    %c0_i32 = arith.constant 0 : i32
    %c0_i32_0 = arith.constant 0 : i32
    %c0_i32_1 = arith.constant 0 : i32
    return %arg0, %c0_i32, %c0_i32_0 : i32, i32, i32
  }
  func.func @transform_4(%arg0: i32) -> (i32, i32, i32) {
    %c0_i32 = arith.constant 0 : i32
    %c0_i32_0 = arith.constant 0 : i32
    %c0_i32_1 = arith.constant 0 : i32
    return %arg0, %c0_i32, %c0_i32_0 : i32, i32, i32
  }
}

module attributes {stable_mosaic.version = 11 : i64} {
  func.func @_bn_relu_deconv_relu_kernel(%arg0: i32, %arg1: memref<1x256x8xbf16, #tpu.memory_space<vmem>>, %arg2: memref<1x8xf32, #tpu.memory_space<vmem>>, %arg3: memref<1x8xf32, #tpu.memory_space<vmem>>, %arg4: memref<4x32x4xbf16, #tpu.memory_space<vmem>>, %arg5: memref<1x4xf32, #tpu.memory_space<vmem>>, %arg6: memref<1x256x16xf32, #tpu.memory_space<vmem>>, %arg7: memref<18x18x8xf32, #tpu.memory_space<vmem>>, %arg8: memref<256x32xf32, #tpu.memory_space<vmem>>) attributes {dimension_semantics = [#tpu.dimension_semantics<parallel>], iteration_bounds = array<i64: 2>, scalar_prefetch = 0 : i64, scratch_operands = 2 : i64, tpu.core_type = #tpu.core_type<tc>, window_params = [{transform_indices = @transform_0, window_bounds = array<i64: 1, 256, 8>}, {pipeline_mode = #tpu.pipeline_mode<synchronous>, transform_indices = @transform_1, window_bounds = array<i64: 1, 8>}, {pipeline_mode = #tpu.pipeline_mode<synchronous>, transform_indices = @transform_2, window_bounds = array<i64: 1, 8>}, {pipeline_mode = #tpu.pipeline_mode<synchronous>, transform_indices = @transform_3, window_bounds = array<i64: 4, 32, 4>}, {pipeline_mode = #tpu.pipeline_mode<synchronous>, transform_indices = @transform_4, window_bounds = array<i64: 1, 4>}, {transform_indices = @transform_5, window_bounds = array<i64: 1, 256, 16>}]} {
    %c0 = arith.constant 0 : index
    %c0_0 = arith.constant 0 : index
    %c0_1 = arith.constant 0 : index
    %0 = vector.load %arg1[%c0, %c0_0, %c0_1] : memref<1x256x8xbf16, #tpu.memory_space<vmem>>, vector<1x256x8xbf16>
    %1 = vector.shape_cast %0 : vector<1x256x8xbf16> to vector<256x8xbf16>
    %2 = arith.extf %1 : vector<256x8xbf16> to vector<256x8xf32>
    %c0_2 = arith.constant 0 : index
    %c0_3 = arith.constant 0 : index
    %3 = vector.load %arg2[%c0_2, %c0_3] : memref<1x8xf32, #tpu.memory_space<vmem>>, vector<1x8xf32>
    %4 = vector.broadcast %3 : vector<1x8xf32> to vector<256x8xf32>
    %5 = arith.mulf %2, %4 : vector<256x8xf32>
    %c0_4 = arith.constant 0 : index
    %c0_5 = arith.constant 0 : index
    %6 = vector.load %arg3[%c0_4, %c0_5] : memref<1x8xf32, #tpu.memory_space<vmem>>, vector<1x8xf32>
    %7 = vector.broadcast %6 : vector<1x8xf32> to vector<256x8xf32>
    %8 = arith.addf %5, %7 : vector<256x8xf32>
    %cst = arith.constant 0.000000e+00 : f32
    %9 = vector.broadcast %cst : f32 to vector<256x8xf32>
    %10 = arith.maximumf %8, %9 : vector<256x8xf32>
    %cst_6 = arith.constant 0.000000e+00 : f32
    %11 = vector.broadcast %cst_6 : f32 to vector<1x18x8xf32>
    %c0_7 = arith.constant 0 : index
    %c0_8 = arith.constant 0 : index
    %c0_9 = arith.constant 0 : index
    %12 = vector.load %arg7[%c0_7, %c0_8, %c0_9] : memref<18x18x8xf32, #tpu.memory_space<vmem>>, vector<1x18x8xf32>
    tpu.vector_store %arg7[%c0_7, %c0_8, %c0_9], %11 {strides = array<i32>} : memref<18x18x8xf32, #tpu.memory_space<vmem>>, vector<1x18x8xf32>,
    %cst_10 = arith.constant 0.000000e+00 : f32
    %13 = vector.broadcast %cst_10 : f32 to vector<1x18x8xf32>
    %c17 = arith.constant 17 : index
    %c0_11 = arith.constant 0 : index
    %c0_12 = arith.constant 0 : index
    %14 = vector.load %arg7[%c17, %c0_11, %c0_12] : memref<18x18x8xf32, #tpu.memory_space<vmem>>, vector<1x18x8xf32>
    tpu.vector_store %arg7[%c17, %c0_11, %c0_12], %13 {strides = array<i32>} : memref<18x18x8xf32, #tpu.memory_space<vmem>>, vector<1x18x8xf32>,
    %cst_13 = arith.constant 0.000000e+00 : f32
    %15 = vector.broadcast %cst_13 : f32 to vector<18x1x8xf32>
    %c0_14 = arith.constant 0 : index
    %c0_15 = arith.constant 0 : index
    %c0_16 = arith.constant 0 : index
    %16 = vector.load %arg7[%c0_14, %c0_15, %c0_16] : memref<18x18x8xf32, #tpu.memory_space<vmem>>, vector<18x1x8xf32>
    tpu.vector_store %arg7[%c0_14, %c0_15, %c0_16], %15 {strides = array<i32>} : memref<18x18x8xf32, #tpu.memory_space<vmem>>, vector<18x1x8xf32>,
    %cst_17 = arith.constant 0.000000e+00 : f32
    %17 = vector.broadcast %cst_17 : f32 to vector<18x1x8xf32>
    %c0_18 = arith.constant 0 : index
    %c17_19 = arith.constant 17 : index
    %c0_20 = arith.constant 0 : index
    %18 = vector.load %arg7[%c0_18, %c17_19, %c0_20] : memref<18x18x8xf32, #tpu.memory_space<vmem>>, vector<18x1x8xf32>
    tpu.vector_store %arg7[%c0_18, %c17_19, %c0_20], %17 {strides = array<i32>} : memref<18x18x8xf32, #tpu.memory_space<vmem>>, vector<18x1x8xf32>,
    %19 = vector.shape_cast %10 : vector<256x8xf32> to vector<16x16x8xf32>
    %c1 = arith.constant 1 : index
    %c1_21 = arith.constant 1 : index
    %c0_22 = arith.constant 0 : index
    %20 = vector.load %arg7[%c1, %c1_21, %c0_22] : memref<18x18x8xf32, #tpu.memory_space<vmem>>, vector<16x16x8xf32>
    tpu.vector_store %arg7[%c1, %c1_21, %c0_22], %19 {strides = array<i32>} : memref<18x18x8xf32, #tpu.memory_space<vmem>>, vector<16x16x8xf32>,
    %c0_23 = arith.constant 0 : index
    %c0_24 = arith.constant 0 : index
    %c0_25 = arith.constant 0 : index
    %21 = vector.load %arg7[%c0_23, %c0_24, %c0_25] : memref<18x18x8xf32, #tpu.memory_space<vmem>>, vector<16x16x8xf32>
    %22 = vector.shape_cast %21 : vector<16x16x8xf32> to vector<256x8xf32>
    %c0_26 = arith.constant 0 : index
    %c0_27 = arith.constant 0 : index
    %23 = vector.load %arg8[%c0_26, %c0_27] : memref<256x32xf32, #tpu.memory_space<vmem>>, vector<256x8xf32>
    tpu.vector_store %arg8[%c0_26, %c0_27], %22 {strides = array<i32>} : memref<256x32xf32, #tpu.memory_space<vmem>>, vector<256x8xf32>,
    %c0_28 = arith.constant 0 : index
    %c1_29 = arith.constant 1 : index
    %c0_30 = arith.constant 0 : index
    %24 = vector.load %arg7[%c0_28, %c1_29, %c0_30] : memref<18x18x8xf32, #tpu.memory_space<vmem>>, vector<16x16x8xf32>
    %25 = vector.shape_cast %24 : vector<16x16x8xf32> to vector<256x8xf32>
    %c0_31 = arith.constant 0 : index
    %c8 = arith.constant 8 : index
    %26 = vector.load %arg8[%c0_31, %c8] : memref<256x32xf32, #tpu.memory_space<vmem>>, vector<256x8xf32>
    tpu.vector_store %arg8[%c0_31, %c8], %25 {strides = array<i32>} : memref<256x32xf32, #tpu.memory_space<vmem>>, vector<256x8xf32>,
    %c1_32 = arith.constant 1 : index
    %c0_33 = arith.constant 0 : index
    %c0_34 = arith.constant 0 : index
    %27 = vector.load %arg7[%c1_32, %c0_33, %c0_34] : memref<18x18x8xf32, #tpu.memory_space<vmem>>, vector<16x16x8xf32>
    %28 = vector.shape_cast %27 : vector<16x16x8xf32> to vector<256x8xf32>
    %c0_35 = arith.constant 0 : index
    %c16 = arith.constant 16 : index
    %29 = vector.load %arg8[%c0_35, %c16] : memref<256x32xf32, #tpu.memory_space<vmem>>, vector<256x8xf32>
    tpu.vector_store %arg8[%c0_35, %c16], %28 {strides = array<i32>} : memref<256x32xf32, #tpu.memory_space<vmem>>, vector<256x8xf32>,
    %c1_36 = arith.constant 1 : index
    %c1_37 = arith.constant 1 : index
    %c0_38 = arith.constant 0 : index
    %30 = vector.load %arg7[%c1_36, %c1_37, %c0_38] : memref<18x18x8xf32, #tpu.memory_space<vmem>>, vector<16x16x8xf32>
    %31 = vector.shape_cast %30 : vector<16x16x8xf32> to vector<256x8xf32>
    %c0_39 = arith.constant 0 : index
    %c24 = arith.constant 24 : index
    %32 = vector.load %arg8[%c0_39, %c24] : memref<256x32xf32, #tpu.memory_space<vmem>>, vector<256x8xf32>
    tpu.vector_store %arg8[%c0_39, %c24], %31 {strides = array<i32>} : memref<256x32xf32, #tpu.memory_space<vmem>>, vector<256x8xf32>,
    %c0_40 = arith.constant 0 : index
    %c0_41 = arith.constant 0 : index
    %33 = vector.load %arg8[%c0_40, %c0_41] : memref<256x32xf32, #tpu.memory_space<vmem>>, vector<256x32xf32>
    %34 = arith.truncf %33 : vector<256x32xf32> to vector<256x32xbf16>
    %c0_42 = arith.constant 0 : index
    %c0_43 = arith.constant 0 : index
    %c0_44 = arith.constant 0 : index
    %35 = vector.load %arg4[%c0_42, %c0_43, %c0_44] : memref<4x32x4xbf16, #tpu.memory_space<vmem>>, vector<1x32x4xbf16>
    %36 = vector.shape_cast %35 : vector<1x32x4xbf16> to vector<32x4xbf16>
    %cst_45 = arith.constant dense<0.000000e+00> : vector<256x4xf32>
    %37 = tpu.matmul %34, %36, %cst_45 {dimension_numbers = #tpu.dot_dimension_numbers<[1], [0], [0], [1], [0, 0, 1, 1], [], []>} : vector<256x32xbf16>, vector<32x4xbf16>, vector<256x4xf32> -> vector<256x4xf32>
    %c0_46 = arith.constant 0 : index
    %c0_47 = arith.constant 0 : index
    %38 = vector.load %arg5[%c0_46, %c0_47] : memref<1x4xf32, #tpu.memory_space<vmem>>, vector<1x4xf32>
    %39 = vector.broadcast %38 : vector<1x4xf32> to vector<256x4xf32>
    %40 = arith.addf %37, %39 : vector<256x4xf32>
    %cst_48 = arith.constant 0.000000e+00 : f32
    %41 = vector.broadcast %cst_48 : f32 to vector<256x4xf32>
    %42 = arith.maximumf %40, %41 : vector<256x4xf32>
    %c0_49 = arith.constant 0 : index
    %c1_50 = arith.constant 1 : index
    %c0_51 = arith.constant 0 : index
    %43 = vector.load %arg7[%c0_49, %c1_50, %c0_51] : memref<18x18x8xf32, #tpu.memory_space<vmem>>, vector<16x16x8xf32>
    %44 = vector.shape_cast %43 : vector<16x16x8xf32> to vector<256x8xf32>
    %c0_52 = arith.constant 0 : index
    %c0_53 = arith.constant 0 : index
    %45 = vector.load %arg8[%c0_52, %c0_53] : memref<256x32xf32, #tpu.memory_space<vmem>>, vector<256x8xf32>
    tpu.vector_store %arg8[%c0_52, %c0_53], %44 {strides = array<i32>} : memref<256x32xf32, #tpu.memory_space<vmem>>, vector<256x8xf32>,
    %c0_54 = arith.constant 0 : index
    %c2 = arith.constant 2 : index
    %c0_55 = arith.constant 0 : index
    %46 = vector.load %arg7[%c0_54, %c2, %c0_55] : memref<18x18x8xf32, #tpu.memory_space<vmem>>, vector<16x16x8xf32>
    %47 = vector.shape_cast %46 : vector<16x16x8xf32> to vector<256x8xf32>
    %c0_56 = arith.constant 0 : index
    %c8_57 = arith.constant 8 : index
    %48 = vector.load %arg8[%c0_56, %c8_57] : memref<256x32xf32, #tpu.memory_space<vmem>>, vector<256x8xf32>
    tpu.vector_store %arg8[%c0_56, %c8_57], %47 {strides = array<i32>} : memref<256x32xf32, #tpu.memory_space<vmem>>, vector<256x8xf32>,
    %c1_58 = arith.constant 1 : index
    %c1_59 = arith.constant 1 : index
    %c0_60 = arith.constant 0 : index
    %49 = vector.load %arg7[%c1_58, %c1_59, %c0_60] : memref<18x18x8xf32, #tpu.memory_space<vmem>>, vector<16x16x8xf32>
    %50 = vector.shape_cast %49 : vector<16x16x8xf32> to vector<256x8xf32>
    %c0_61 = arith.constant 0 : index
    %c16_62 = arith.constant 16 : index
    %51 = vector.load %arg8[%c0_61, %c16_62] : memref<256x32xf32, #tpu.memory_space<vmem>>, vector<256x8xf32>
    tpu.vector_store %arg8[%c0_61, %c16_62], %50 {strides = array<i32>} : memref<256x32xf32, #tpu.memory_space<vmem>>, vector<256x8xf32>,
    %c1_63 = arith.constant 1 : index
    %c2_64 = arith.constant 2 : index
    %c0_65 = arith.constant 0 : index
    %52 = vector.load %arg7[%c1_63, %c2_64, %c0_65] : memref<18x18x8xf32, #tpu.memory_space<vmem>>, vector<16x16x8xf32>
    %53 = vector.shape_cast %52 : vector<16x16x8xf32> to vector<256x8xf32>
    %c0_66 = arith.constant 0 : index
    %c24_67 = arith.constant 24 : index
    %54 = vector.load %arg8[%c0_66, %c24_67] : memref<256x32xf32, #tpu.memory_space<vmem>>, vector<256x8xf32>
    tpu.vector_store %arg8[%c0_66, %c24_67], %53 {strides = array<i32>} : memref<256x32xf32, #tpu.memory_space<vmem>>, vector<256x8xf32>,
    %c0_68 = arith.constant 0 : index
    %c0_69 = arith.constant 0 : index
    %55 = vector.load %arg8[%c0_68, %c0_69] : memref<256x32xf32, #tpu.memory_space<vmem>>, vector<256x32xf32>
    %56 = arith.truncf %55 : vector<256x32xf32> to vector<256x32xbf16>
    %c1_70 = arith.constant 1 : index
    %c0_71 = arith.constant 0 : index
    %c0_72 = arith.constant 0 : index
    %57 = vector.load %arg4[%c1_70, %c0_71, %c0_72] : memref<4x32x4xbf16, #tpu.memory_space<vmem>>, vector<1x32x4xbf16>
    %58 = vector.shape_cast %57 : vector<1x32x4xbf16> to vector<32x4xbf16>
    %cst_73 = arith.constant dense<0.000000e+00> : vector<256x4xf32>
    %59 = tpu.matmul %56, %58, %cst_73 {dimension_numbers = #tpu.dot_dimension_numbers<[1], [0], [0], [1], [0, 0, 1, 1], [], []>} : vector<256x32xbf16>, vector<32x4xbf16>, vector<256x4xf32> -> vector<256x4xf32>
    %c0_74 = arith.constant 0 : index
    %c0_75 = arith.constant 0 : index
    %60 = vector.load %arg5[%c0_74, %c0_75] : memref<1x4xf32, #tpu.memory_space<vmem>>, vector<1x4xf32>
    %61 = vector.broadcast %60 : vector<1x4xf32> to vector<256x4xf32>
    %62 = arith.addf %59, %61 : vector<256x4xf32>
    %cst_76 = arith.constant 0.000000e+00 : f32
    %63 = vector.broadcast %cst_76 : f32 to vector<256x4xf32>
    %64 = arith.maximumf %62, %63 : vector<256x4xf32>
    %c1_77 = arith.constant 1 : index
    %c0_78 = arith.constant 0 : index
    %c0_79 = arith.constant 0 : index
    %65 = vector.load %arg7[%c1_77, %c0_78, %c0_79] : memref<18x18x8xf32, #tpu.memory_space<vmem>>, vector<16x16x8xf32>
    %66 = vector.shape_cast %65 : vector<16x16x8xf32> to vector<256x8xf32>
    %c0_80 = arith.constant 0 : index
    %c0_81 = arith.constant 0 : index
    %67 = vector.load %arg8[%c0_80, %c0_81] : memref<256x32xf32, #tpu.memory_space<vmem>>, vector<256x8xf32>
    tpu.vector_store %arg8[%c0_80, %c0_81], %66 {strides = array<i32>} : memref<256x32xf32, #tpu.memory_space<vmem>>, vector<256x8xf32>,
    %c1_82 = arith.constant 1 : index
    %c1_83 = arith.constant 1 : index
    %c0_84 = arith.constant 0 : index
    %68 = vector.load %arg7[%c1_82, %c1_83, %c0_84] : memref<18x18x8xf32, #tpu.memory_space<vmem>>, vector<16x16x8xf32>
    %69 = vector.shape_cast %68 : vector<16x16x8xf32> to vector<256x8xf32>
    %c0_85 = arith.constant 0 : index
    %c8_86 = arith.constant 8 : index
    %70 = vector.load %arg8[%c0_85, %c8_86] : memref<256x32xf32, #tpu.memory_space<vmem>>, vector<256x8xf32>
    tpu.vector_store %arg8[%c0_85, %c8_86], %69 {strides = array<i32>} : memref<256x32xf32, #tpu.memory_space<vmem>>, vector<256x8xf32>,
    %c2_87 = arith.constant 2 : index
    %c0_88 = arith.constant 0 : index
    %c0_89 = arith.constant 0 : index
    %71 = vector.load %arg7[%c2_87, %c0_88, %c0_89] : memref<18x18x8xf32, #tpu.memory_space<vmem>>, vector<16x16x8xf32>
    %72 = vector.shape_cast %71 : vector<16x16x8xf32> to vector<256x8xf32>
    %c0_90 = arith.constant 0 : index
    %c16_91 = arith.constant 16 : index
    %73 = vector.load %arg8[%c0_90, %c16_91] : memref<256x32xf32, #tpu.memory_space<vmem>>, vector<256x8xf32>
    tpu.vector_store %arg8[%c0_90, %c16_91], %72 {strides = array<i32>} : memref<256x32xf32, #tpu.memory_space<vmem>>, vector<256x8xf32>,
    %c2_92 = arith.constant 2 : index
    %c1_93 = arith.constant 1 : index
    %c0_94 = arith.constant 0 : index
    %74 = vector.load %arg7[%c2_92, %c1_93, %c0_94] : memref<18x18x8xf32, #tpu.memory_space<vmem>>, vector<16x16x8xf32>
    %75 = vector.shape_cast %74 : vector<16x16x8xf32> to vector<256x8xf32>
    %c0_95 = arith.constant 0 : index
    %c24_96 = arith.constant 24 : index
    %76 = vector.load %arg8[%c0_95, %c24_96] : memref<256x32xf32, #tpu.memory_space<vmem>>, vector<256x8xf32>
    tpu.vector_store %arg8[%c0_95, %c24_96], %75 {strides = array<i32>} : memref<256x32xf32, #tpu.memory_space<vmem>>, vector<256x8xf32>,
    %c0_97 = arith.constant 0 : index
    %c0_98 = arith.constant 0 : index
    %77 = vector.load %arg8[%c0_97, %c0_98] : memref<256x32xf32, #tpu.memory_space<vmem>>, vector<256x32xf32>
    %78 = arith.truncf %77 : vector<256x32xf32> to vector<256x32xbf16>
    %c2_99 = arith.constant 2 : index
    %c0_100 = arith.constant 0 : index
    %c0_101 = arith.constant 0 : index
    %79 = vector.load %arg4[%c2_99, %c0_100, %c0_101] : memref<4x32x4xbf16, #tpu.memory_space<vmem>>, vector<1x32x4xbf16>
    %80 = vector.shape_cast %79 : vector<1x32x4xbf16> to vector<32x4xbf16>
    %cst_102 = arith.constant dense<0.000000e+00> : vector<256x4xf32>
    %81 = tpu.matmul %78, %80, %cst_102 {dimension_numbers = #tpu.dot_dimension_numbers<[1], [0], [0], [1], [0, 0, 1, 1], [], []>} : vector<256x32xbf16>, vector<32x4xbf16>, vector<256x4xf32> -> vector<256x4xf32>
    %c0_103 = arith.constant 0 : index
    %c0_104 = arith.constant 0 : index
    %82 = vector.load %arg5[%c0_103, %c0_104] : memref<1x4xf32, #tpu.memory_space<vmem>>, vector<1x4xf32>
    %83 = vector.broadcast %82 : vector<1x4xf32> to vector<256x4xf32>
    %84 = arith.addf %81, %83 : vector<256x4xf32>
    %cst_105 = arith.constant 0.000000e+00 : f32
    %85 = vector.broadcast %cst_105 : f32 to vector<256x4xf32>
    %86 = arith.maximumf %84, %85 : vector<256x4xf32>
    %c1_106 = arith.constant 1 : index
    %c1_107 = arith.constant 1 : index
    %c0_108 = arith.constant 0 : index
    %87 = vector.load %arg7[%c1_106, %c1_107, %c0_108] : memref<18x18x8xf32, #tpu.memory_space<vmem>>, vector<16x16x8xf32>
    %88 = vector.shape_cast %87 : vector<16x16x8xf32> to vector<256x8xf32>
    %c0_109 = arith.constant 0 : index
    %c0_110 = arith.constant 0 : index
    %89 = vector.load %arg8[%c0_109, %c0_110] : memref<256x32xf32, #tpu.memory_space<vmem>>, vector<256x8xf32>
    tpu.vector_store %arg8[%c0_109, %c0_110], %88 {strides = array<i32>} : memref<256x32xf32, #tpu.memory_space<vmem>>, vector<256x8xf32>,
    %c1_111 = arith.constant 1 : index
    %c2_112 = arith.constant 2 : index
    %c0_113 = arith.constant 0 : index
    %90 = vector.load %arg7[%c1_111, %c2_112, %c0_113] : memref<18x18x8xf32, #tpu.memory_space<vmem>>, vector<16x16x8xf32>
    %91 = vector.shape_cast %90 : vector<16x16x8xf32> to vector<256x8xf32>
    %c0_114 = arith.constant 0 : index
    %c8_115 = arith.constant 8 : index
    %92 = vector.load %arg8[%c0_114, %c8_115] : memref<256x32xf32, #tpu.memory_space<vmem>>, vector<256x8xf32>
    tpu.vector_store %arg8[%c0_114, %c8_115], %91 {strides = array<i32>} : memref<256x32xf32, #tpu.memory_space<vmem>>, vector<256x8xf32>,
    %c2_116 = arith.constant 2 : index
    %c1_117 = arith.constant 1 : index
    %c0_118 = arith.constant 0 : index
    %93 = vector.load %arg7[%c2_116, %c1_117, %c0_118] : memref<18x18x8xf32, #tpu.memory_space<vmem>>, vector<16x16x8xf32>
    %94 = vector.shape_cast %93 : vector<16x16x8xf32> to vector<256x8xf32>
    %c0_119 = arith.constant 0 : index
    %c16_120 = arith.constant 16 : index
    %95 = vector.load %arg8[%c0_119, %c16_120] : memref<256x32xf32, #tpu.memory_space<vmem>>, vector<256x8xf32>
    tpu.vector_store %arg8[%c0_119, %c16_120], %94 {strides = array<i32>} : memref<256x32xf32, #tpu.memory_space<vmem>>, vector<256x8xf32>,
    %c2_121 = arith.constant 2 : index
    %c2_122 = arith.constant 2 : index
    %c0_123 = arith.constant 0 : index
    %96 = vector.load %arg7[%c2_121, %c2_122, %c0_123] : memref<18x18x8xf32, #tpu.memory_space<vmem>>, vector<16x16x8xf32>
    %97 = vector.shape_cast %96 : vector<16x16x8xf32> to vector<256x8xf32>
    %c0_124 = arith.constant 0 : index
    %c24_125 = arith.constant 24 : index
    %98 = vector.load %arg8[%c0_124, %c24_125] : memref<256x32xf32, #tpu.memory_space<vmem>>, vector<256x8xf32>
    tpu.vector_store %arg8[%c0_124, %c24_125], %97 {strides = array<i32>} : memref<256x32xf32, #tpu.memory_space<vmem>>, vector<256x8xf32>,
    %c0_126 = arith.constant 0 : index
    %c0_127 = arith.constant 0 : index
    %99 = vector.load %arg8[%c0_126, %c0_127] : memref<256x32xf32, #tpu.memory_space<vmem>>, vector<256x32xf32>
    %100 = arith.truncf %99 : vector<256x32xf32> to vector<256x32xbf16>
    %c3 = arith.constant 3 : index
    %c0_128 = arith.constant 0 : index
    %c0_129 = arith.constant 0 : index
    %101 = vector.load %arg4[%c3, %c0_128, %c0_129] : memref<4x32x4xbf16, #tpu.memory_space<vmem>>, vector<1x32x4xbf16>
    %102 = vector.shape_cast %101 : vector<1x32x4xbf16> to vector<32x4xbf16>
    %cst_130 = arith.constant dense<0.000000e+00> : vector<256x4xf32>
    %103 = tpu.matmul %100, %102, %cst_130 {dimension_numbers = #tpu.dot_dimension_numbers<[1], [0], [0], [1], [0, 0, 1, 1], [], []>} : vector<256x32xbf16>, vector<32x4xbf16>, vector<256x4xf32> -> vector<256x4xf32>
    %c0_131 = arith.constant 0 : index
    %c0_132 = arith.constant 0 : index
    %104 = vector.load %arg5[%c0_131, %c0_132] : memref<1x4xf32, #tpu.memory_space<vmem>>, vector<1x4xf32>
    %105 = vector.broadcast %104 : vector<1x4xf32> to vector<256x4xf32>
    %106 = arith.addf %103, %105 : vector<256x4xf32>
    %cst_133 = arith.constant 0.000000e+00 : f32
    %107 = vector.broadcast %cst_133 : f32 to vector<256x4xf32>
    %108 = arith.maximumf %106, %107 : vector<256x4xf32>
    %109 = tpu.concatenate %42, %64, %86, %108 in 1 : vector<256x4xf32>, vector<256x4xf32>, vector<256x4xf32>, vector<256x4xf32> -> vector<256x16xf32>
    %c0_134 = arith.constant 0 : index
    %c0_135 = arith.constant 0 : index
    %c0_136 = arith.constant 0 : index
    %110 = vector.load %arg6[%c0_134, %c0_135, %c0_136] : memref<1x256x16xf32, #tpu.memory_space<vmem>>, vector<1x256x16xf32>
    %111 = vector.shape_cast %110 : vector<1x256x16xf32> to vector<256x16xf32>
    %112 = vector.shape_cast %109 : vector<256x16xf32> to vector<1x256x16xf32>
    tpu.vector_store %arg6[%c0_134, %c0_135, %c0_136], %112 {strides = array<i32>} : memref<1x256x16xf32, #tpu.memory_space<vmem>>, vector<1x256x16xf32>,
    return
  }
  func.func @transform_0(%arg0: i32) -> (i32, i32, i32) {
    %c0_i32 = arith.constant 0 : i32
    %c0_i32_0 = arith.constant 0 : i32
    %c0_i32_1 = arith.constant 0 : i32
    return %arg0, %c0_i32, %c0_i32_0 : i32, i32, i32
  }
  func.func @transform_1(%arg0: i32) -> (i32, i32) {
    %c0_i32 = arith.constant 0 : i32
    %c0_i32_0 = arith.constant 0 : i32
    %c0_i32_1 = arith.constant 0 : i32
    return %c0_i32, %c0_i32_0 : i32, i32
  }
  func.func @transform_2(%arg0: i32) -> (i32, i32) {
    %c0_i32 = arith.constant 0 : i32
    %c0_i32_0 = arith.constant 0 : i32
    %c0_i32_1 = arith.constant 0 : i32
    return %c0_i32, %c0_i32_0 : i32, i32
  }
  func.func @transform_3(%arg0: i32) -> (i32, i32, i32) {
    %c0_i32 = arith.constant 0 : i32
    %c0_i32_0 = arith.constant 0 : i32
    %c0_i32_1 = arith.constant 0 : i32
    %c0_i32_2 = arith.constant 0 : i32
    return %c0_i32, %c0_i32_0, %c0_i32_1 : i32, i32, i32
  }
  func.func @transform_4(%arg0: i32) -> (i32, i32) {
    %c0_i32 = arith.constant 0 : i32
    %c0_i32_0 = arith.constant 0 : i32
    %c0_i32_1 = arith.constant 0 : i32
    return %c0_i32, %c0_i32_0 : i32, i32
  }
  func.func @transform_5(%arg0: i32) -> (i32, i32, i32) {
    %c0_i32 = arith.constant 0 : i32
    %c0_i32_0 = arith.constant 0 : i32
    %c0_i32_1 = arith.constant 0 : i32
    return %arg0, %c0_i32, %c0_i32_0 : i32, i32, i32
  }
}

</mosaic_0001>

<llo_original>
// kernel: decoder_block_forward.2
$region0: #{decoder_block_forward.2}
  #allocation0 [shape = 'u32[]', space=smem, size = 0x4, offset = 0x4, fixed_abs, tag = 'smem constant byte address 0x4 - core index']
  #allocation1 [shape = 'u32[144,128]{1,0:T(1,128)}', space=vmem, size = 0x12000, scoped, tag = 'internal scratch']
  #allocation2 [shape = 'f32[18,18,4]{2,1,0:T(8,128)}', space=vmem, size = 0x36000, scoped, tag = 'scratch operand']
  #allocation3 [shape = 'f32[256,36]{1,0:T(8,128)}', space=vmem, size = 0x20000, scoped, tag = 'scratch operand']
  %s0 = inlined_call_operand.vmem [shape: f32[2,16,16,4], index: 0, kind: input, shape index: {}]
  %s1 = inlined_call_operand.vmem [shape: bf16[36,8], index: 1, kind: input, shape index: {}]
  %s2 = inlined_call_operand.vmem [shape: f32[1,8], index: 2, kind: input, shape index: {}]
  %s3 = inlined_call_operand.vmem [shape: bf16[2,256,8], index: 3, kind: output, shape index: {0}]
  %s4 = inlined_call_operand.vmem [shape: f32[2,2,8], index: 4, kind: output, shape index: {1}]
  %5 = xla_tuple %s3, %s4
  %s6 = sld [smem:[#allocation0]]
  $region53: #{decoder_block_forward.2} parent=0
    _
  %s8 = ssub.s32 1, %s6
  %s9 = scalar_select 0, %s8, %s6
  loop: start=0, step=1, limit=4
  $region2: #{decoder_block_forward.2} parent=0 // loop_pre_header
    _
  $region3: #{decoder_block_forward.2} parent=0 // loop_header
    %s11 = sphi 0, %s15
    %p12 = scmp.ge.s32.totalorder %s11, 4
    %s21 = sphi 0, %s23
    %s24 = sphi 0, %s21
    %s25 = sphi 0, %s24
    %s41 = sphi 0, %s25
    %s45 = sphi 0, %s45
    %s47 = sphi 0, %s45
    %s48 = sphi 0, %s47
    %s62 = sphi 0, %s48
    %s66 = sphi 0, %s66
    %s68 = sphi 0, %s66
    %s69 = sphi 0, %s68
    %s83 = sphi 0, %s69
    %s89 = sphi 0, %s91
    %s92 = sphi 0, %s89
    %s93 = sphi 0, %s92
    %s109 = sphi 0, %s93
    %s115 = sphi 0, %s117
    %s118 = sphi 0, %s115
    %s119 = sphi 0, %s118
    %s135 = sphi 0, %s119
  $region4: #{decoder_block_forward.2} parent=0 // loop_header_branch
    %14 = sbr.rel (%p12) target = $region8
  $region5: #{decoder_block_forward.2} parent=0 // loop_body
    %s16 = ssub.s32 %s11, 1
    %s17 = ssub.s32 %s11, 2
    %s18 = sadd.s32 %s11, 1
    %s19 = ssub.s32 %s11, %s18
    %p20 = scmp.eq.s32.totalorder %s19, 0
    %s22 = sadd.s32 %s21, 1
    %s23 = scalar_select %p20, %s21, %s22
    %p26 = pneg %p20
    %p27 = scmp.eq.s32.totalorder %s11, 1
    %p28 = por %p26, %p27
    %p29 = scmp.ne.s32.totalorder %s21, %s24
    %p30 = scmp.eq.s32.totalorder %s11, 0
    %p31 = por %p29, %p30
    %p32 = scmp.ne.s32.totalorder %s21, %s24
    %p33 = scmp.eq.s32.totalorder %s16, 1
    %p34 = por %p32, %p33
    %p35 = scmp.ne.s32.totalorder %s24, %s25
    %p36 = scmp.eq.s32.totalorder %s16, 0
    %p37 = por %p35, %p36
    %p38 = scmp.ne.s32.totalorder %s24, %s25
    %p39 = scmp.eq.s32.totalorder %s17, 1
    %p40 = por %p38, %p39
    %p42 = scmp.ne.s32.totalorder %s25, %s41
    %p43 = scmp.eq.s32.totalorder %s17, 0
    %p44 = por %p42, %p43
    %s46 = sadd.s32 %s45, 1
    %p49 = scmp.eq.s32.totalorder %s11, 1
    %p50 = scmp.ne.s32.totalorder %s45, %s47
    %p51 = scmp.eq.s32.totalorder %s11, 0
    %p52 = por %p50, %p51
    %p53 = scmp.ne.s32.totalorder %s45, %s47
    %p54 = scmp.eq.s32.totalorder %s16, 1
    %p55 = por %p53, %p54
    %p56 = scmp.ne.s32.totalorder %s47, %s48
    %p57 = scmp.eq.s32.totalorder %s16, 0
    %p58 = por %p56, %p57
    %p59 = scmp.ne.s32.totalorder %s47, %s48
    %p60 = scmp.eq.s32.totalorder %s17, 1
    %p61 = por %p59, %p60
    %p63 = scmp.ne.s32.totalorder %s48, %s62
    %p64 = scmp.eq.s32.totalorder %s17, 0
    %p65 = por %p63, %p64
    %s67 = sadd.s32 %s66, 1
    %p70 = scmp.eq.s32.totalorder %s11, 1
    %p71 = scmp.ne.s32.totalorder %s66, %s68
    %p72 = scmp.eq.s32.totalorder %s11, 0
    %p73 = por %p71, %p72
    %p74 = scmp.ne.s32.totalorder %s66, %s68
    %p75 = scmp.eq.s32.totalorder %s16, 1
    %p76 = por %p74, %p75
    %p77 = scmp.ne.s32.totalorder %s68, %s69
    %p78 = scmp.eq.s32.totalorder %s16, 0
    %p79 = por %p77, %p78
    %p80 = scmp.ne.s32.totalorder %s68, %s69
    %p81 = scmp.eq.s32.totalorder %s17, 1
    %p82 = por %p80, %p81
    %p84 = scmp.ne.s32.totalorder %s69, %s83
    %p85 = scmp.eq.s32.totalorder %s17, 0
    %p86 = por %p84, %p85
    %s87 = ssub.s32 %s11, %s18
    %p88 = scmp.eq.s32.totalorder %s87, 0
    %s90 = sadd.s32 %s89, 1
    %s91 = scalar_select %p88, %s89, %s90
    %p94 = pneg %p88
    %p95 = scmp.eq.s32.totalorder %s11, 1
    %p96 = por %p94, %p95
    %p97 = scmp.ne.s32.totalorder %s89, %s92
    %p98 = scmp.eq.s32.totalorder %s11, 0
    %p99 = por %p97, %p98
    %p100 = scmp.ne.s32.totalorder %s89, %s92
    %p101 = scmp.eq.s32.totalorder %s16, 1
    %p102 = por %p100, %p101
    %p103 = scmp.ne.s32.totalorder %s92, %s93
    %p104 = scmp.eq.s32.totalorder %s16, 0
    %p105 = por %p103, %p104
    %p106 = scmp.ne.s32.totalorder %s92, %s93
    %p107 = scmp.eq.s32.totalorder %s17, 1
    %p108 = por %p106, %p107
    %p110 = scmp.ne.s32.totalorder %s93, %s109
    %p111 = scmp.eq.s32.totalorder %s17, 0
    %p112 = por %p110, %p111
    %s113 = ssub.s32 %s11, %s18
    %p114 = scmp.eq.s32.totalorder %s113, 0
    %s116 = sadd.s32 %s115, 1
    %s117 = scalar_select %p114, %s115, %s116
    %p120 = pneg %p114
    %p121 = scmp.eq.s32.totalorder %s11, 1
    %p122 = por %p120, %p121
    %p123 = scmp.ne.s32.totalorder %s115, %s118
    %p124 = scmp.eq.s32.totalorder %s11, 0
    %p125 = por %p123, %p124
    %p126 = scmp.ne.s32.totalorder %s115, %s118
    %p127 = scmp.eq.s32.totalorder %s16, 1
    %p128 = por %p126, %p127
    %p129 = scmp.ne.s32.totalorder %s118, %s119
    %p130 = scmp.eq.s32.totalorder %s16, 0
    %p131 = por %p129, %p130
    %p132 = scmp.ne.s32.totalorder %s118, %s119
    %p133 = scmp.eq.s32.totalorder %s17, 1
    %p134 = por %p132, %p133
    %p136 = scmp.ne.s32.totalorder %s119, %s135
    %p137 = scmp.eq.s32.totalorder %s17, 0
    %p138 = por %p136, %p137
    %p139 = scmp.le.s32.totalorder 1, %s11
    %p140 = scmp.lt.s32.totalorder %s11, 3
    %p141 = pnand %p139, %p140
    %p142 = pneg %p141
    // Predicated region
    $region9: #{decoder_block_forward.2} parent=5 // pred_check
      _
    $region10: #{decoder_block_forward.2} parent=5 // pred_check_branch
      %144 = sbr.rel (%p141) target = $region12
    $region11: #{decoder_block_forward.2} parent=5 // pred_region
      %s145 = ssub.s32 %s11, 1
      // Predicated region
      $region13: #{decoder_block_forward.2} parent=11 // pred_check
        %p146 = pneg %p58
      $region14: #{decoder_block_forward.2} parent=11 // pred_check_branch
        %148 = sbr.rel (%p146) target = $region16
      $region15: #{decoder_block_forward.2} parent=11 // pred_region
        _
      $region16: #{decoder_block_forward.2} parent=11 // pred_fallthru
        _
      // Predicated region
      $region17: #{decoder_block_forward.2} parent=11 // pred_check
        %p149 = pneg %p79
      $region18: #{decoder_block_forward.2} parent=11 // pred_check_branch
        %151 = sbr.rel (%p149) target = $region20
      $region19: #{decoder_block_forward.2} parent=11 // pred_region
        _
      $region20: #{decoder_block_forward.2} parent=11 // pred_fallthru
        _
    $region12: #{decoder_block_forward.2} parent=5 // pred_fallthru
      _
    %p152 = scmp.lt.s32.totalorder %s11, 2
    // Predicated region
    $region21: #{decoder_block_forward.2} parent=5 // pred_check
      %p153 = pneg %p152
    $region22: #{decoder_block_forward.2} parent=5 // pred_check_branch
      %155 = sbr.rel (%p153) target = $region24
    $region23: #{decoder_block_forward.2} parent=5 // pred_region
      // Predicated region
      $region25: #{decoder_block_forward.2} parent=23 // pred_check
        %p156 = pneg %p31
      $region26: #{decoder_block_forward.2} parent=23 // pred_check_branch
        %158 = sbr.rel (%p156) target = $region28
      $region27: #{decoder_block_forward.2} parent=23 // pred_region
        %p159 = scmp.lt.s32.totalorder %s11, 1
        %s160 = scalar_select %p159, %s11, 1
        %s161 = smul.addr %s160, 32
        %s162 = smul.addr %s161, 8
        %s163 = scalar_lea.vmem %s0, %s162
      $region28: #{decoder_block_forward.2} parent=23 // pred_fallthru
        _
    $region24: #{decoder_block_forward.2} parent=5 // pred_fallthru
      _
    %p164 = scmp.le.s32.totalorder 1, %s11
    %p165 = scmp.lt.s32.totalorder %s11, 3
    %p166 = pnand %p164, %p165
    %p167 = pneg %p166
    // Predicated region
    $region29: #{decoder_block_forward.2} parent=5 // pred_check
      _
    $region30: #{decoder_block_forward.2} parent=5 // pred_check_branch
      %169 = sbr.rel (%p166) target = $region32
    $region31: #{decoder_block_forward.2} parent=5 // pred_region
      %s170 = ssub.s32 %s11, 1
      %p171 = scmp.lt.s32.totalorder %s16, 1
      %s172 = scalar_select %p171, %s16, 1
      %s173 = smul.addr %s172, 32
      %s174 = smul.addr %s173, 8
      %s175 = scalar_lea.vmem %s0, %s174
      %p176 = pneg %p37
      %p177 = pneg %p34
      %p178 = pneg %p58
      %p179 = pneg %p55
      %p180 = pneg %p79
      %p181 = pneg %p76
      %p182 = pneg %p105
      %p183 = pneg %p102
      %p184 = scmp.lt.s32.totalorder %s16, 1
      %s185 = scalar_select %p184, %s16, 1
      %s186 = smul.addr %s185, 32
      %s187 = smul.addr %s186, 4
      %s188 = scalar_lea.vmem %s3, %s187
      %p189 = pneg %p131
      %p190 = pneg %p128
      %p191 = scmp.lt.s32.totalorder %s16, 1
      %s192 = scalar_select %p191, %s16, 1
      %s193 = smul.addr %s192, 2
      %s194 = scalar_lea.vmem %s4, %s193
      %p195 = scmp.lt.s32.totalorder %s16, 1
      %s196 = scalar_select %p195, %s16, 1
      %s197 = smul.addr %s196, 32
      %s198 = smul.addr %s197, 8
      %s199 = scalar_lea.vmem %s0, %s198
      %p200 = scmp.lt.s32.totalorder %s16, 1
      %s201 = scalar_select %p200, %s16, 1
      %s202 = smul.addr %s201, 32
      %s203 = smul.addr %s202, 4
      %s204 = scalar_lea.vmem %s3, %s203
      %p205 = scmp.lt.s32.totalorder %s16, 1
      %s206 = scalar_select %p205, %s16, 1
      %s207 = smul.addr %s206, 2
      %s208 = scalar_lea.vmem %s4, %s207
      %vm210 = vcmask 31744
      %211 = vst.msk [vmem:[#allocation2] sm:$0xff] %vm210, 0.0
      %212 = vst.msk [vmem:[#allocation2 + $0x8] sm:$0xff] %vm210, 0.0
      %vm213 = vcmask 25600
      %214 = vst.msk [vmem:[#allocation2 + $0x10] sm:$0x3] %vm213, 0.0
      %s215 = scalar_lea.vmem [#allocation2], 408
      %216 = vst.msk [vmem:[%s215] sm:$0xff] %vm210, 0.0
      %217 = vst.msk [vmem:[%s215 + $0x8] sm:$0xff] %vm210, 0.0
      %218 = vst.msk [vmem:[%s215 + $0x10] sm:$0x3] %vm213, 0.0
      %vm219 = vcmask 24576
      %220 = vst.msk [vmem:[#allocation2] sm:$0x1] %vm219, 0.0
      %221 = vst.msk [vmem:[#allocation2 + $0x18] sm:$0x1] %vm219, 0.0
      %222 = vst.msk [vmem:[#allocation2 + $0x30] sm:$0x1] %vm219, 0.0
      %223 = vst.msk [vmem:[#allocation2 + $0x48] sm:$0x1] %vm219, 0.0
      %224 = vst.msk [vmem:[#allocation2 + $0x60] sm:$0x1] %vm219, 0.0
      %225 = vst.msk [vmem:[#allocation2 + $0x78] sm:$0x1] %vm219, 0.0
      %226 = vst.msk [vmem:[#allocation2 + $0x90] sm:$0x1] %vm219, 0.0
      %227 = vst.msk [vmem:[#allocation2 + $0xa8] sm:$0x1] %vm219, 0.0
      %228 = vst.msk [vmem:[#allocation2 + $0xc0] sm:$0x1] %vm219, 0.0
      %229 = vst.msk [vmem:[#allocation2 + $0xd8] sm:$0x1] %vm219, 0.0
      %230 = vst.msk [vmem:[#allocation2 + $0xf0] sm:$0x1] %vm219, 0.0
      %231 = vst.msk [vmem:[#allocation2 + $0x108] sm:$0x1] %vm219, 0.0
      %232 = vst.msk [vmem:[#allocation2 + $0x120] sm:$0x1] %vm219, 0.0
      %233 = vst.msk [vmem:[#allocation2 + $0x138] sm:$0x1] %vm219, 0.0
      %234 = vst.msk [vmem:[#allocation2 + $0x150] sm:$0x1] %vm219, 0.0
      %235 = vst.msk [vmem:[#allocation2 + $0x168] sm:$0x1] %vm219, 0.0
      %236 = vst.msk [vmem:[#allocation2 + $0x180] sm:$0x1] %vm219, 0.0
      %237 = vst.msk [vmem:[#allocation2 + $0x198] sm:$0x1] %vm219, 0.0
      %238 = vst.msk [vmem:[#allocation2 + $0x11] sm:$0x1] %vm219, 0.0
      %239 = vst.msk [vmem:[#allocation2 + $0x29] sm:$0x1] %vm219, 0.0
      %240 = vst.msk [vmem:[#allocation2 + $0x41] sm:$0x1] %vm219, 0.0
      %241 = vst.msk [vmem:[#allocation2 + $0x59] sm:$0x1] %vm219, 0.0
      %242 = vst.msk [vmem:[#allocation2 + $0x71] sm:$0x1] %vm219, 0.0
      %243 = vst.msk [vmem:[#allocation2 + $0x89] sm:$0x1] %vm219, 0.0
      %244 = vst.msk [vmem:[#allocation2 + $0xa1] sm:$0x1] %vm219, 0.0
      %245 = vst.msk [vmem:[#allocation2 + $0xb9] sm:$0x1] %vm219, 0.0
      %246 = vst.msk [vmem:[#allocation2 + $0xd1] sm:$0x1] %vm219, 0.0
      %247 = vst.msk [vmem:[#allocation2 + $0xe9] sm:$0x1] %vm219, 0.0
      %248 = vst.msk [vmem:[#allocation2 + $0x101] sm:$0x1] %vm219, 0.0
      %249 = vst.msk [vmem:[#allocation2 + $0x119] sm:$0x1] %vm219, 0.0
      %250 = vst.msk [vmem:[#allocation2 + $0x131] sm:$0x1] %vm219, 0.0
      %251 = vst.msk [vmem:[#allocation2 + $0x149] sm:$0x1] %vm219, 0.0
      %252 = vst.msk [vmem:[#allocation2 + $0x161] sm:$0x1] %vm219, 0.0
      %253 = vst.msk [vmem:[#allocation2 + $0x179] sm:$0x1] %vm219, 0.0
      %254 = vst.msk [vmem:[#allocation2 + $0x191] sm:$0x1] %vm219, 0.0
      %255 = vst.msk [vmem:[#allocation2 + $0x1a9] sm:$0x1] %vm219, 0.0
      %v256 = vld [vmem:[%s199] sm:$0xff]
      %v257 = vld [vmem:[%s199 + $0x8] sm:$0xff]
      %v258 = vld [vmem:[%s199 + $0x10] sm:$0xff]
      %v259 = vld [vmem:[%s199 + $0x18] sm:$0xff]
      %v260 = vld [vmem:[%s199 + $0x20] sm:$0xff]
      %v261 = vld [vmem:[%s199 + $0x28] sm:$0xff]
      %v262 = vld [vmem:[%s199 + $0x30] sm:$0xff]
      %v263 = vld [vmem:[%s199 + $0x38] sm:$0xff]
      %v264 = vld [vmem:[%s199 + $0x40] sm:$0xff]
      %v265 = vld [vmem:[%s199 + $0x48] sm:$0xff]
      %v266 = vld [vmem:[%s199 + $0x50] sm:$0xff]
      %v267 = vld [vmem:[%s199 + $0x58] sm:$0xff]
      %v268 = vld [vmem:[%s199 + $0x60] sm:$0xff]
      %v269 = vld [vmem:[%s199 + $0x68] sm:$0xff]
      %v270 = vld [vmem:[%s199 + $0x70] sm:$0xff]
      %v271 = vld [vmem:[%s199 + $0x78] sm:$0xff]
      %v272 = vld [vmem:[%s199 + $0x80] sm:$0xff]
      %v273 = vld [vmem:[%s199 + $0x88] sm:$0xff]
      %v274 = vld [vmem:[%s199 + $0x90] sm:$0xff]
      %v275 = vld [vmem:[%s199 + $0x98] sm:$0xff]
      %v276 = vld [vmem:[%s199 + $0xa0] sm:$0xff]
      %v277 = vld [vmem:[%s199 + $0xa8] sm:$0xff]
      %v278 = vld [vmem:[%s199 + $0xb0] sm:$0xff]
      %v279 = vld [vmem:[%s199 + $0xb8] sm:$0xff]
      %v280 = vld [vmem:[%s199 + $0xc0] sm:$0xff]
      %v281 = vld [vmem:[%s199 + $0xc8] sm:$0xff]
      %v282 = vld [vmem:[%s199 + $0xd0] sm:$0xff]
      %v283 = vld [vmem:[%s199 + $0xd8] sm:$0xff]
      %v284 = vld [vmem:[%s199 + $0xe0] sm:$0xff]
      %v285 = vld [vmem:[%s199 + $0xe8] sm:$0xff]
      %v286 = vld [vmem:[%s199 + $0xf0] sm:$0xff]
      %v287 = vld [vmem:[%s199 + $0xf8] sm:$0xff]
      %s288 = scalar_lea.vmem [#allocation2], 24
      %289 = vst.msk [vmem:[%s288 + $0x1] sm:$0xff] %vm210, %v256
      %290 = vst.msk [vmem:[%s288 + $0x9] sm:$0xff] %vm210, %v257
      %291 = vst.msk [vmem:[%s288 + $0x19] sm:$0xff] %vm210, %v258
      %292 = vst.msk [vmem:[%s288 + $0x21] sm:$0xff] %vm210, %v259
      %293 = vst.msk [vmem:[%s288 + $0x31] sm:$0xff] %vm210, %v260
      %294 = vst.msk [vmem:[%s288 + $0x39] sm:$0xff] %vm210, %v261
      %295 = vst.msk [vmem:[%s288 + $0x49] sm:$0xff] %vm210, %v262
      %296 = vst.msk [vmem:[%s288 + $0x51] sm:$0xff] %vm210, %v263
      %297 = vst.msk [vmem:[%s288 + $0x61] sm:$0xff] %vm210, %v264
      %298 = vst.msk [vmem:[%s288 + $0x69] sm:$0xff] %vm210, %v265
      %299 = vst.msk [vmem:[%s288 + $0x79] sm:$0xff] %vm210, %v266
      %300 = vst.msk [vmem:[%s288 + $0x81] sm:$0xff] %vm210, %v267
      %301 = vst.msk [vmem:[%s288 + $0x91] sm:$0xff] %vm210, %v268
      %302 = vst.msk [vmem:[%s288 + $0x99] sm:$0xff] %vm210, %v269
      %303 = vst.msk [vmem:[%s288 + $0xa9] sm:$0xff] %vm210, %v270
      %304 = vst.msk [vmem:[%s288 + $0xb1] sm:$0xff] %vm210, %v271
      %305 = vst.msk [vmem:[%s288 + $0xc1] sm:$0xff] %vm210, %v272
      %306 = vst.msk [vmem:[%s288 + $0xc9] sm:$0xff] %vm210, %v273
      %307 = vst.msk [vmem:[%s288 + $0xd9] sm:$0xff] %vm210, %v274
      %308 = vst.msk [vmem:[%s288 + $0xe1] sm:$0xff] %vm210, %v275
      %309 = vst.msk [vmem:[%s288 + $0xf1] sm:$0xff] %vm210, %v276
      %310 = vst.msk [vmem:[%s288 + $0xf9] sm:$0xff] %vm210, %v277
      %311 = vst.msk [vmem:[%s288 + $0x109] sm:$0xff] %vm210, %v278
      %312 = vst.msk [vmem:[%s288 + $0x111] sm:$0xff] %vm210, %v279
      %313 = vst.msk [vmem:[%s288 + $0x121] sm:$0xff] %vm210, %v280
      %314 = vst.msk [vmem:[%s288 + $0x129] sm:$0xff] %vm210, %v281
      %315 = vst.msk [vmem:[%s288 + $0x139] sm:$0xff] %vm210, %v282
      %316 = vst.msk [vmem:[%s288 + $0x141] sm:$0xff] %vm210, %v283
      %317 = vst.msk [vmem:[%s288 + $0x151] sm:$0xff] %vm210, %v284
      %318 = vst.msk [vmem:[%s288 + $0x159] sm:$0xff] %vm210, %v285
      %319 = vst.msk [vmem:[%s288 + $0x169] sm:$0xff] %vm210, %v286
      %320 = vst.msk [vmem:[%s288 + $0x171] sm:$0xff] %vm210, %v287
      %v321 = vld [vmem:[#allocation2] sm:$0xff]
      %v322 = vld [vmem:[#allocation2 + $0x8] sm:$0xff]
      %v323 = vld [vmem:[#allocation2 + $0x18] sm:$0xff]
      %v324 = vld [vmem:[#allocation2 + $0x20] sm:$0xff]
      %v325 = vld [vmem:[#allocation2 + $0x30] sm:$0xff]
      %v326 = vld [vmem:[#allocation2 + $0x38] sm:$0xff]
      %v327 = vld [vmem:[#allocation2 + $0x48] sm:$0xff]
      %v328 = vld [vmem:[#allocation2 + $0x50] sm:$0xff]
      %v329 = vld [vmem:[#allocation2 + $0x60] sm:$0xff]
      %v330 = vld [vmem:[#allocation2 + $0x68] sm:$0xff]
      %v331 = vld [vmem:[#allocation2 + $0x78] sm:$0xff]
      %v332 = vld [vmem:[#allocation2 + $0x80] sm:$0xff]
      %v333 = vld [vmem:[#allocation2 + $0x90] sm:$0xff]
      %v334 = vld [vmem:[#allocation2 + $0x98] sm:$0xff]
      %v335 = vld [vmem:[#allocation2 + $0xa8] sm:$0xff]
      %v336 = vld [vmem:[#allocation2 + $0xb0] sm:$0xff]
      %v337 = vld [vmem:[#allocation2 + $0xc0] sm:$0xff]
      %v338 = vld [vmem:[#allocation2 + $0xc8] sm:$0xff]
      %v339 = vld [vmem:[#allocation2 + $0xd8] sm:$0xff]
      %v340 = vld [vmem:[#allocation2 + $0xe0] sm:$0xff]
      %v341 = vld [vmem:[#allocation2 + $0xf0] sm:$0xff]
      %v342 = vld [vmem:[#allocation2 + $0xf8] sm:$0xff]
      %v343 = vld [vmem:[#allocation2 + $0x108] sm:$0xff]
      %v344 = vld [vmem:[#allocation2 + $0x110] sm:$0xff]
      %v345 = vld [vmem:[#allocation2 + $0x120] sm:$0xff]
      %v346 = vld [vmem:[#allocation2 + $0x128] sm:$0xff]
      %v347 = vld [vmem:[#allocation2 + $0x138] sm:$0xff]
      %v348 = vld [vmem:[#allocation2 + $0x140] sm:$0xff]
      %v349 = vld [vmem:[#allocation2 + $0x150] sm:$0xff]
      %v350 = vld [vmem:[#allocation2 + $0x158] sm:$0xff]
      %v351 = vld [vmem:[#allocation2 + $0x168] sm:$0xff]
      %v352 = vld [vmem:[#allocation2 + $0x170] sm:$0xff]
      %353 = vst.msk [vmem:[#allocation3] sm:$0xff] %vm210, %v321
      %354 = vst.msk [vmem:[#allocation3 + $0x8] sm:$0xff] %vm210, %v322
      %355 = vst.msk [vmem:[#allocation3 + $0x10] sm:$0xff] %vm210, %v323
      %356 = vst.msk [vmem:[#allocation3 + $0x18] sm:$0xff] %vm210, %v324
      %357 = vst.msk [vmem:[#allocation3 + $0x20] sm:$0xff] %vm210, %v325
      %358 = vst.msk [vmem:[#allocation3 + $0x28] sm:$0xff] %vm210, %v326
      %359 = vst.msk [vmem:[#allocation3 + $0x30] sm:$0xff] %vm210, %v327
      %360 = vst.msk [vmem:[#allocation3 + $0x38] sm:$0xff] %vm210, %v328
      %361 = vst.msk [vmem:[#allocation3 + $0x40] sm:$0xff] %vm210, %v329
      %362 = vst.msk [vmem:[#allocation3 + $0x48] sm:$0xff] %vm210, %v330
      %363 = vst.msk [vmem:[#allocation3 + $0x50] sm:$0xff] %vm210, %v331
      %364 = vst.msk [vmem:[#allocation3 + $0x58] sm:$0xff] %vm210, %v332
      %365 = vst.msk [vmem:[#allocation3 + $0x60] sm:$0xff] %vm210, %v333
      %366 = vst.msk [vmem:[#allocation3 + $0x68] sm:$0xff] %vm210, %v334
      %367 = vst.msk [vmem:[#allocation3 + $0x70] sm:$0xff] %vm210, %v335
      %368 = vst.msk [vmem:[#allocation3 + $0x78] sm:$0xff] %vm210, %v336
      %369 = vst.msk [vmem:[#allocation3 + $0x80] sm:$0xff] %vm210, %v337
      %370 = vst.msk [vmem:[#allocation3 + $0x88] sm:$0xff] %vm210, %v338
      %371 = vst.msk [vmem:[#allocation3 + $0x90] sm:$0xff] %vm210, %v339
      %372 = vst.msk [vmem:[#allocation3 + $0x98] sm:$0xff] %vm210, %v340
      %373 = vst.msk [vmem:[#allocation3 + $0xa0] sm:$0xff] %vm210, %v341
      %374 = vst.msk [vmem:[#allocation3 + $0xa8] sm:$0xff] %vm210, %v342
      %375 = vst.msk [vmem:[#allocation3 + $0xb0] sm:$0xff] %vm210, %v343
      %376 = vst.msk [vmem:[#allocation3 + $0xb8] sm:$0xff] %vm210, %v344
      %377 = vst.msk [vmem:[#allocation3 + $0xc0] sm:$0xff] %vm210, %v345
      %378 = vst.msk [vmem:[#allocation3 + $0xc8] sm:$0xff] %vm210, %v346
      %379 = vst.msk [vmem:[#allocation3 + $0xd0] sm:$0xff] %vm210, %v347
      %380 = vst.msk [vmem:[#allocation3 + $0xd8] sm:$0xff] %vm210, %v348
      %381 = vst.msk [vmem:[#allocation3 + $0xe0] sm:$0xff] %vm210, %v349
      %382 = vst.msk [vmem:[#allocation3 + $0xe8] sm:$0xff] %vm210, %v350
      %383 = vst.msk [vmem:[#allocation3 + $0xf0] sm:$0xff] %vm210, %v351
      %384 = vst.msk [vmem:[#allocation3 + $0xf8] sm:$0xff] %vm210, %v352
      %v385 = vld [vmem:[#allocation2 + $0x1] sm:$0xff]
      %v386 = vld [vmem:[#allocation2 + $0x9] sm:$0xff]
      %v387 = vld [vmem:[#allocation2 + $0x19] sm:$0xff]
      %v388 = vld [vmem:[#allocation2 + $0x21] sm:$0xff]
      %v389 = vld [vmem:[#allocation2 + $0x31] sm:$0xff]
      %v390 = vld [vmem:[#allocation2 + $0x39] sm:$0xff]
      %v391 = vld [vmem:[#allocation2 + $0x49] sm:$0xff]
      %v392 = vld [vmem:[#allocation2 + $0x51] sm:$0xff]
      %v393 = vld [vmem:[#allocation2 + $0x61] sm:$0xff]
      %v394 = vld [vmem:[#allocation2 + $0x69] sm:$0xff]
      %v395 = vld [vmem:[#allocation2 + $0x79] sm:$0xff]
      %v396 = vld [vmem:[#allocation2 + $0x81] sm:$0xff]
      %v397 = vld [vmem:[#allocation2 + $0x91] sm:$0xff]
      %v398 = vld [vmem:[#allocation2 + $0x99] sm:$0xff]
      %v399 = vld [vmem:[#allocation2 + $0xa9] sm:$0xff]
      %v400 = vld [vmem:[#allocation2 + $0xb1] sm:$0xff]
      %v401 = vld [vmem:[#allocation2 + $0xc1] sm:$0xff]
      %v402 = vld [vmem:[#allocation2 + $0xc9] sm:$0xff]
      %v403 = vld [vmem:[#allocation2 + $0xd9] sm:$0xff]
      %v404 = vld [vmem:[#allocation2 + $0xe1] sm:$0xff]
      %v405 = vld [vmem:[#allocation2 + $0xf1] sm:$0xff]
      %v406 = vld [vmem:[#allocation2 + $0xf9] sm:$0xff]
      %v407 = vld [vmem:[#allocation2 + $0x109] sm:$0xff]
      %v408 = vld [vmem:[#allocation2 + $0x111] sm:$0xff]
      %v409 = vld [vmem:[#allocation2 + $0x121] sm:$0xff]
      %v410 = vld [vmem:[#allocation2 + $0x129] sm:$0xff]
      %v411 = vld [vmem:[#allocation2 + $0x139] sm:$0xff]
      %v412 = vld [vmem:[#allocation2 + $0x141] sm:$0xff]
      %v413 = vld [vmem:[#allocation2 + $0x151] sm:$0xff]
      %v414 = vld [vmem:[#allocation2 + $0x159] sm:$0xff]
      %v415 = vld [vmem:[#allocation2 + $0x169] sm:$0xff]
      %v416 = vld [vmem:[#allocation2 + $0x171] sm:$0xff]
      %449 = vrot.lane.b32.xlu0 %v385, 4
      %v450 = vpop.permute.xlu0 %449
      %451 = vrot.lane.b32.xlu0 %v386, 4
      %v452 = vpop.permute.xlu0 %451
      %453 = vrot.lane.b32.xlu0 %v387, 4
      %v454 = vpop.permute.xlu0 %453
      %455 = vrot.lane.b32.xlu0 %v388, 4
      %v456 = vpop.permute.xlu0 %455
      %457 = vrot.lane.b32.xlu0 %v389, 4
      %v458 = vpop.permute.xlu0 %457
      %459 = vrot.lane.b32.xlu0 %v390, 4
      %v460 = vpop.permute.xlu0 %459
      %461 = vrot.lane.b32.xlu0 %v391, 4
      %v462 = vpop.permute.xlu0 %461
      %463 = vrot.lane.b32.xlu0 %v392, 4
      %v464 = vpop.permute.xlu0 %463
      %465 = vrot.lane.b32.xlu0 %v393, 4
      %v466 = vpop.permute.xlu0 %465
      %467 = vrot.lane.b32.xlu0 %v394, 4
      %v468 = vpop.permute.xlu0 %467
      %469 = vrot.lane.b32.xlu0 %v395, 4
      %v470 = vpop.permute.xlu0 %469
      %471 = vrot.lane.b32.xlu0 %v396, 4
      %v472 = vpop.permute.xlu0 %471
      %473 = vrot.lane.b32.xlu0 %v397, 4
      %v474 = vpop.permute.xlu0 %473
      %475 = vrot.lane.b32.xlu0 %v398, 4
      %v476 = vpop.permute.xlu0 %475
      %477 = vrot.lane.b32.xlu0 %v399, 4
      %v478 = vpop.permute.xlu0 %477
      %479 = vrot.lane.b32.xlu0 %v400, 4
      %v480 = vpop.permute.xlu0 %479
      %481 = vrot.lane.b32.xlu0 %v401, 4
      %v482 = vpop.permute.xlu0 %481
      %483 = vrot.lane.b32.xlu0 %v402, 4
      %v484 = vpop.permute.xlu0 %483
      %485 = vrot.lane.b32.xlu0 %v403, 4
      %v486 = vpop.permute.xlu0 %485
      %487 = vrot.lane.b32.xlu0 %v404, 4
      %v488 = vpop.permute.xlu0 %487
      %489 = vrot.lane.b32.xlu0 %v405, 4
      %v490 = vpop.permute.xlu0 %489
      %491 = vrot.lane.b32.xlu0 %v406, 4
      %v492 = vpop.permute.xlu0 %491
      %493 = vrot.lane.b32.xlu0 %v407, 4
      %v494 = vpop.permute.xlu0 %493
      %495 = vrot.lane.b32.xlu0 %v408, 4
      %v496 = vpop.permute.xlu0 %495
      %497 = vrot.lane.b32.xlu0 %v409, 4
      %v498 = vpop.permute.xlu0 %497
      %499 = vrot.lane.b32.xlu0 %v410, 4
      %v500 = vpop.permute.xlu0 %499
      %501 = vrot.lane.b32.xlu0 %v411, 4
      %v502 = vpop.permute.xlu0 %501
      %503 = vrot.lane.b32.xlu0 %v412, 4
      %v504 = vpop.permute.xlu0 %503
      %505 = vrot.lane.b32.xlu0 %v413, 4
      %v506 = vpop.permute.xlu0 %505
      %507 = vrot.lane.b32.xlu0 %v414, 4
      %v508 = vpop.permute.xlu0 %507
      %509 = vrot.lane.b32.xlu0 %v415, 4
      %v510 = vpop.permute.xlu0 %509
      %511 = vrot.lane.b32.xlu0 %v416, 4
      %v512 = vpop.permute.xlu0 %511
      %vm545 = vcmask 64544
      %546 = vst.msk [vmem:[#allocation3] sm:$0xff] %vm545, %v450
      %547 = vst.msk [vmem:[#allocation3 + $0x8] sm:$0xff] %vm545, %v452
      %548 = vst.msk [vmem:[#allocation3 + $0x10] sm:$0xff] %vm545, %v454
      %549 = vst.msk [vmem:[#allocation3 + $0x18] sm:$0xff] %vm545, %v456
      %550 = vst.msk [vmem:[#allocation3 + $0x20] sm:$0xff] %vm545, %v458
      %551 = vst.msk [vmem:[#allocation3 + $0x28] sm:$0xff] %vm545, %v460
      %552 = vst.msk [vmem:[#allocation3 + $0x30] sm:$0xff] %vm545, %v462
      %553 = vst.msk [vmem:[#allocation3 + $0x38] sm:$0xff] %vm545, %v464
      %554 = vst.msk [vmem:[#allocation3 + $0x40] sm:$0xff] %vm545, %v466
      %555 = vst.msk [vmem:[#allocation3 + $0x48] sm:$0xff] %vm545, %v468
      %556 = vst.msk [vmem:[#allocation3 + $0x50] sm:$0xff] %vm545, %v470
      %557 = vst.msk [vmem:[#allocation3 + $0x58] sm:$0xff] %vm545, %v472
      %558 = vst.msk [vmem:[#allocation3 + $0x60] sm:$0xff] %vm545, %v474
      %559 = vst.msk [vmem:[#allocation3 + $0x68] sm:$0xff] %vm545, %v476
      %560 = vst.msk [vmem:[#allocation3 + $0x70] sm:$0xff] %vm545, %v478
      %561 = vst.msk [vmem:[#allocation3 + $0x78] sm:$0xff] %vm545, %v480
      %562 = vst.msk [vmem:[#allocation3 + $0x80] sm:$0xff] %vm545, %v482
      %563 = vst.msk [vmem:[#allocation3 + $0x88] sm:$0xff] %vm545, %v484
      %564 = vst.msk [vmem:[#allocation3 + $0x90] sm:$0xff] %vm545, %v486
      %565 = vst.msk [vmem:[#allocation3 + $0x98] sm:$0xff] %vm545, %v488
      %566 = vst.msk [vmem:[#allocation3 + $0xa0] sm:$0xff] %vm545, %v490
      %567 = vst.msk [vmem:[#allocation3 + $0xa8] sm:$0xff] %vm545, %v492
      %568 = vst.msk [vmem:[#allocation3 + $0xb0] sm:$0xff] %vm545, %v494
      %569 = vst.msk [vmem:[#allocation3 + $0xb8] sm:$0xff] %vm545, %v496
      %570 = vst.msk [vmem:[#allocation3 + $0xc0] sm:$0xff] %vm545, %v498
      %571 = vst.msk [vmem:[#allocation3 + $0xc8] sm:$0xff] %vm545, %v500
      %572 = vst.msk [vmem:[#allocation3 + $0xd0] sm:$0xff] %vm545, %v502
      %573 = vst.msk [vmem:[#allocation3 + $0xd8] sm:$0xff] %vm545, %v504
      %574 = vst.msk [vmem:[#allocation3 + $0xe0] sm:$0xff] %vm545, %v506
      %575 = vst.msk [vmem:[#allocation3 + $0xe8] sm:$0xff] %vm545, %v508
      %576 = vst.msk [vmem:[#allocation3 + $0xf0] sm:$0xff] %vm545, %v510
      %577 = vst.msk [vmem:[#allocation3 + $0xf8] sm:$0xff] %vm545, %v512
      %v578 = vld [vmem:[#allocation2 + $0x2] sm:$0xff]
      %v579 = vld [vmem:[#allocation2 + $0xa] sm:$0xff]
      %v580 = vld [vmem:[#allocation2 + $0x1a] sm:$0xff]
      %v581 = vld [vmem:[#allocation2 + $0x22] sm:$0xff]
      %v582 = vld [vmem:[#allocation2 + $0x32] sm:$0xff]
      %v583 = vld [vmem:[#allocation2 + $0x3a] sm:$0xff]
      %v584 = vld [vmem:[#allocation2 + $0x4a] sm:$0xff]
      %v585 = vld [vmem:[#allocation2 + $0x52] sm:$0xff]
      %v586 = vld [vmem:[#allocation2 + $0x62] sm:$0xff]
      %v587 = vld [vmem:[#allocation2 + $0x6a] sm:$0xff]
      %v588 = vld [vmem:[#allocation2 + $0x7a] sm:$0xff]
      %v589 = vld [vmem:[#allocation2 + $0x82] sm:$0xff]
      %v590 = vld [vmem:[#allocation2 + $0x92] sm:$0xff]
      %v591 = vld [vmem:[#allocation2 + $0x9a] sm:$0xff]
      %v592 = vld [vmem:[#allocation2 + $0xaa] sm:$0xff]
      %v593 = vld [vmem:[#allocation2 + $0xb2] sm:$0xff]
      %v594 = vld [vmem:[#allocation2 + $0xc2] sm:$0xff]
      %v595 = vld [vmem:[#allocation2 + $0xca] sm:$0xff]
      %v596 = vld [vmem:[#allocation2 + $0xda] sm:$0xff]
      %v597 = vld [vmem:[#allocation2 + $0xe2] sm:$0xff]
      %v598 = vld [vmem:[#allocation2 + $0xf2] sm:$0xff]
      %v599 = vld [vmem:[#allocation2 + $0xfa] sm:$0xff]
      %v600 = vld [vmem:[#allocation2 + $0x10a] sm:$0xff]
      %v601 = vld [vmem:[#allocation2 + $0x112] sm:$0xff]
      %v602 = vld [vmem:[#allocation2 + $0x122] sm:$0xff]
      %v603 = vld [vmem:[#allocation2 + $0x12a] sm:$0xff]
      %v604 = vld [vmem:[#allocation2 + $0x13a] sm:$0xff]
      %v605 = vld [vmem:[#allocation2 + $0x142] sm:$0xff]
      %v606 = vld [vmem:[#allocation2 + $0x152] sm:$0xff]
      %v607 = vld [vmem:[#allocation2 + $0x15a] sm:$0xff]
      %v608 = vld [vmem:[#allocation2 + $0x16a] sm:$0xff]
      %v609 = vld [vmem:[#allocation2 + $0x172] sm:$0xff]
      %642 = vrot.lane.b32.xlu0 %v578, 8
      %v643 = vpop.permute.xlu0 %642
      %644 = vrot.lane.b32.xlu0 %v579, 8
      %v645 = vpop.permute.xlu0 %644
      %646 = vrot.lane.b32.xlu0 %v580, 8
      %v647 = vpop.permute.xlu0 %646
      %648 = vrot.lane.b32.xlu0 %v581, 8
      %v649 = vpop.permute.xlu0 %648
      %650 = vrot.lane.b32.xlu0 %v582, 8
      %v651 = vpop.permute.xlu0 %650
      %652 = vrot.lane.b32.xlu0 %v583, 8
      %v653 = vpop.permute.xlu0 %652
      %654 = vrot.lane.b32.xlu0 %v584, 8
      %v655 = vpop.permute.xlu0 %654
      %656 = vrot.lane.b32.xlu0 %v585, 8
      %v657 = vpop.permute.xlu0 %656
      %658 = vrot.lane.b32.xlu0 %v586, 8
      %v659 = vpop.permute.xlu0 %658
      %660 = vrot.lane.b32.xlu0 %v587, 8
      %v661 = vpop.permute.xlu0 %660
      %662 = vrot.lane.b32.xlu0 %v588, 8
      %v663 = vpop.permute.xlu0 %662
      %664 = vrot.lane.b32.xlu0 %v589, 8
      %v665 = vpop.permute.xlu0 %664
      %666 = vrot.lane.b32.xlu0 %v590, 8
      %v667 = vpop.permute.xlu0 %666
      %668 = vrot.lane.b32.xlu0 %v591, 8
      %v669 = vpop.permute.xlu0 %668
      %670 = vrot.lane.b32.xlu0 %v592, 8
      %v671 = vpop.permute.xlu0 %670
      %672 = vrot.lane.b32.xlu0 %v593, 8
      %v673 = vpop.permute.xlu0 %672
      %674 = vrot.lane.b32.xlu0 %v594, 8
      %v675 = vpop.permute.xlu0 %674
      %676 = vrot.lane.b32.xlu0 %v595, 8
      %v677 = vpop.permute.xlu0 %676
      %678 = vrot.lane.b32.xlu0 %v596, 8
      %v679 = vpop.permute.xlu0 %678
      %680 = vrot.lane.b32.xlu0 %v597, 8
      %v681 = vpop.permute.xlu0 %680
      %682 = vrot.lane.b32.xlu0 %v598, 8
      %v683 = vpop.permute.xlu0 %682
      %684 = vrot.lane.b32.xlu0 %v599, 8
      %v685 = vpop.permute.xlu0 %684
      %686 = vrot.lane.b32.xlu0 %v600, 8
      %v687 = vpop.permute.xlu0 %686
      %688 = vrot.lane.b32.xlu0 %v601, 8
      %v689 = vpop.permute.xlu0 %688
      %690 = vrot.lane.b32.xlu0 %v602, 8
      %v691 = vpop.permute.xlu0 %690
      %692 = vrot.lane.b32.xlu0 %v603, 8
      %v693 = vpop.permute.xlu0 %692
      %694 = vrot.lane.b32.xlu0 %v604, 8
      %v695 = vpop.permute.xlu0 %694
      %696 = vrot.lane.b32.xlu0 %v605, 8
      %v697 = vpop.permute.xlu0 %696
      %698 = vrot.lane.b32.xlu0 %v606, 8
      %v699 = vpop.permute.xlu0 %698
      %700 = vrot.lane.b32.xlu0 %v607, 8
      %v701 = vpop.permute.xlu0 %700
      %702 = vrot.lane.b32.xlu0 %v608, 8
      %v703 = vpop.permute.xlu0 %702
      %704 = vrot.lane.b32.xlu0 %v609, 8
      %v705 = vpop.permute.xlu0 %704
      %vm738 = vcmask 97344
      %739 = vst.msk [vmem:[#allocation3] sm:$0xff] %vm738, %v643
      %740 = vst.msk [vmem:[#allocation3 + $0x8] sm:$0xff] %vm738, %v645
      %741 = vst.msk [vmem:[#allocation3 + $0x10] sm:$0xff] %vm738, %v647
      %742 = vst.msk [vmem:[#allocation3 + $0x18] sm:$0xff] %vm738, %v649
      %743 = vst.msk [vmem:[#allocation3 + $0x20] sm:$0xff] %vm738, %v651
      %744 = vst.msk [vmem:[#allocation3 + $0x28] sm:$0xff] %vm738, %v653
      %745 = vst.msk [vmem:[#allocation3 + $0x30] sm:$0xff] %vm738, %v655
      %746 = vst.msk [vmem:[#allocation3 + $0x38] sm:$0xff] %vm738, %v657
      %747 = vst.msk [vmem:[#allocation3 + $0x40] sm:$0xff] %vm738, %v659
      %748 = vst.msk [vmem:[#allocation3 + $0x48] sm:$0xff] %vm738, %v661
      %749 = vst.msk [vmem:[#allocation3 + $0x50] sm:$0xff] %vm738, %v663
      %750 = vst.msk [vmem:[#allocation3 + $0x58] sm:$0xff] %vm738, %v665
      %751 = vst.msk [vmem:[#allocation3 + $0x60] sm:$0xff] %vm738, %v667
      %752 = vst.msk [vmem:[#allocation3 + $0x68] sm:$0xff] %vm738, %v669
      %753 = vst.msk [vmem:[#allocation3 + $0x70] sm:$0xff] %vm738, %v671
      %754 = vst.msk [vmem:[#allocation3 + $0x78] sm:$0xff] %vm738, %v673
      %755 = vst.msk [vmem:[#allocation3 + $0x80] sm:$0xff] %vm738, %v675
      %756 = vst.msk [vmem:[#allocation3 + $0x88] sm:$0xff] %vm738, %v677
      %757 = vst.msk [vmem:[#allocation3 + $0x90] sm:$0xff] %vm738, %v679
      %758 = vst.msk [vmem:[#allocation3 + $0x98] sm:$0xff] %vm738, %v681
      %759 = vst.msk [vmem:[#allocation3 + $0xa0] sm:$0xff] %vm738, %v683
      %760 = vst.msk [vmem:[#allocation3 + $0xa8] sm:$0xff] %vm738, %v685
      %761 = vst.msk [vmem:[#allocation3 + $0xb0] sm:$0xff] %vm738, %v687
      %762 = vst.msk [vmem:[#allocation3 + $0xb8] sm:$0xff] %vm738, %v689
      %763 = vst.msk [vmem:[#allocation3 + $0xc0] sm:$0xff] %vm738, %v691
      %764 = vst.msk [vmem:[#allocation3 + $0xc8] sm:$0xff] %vm738, %v693
      %765 = vst.msk [vmem:[#allocation3 + $0xd0] sm:$0xff] %vm738, %v695
      %766 = vst.msk [vmem:[#allocation3 + $0xd8] sm:$0xff] %vm738, %v697
      %767 = vst.msk [vmem:[#allocation3 + $0xe0] sm:$0xff] %vm738, %v699
      %768 = vst.msk [vmem:[#allocation3 + $0xe8] sm:$0xff] %vm738, %v701
      %769 = vst.msk [vmem:[#allocation3 + $0xf0] sm:$0xff] %vm738, %v703
      %770 = vst.msk [vmem:[#allocation3 + $0xf8] sm:$0xff] %vm738, %v705
      %v771 = vld [vmem:[%s288] sm:$0xff]
      %v772 = vld [vmem:[%s288 + $0x8] sm:$0xff]
      %v773 = vld [vmem:[%s288 + $0x18] sm:$0xff]
      %v774 = vld [vmem:[%s288 + $0x20] sm:$0xff]
      %v775 = vld [vmem:[%s288 + $0x30] sm:$0xff]
      %v776 = vld [vmem:[%s288 + $0x38] sm:$0xff]
      %v777 = vld [vmem:[%s288 + $0x48] sm:$0xff]
      %v778 = vld [vmem:[%s288 + $0x50] sm:$0xff]
      %v779 = vld [vmem:[%s288 + $0x60] sm:$0xff]
      %v780 = vld [vmem:[%s288 + $0x68] sm:$0xff]
      %v781 = vld [vmem:[%s288 + $0x78] sm:$0xff]
      %v782 = vld [vmem:[%s288 + $0x80] sm:$0xff]
      %v783 = vld [vmem:[%s288 + $0x90] sm:$0xff]
      %v784 = vld [vmem:[%s288 + $0x98] sm:$0xff]
      %v785 = vld [vmem:[%s288 + $0xa8] sm:$0xff]
      %v786 = vld [vmem:[%s288 + $0xb0] sm:$0xff]
      %v787 = vld [vmem:[%s288 + $0xc0] sm:$0xff]
      %v788 = vld [vmem:[%s288 + $0xc8] sm:$0xff]
      %v789 = vld [vmem:[%s288 + $0xd8] sm:$0xff]
      %v790 = vld [vmem:[%s288 + $0xe0] sm:$0xff]
      %v791 = vld [vmem:[%s288 + $0xf0] sm:$0xff]
      %v792 = vld [vmem:[%s288 + $0xf8] sm:$0xff]
      %v793 = vld [vmem:[%s288 + $0x108] sm:$0xff]
      %v794 = vld [vmem:[%s288 + $0x110] sm:$0xff]
      %v795 = vld [vmem:[%s288 + $0x120] sm:$0xff]
      %v796 = vld [vmem:[%s288 + $0x128] sm:$0xff]
      %v797 = vld [vmem:[%s288 + $0x138] sm:$0xff]
      %v798 = vld [vmem:[%s288 + $0x140] sm:$0xff]
      %v799 = vld [vmem:[%s288 + $0x150] sm:$0xff]
      %v800 = vld [vmem:[%s288 + $0x158] sm:$0xff]
      %v801 = vld [vmem:[%s288 + $0x168] sm:$0xff]
      %v802 = vld [vmem:[%s288 + $0x170] sm:$0xff]
      %835 = vrot.lane.b32.xlu0 %v771, 12
      %v836 = vpop.permute.xlu0 %835
      %837 = vrot.lane.b32.xlu0 %v772, 12
      %v838 = vpop.permute.xlu0 %837
      %839 = vrot.lane.b32.xlu0 %v773, 12
      %v840 = vpop.permute.xlu0 %839
      %841 = vrot.lane.b32.xlu0 %v774, 12
      %v842 = vpop.permute.xlu0 %841
      %843 = vrot.lane.b32.xlu0 %v775, 12
      %v844 = vpop.permute.xlu0 %843
      %845 = vrot.lane.b32.xlu0 %v776, 12
      %v846 = vpop.permute.xlu0 %845
      %847 = vrot.lane.b32.xlu0 %v777, 12
      %v848 = vpop.permute.xlu0 %847
      %849 = vrot.lane.b32.xlu0 %v778, 12
      %v850 = vpop.permute.xlu0 %849
      %851 = vrot.lane.b32.xlu0 %v779, 12
      %v852 = vpop.permute.xlu0 %851
      %853 = vrot.lane.b32.xlu0 %v780, 12
      %v854 = vpop.permute.xlu0 %853
      %855 = vrot.lane.b32.xlu0 %v781, 12
      %v856 = vpop.permute.xlu0 %855
      %857 = vrot.lane.b32.xlu0 %v782, 12
      %v858 = vpop.permute.xlu0 %857
      %859 = vrot.lane.b32.xlu0 %v783, 12
      %v860 = vpop.permute.xlu0 %859
      %861 = vrot.lane.b32.xlu0 %v784, 12
      %v862 = vpop.permute.xlu0 %861
      %863 = vrot.lane.b32.xlu0 %v785, 12
      %v864 = vpop.permute.xlu0 %863
      %865 = vrot.lane.b32.xlu0 %v786, 12
      %v866 = vpop.permute.xlu0 %865
      %867 = vrot.lane.b32.xlu0 %v787, 12
      %v868 = vpop.permute.xlu0 %867
      %869 = vrot.lane.b32.xlu0 %v788, 12
      %v870 = vpop.permute.xlu0 %869
      %871 = vrot.lane.b32.xlu0 %v789, 12
      %v872 = vpop.permute.xlu0 %871
      %873 = vrot.lane.b32.xlu0 %v790, 12
      %v874 = vpop.permute.xlu0 %873
      %875 = vrot.lane.b32.xlu0 %v791, 12
      %v876 = vpop.permute.xlu0 %875
      %877 = vrot.lane.b32.xlu0 %v792, 12
      %v878 = vpop.permute.xlu0 %877
      %879 = vrot.lane.b32.xlu0 %v793, 12
      %v880 = vpop.permute.xlu0 %879
      %881 = vrot.lane.b32.xlu0 %v794, 12
      %v882 = vpop.permute.xlu0 %881
      %883 = vrot.lane.b32.xlu0 %v795, 12
      %v884 = vpop.permute.xlu0 %883
      %885 = vrot.lane.b32.xlu0 %v796, 12
      %v886 = vpop.permute.xlu0 %885
      %887 = vrot.lane.b32.xlu0 %v797, 12
      %v888 = vpop.permute.xlu0 %887
      %889 = vrot.lane.b32.xlu0 %v798, 12
      %v890 = vpop.permute.xlu0 %889
      %891 = vrot.lane.b32.xlu0 %v799, 12
      %v892 = vpop.permute.xlu0 %891
      %893 = vrot.lane.b32.xlu0 %v800, 12
      %v894 = vpop.permute.xlu0 %893
      %895 = vrot.lane.b32.xlu0 %v801, 12
      %v896 = vpop.permute.xlu0 %895
      %897 = vrot.lane.b32.xlu0 %v802, 12
      %v898 = vpop.permute.xlu0 %897
      %vm931 = vcmask 130144
      %932 = vst.msk [vmem:[#allocation3] sm:$0xff] %vm931, %v836
      %933 = vst.msk [vmem:[#allocation3 + $0x8] sm:$0xff] %vm931, %v838
      %934 = vst.msk [vmem:[#allocation3 + $0x10] sm:$0xff] %vm931, %v840
      %935 = vst.msk [vmem:[#allocation3 + $0x18] sm:$0xff] %vm931, %v842
      %936 = vst.msk [vmem:[#allocation3 + $0x20] sm:$0xff] %vm931, %v844
      %937 = vst.msk [vmem:[#allocation3 + $0x28] sm:$0xff] %vm931, %v846
      %938 = vst.msk [vmem:[#allocation3 + $0x30] sm:$0xff] %vm931, %v848
      %939 = vst.msk [vmem:[#allocation3 + $0x38] sm:$0xff] %vm931, %v850
      %940 = vst.msk [vmem:[#allocation3 + $0x40] sm:$0xff] %vm931, %v852
      %941 = vst.msk [vmem:[#allocation3 + $0x48] sm:$0xff] %vm931, %v854
      %942 = vst.msk [vmem:[#allocation3 + $0x50] sm:$0xff] %vm931, %v856
      %943 = vst.msk [vmem:[#allocation3 + $0x58] sm:$0xff] %vm931, %v858
      %944 = vst.msk [vmem:[#allocation3 + $0x60] sm:$0xff] %vm931, %v860
      %945 = vst.msk [vmem:[#allocation3 + $0x68] sm:$0xff] %vm931, %v862
      %946 = vst.msk [vmem:[#allocation3 + $0x70] sm:$0xff] %vm931, %v864
      %947 = vst.msk [vmem:[#allocation3 + $0x78] sm:$0xff] %vm931, %v866
      %948 = vst.msk [vmem:[#allocation3 + $0x80] sm:$0xff] %vm931, %v868
      %949 = vst.msk [vmem:[#allocation3 + $0x88] sm:$0xff] %vm931, %v870
      %950 = vst.msk [vmem:[#allocation3 + $0x90] sm:$0xff] %vm931, %v872
      %951 = vst.msk [vmem:[#allocation3 + $0x98] sm:$0xff] %vm931, %v874
      %952 = vst.msk [vmem:[#allocation3 + $0xa0] sm:$0xff] %vm931, %v876
      %953 = vst.msk [vmem:[#allocation3 + $0xa8] sm:$0xff] %vm931, %v878
      %954 = vst.msk [vmem:[#allocation3 + $0xb0] sm:$0xff] %vm931, %v880
      %955 = vst.msk [vmem:[#allocation3 + $0xb8] sm:$0xff] %vm931, %v882
      %956 = vst.msk [vmem:[#allocation3 + $0xc0] sm:$0xff] %vm931, %v884
      %957 = vst.msk [vmem:[#allocation3 + $0xc8] sm:$0xff] %vm931, %v886
      %958 = vst.msk [vmem:[#allocation3 + $0xd0] sm:$0xff] %vm931, %v888
      %959 = vst.msk [vmem:[#allocation3 + $0xd8] sm:$0xff] %vm931, %v890
      %960 = vst.msk [vmem:[#allocation3 + $0xe0] sm:$0xff] %vm931, %v892
      %961 = vst.msk [vmem:[#allocation3 + $0xe8] sm:$0xff] %vm931, %v894
      %962 = vst.msk [vmem:[#allocation3 + $0xf0] sm:$0xff] %vm931, %v896
      %963 = vst.msk [vmem:[#allocation3 + $0xf8] sm:$0xff] %vm931, %v898
      %v964 = vld [vmem:[%s288 + $0x1] sm:$0xff]
      %v965 = vld [vmem:[%s288 + $0x9] sm:$0xff]
      %v966 = vld [vmem:[%s288 + $0x19] sm:$0xff]
      %v967 = vld [vmem:[%s288 + $0x21] sm:$0xff]
      %v968 = vld [vmem:[%s288 + $0x31] sm:$0xff]
      %v969 = vld [vmem:[%s288 + $0x39] sm:$0xff]
      %v970 = vld [vmem:[%s288 + $0x49] sm:$0xff]
      %v971 = vld [vmem:[%s288 + $0x51] sm:$0xff]
      %v972 = vld [vmem:[%s288 + $0x61] sm:$0xff]
      %v973 = vld [vmem:[%s288 + $0x69] sm:$0xff]
      %v974 = vld [vmem:[%s288 + $0x79] sm:$0xff]
      %v975 = vld [vmem:[%s288 + $0x81] sm:$0xff]
      %v976 = vld [vmem:[%s288 + $0x91] sm:$0xff]
      %v977 = vld [vmem:[%s288 + $0x99] sm:$0xff]
      %v978 = vld [vmem:[%s288 + $0xa9] sm:$0xff]
      %v979 = vld [vmem:[%s288 + $0xb1] sm:$0xff]
      %v980 = vld [vmem:[%s288 + $0xc1] sm:$0xff]
      %v981 = vld [vmem:[%s288 + $0xc9] sm:$0xff]
      %v982 = vld [vmem:[%s288 + $0xd9] sm:$0xff]
      %v983 = vld [vmem:[%s288 + $0xe1] sm:$0xff]
      %v984 = vld [vmem:[%s288 + $0xf1] sm:$0xff]
      %v985 = vld [vmem:[%s288 + $0xf9] sm:$0xff]
      %v986 = vld [vmem:[%s288 + $0x109] sm:$0xff]
      %v987 = vld [vmem:[%s288 + $0x111] sm:$0xff]
      %v988 = vld [vmem:[%s288 + $0x121] sm:$0xff]
      %v989 = vld [vmem:[%s288 + $0x129] sm:$0xff]
      %v990 = vld [vmem:[%s288 + $0x139] sm:$0xff]
      %v991 = vld [vmem:[%s288 + $0x141] sm:$0xff]
      %v992 = vld [vmem:[%s288 + $0x151] sm:$0xff]
      %v993 = vld [vmem:[%s288 + $0x159] sm:$0xff]
      %v994 = vld [vmem:[%s288 + $0x169] sm:$0xff]
      %v995 = vld [vmem:[%s288 + $0x171] sm:$0xff]
      %1028 = vrot.lane.b32.xlu0 %v964, 16
      %v1029 = vpop.permute.xlu0 %1028
      %1030 = vrot.lane.b32.xlu0 %v965, 16
      %v1031 = vpop.permute.xlu0 %1030
      %1032 = vrot.lane.b32.xlu0 %v966, 16
      %v1033 = vpop.permute.xlu0 %1032
      %1034 = vrot.lane.b32.xlu0 %v967, 16
      %v1035 = vpop.permute.xlu0 %1034
      %1036 = vrot.lane.b32.xlu0 %v968, 16
      %v1037 = vpop.permute.xlu0 %1036
      %1038 = vrot.lane.b32.xlu0 %v969, 16
      %v1039 = vpop.permute.xlu0 %1038
      %1040 = vrot.lane.b32.xlu0 %v970, 16
      %v1041 = vpop.permute.xlu0 %1040
      %1042 = vrot.lane.b32.xlu0 %v971, 16
      %v1043 = vpop.permute.xlu0 %1042
      %1044 = vrot.lane.b32.xlu0 %v972, 16
      %v1045 = vpop.permute.xlu0 %1044
      %1046 = vrot.lane.b32.xlu0 %v973, 16
      %v1047 = vpop.permute.xlu0 %1046
      %1048 = vrot.lane.b32.xlu0 %v974, 16
      %v1049 = vpop.permute.xlu0 %1048
      %1050 = vrot.lane.b32.xlu0 %v975, 16
      %v1051 = vpop.permute.xlu0 %1050
      %1052 = vrot.lane.b32.xlu0 %v976, 16
      %v1053 = vpop.permute.xlu0 %1052
      %1054 = vrot.lane.b32.xlu0 %v977, 16
      %v1055 = vpop.permute.xlu0 %1054
      %1056 = vrot.lane.b32.xlu0 %v978, 16
      %v1057 = vpop.permute.xlu0 %1056
      %1058 = vrot.lane.b32.xlu0 %v979, 16
      %v1059 = vpop.permute.xlu0 %1058
      %1060 = vrot.lane.b32.xlu0 %v980, 16
      %v1061 = vpop.permute.xlu0 %1060
      %1062 = vrot.lane.b32.xlu0 %v981, 16
      %v1063 = vpop.permute.xlu0 %1062
      %1064 = vrot.lane.b32.xlu0 %v982, 16
      %v1065 = vpop.permute.xlu0 %1064
      %1066 = vrot.lane.b32.xlu0 %v983, 16
      %v1067 = vpop.permute.xlu0 %1066
      %1068 = vrot.lane.b32.xlu0 %v984, 16
      %v1069 = vpop.permute.xlu0 %1068
      %1070 = vrot.lane.b32.xlu0 %v985, 16
      %v1071 = vpop.permute.xlu0 %1070
      %1072 = vrot.lane.b32.xlu0 %v986, 16
      %v1073 = vpop.permute.xlu0 %1072
      %1074 = vrot.lane.b32.xlu0 %v987, 16
      %v1075 = vpop.permute.xlu0 %1074
      %1076 = vrot.lane.b32.xlu0 %v988, 16
      %v1077 = vpop.permute.xlu0 %1076
      %1078 = vrot.lane.b32.xlu0 %v989, 16
      %v1079 = vpop.permute.xlu0 %1078
      %1080 = vrot.lane.b32.xlu0 %v990, 16
      %v1081 = vpop.permute.xlu0 %1080
      %1082 = vrot.lane.b32.xlu0 %v991, 16
      %v1083 = vpop.permute.xlu0 %1082
      %1084 = vrot.lane.b32.xlu0 %v992, 16
      %v1085 = vpop.permute.xlu0 %1084
      %1086 = vrot.lane.b32.xlu0 %v993, 16
      %v1087 = vpop.permute.xlu0 %1086
      %1088 = vrot.lane.b32.xlu0 %v994, 16
      %v1089 = vpop.permute.xlu0 %1088
      %1090 = vrot.lane.b32.xlu0 %v995, 16
      %v1091 = vpop.permute.xlu0 %1090
      %vm1124 = vcmask 162944
      %1125 = vst.msk [vmem:[#allocation3] sm:$0xff] %vm1124, %v1029
      %1126 = vst.msk [vmem:[#allocation3 + $0x8] sm:$0xff] %vm1124, %v1031
      %1127 = vst.msk [vmem:[#allocation3 + $0x10] sm:$0xff] %vm1124, %v1033
      %1128 = vst.msk [vmem:[#allocation3 + $0x18] sm:$0xff] %vm1124, %v1035
      %1129 = vst.msk [vmem:[#allocation3 + $0x20] sm:$0xff] %vm1124, %v1037
      %1130 = vst.msk [vmem:[#allocation3 + $0x28] sm:$0xff] %vm1124, %v1039
      %1131 = vst.msk [vmem:[#allocation3 + $0x30] sm:$0xff] %vm1124, %v1041
      %1132 = vst.msk [vmem:[#allocation3 + $0x38] sm:$0xff] %vm1124, %v1043
      %1133 = vst.msk [vmem:[#allocation3 + $0x40] sm:$0xff] %vm1124, %v1045
      %1134 = vst.msk [vmem:[#allocation3 + $0x48] sm:$0xff] %vm1124, %v1047
      %1135 = vst.msk [vmem:[#allocation3 + $0x50] sm:$0xff] %vm1124, %v1049
      %1136 = vst.msk [vmem:[#allocation3 + $0x58] sm:$0xff] %vm1124, %v1051
      %1137 = vst.msk [vmem:[#allocation3 + $0x60] sm:$0xff] %vm1124, %v1053
      %1138 = vst.msk [vmem:[#allocation3 + $0x68] sm:$0xff] %vm1124, %v1055
      %1139 = vst.msk [vmem:[#allocation3 + $0x70] sm:$0xff] %vm1124, %v1057
      %1140 = vst.msk [vmem:[#allocation3 + $0x78] sm:$0xff] %vm1124, %v1059
      %1141 = vst.msk [vmem:[#allocation3 + $0x80] sm:$0xff] %vm1124, %v1061
      %1142 = vst.msk [vmem:[#allocation3 + $0x88] sm:$0xff] %vm1124, %v1063
      %1143 = vst.msk [vmem:[#allocation3 + $0x90] sm:$0xff] %vm1124, %v1065
      %1144 = vst.msk [vmem:[#allocation3 + $0x98] sm:$0xff] %vm1124, %v1067
      %1145 = vst.msk [vmem:[#allocation3 + $0xa0] sm:$0xff] %vm1124, %v1069
      %1146 = vst.msk [vmem:[#allocation3 + $0xa8] sm:$0xff] %vm1124, %v1071
      %1147 = vst.msk [vmem:[#allocation3 + $0xb0] sm:$0xff] %vm1124, %v1073
      %1148 = vst.msk [vmem:[#allocation3 + $0xb8] sm:$0xff] %vm1124, %v1075
      %1149 = vst.msk [vmem:[#allocation3 + $0xc0] sm:$0xff] %vm1124, %v1077
      %1150 = vst.msk [vmem:[#allocation3 + $0xc8] sm:$0xff] %vm1124, %v1079
      %1151 = vst.msk [vmem:[#allocation3 + $0xd0] sm:$0xff] %vm1124, %v1081
      %1152 = vst.msk [vmem:[#allocation3 + $0xd8] sm:$0xff] %vm1124, %v1083
      %1153 = vst.msk [vmem:[#allocation3 + $0xe0] sm:$0xff] %vm1124, %v1085
      %1154 = vst.msk [vmem:[#allocation3 + $0xe8] sm:$0xff] %vm1124, %v1087
      %1155 = vst.msk [vmem:[#allocation3 + $0xf0] sm:$0xff] %vm1124, %v1089
      %1156 = vst.msk [vmem:[#allocation3 + $0xf8] sm:$0xff] %vm1124, %v1091
      %v1157 = vld [vmem:[%s288 + $0x2] sm:$0xff]
      %v1158 = vld [vmem:[%s288 + $0xa] sm:$0xff]
      %v1159 = vld [vmem:[%s288 + $0x1a] sm:$0xff]
      %v1160 = vld [vmem:[%s288 + $0x22] sm:$0xff]
      %v1161 = vld [vmem:[%s288 + $0x32] sm:$0xff]
      %v1162 = vld [vmem:[%s288 + $0x3a] sm:$0xff]
      %v1163 = vld [vmem:[%s288 + $0x4a] sm:$0xff]
      %v1164 = vld [vmem:[%s288 + $0x52] sm:$0xff]
      %v1165 = vld [vmem:[%s288 + $0x62] sm:$0xff]
      %v1166 = vld [vmem:[%s288 + $0x6a] sm:$0xff]
      %v1167 = vld [vmem:[%s288 + $0x7a] sm:$0xff]
      %v1168 = vld [vmem:[%s288 + $0x82] sm:$0xff]
      %v1169 = vld [vmem:[%s288 + $0x92] sm:$0xff]
      %v1170 = vld [vmem:[%s288 + $0x9a] sm:$0xff]
      %v1171 = vld [vmem:[%s288 + $0xaa] sm:$0xff]
      %v1172 = vld [vmem:[%s288 + $0xb2] sm:$0xff]
      %v1173 = vld [vmem:[%s288 + $0xc2] sm:$0xff]
      %v1174 = vld [vmem:[%s288 + $0xca] sm:$0xff]
      %v1175 = vld [vmem:[%s288 + $0xda] sm:$0xff]
      %v1176 = vld [vmem:[%s288 + $0xe2] sm:$0xff]
      %v1177 = vld [vmem:[%s288 + $0xf2] sm:$0xff]
      %v1178 = vld [vmem:[%s288 + $0xfa] sm:$0xff]
      %v1179 = vld [vmem:[%s288 + $0x10a] sm:$0xff]
      %v1180 = vld [vmem:[%s288 + $0x112] sm:$0xff]
      %v1181 = vld [vmem:[%s288 + $0x122] sm:$0xff]
      %v1182 = vld [vmem:[%s288 + $0x12a] sm:$0xff]
      %v1183 = vld [vmem:[%s288 + $0x13a] sm:$0xff]
      %v1184 = vld [vmem:[%s288 + $0x142] sm:$0xff]
      %v1185 = vld [vmem:[%s288 + $0x152] sm:$0xff]
      %v1186 = vld [vmem:[%s288 + $0x15a] sm:$0xff]
      %v1187 = vld [vmem:[%s288 + $0x16a] sm:$0xff]
      %v1188 = vld [vmem:[%s288 + $0x172] sm:$0xff]
      %1221 = vrot.lane.b32.xlu0 %v1157, 20
      %v1222 = vpop.permute.xlu0 %1221
      %1223 = vrot.lane.b32.xlu0 %v1158, 20
      %v1224 = vpop.permute.xlu0 %1223
      %1225 = vrot.lane.b32.xlu0 %v1159, 20
      %v1226 = vpop.permute.xlu0 %1225
      %1227 = vrot.lane.b32.xlu0 %v1160, 20
      %v1228 = vpop.permute.xlu0 %1227
      %1229 = vrot.lane.b32.xlu0 %v1161, 20
      %v1230 = vpop.permute.xlu0 %1229
      %1231 = vrot.lane.b32.xlu0 %v1162, 20
      %v1232 = vpop.permute.xlu0 %1231
      %1233 = vrot.lane.b32.xlu0 %v1163, 20
      %v1234 = vpop.permute.xlu0 %1233
      %1235 = vrot.lane.b32.xlu0 %v1164, 20
      %v1236 = vpop.permute.xlu0 %1235
      %1237 = vrot.lane.b32.xlu0 %v1165, 20
      %v1238 = vpop.permute.xlu0 %1237
      %1239 = vrot.lane.b32.xlu0 %v1166, 20
      %v1240 = vpop.permute.xlu0 %1239
      %1241 = vrot.lane.b32.xlu0 %v1167, 20
      %v1242 = vpop.permute.xlu0 %1241
      %1243 = vrot.lane.b32.xlu0 %v1168, 20
      %v1244 = vpop.permute.xlu0 %1243
      %1245 = vrot.lane.b32.xlu0 %v1169, 20
      %v1246 = vpop.permute.xlu0 %1245
      %1247 = vrot.lane.b32.xlu0 %v1170, 20
      %v1248 = vpop.permute.xlu0 %1247
      %1249 = vrot.lane.b32.xlu0 %v1171, 20
      %v1250 = vpop.permute.xlu0 %1249
      %1251 = vrot.lane.b32.xlu0 %v1172, 20
      %v1252 = vpop.permute.xlu0 %1251
      %1253 = vrot.lane.b32.xlu0 %v1173, 20
      %v1254 = vpop.permute.xlu0 %1253
      %1255 = vrot.lane.b32.xlu0 %v1174, 20
      %v1256 = vpop.permute.xlu0 %1255
      %1257 = vrot.lane.b32.xlu0 %v1175, 20
      %v1258 = vpop.permute.xlu0 %1257
      %1259 = vrot.lane.b32.xlu0 %v1176, 20
      %v1260 = vpop.permute.xlu0 %1259
      %1261 = vrot.lane.b32.xlu0 %v1177, 20
      %v1262 = vpop.permute.xlu0 %1261
      %1263 = vrot.lane.b32.xlu0 %v1178, 20
      %v1264 = vpop.permute.xlu0 %1263
      %1265 = vrot.lane.b32.xlu0 %v1179, 20
      %v1266 = vpop.permute.xlu0 %1265
      %1267 = vrot.lane.b32.xlu0 %v1180, 20
      %v1268 = vpop.permute.xlu0 %1267
      %1269 = vrot.lane.b32.xlu0 %v1181, 20
      %v1270 = vpop.permute.xlu0 %1269
      %1271 = vrot.lane.b32.xlu0 %v1182, 20
      %v1272 = vpop.permute.xlu0 %1271
      %1273 = vrot.lane.b32.xlu0 %v1183, 20
      %v1274 = vpop.permute.xlu0 %1273
      %1275 = vrot.lane.b32.xlu0 %v1184, 20
      %v1276 = vpop.permute.xlu0 %1275
      %1277 = vrot.lane.b32.xlu0 %v1185, 20
      %v1278 = vpop.permute.xlu0 %1277
      %1279 = vrot.lane.b32.xlu0 %v1186, 20
      %v1280 = vpop.permute.xlu0 %1279
      %1281 = vrot.lane.b32.xlu0 %v1187, 20
      %v1282 = vpop.permute.xlu0 %1281
      %1283 = vrot.lane.b32.xlu0 %v1188, 20
      %v1284 = vpop.permute.xlu0 %1283
      %vm1317 = vcmask 195744
      %1318 = vst.msk [vmem:[#allocation3] sm:$0xff] %vm1317, %v1222
      %1319 = vst.msk [vmem:[#allocation3 + $0x8] sm:$0xff] %vm1317, %v1224
      %1320 = vst.msk [vmem:[#allocation3 + $0x10] sm:$0xff] %vm1317, %v1226
      %1321 = vst.msk [vmem:[#allocation3 + $0x18] sm:$0xff] %vm1317, %v1228
      %1322 = vst.msk [vmem:[#allocation3 + $0x20] sm:$0xff] %vm1317, %v1230
      %1323 = vst.msk [vmem:[#allocation3 + $0x28] sm:$0xff] %vm1317, %v1232
      %1324 = vst.msk [vmem:[#allocation3 + $0x30] sm:$0xff] %vm1317, %v1234
      %1325 = vst.msk [vmem:[#allocation3 + $0x38] sm:$0xff] %vm1317, %v1236
      %1326 = vst.msk [vmem:[#allocation3 + $0x40] sm:$0xff] %vm1317, %v1238
      %1327 = vst.msk [vmem:[#allocation3 + $0x48] sm:$0xff] %vm1317, %v1240
      %1328 = vst.msk [vmem:[#allocation3 + $0x50] sm:$0xff] %vm1317, %v1242
      %1329 = vst.msk [vmem:[#allocation3 + $0x58] sm:$0xff] %vm1317, %v1244
      %1330 = vst.msk [vmem:[#allocation3 + $0x60] sm:$0xff] %vm1317, %v1246
      %1331 = vst.msk [vmem:[#allocation3 + $0x68] sm:$0xff] %vm1317, %v1248
      %1332 = vst.msk [vmem:[#allocation3 + $0x70] sm:$0xff] %vm1317, %v1250
      %1333 = vst.msk [vmem:[#allocation3 + $0x78] sm:$0xff] %vm1317, %v1252
      %1334 = vst.msk [vmem:[#allocation3 + $0x80] sm:$0xff] %vm1317, %v1254
      %1335 = vst.msk [vmem:[#allocation3 + $0x88] sm:$0xff] %vm1317, %v1256
      %1336 = vst.msk [vmem:[#allocation3 + $0x90] sm:$0xff] %vm1317, %v1258
      %1337 = vst.msk [vmem:[#allocation3 + $0x98] sm:$0xff] %vm1317, %v1260
      %1338 = vst.msk [vmem:[#allocation3 + $0xa0] sm:$0xff] %vm1317, %v1262
      %1339 = vst.msk [vmem:[#allocation3 + $0xa8] sm:$0xff] %vm1317, %v1264
      %1340 = vst.msk [vmem:[#allocation3 + $0xb0] sm:$0xff] %vm1317, %v1266
      %1341 = vst.msk [vmem:[#allocation3 + $0xb8] sm:$0xff] %vm1317, %v1268
      %1342 = vst.msk [vmem:[#allocation3 + $0xc0] sm:$0xff] %vm1317, %v1270
      %1343 = vst.msk [vmem:[#allocation3 + $0xc8] sm:$0xff] %vm1317, %v1272
      %1344 = vst.msk [vmem:[#allocation3 + $0xd0] sm:$0xff] %vm1317, %v1274
      %1345 = vst.msk [vmem:[#allocation3 + $0xd8] sm:$0xff] %vm1317, %v1276
      %1346 = vst.msk [vmem:[#allocation3 + $0xe0] sm:$0xff] %vm1317, %v1278
      %1347 = vst.msk [vmem:[#allocation3 + $0xe8] sm:$0xff] %vm1317, %v1280
      %1348 = vst.msk [vmem:[#allocation3 + $0xf0] sm:$0xff] %vm1317, %v1282
      %1349 = vst.msk [vmem:[#allocation3 + $0xf8] sm:$0xff] %vm1317, %v1284
      %s1350 = scalar_lea.vmem [#allocation2], 48
      %v1351 = vld [vmem:[%s1350] sm:$0xff]
      %v1352 = vld [vmem:[%s1350 + $0x8] sm:$0xff]
      %v1353 = vld [vmem:[%s1350 + $0x18] sm:$0xff]
      %v1354 = vld [vmem:[%s1350 + $0x20] sm:$0xff]
      %v1355 = vld [vmem:[%s1350 + $0x30] sm:$0xff]
      %v1356 = vld [vmem:[%s1350 + $0x38] sm:$0xff]
      %v1357 = vld [vmem:[%s1350 + $0x48] sm:$0xff]
      %v1358 = vld [vmem:[%s1350 + $0x50] sm:$0xff]
      %v1359 = vld [vmem:[%s1350 + $0x60] sm:$0xff]
      %v1360 = vld [vmem:[%s1350 + $0x68] sm:$0xff]
      %v1361 = vld [vmem:[%s1350 + $0x78] sm:$0xff]
      %v1362 = vld [vmem:[%s1350 + $0x80] sm:$0xff]
      %v1363 = vld [vmem:[%s1350 + $0x90] sm:$0xff]
      %v1364 = vld [vmem:[%s1350 + $0x98] sm:$0xff]
      %v1365 = vld [vmem:[%s1350 + $0xa8] sm:$0xff]
      %v1366 = vld [vmem:[%s1350 + $0xb0] sm:$0xff]
      %v1367 = vld [vmem:[%s1350 + $0xc0] sm:$0xff]
      %v1368 = vld [vmem:[%s1350 + $0xc8] sm:$0xff]
      %v1369 = vld [vmem:[%s1350 + $0xd8] sm:$0xff]
      %v1370 = vld [vmem:[%s1350 + $0xe0] sm:$0xff]
      %v1371 = vld [vmem:[%s1350 + $0xf0] sm:$0xff]
      %v1372 = vld [vmem:[%s1350 + $0xf8] sm:$0xff]
      %v1373 = vld [vmem:[%s1350 + $0x108] sm:$0xff]
      %v1374 = vld [vmem:[%s1350 + $0x110] sm:$0xff]
      %v1375 = vld [vmem:[%s1350 + $0x120] sm:$0xff]
      %v1376 = vld [vmem:[%s1350 + $0x128] sm:$0xff]
      %v1377 = vld [vmem:[%s1350 + $0x138] sm:$0xff]
      %v1378 = vld [vmem:[%s1350 + $0x140] sm:$0xff]
      %v1379 = vld [vmem:[%s1350 + $0x150] sm:$0xff]
      %v1380 = vld [vmem:[%s1350 + $0x158] sm:$0xff]
      %v1381 = vld [vmem:[%s1350 + $0x168] sm:$0xff]
      %v1382 = vld [vmem:[%s1350 + $0x170] sm:$0xff]
      %1415 = vrot.lane.b32.xlu0 %v1351, 24
      %v1416 = vpop.permute.xlu0 %1415
      %1417 = vrot.lane.b32.xlu0 %v1352, 24
      %v1418 = vpop.permute.xlu0 %1417
      %1419 = vrot.lane.b32.xlu0 %v1353, 24
      %v1420 = vpop.permute.xlu0 %1419
      %1421 = vrot.lane.b32.xlu0 %v1354, 24
      %v1422 = vpop.permute.xlu0 %1421
      %1423 = vrot.lane.b32.xlu0 %v1355, 24
      %v1424 = vpop.permute.xlu0 %1423
      %1425 = vrot.lane.b32.xlu0 %v1356, 24
      %v1426 = vpop.permute.xlu0 %1425
      %1427 = vrot.lane.b32.xlu0 %v1357, 24
      %v1428 = vpop.permute.xlu0 %1427
      %1429 = vrot.lane.b32.xlu0 %v1358, 24
      %v1430 = vpop.permute.xlu0 %1429
      %1431 = vrot.lane.b32.xlu0 %v1359, 24
      %v1432 = vpop.permute.xlu0 %1431
      %1433 = vrot.lane.b32.xlu0 %v1360, 24
      %v1434 = vpop.permute.xlu0 %1433
      %1435 = vrot.lane.b32.xlu0 %v1361, 24
      %v1436 = vpop.permute.xlu0 %1435
      %1437 = vrot.lane.b32.xlu0 %v1362, 24
      %v1438 = vpop.permute.xlu0 %1437
      %1439 = vrot.lane.b32.xlu0 %v1363, 24
      %v1440 = vpop.permute.xlu0 %1439
      %1441 = vrot.lane.b32.xlu0 %v1364, 24
      %v1442 = vpop.permute.xlu0 %1441
      %1443 = vrot.lane.b32.xlu0 %v1365, 24
      %v1444 = vpop.permute.xlu0 %1443
      %1445 = vrot.lane.b32.xlu0 %v1366, 24
      %v1446 = vpop.permute.xlu0 %1445
      %1447 = vrot.lane.b32.xlu0 %v1367, 24
      %v1448 = vpop.permute.xlu0 %1447
      %1449 = vrot.lane.b32.xlu0 %v1368, 24
      %v1450 = vpop.permute.xlu0 %1449
      %1451 = vrot.lane.b32.xlu0 %v1369, 24
      %v1452 = vpop.permute.xlu0 %1451
      %1453 = vrot.lane.b32.xlu0 %v1370, 24
      %v1454 = vpop.permute.xlu0 %1453
      %1455 = vrot.lane.b32.xlu0 %v1371, 24
      %v1456 = vpop.permute.xlu0 %1455
      %1457 = vrot.lane.b32.xlu0 %v1372, 24
      %v1458 = vpop.permute.xlu0 %1457
      %1459 = vrot.lane.b32.xlu0 %v1373, 24
      %v1460 = vpop.permute.xlu0 %1459
      %1461 = vrot.lane.b32.xlu0 %v1374, 24
      %v1462 = vpop.permute.xlu0 %1461
      %1463 = vrot.lane.b32.xlu0 %v1375, 24
      %v1464 = vpop.permute.xlu0 %1463
      %1465 = vrot.lane.b32.xlu0 %v1376, 24
      %v1466 = vpop.permute.xlu0 %1465
      %1467 = vrot.lane.b32.xlu0 %v1377, 24
      %v1468 = vpop.permute.xlu0 %1467
      %1469 = vrot.lane.b32.xlu0 %v1378, 24
      %v1470 = vpop.permute.xlu0 %1469
      %1471 = vrot.lane.b32.xlu0 %v1379, 24
      %v1472 = vpop.permute.xlu0 %1471
      %1473 = vrot.lane.b32.xlu0 %v1380, 24
      %v1474 = vpop.permute.xlu0 %1473
      %1475 = vrot.lane.b32.xlu0 %v1381, 24
      %v1476 = vpop.permute.xlu0 %1475
      %1477 = vrot.lane.b32.xlu0 %v1382, 24
      %v1478 = vpop.permute.xlu0 %1477
      %vm1511 = vcmask 228544
      %1512 = vst.msk [vmem:[#allocation3] sm:$0xff] %vm1511, %v1416
      %1513 = vst.msk [vmem:[#allocation3 + $0x8] sm:$0xff] %vm1511, %v1418
      %1514 = vst.msk [vmem:[#allocation3 + $0x10] sm:$0xff] %vm1511, %v1420
      %1515 = vst.msk [vmem:[#allocation3 + $0x18] sm:$0xff] %vm1511, %v1422
      %1516 = vst.msk [vmem:[#allocation3 + $0x20] sm:$0xff] %vm1511, %v1424
      %1517 = vst.msk [vmem:[#allocation3 + $0x28] sm:$0xff] %vm1511, %v1426
      %1518 = vst.msk [vmem:[#allocation3 + $0x30] sm:$0xff] %vm1511, %v1428
      %1519 = vst.msk [vmem:[#allocation3 + $0x38] sm:$0xff] %vm1511, %v1430
      %1520 = vst.msk [vmem:[#allocation3 + $0x40] sm:$0xff] %vm1511, %v1432
      %1521 = vst.msk [vmem:[#allocation3 + $0x48] sm:$0xff] %vm1511, %v1434
      %1522 = vst.msk [vmem:[#allocation3 + $0x50] sm:$0xff] %vm1511, %v1436
      %1523 = vst.msk [vmem:[#allocation3 + $0x58] sm:$0xff] %vm1511, %v1438
      %1524 = vst.msk [vmem:[#allocation3 + $0x60] sm:$0xff] %vm1511, %v1440
      %1525 = vst.msk [vmem:[#allocation3 + $0x68] sm:$0xff] %vm1511, %v1442
      %1526 = vst.msk [vmem:[#allocation3 + $0x70] sm:$0xff] %vm1511, %v1444
      %1527 = vst.msk [vmem:[#allocation3 + $0x78] sm:$0xff] %vm1511, %v1446
      %1528 = vst.msk [vmem:[#allocation3 + $0x80] sm:$0xff] %vm1511, %v1448
      %1529 = vst.msk [vmem:[#allocation3 + $0x88] sm:$0xff] %vm1511, %v1450
      %1530 = vst.msk [vmem:[#allocation3 + $0x90] sm:$0xff] %vm1511, %v1452
      %1531 = vst.msk [vmem:[#allocation3 + $0x98] sm:$0xff] %vm1511, %v1454
      %1532 = vst.msk [vmem:[#allocation3 + $0xa0] sm:$0xff] %vm1511, %v1456
      %1533 = vst.msk [vmem:[#allocation3 + $0xa8] sm:$0xff] %vm1511, %v1458
      %1534 = vst.msk [vmem:[#allocation3 + $0xb0] sm:$0xff] %vm1511, %v1460
      %1535 = vst.msk [vmem:[#allocation3 + $0xb8] sm:$0xff] %vm1511, %v1462
      %1536 = vst.msk [vmem:[#allocation3 + $0xc0] sm:$0xff] %vm1511, %v1464
      %1537 = vst.msk [vmem:[#allocation3 + $0xc8] sm:$0xff] %vm1511, %v1466
      %1538 = vst.msk [vmem:[#allocation3 + $0xd0] sm:$0xff] %vm1511, %v1468
      %1539 = vst.msk [vmem:[#allocation3 + $0xd8] sm:$0xff] %vm1511, %v1470
      %1540 = vst.msk [vmem:[#allocation3 + $0xe0] sm:$0xff] %vm1511, %v1472
      %1541 = vst.msk [vmem:[#allocation3 + $0xe8] sm:$0xff] %vm1511, %v1474
      %1542 = vst.msk [vmem:[#allocation3 + $0xf0] sm:$0xff] %vm1511, %v1476
      %1543 = vst.msk [vmem:[#allocation3 + $0xf8] sm:$0xff] %vm1511, %v1478
      %v1544 = vld [vmem:[%s1350 + $0x1] sm:$0xff]
      %v1545 = vld [vmem:[%s1350 + $0x9] sm:$0xff]
      %v1546 = vld [vmem:[%s1350 + $0x19] sm:$0xff]
      %v1547 = vld [vmem:[%s1350 + $0x21] sm:$0xff]
      %v1548 = vld [vmem:[%s1350 + $0x31] sm:$0xff]
      %v1549 = vld [vmem:[%s1350 + $0x39] sm:$0xff]
      %v1550 = vld [vmem:[%s1350 + $0x49] sm:$0xff]
      %v1551 = vld [vmem:[%s1350 + $0x51] sm:$0xff]
      %v1552 = vld [vmem:[%s1350 + $0x61] sm:$0xff]
      %v1553 = vld [vmem:[%s1350 + $0x69] sm:$0xff]
      %v1554 = vld [vmem:[%s1350 + $0x79] sm:$0xff]
      %v1555 = vld [vmem:[%s1350 + $0x81] sm:$0xff]
      %v1556 = vld [vmem:[%s1350 + $0x91] sm:$0xff]
      %v1557 = vld [vmem:[%s1350 + $0x99] sm:$0xff]
      %v1558 = vld [vmem:[%s1350 + $0xa9] sm:$0xff]
      %v1559 = vld [vmem:[%s1350 + $0xb1] sm:$0xff]
      %v1560 = vld [vmem:[%s1350 + $0xc1] sm:$0xff]
      %v1561 = vld [vmem:[%s1350 + $0xc9] sm:$0xff]
      %v1562 = vld [vmem:[%s1350 + $0xd9] sm:$0xff]
      %v1563 = vld [vmem:[%s1350 + $0xe1] sm:$0xff]
      %v1564 = vld [vmem:[%s1350 + $0xf1] sm:$0xff]
      %v1565 = vld [vmem:[%s1350 + $0xf9] sm:$0xff]
      %v1566 = vld [vmem:[%s1350 + $0x109] sm:$0xff]
      %v1567 = vld [vmem:[%s1350 + $0x111] sm:$0xff]
      %v1568 = vld [vmem:[%s1350 + $0x121] sm:$0xff]
      %v1569 = vld [vmem:[%s1350 + $0x129] sm:$0xff]
      %v1570 = vld [vmem:[%s1350 + $0x139] sm:$0xff]
      %v1571 = vld [vmem:[%s1350 + $0x141] sm:$0xff]
      %v1572 = vld [vmem:[%s1350 + $0x151] sm:$0xff]
      %v1573 = vld [vmem:[%s1350 + $0x159] sm:$0xff]
      %v1574 = vld [vmem:[%s1350 + $0x169] sm:$0xff]
      %v1575 = vld [vmem:[%s1350 + $0x171] sm:$0xff]
      %1608 = vrot.lane.b32.xlu0 %v1544, 28
      %v1609 = vpop.permute.xlu0 %1608
      %1610 = vrot.lane.b32.xlu0 %v1545, 28
      %v1611 = vpop.permute.xlu0 %1610
      %1612 = vrot.lane.b32.xlu0 %v1546, 28
      %v1613 = vpop.permute.xlu0 %1612
      %1614 = vrot.lane.b32.xlu0 %v1547, 28
      %v1615 = vpop.permute.xlu0 %1614
      %1616 = vrot.lane.b32.xlu0 %v1548, 28
      %v1617 = vpop.permute.xlu0 %1616
      %1618 = vrot.lane.b32.xlu0 %v1549, 28
      %v1619 = vpop.permute.xlu0 %1618
      %1620 = vrot.lane.b32.xlu0 %v1550, 28
      %v1621 = vpop.permute.xlu0 %1620
      %1622 = vrot.lane.b32.xlu0 %v1551, 28
      %v1623 = vpop.permute.xlu0 %1622
      %1624 = vrot.lane.b32.xlu0 %v1552, 28
      %v1625 = vpop.permute.xlu0 %1624
      %1626 = vrot.lane.b32.xlu0 %v1553, 28
      %v1627 = vpop.permute.xlu0 %1626
      %1628 = vrot.lane.b32.xlu0 %v1554, 28
      %v1629 = vpop.permute.xlu0 %1628
      %1630 = vrot.lane.b32.xlu0 %v1555, 28
      %v1631 = vpop.permute.xlu0 %1630
      %1632 = vrot.lane.b32.xlu0 %v1556, 28
      %v1633 = vpop.permute.xlu0 %1632
      %1634 = vrot.lane.b32.xlu0 %v1557, 28
      %v1635 = vpop.permute.xlu0 %1634
      %1636 = vrot.lane.b32.xlu0 %v1558, 28
      %v1637 = vpop.permute.xlu0 %1636
      %1638 = vrot.lane.b32.xlu0 %v1559, 28
      %v1639 = vpop.permute.xlu0 %1638
      %1640 = vrot.lane.b32.xlu0 %v1560, 28
      %v1641 = vpop.permute.xlu0 %1640
      %1642 = vrot.lane.b32.xlu0 %v1561, 28
      %v1643 = vpop.permute.xlu0 %1642
      %1644 = vrot.lane.b32.xlu0 %v1562, 28
      %v1645 = vpop.permute.xlu0 %1644
      %1646 = vrot.lane.b32.xlu0 %v1563, 28
      %v1647 = vpop.permute.xlu0 %1646
      %1648 = vrot.lane.b32.xlu0 %v1564, 28
      %v1649 = vpop.permute.xlu0 %1648
      %1650 = vrot.lane.b32.xlu0 %v1565, 28
      %v1651 = vpop.permute.xlu0 %1650
      %1652 = vrot.lane.b32.xlu0 %v1566, 28
      %v1653 = vpop.permute.xlu0 %1652
      %1654 = vrot.lane.b32.xlu0 %v1567, 28
      %v1655 = vpop.permute.xlu0 %1654
      %1656 = vrot.lane.b32.xlu0 %v1568, 28
      %v1657 = vpop.permute.xlu0 %1656
      %1658 = vrot.lane.b32.xlu0 %v1569, 28
      %v1659 = vpop.permute.xlu0 %1658
      %1660 = vrot.lane.b32.xlu0 %v1570, 28
      %v1661 = vpop.permute.xlu0 %1660
      %1662 = vrot.lane.b32.xlu0 %v1571, 28
      %v1663 = vpop.permute.xlu0 %1662
      %1664 = vrot.lane.b32.xlu0 %v1572, 28
      %v1665 = vpop.permute.xlu0 %1664
      %1666 = vrot.lane.b32.xlu0 %v1573, 28
      %v1667 = vpop.permute.xlu0 %1666
      %1668 = vrot.lane.b32.xlu0 %v1574, 28
      %v1669 = vpop.permute.xlu0 %1668
      %1670 = vrot.lane.b32.xlu0 %v1575, 28
      %v1671 = vpop.permute.xlu0 %1670
      %vm1704 = vcmask 261344
      %1705 = vst.msk [vmem:[#allocation3] sm:$0xff] %vm1704, %v1609
      %1706 = vst.msk [vmem:[#allocation3 + $0x8] sm:$0xff] %vm1704, %v1611
      %1707 = vst.msk [vmem:[#allocation3 + $0x10] sm:$0xff] %vm1704, %v1613
      %1708 = vst.msk [vmem:[#allocation3 + $0x18] sm:$0xff] %vm1704, %v1615
      %1709 = vst.msk [vmem:[#allocation3 + $0x20] sm:$0xff] %vm1704, %v1617
      %1710 = vst.msk [vmem:[#allocation3 + $0x28] sm:$0xff] %vm1704, %v1619
      %1711 = vst.msk [vmem:[#allocation3 + $0x30] sm:$0xff] %vm1704, %v1621
      %1712 = vst.msk [vmem:[#allocation3 + $0x38] sm:$0xff] %vm1704, %v1623
      %1713 = vst.msk [vmem:[#allocation3 + $0x40] sm:$0xff] %vm1704, %v1625
      %1714 = vst.msk [vmem:[#allocation3 + $0x48] sm:$0xff] %vm1704, %v1627
      %1715 = vst.msk [vmem:[#allocation3 + $0x50] sm:$0xff] %vm1704, %v1629
      %1716 = vst.msk [vmem:[#allocation3 + $0x58] sm:$0xff] %vm1704, %v1631
      %1717 = vst.msk [vmem:[#allocation3 + $0x60] sm:$0xff] %vm1704, %v1633
      %1718 = vst.msk [vmem:[#allocation3 + $0x68] sm:$0xff] %vm1704, %v1635
      %1719 = vst.msk [vmem:[#allocation3 + $0x70] sm:$0xff] %vm1704, %v1637
      %1720 = vst.msk [vmem:[#allocation3 + $0x78] sm:$0xff] %vm1704, %v1639
      %1721 = vst.msk [vmem:[#allocation3 + $0x80] sm:$0xff] %vm1704, %v1641
      %1722 = vst.msk [vmem:[#allocation3 + $0x88] sm:$0xff] %vm1704, %v1643
      %1723 = vst.msk [vmem:[#allocation3 + $0x90] sm:$0xff] %vm1704, %v1645
      %1724 = vst.msk [vmem:[#allocation3 + $0x98] sm:$0xff] %vm1704, %v1647
      %1725 = vst.msk [vmem:[#allocation3 + $0xa0] sm:$0xff] %vm1704, %v1649
      %1726 = vst.msk [vmem:[#allocation3 + $0xa8] sm:$0xff] %vm1704, %v1651
      %1727 = vst.msk [vmem:[#allocation3 + $0xb0] sm:$0xff] %vm1704, %v1653
      %1728 = vst.msk [vmem:[#allocation3 + $0xb8] sm:$0xff] %vm1704, %v1655
      %1729 = vst.msk [vmem:[#allocation3 + $0xc0] sm:$0xff] %vm1704, %v1657
      %1730 = vst.msk [vmem:[#allocation3 + $0xc8] sm:$0xff] %vm1704, %v1659
      %1731 = vst.msk [vmem:[#allocation3 + $0xd0] sm:$0xff] %vm1704, %v1661
      %1732 = vst.msk [vmem:[#allocation3 + $0xd8] sm:$0xff] %vm1704, %v1663
      %1733 = vst.msk [vmem:[#allocation3 + $0xe0] sm:$0xff] %vm1704, %v1665
      %1734 = vst.msk [vmem:[#allocation3 + $0xe8] sm:$0xff] %vm1704, %v1667
      %1735 = vst.msk [vmem:[#allocation3 + $0xf0] sm:$0xff] %vm1704, %v1669
      %1736 = vst.msk [vmem:[#allocation3 + $0xf8] sm:$0xff] %vm1704, %v1671
      %v1737 = vld [vmem:[%s1350 + $0x2] sm:$0xff]
      %v1738 = vld [vmem:[%s1350 + $0xa] sm:$0xff]
      %v1739 = vld [vmem:[%s1350 + $0x1a] sm:$0xff]
      %v1740 = vld [vmem:[%s1350 + $0x22] sm:$0xff]
      %v1741 = vld [vmem:[%s1350 + $0x32] sm:$0xff]
      %v1742 = vld [vmem:[%s1350 + $0x3a] sm:$0xff]
      %v1743 = vld [vmem:[%s1350 + $0x4a] sm:$0xff]
      %v1744 = vld [vmem:[%s1350 + $0x52] sm:$0xff]
      %v1745 = vld [vmem:[%s1350 + $0x62] sm:$0xff]
      %v1746 = vld [vmem:[%s1350 + $0x6a] sm:$0xff]
      %v1747 = vld [vmem:[%s1350 + $0x7a] sm:$0xff]
      %v1748 = vld [vmem:[%s1350 + $0x82] sm:$0xff]
      %v1749 = vld [vmem:[%s1350 + $0x92] sm:$0xff]
      %v1750 = vld [vmem:[%s1350 + $0x9a] sm:$0xff]
      %v1751 = vld [vmem:[%s1350 + $0xaa] sm:$0xff]
      %v1752 = vld [vmem:[%s1350 + $0xb2] sm:$0xff]
      %v1753 = vld [vmem:[%s1350 + $0xc2] sm:$0xff]
      %v1754 = vld [vmem:[%s1350 + $0xca] sm:$0xff]
      %v1755 = vld [vmem:[%s1350 + $0xda] sm:$0xff]
      %v1756 = vld [vmem:[%s1350 + $0xe2] sm:$0xff]
      %v1757 = vld [vmem:[%s1350 + $0xf2] sm:$0xff]
      %v1758 = vld [vmem:[%s1350 + $0xfa] sm:$0xff]
      %v1759 = vld [vmem:[%s1350 + $0x10a] sm:$0xff]
      %v1760 = vld [vmem:[%s1350 + $0x112] sm:$0xff]
      %v1761 = vld [vmem:[%s1350 + $0x122] sm:$0xff]
      %v1762 = vld [vmem:[%s1350 + $0x12a] sm:$0xff]
      %v1763 = vld [vmem:[%s1350 + $0x13a] sm:$0xff]
      %v1764 = vld [vmem:[%s1350 + $0x142] sm:$0xff]
      %v1765 = vld [vmem:[%s1350 + $0x152] sm:$0xff]
      %v1766 = vld [vmem:[%s1350 + $0x15a] sm:$0xff]
      %v1767 = vld [vmem:[%s1350 + $0x16a] sm:$0xff]
      %v1768 = vld [vmem:[%s1350 + $0x172] sm:$0xff]
      %1801 = vrot.lane.b32.xlu0 %v1737, 32
      %v1802 = vpop.permute.xlu0 %1801
      %1803 = vrot.lane.b32.xlu0 %v1738, 32
      %v1804 = vpop.permute.xlu0 %1803
      %1805 = vrot.lane.b32.xlu0 %v1739, 32
      %v1806 = vpop.permute.xlu0 %1805
      %1807 = vrot.lane.b32.xlu0 %v1740, 32
      %v1808 = vpop.permute.xlu0 %1807
      %1809 = vrot.lane.b32.xlu0 %v1741, 32
      %v1810 = vpop.permute.xlu0 %1809
      %1811 = vrot.lane.b32.xlu0 %v1742, 32
      %v1812 = vpop.permute.xlu0 %1811
      %1813 = vrot.lane.b32.xlu0 %v1743, 32
      %v1814 = vpop.permute.xlu0 %1813
      %1815 = vrot.lane.b32.xlu0 %v1744, 32
      %v1816 = vpop.permute.xlu0 %1815
      %1817 = vrot.lane.b32.xlu0 %v1745, 32
      %v1818 = vpop.permute.xlu0 %1817
      %1819 = vrot.lane.b32.xlu0 %v1746, 32
      %v1820 = vpop.permute.xlu0 %1819
      %1821 = vrot.lane.b32.xlu0 %v1747, 32
      %v1822 = vpop.permute.xlu0 %1821
      %1823 = vrot.lane.b32.xlu0 %v1748, 32
      %v1824 = vpop.permute.xlu0 %1823
      %1825 = vrot.lane.b32.xlu0 %v1749, 32
      %v1826 = vpop.permute.xlu0 %1825
      %1827 = vrot.lane.b32.xlu0 %v1750, 32
      %v1828 = vpop.permute.xlu0 %1827
      %1829 = vrot.lane.b32.xlu0 %v1751, 32
      %v1830 = vpop.permute.xlu0 %1829
      %1831 = vrot.lane.b32.xlu0 %v1752, 32
      %v1832 = vpop.permute.xlu0 %1831
      %1833 = vrot.lane.b32.xlu0 %v1753, 32
      %v1834 = vpop.permute.xlu0 %1833
      %1835 = vrot.lane.b32.xlu0 %v1754, 32
      %v1836 = vpop.permute.xlu0 %1835
      %1837 = vrot.lane.b32.xlu0 %v1755, 32
      %v1838 = vpop.permute.xlu0 %1837
      %1839 = vrot.lane.b32.xlu0 %v1756, 32
      %v1840 = vpop.permute.xlu0 %1839
      %1841 = vrot.lane.b32.xlu0 %v1757, 32
      %v1842 = vpop.permute.xlu0 %1841
      %1843 = vrot.lane.b32.xlu0 %v1758, 32
      %v1844 = vpop.permute.xlu0 %1843
      %1845 = vrot.lane.b32.xlu0 %v1759, 32
      %v1846 = vpop.permute.xlu0 %1845
      %1847 = vrot.lane.b32.xlu0 %v1760, 32
      %v1848 = vpop.permute.xlu0 %1847
      %1849 = vrot.lane.b32.xlu0 %v1761, 32
      %v1850 = vpop.permute.xlu0 %1849
      %1851 = vrot.lane.b32.xlu0 %v1762, 32
      %v1852 = vpop.permute.xlu0 %1851
      %1853 = vrot.lane.b32.xlu0 %v1763, 32
      %v1854 = vpop.permute.xlu0 %1853
      %1855 = vrot.lane.b32.xlu0 %v1764, 32
      %v1856 = vpop.permute.xlu0 %1855
      %1857 = vrot.lane.b32.xlu0 %v1765, 32
      %v1858 = vpop.permute.xlu0 %1857
      %1859 = vrot.lane.b32.xlu0 %v1766, 32
      %v1860 = vpop.permute.xlu0 %1859
      %1861 = vrot.lane.b32.xlu0 %v1767, 32
      %v1862 = vpop.permute.xlu0 %1861
      %1863 = vrot.lane.b32.xlu0 %v1768, 32
      %v1864 = vpop.permute.xlu0 %1863
      %vm1897 = vcmask 294144
      %1898 = vst.msk [vmem:[#allocation3] sm:$0xff] %vm1897, %v1802
      %1899 = vst.msk [vmem:[#allocation3 + $0x8] sm:$0xff] %vm1897, %v1804
      %1900 = vst.msk [vmem:[#allocation3 + $0x10] sm:$0xff] %vm1897, %v1806
      %1901 = vst.msk [vmem:[#allocation3 + $0x18] sm:$0xff] %vm1897, %v1808
      %1902 = vst.msk [vmem:[#allocation3 + $0x20] sm:$0xff] %vm1897, %v1810
      %1903 = vst.msk [vmem:[#allocation3 + $0x28] sm:$0xff] %vm1897, %v1812
      %1904 = vst.msk [vmem:[#allocation3 + $0x30] sm:$0xff] %vm1897, %v1814
      %1905 = vst.msk [vmem:[#allocation3 + $0x38] sm:$0xff] %vm1897, %v1816
      %1906 = vst.msk [vmem:[#allocation3 + $0x40] sm:$0xff] %vm1897, %v1818
      %1907 = vst.msk [vmem:[#allocation3 + $0x48] sm:$0xff] %vm1897, %v1820
      %1908 = vst.msk [vmem:[#allocation3 + $0x50] sm:$0xff] %vm1897, %v1822
      %1909 = vst.msk [vmem:[#allocation3 + $0x58] sm:$0xff] %vm1897, %v1824
      %1910 = vst.msk [vmem:[#allocation3 + $0x60] sm:$0xff] %vm1897, %v1826
      %1911 = vst.msk [vmem:[#allocation3 + $0x68] sm:$0xff] %vm1897, %v1828
      %1912 = vst.msk [vmem:[#allocation3 + $0x70] sm:$0xff] %vm1897, %v1830
      %1913 = vst.msk [vmem:[#allocation3 + $0x78] sm:$0xff] %vm1897, %v1832
      %1914 = vst.msk [vmem:[#allocation3 + $0x80] sm:$0xff] %vm1897, %v1834
      %1915 = vst.msk [vmem:[#allocation3 + $0x88] sm:$0xff] %vm1897, %v1836
      %1916 = vst.msk [vmem:[#allocation3 + $0x90] sm:$0xff] %vm1897, %v1838
      %1917 = vst.msk [vmem:[#allocation3 + $0x98] sm:$0xff] %vm1897, %v1840
      %1918 = vst.msk [vmem:[#allocation3 + $0xa0] sm:$0xff] %vm1897, %v1842
      %1919 = vst.msk [vmem:[#allocation3 + $0xa8] sm:$0xff] %vm1897, %v1844
      %1920 = vst.msk [vmem:[#allocation3 + $0xb0] sm:$0xff] %vm1897, %v1846
      %1921 = vst.msk [vmem:[#allocation3 + $0xb8] sm:$0xff] %vm1897, %v1848
      %1922 = vst.msk [vmem:[#allocation3 + $0xc0] sm:$0xff] %vm1897, %v1850
      %1923 = vst.msk [vmem:[#allocation3 + $0xc8] sm:$0xff] %vm1897, %v1852
      %1924 = vst.msk [vmem:[#allocation3 + $0xd0] sm:$0xff] %vm1897, %v1854
      %1925 = vst.msk [vmem:[#allocation3 + $0xd8] sm:$0xff] %vm1897, %v1856
      %1926 = vst.msk [vmem:[#allocation3 + $0xe0] sm:$0xff] %vm1897, %v1858
      %1927 = vst.msk [vmem:[#allocation3 + $0xe8] sm:$0xff] %vm1897, %v1860
      %1928 = vst.msk [vmem:[#allocation3 + $0xf0] sm:$0xff] %vm1897, %v1862
      %1929 = vst.msk [vmem:[#allocation3 + $0xf8] sm:$0xff] %vm1897, %v1864
      %v1930 = vld [vmem:[#allocation3] sm:$0xff]
      %v1931 = vld [vmem:[#allocation3 + $0x8] sm:$0xff]
      %v1932 = vld [vmem:[#allocation3 + $0x10] sm:$0xff]
      %v1933 = vld [vmem:[#allocation3 + $0x18] sm:$0xff]
      %v1934 = vld [vmem:[#allocation3 + $0x20] sm:$0xff]
      %v1935 = vld [vmem:[#allocation3 + $0x28] sm:$0xff]
      %v1936 = vld [vmem:[#allocation3 + $0x30] sm:$0xff]
      %v1937 = vld [vmem:[#allocation3 + $0x38] sm:$0xff]
      %v1938 = vld [vmem:[#allocation3 + $0x40] sm:$0xff]
      %v1939 = vld [vmem:[#allocation3 + $0x48] sm:$0xff]
      %v1940 = vld [vmem:[#allocation3 + $0x50] sm:$0xff]
      %v1941 = vld [vmem:[#allocation3 + $0x58] sm:$0xff]
      %v1942 = vld [vmem:[#allocation3 + $0x60] sm:$0xff]
      %v1943 = vld [vmem:[#allocation3 + $0x68] sm:$0xff]
      %v1944 = vld [vmem:[#allocation3 + $0x70] sm:$0xff]
      %v1945 = vld [vmem:[#allocation3 + $0x78] sm:$0xff]
      %v1946 = vld [vmem:[#allocation3 + $0x80] sm:$0xff]
      %v1947 = vld [vmem:[#allocation3 + $0x88] sm:$0xff]
      %v1948 = vld [vmem:[#allocation3 + $0x90] sm:$0xff]
      %v1949 = vld [vmem:[#allocation3 + $0x98] sm:$0xff]
      %v1950 = vld [vmem:[#allocation3 + $0xa0] sm:$0xff]
      %v1951 = vld [vmem:[#allocation3 + $0xa8] sm:$0xff]
      %v1952 = vld [vmem:[#allocation3 + $0xb0] sm:$0xff]
      %v1953 = vld [vmem:[#allocation3 + $0xb8] sm:$0xff]
      %v1954 = vld [vmem:[#allocation3 + $0xc0] sm:$0xff]
      %v1955 = vld [vmem:[#allocation3 + $0xc8] sm:$0xff]
      %v1956 = vld [vmem:[#allocation3 + $0xd0] sm:$0xff]
      %v1957 = vld [vmem:[#allocation3 + $0xd8] sm:$0xff]
      %v1958 = vld [vmem:[#allocation3 + $0xe0] sm:$0xff]
      %v1959 = vld [vmem:[#allocation3 + $0xe8] sm:$0xff]
      %v1960 = vld [vmem:[#allocation3 + $0xf0] sm:$0xff]
      %v1961 = vld [vmem:[#allocation3 + $0xf8] sm:$0xff]
      %v1962 = vpack.c.bf16 %v1931, %v1930
      %v1963 = vpack.c.bf16 %v1933, %v1932
      %v1964 = vpack.c.bf16 %v1935, %v1934
      %v1965 = vpack.c.bf16 %v1937, %v1936
      %v1966 = vpack.c.bf16 %v1939, %v1938
      %v1967 = vpack.c.bf16 %v1941, %v1940
      %v1968 = vpack.c.bf16 %v1943, %v1942
      %v1969 = vpack.c.bf16 %v1945, %v1944
      %v1970 = vpack.c.bf16 %v1947, %v1946
      %v1971 = vpack.c.bf16 %v1949, %v1948
      %v1972 = vpack.c.bf16 %v1951, %v1950
      %v1973 = vpack.c.bf16 %v1953, %v1952
      %v1974 = vpack.c.bf16 %v1955, %v1954
      %v1975 = vpack.c.bf16 %v1957, %v1956
      %v1976 = vpack.c.bf16 %v1959, %v1958
      %v1977 = vpack.c.bf16 %v1961, %v1960
      %v1978 = vld [vmem:[%s1] sm:$0xf]
      %v1979 = vld [vmem:[%s1 + $0x4] sm:$0xf]
      %v1980 = vld [vmem:[%s1 + $0x8] sm:$0xf]
      %v1981 = vld [vmem:[%s1 + $0xc] sm:$0xf]
      %v1982 = vld [vmem:[%s1 + $0x10] sm:$0x3]
      %v1983 = vld [vmem:[%s2] sm:$0x1]
      %v1985 = vlaneseq
      %v1986 = vshrl.u32 %v1985, 7
      %v1987 = vsub.s32 0, %v1986
      %v1988 = vrot.slane %v1983, %v1987
      %v1995 = vunpack.c.l.b16 %v1978
      %v1996 = vunpack.c.l.b16 %v1979
      %v1997 = vunpack.c.l.b16 %v1980
      %v1998 = vunpack.c.l.b16 %v1981
      %v1999 = vunpack.c.l.b16 %v1982
      %v2000 = vpack.c.b16 %v1996, %v1995
      %v2001 = vpack.c.b16 %v1998, %v1997
      %v2002 = vpack.c.b16 %v1999, %v1999
      %vm2005 = vcmask 293888
      %v2007 = vsel %vm2005, %v1962, 0
      %v2010 = vsel %vm2005, %v1963, 0
      %v2013 = vsel %vm2005, %v1964, 0
      %v2016 = vsel %vm2005, %v1965, 0
      %v2019 = vsel %vm2005, %v1966, 0
      %v2022 = vsel %vm2005, %v1967, 0
      %v2025 = vsel %vm2005, %v1968, 0
      %v2028 = vsel %vm2005, %v1969, 0
      %v2031 = vsel %vm2005, %v1970, 0
      %v2034 = vsel %vm2005, %v1971, 0
      %v2037 = vsel %vm2005, %v1972, 0
      %v2040 = vsel %vm2005, %v1973, 0
      %v2043 = vsel %vm2005, %v1974, 0
      %v2046 = vsel %vm2005, %v1975, 0
      %v2049 = vsel %vm2005, %v1976, 0
      %v2052 = vsel %vm2005, %v1977, 0
      %vm2054 = vcmask 1041408
      %v2056 = vsel %vm2054, %v2002, 0
      %2058 = vmatprep.subr.bf16.mxu0 0
      %2059 = vmatpush1.bf16.msra.mxu0 %v2000
      %2060 = vmatprep.subr.bf16.mxu0 0
      %2061 = vmatpush1.bf16.msra.mxu0 %v2001
      %2062 = vmatprep.subr.bf16.mxu0 0
      %2063 = vmatpush1.bf16.msra.mxu0 %v2056
      %2064 = vmatprep.subr.bf16.mxu0 0
      %2065 = vmatpush1.bf16.msra.mxu0 0
      %2066 = vmatprep.subr.bf16.mxu0 0
      %2067 = vmatpush1.bf16.msra.mxu0 0
      %2068 = vmatprep.subr.bf16.mxu0 0
      %2069 = vmatpush1.bf16.msra.mxu0 0
      %2070 = vmatprep.subr.bf16.mxu0 0
      %2071 = vmatpush1.bf16.msra.mxu0 0
      %2072 = vmatprep.subr.bf16.mxu0 0
      %2073 = vmatpush1.bf16.msra.mxu0 0
      %2074 = vmatprep.subr.bf16.mxu0 0
      %2075 = vmatpush1.bf16.msra.mxu0 0
      %2076 = vmatprep.subr.bf16.mxu0 0
      %2077 = vmatpush1.bf16.msra.mxu0 0
      %2078 = vmatprep.subr.bf16.mxu0 0
      %2079 = vmatpush1.bf16.msra.mxu0 0
      %2080 = vmatprep.subr.bf16.mxu0 0
      %2081 = vmatpush1.bf16.msra.mxu0 0
      %2082 = vmatprep.subr.bf16.mxu0 0
      %2083 = vmatpush1.bf16.msra.mxu0 0
      %2084 = vmatprep.subr.bf16.mxu0 0
      %2085 = vmatpush1.bf16.msra.mxu0 0
      %2086 = vmatprep.subr.bf16.mxu0 0
      %2087 = vmatpush1.bf16.msra.mxu0 0
      %2088 = vmatprep.subr.bf16.mxu0 0
      %2089 = vmatpush1.bf16.msra.mxu0 0
      %2090 = vmatprep.mubr.bf16.mxu0 0
      %2091 = vmatmul.mubr.bf16.gmra.mrb[0].mxu0 %v2007
      %v2092 = vpop.f32.mrb[0].mxu0
      %v2093 = vadd.f32 %v1988, %v2092
      %v2094 = vpop.f32.mrb[0].mxu0
      %v2095 = vpop.f32.mrb[0].mxu0
      %v2096 = vadd.f32 %v1988, %v2095
      %v2097 = vpop.f32.mrb[0].mxu0
      %2098 = vmatprep.mubr.bf16.mxu0 0
      %2099 = vmatmul.mubr.bf16.gmra.mrb[0].mxu0 %v2010
      %v2100 = vpop.f32.mrb[0].mxu0
      %v2101 = vadd.f32 %v1988, %v2100
      %v2102 = vpop.f32.mrb[0].mxu0
      %v2103 = vpop.f32.mrb[0].mxu0
      %v2104 = vadd.f32 %v1988, %v2103
      %v2105 = vpop.f32.mrb[0].mxu0
      %2106 = vmatprep.mubr.bf16.mxu0 0
      %2107 = vmatmul.mubr.bf16.gmra.mrb[0].mxu0 %v2013
      %v2108 = vpop.f32.mrb[0].mxu0
      %v2109 = vadd.f32 %v1988, %v2108
      %v2110 = vpop.f32.mrb[0].mxu0
      %v2111 = vpop.f32.mrb[0].mxu0
      %v2112 = vadd.f32 %v1988, %v2111
      %v2113 = vpop.f32.mrb[0].mxu0
      %2114 = vmatprep.mubr.bf16.mxu0 0
      %2115 = vmatmul.mubr.bf16.gmra.mrb[0].mxu0 %v2016
      %v2116 = vpop.f32.mrb[0].mxu0
      %v2117 = vadd.f32 %v1988, %v2116
      %v2118 = vpop.f32.mrb[0].mxu0
      %v2119 = vpop.f32.mrb[0].mxu0
      %v2120 = vadd.f32 %v1988, %v2119
      %v2121 = vpop.f32.mrb[0].mxu0
      %2122 = vmatprep.mubr.bf16.mxu0 0
      %2123 = vmatmul.mubr.bf16.gmra.mrb[0].mxu0 %v2019
      %v2124 = vpop.f32.mrb[0].mxu0
      %v2125 = vadd.f32 %v1988, %v2124
      %v2126 = vpop.f32.mrb[0].mxu0
      %v2127 = vpop.f32.mrb[0].mxu0
      %v2128 = vadd.f32 %v1988, %v2127
      %v2129 = vpop.f32.mrb[0].mxu0
      %2130 = vmatprep.mubr.bf16.mxu0 0
      %2131 = vmatmul.mubr.bf16.gmra.mrb[0].mxu0 %v2022
      %v2132 = vpop.f32.mrb[0].mxu0
      %v2133 = vadd.f32 %v1988, %v2132
      %v2134 = vpop.f32.mrb[0].mxu0
      %v2135 = vpop.f32.mrb[0].mxu0
      %v2136 = vadd.f32 %v1988, %v2135
      %v2137 = vpop.f32.mrb[0].mxu0
      %2138 = vmatprep.mubr.bf16.mxu0 0
      %2139 = vmatmul.mubr.bf16.gmra.mrb[0].mxu0 %v2025
      %v2140 = vpop.f32.mrb[0].mxu0
      %v2141 = vadd.f32 %v1988, %v2140
      %v2142 = vpop.f32.mrb[0].mxu0
      %v2143 = vpop.f32.mrb[0].mxu0
      %v2144 = vadd.f32 %v1988, %v2143
      %v2145 = vpop.f32.mrb[0].mxu0
      %2146 = vmatprep.mubr.bf16.mxu0 0
      %2147 = vmatmul.mubr.bf16.gmra.mrb[0].mxu0 %v2028
      %v2148 = vpop.f32.mrb[0].mxu0
      %v2149 = vadd.f32 %v1988, %v2148
      %v2150 = vpop.f32.mrb[0].mxu0
      %v2151 = vpop.f32.mrb[0].mxu0
      %v2152 = vadd.f32 %v1988, %v2151
      %v2153 = vpop.f32.mrb[0].mxu0
      %2154 = vmatprep.mubr.bf16.mxu0 0
      %2155 = vmatmul.mubr.bf16.gmra.mrb[0].mxu0 %v2031
      %v2156 = vpop.f32.mrb[0].mxu0
      %v2157 = vadd.f32 %v1988, %v2156
      %v2158 = vpop.f32.mrb[0].mxu0
      %v2159 = vpop.f32.mrb[0].mxu0
      %v2160 = vadd.f32 %v1988, %v2159
      %v2161 = vpop.f32.mrb[0].mxu0
      %2162 = vmatprep.mubr.bf16.mxu0 0
      %2163 = vmatmul.mubr.bf16.gmra.mrb[0].mxu0 %v2034
      %v2164 = vpop.f32.mrb[0].mxu0
      %v2165 = vadd.f32 %v1988, %v2164
      %v2166 = vpop.f32.mrb[0].mxu0
      %v2167 = vpop.f32.mrb[0].mxu0
      %v2168 = vadd.f32 %v1988, %v2167
      %v2169 = vpop.f32.mrb[0].mxu0
      %2170 = vmatprep.mubr.bf16.mxu0 0
      %2171 = vmatmul.mubr.bf16.gmra.mrb[0].mxu0 %v2037
      %v2172 = vpop.f32.mrb[0].mxu0
      %v2173 = vadd.f32 %v1988, %v2172
      %v2174 = vpop.f32.mrb[0].mxu0
      %v2175 = vpop.f32.mrb[0].mxu0
      %v2176 = vadd.f32 %v1988, %v2175
      %v2177 = vpop.f32.mrb[0].mxu0
      %2178 = vmatprep.mubr.bf16.mxu0 0
      %2179 = vmatmul.mubr.bf16.gmra.mrb[0].mxu0 %v2040
      %v2180 = vpop.f32.mrb[0].mxu0
      %v2181 = vadd.f32 %v1988, %v2180
      %v2182 = vpop.f32.mrb[0].mxu0
      %v2183 = vpop.f32.mrb[0].mxu0
      %v2184 = vadd.f32 %v1988, %v2183
      %v2185 = vpop.f32.mrb[0].mxu0
      %2186 = vmatprep.mubr.bf16.mxu0 0
      %2187 = vmatmul.mubr.bf16.gmra.mrb[0].mxu0 %v2043
      %v2188 = vpop.f32.mrb[0].mxu0
      %v2189 = vadd.f32 %v1988, %v2188
      %v2190 = vpop.f32.mrb[0].mxu0
      %v2191 = vpop.f32.mrb[0].mxu0
      %v2192 = vadd.f32 %v1988, %v2191
      %v2193 = vpop.f32.mrb[0].mxu0
      %2194 = vmatprep.mubr.bf16.mxu0 0
      %2195 = vmatmul.mubr.bf16.gmra.mrb[0].mxu0 %v2046
      %v2196 = vpop.f32.mrb[0].mxu0
      %v2197 = vadd.f32 %v1988, %v2196
      %v2198 = vpop.f32.mrb[0].mxu0
      %v2199 = vpop.f32.mrb[0].mxu0
      %v2200 = vadd.f32 %v1988, %v2199
      %v2201 = vpop.f32.mrb[0].mxu0
      %2202 = vmatprep.mubr.bf16.mxu0 0
      %2203 = vmatmul.mubr.bf16.gmra.mrb[0].mxu0 %v2049
      %v2204 = vpop.f32.mrb[0].mxu0
      %v2205 = vadd.f32 %v1988, %v2204
      %v2206 = vpop.f32.mrb[0].mxu0
      %v2207 = vpop.f32.mrb[0].mxu0
      %v2208 = vadd.f32 %v1988, %v2207
      %v2209 = vpop.f32.mrb[0].mxu0
      %2210 = vmatprep.mubr.bf16.mxu0 0
      %2211 = vmatmul.mubr.bf16.gmra.mrb[0].mxu0 %v2052
      %v2212 = vpop.f32.mrb[0].mxu0
      %v2213 = vadd.f32 %v1988, %v2212
      %v2214 = vpop.f32.mrb[0].mxu0
      %v2215 = vpop.f32.mrb[0].mxu0
      %v2216 = vadd.f32 %v1988, %v2215
      %v2217 = vpop.f32.mrb[0].mxu0
      %2218 = vdwg.mxu0
      %vm2219 = vcmask 64512
      %v2220 = vsel %vm2219, %v2093, 0.0
      %v2221 = vsel %vm2219, %v2096, 0.0
      %v2222 = vadd.f32 %v2220, %v2221
      %v2223 = vsel %vm2219, %v2101, 0.0
      %v2224 = vadd.f32 %v2222, %v2223
      %v2225 = vsel %vm2219, %v2104, 0.0
      %v2226 = vadd.f32 %v2224, %v2225
      %v2227 = vsel %vm2219, %v2109, 0.0
      %v2228 = vadd.f32 %v2226, %v2227
      %v2229 = vsel %vm2219, %v2112, 0.0
      %v2230 = vadd.f32 %v2228, %v2229
      %v2231 = vsel %vm2219, %v2117, 0.0
      %v2232 = vadd.f32 %v2230, %v2231
      %v2233 = vsel %vm2219, %v2120, 0.0
      %v2234 = vadd.f32 %v2232, %v2233
      %v2235 = vsel %vm2219, %v2125, 0.0
      %v2236 = vadd.f32 %v2234, %v2235
      %v2237 = vsel %vm2219, %v2128, 0.0
      %v2238 = vadd.f32 %v2236, %v2237
      %v2239 = vsel %vm2219, %v2133, 0.0
      %v2240 = vadd.f32 %v2238, %v2239
      %v2241 = vsel %vm2219, %v2136, 0.0
      %v2242 = vadd.f32 %v2240, %v2241
      %v2243 = vsel %vm2219, %v2141, 0.0
      %v2244 = vadd.f32 %v2242, %v2243
      %v2245 = vsel %vm2219, %v2144, 0.0
      %v2246 = vadd.f32 %v2244, %v2245
      %v2247 = vsel %vm2219, %v2149, 0.0
      %v2248 = vadd.f32 %v2246, %v2247
      %v2249 = vsel %vm2219, %v2152, 0.0
      %v2250 = vadd.f32 %v2248, %v2249
      %v2251 = vsel %vm2219, %v2157, 0.0
      %v2252 = vadd.f32 %v2250, %v2251
      %v2253 = vsel %vm2219, %v2160, 0.0
      %v2254 = vadd.f32 %v2252, %v2253
      %v2255 = vsel %vm2219, %v2165, 0.0
      %v2256 = vadd.f32 %v2254, %v2255
      %v2257 = vsel %vm2219, %v2168, 0.0
      %v2258 = vadd.f32 %v2256, %v2257
      %v2259 = vsel %vm2219, %v2173, 0.0
      %v2260 = vadd.f32 %v2258, %v2259
      %v2261 = vsel %vm2219, %v2176, 0.0
      %v2262 = vadd.f32 %v2260, %v2261
      %v2263 = vsel %vm2219, %v2181, 0.0
      %v2264 = vadd.f32 %v2262, %v2263
      %v2265 = vsel %vm2219, %v2184, 0.0
      %v2266 = vadd.f32 %v2264, %v2265
      %v2267 = vsel %vm2219, %v2189, 0.0
      %v2268 = vadd.f32 %v2266, %v2267
      %v2269 = vsel %vm2219, %v2192, 0.0
      %v2270 = vadd.f32 %v2268, %v2269
      %v2271 = vsel %vm2219, %v2197, 0.0
      %v2272 = vadd.f32 %v2270, %v2271
      %v2273 = vsel %vm2219, %v2200, 0.0
      %v2274 = vadd.f32 %v2272, %v2273
      %v2275 = vsel %vm2219, %v2205, 0.0
      %v2276 = vadd.f32 %v2274, %v2275
      %v2277 = vsel %vm2219, %v2208, 0.0
      %v2278 = vadd.f32 %v2276, %v2277
      %v2279 = vsel %vm2219, %v2213, 0.0
      %v2280 = vadd.f32 %v2278, %v2279
      %v2281 = vsel %vm2219, %v2216, 0.0
      %v2282 = vadd.f32 %v2280, %v2281
      %v2283 = vrot.slane %v2282, 4
      %v2284 = vadd.f32 %v2282, %v2283
      %v2285 = vrot.slane %v2284, 2
      %v2286 = vadd.f32 %v2284, %v2285
      %v2287 = vrot.slane %v2286, 1
      %v2288 = vadd.f32 %v2286, %v2287
      %v2289 = vmul.f32 %v2288, 0.00390625
      %v2290 = vsub.f32 %v2093, %v2289
      %v2291 = vsub.f32 %v2096, %v2289
      %v2292 = vsub.f32 %v2101, %v2289
      %v2293 = vsub.f32 %v2104, %v2289
      %v2294 = vsub.f32 %v2109, %v2289
      %v2295 = vsub.f32 %v2112, %v2289
      %v2296 = vsub.f32 %v2117, %v2289
      %v2297 = vsub.f32 %v2120, %v2289
      %v2298 = vsub.f32 %v2125, %v2289
      %v2299 = vsub.f32 %v2128, %v2289
      %v2300 = vsub.f32 %v2133, %v2289
      %v2301 = vsub.f32 %v2136, %v2289
      %v2302 = vsub.f32 %v2141, %v2289
      %v2303 = vsub.f32 %v2144, %v2289
      %v2304 = vsub.f32 %v2149, %v2289
      %v2305 = vsub.f32 %v2152, %v2289
      %v2306 = vsub.f32 %v2157, %v2289
      %v2307 = vsub.f32 %v2160, %v2289
      %v2308 = vsub.f32 %v2165, %v2289
      %v2309 = vsub.f32 %v2168, %v2289
      %v2310 = vsub.f32 %v2173, %v2289
      %v2311 = vsub.f32 %v2176, %v2289
      %v2312 = vsub.f32 %v2181, %v2289
      %v2313 = vsub.f32 %v2184, %v2289
      %v2314 = vsub.f32 %v2189, %v2289
      %v2315 = vsub.f32 %v2192, %v2289
      %v2316 = vsub.f32 %v2197, %v2289
      %v2317 = vsub.f32 %v2200, %v2289
      %v2318 = vsub.f32 %v2205, %v2289
      %v2319 = vsub.f32 %v2208, %v2289
      %v2320 = vsub.f32 %v2213, %v2289
      %v2321 = vsub.f32 %v2216, %v2289
      %v2322 = vmul.f32 %v2290, %v2290
      %v2323 = vmul.f32 %v2291, %v2291
      %v2324 = vmul.f32 %v2292, %v2292
      %v2325 = vmul.f32 %v2293, %v2293
      %v2326 = vmul.f32 %v2294, %v2294
      %v2327 = vmul.f32 %v2295, %v2295
      %v2328 = vmul.f32 %v2296, %v2296
      %v2329 = vmul.f32 %v2297, %v2297
      %v2330 = vmul.f32 %v2298, %v2298
      %v2331 = vmul.f32 %v2299, %v2299
      %v2332 = vmul.f32 %v2300, %v2300
      %v2333 = vmul.f32 %v2301, %v2301
      %v2334 = vmul.f32 %v2302, %v2302
      %v2335 = vmul.f32 %v2303, %v2303
      %v2336 = vmul.f32 %v2304, %v2304
      %v2337 = vmul.f32 %v2305, %v2305
      %v2338 = vmul.f32 %v2306, %v2306
      %v2339 = vmul.f32 %v2307, %v2307
      %v2340 = vmul.f32 %v2308, %v2308
      %v2341 = vmul.f32 %v2309, %v2309
      %v2342 = vmul.f32 %v2310, %v2310
      %v2343 = vmul.f32 %v2311, %v2311
      %v2344 = vmul.f32 %v2312, %v2312
      %v2345 = vmul.f32 %v2313, %v2313
      %v2346 = vmul.f32 %v2314, %v2314
      %v2347 = vmul.f32 %v2315, %v2315
      %v2348 = vmul.f32 %v2316, %v2316
      %v2349 = vmul.f32 %v2317, %v2317
      %v2350 = vmul.f32 %v2318, %v2318
      %v2351 = vmul.f32 %v2319, %v2319
      %v2352 = vmul.f32 %v2320, %v2320
      %v2353 = vmul.f32 %v2321, %v2321
      %v2354 = vsel %vm2219, %v2322, 0.0
      %v2355 = vsel %vm2219, %v2323, 0.0
      %v2356 = vadd.f32 %v2354, %v2355
      %v2357 = vsel %vm2219, %v2324, 0.0
      %v2358 = vadd.f32 %v2356, %v2357
      %v2359 = vsel %vm2219, %v2325, 0.0
      %v2360 = vadd.f32 %v2358, %v2359
      %v2361 = vsel %vm2219, %v2326, 0.0
      %v2362 = vadd.f32 %v2360, %v2361
      %v2363 = vsel %vm2219, %v2327, 0.0
      %v2364 = vadd.f32 %v2362, %v2363
      %v2365 = vsel %vm2219, %v2328, 0.0
      %v2366 = vadd.f32 %v2364, %v2365
      %v2367 = vsel %vm2219, %v2329, 0.0
      %v2368 = vadd.f32 %v2366, %v2367
      %v2369 = vsel %vm2219, %v2330, 0.0
      %v2370 = vadd.f32 %v2368, %v2369
      %v2371 = vsel %vm2219, %v2331, 0.0
      %v2372 = vadd.f32 %v2370, %v2371
      %v2373 = vsel %vm2219, %v2332, 0.0
      %v2374 = vadd.f32 %v2372, %v2373
      %v2375 = vsel %vm2219, %v2333, 0.0
      %v2376 = vadd.f32 %v2374, %v2375
      %v2377 = vsel %vm2219, %v2334, 0.0
      %v2378 = vadd.f32 %v2376, %v2377
      %v2379 = vsel %vm2219, %v2335, 0.0
      %v2380 = vadd.f32 %v2378, %v2379
      %v2381 = vsel %vm2219, %v2336, 0.0
      %v2382 = vadd.f32 %v2380, %v2381
      %v2383 = vsel %vm2219, %v2337, 0.0
      %v2384 = vadd.f32 %v2382, %v2383
      %v2385 = vsel %vm2219, %v2338, 0.0
      %v2386 = vadd.f32 %v2384, %v2385
      %v2387 = vsel %vm2219, %v2339, 0.0
      %v2388 = vadd.f32 %v2386, %v2387
      %v2389 = vsel %vm2219, %v2340, 0.0
      %v2390 = vadd.f32 %v2388, %v2389
      %v2391 = vsel %vm2219, %v2341, 0.0
      %v2392 = vadd.f32 %v2390, %v2391
      %v2393 = vsel %vm2219, %v2342, 0.0
      %v2394 = vadd.f32 %v2392, %v2393
      %v2395 = vsel %vm2219, %v2343, 0.0
      %v2396 = vadd.f32 %v2394, %v2395
      %v2397 = vsel %vm2219, %v2344, 0.0
      %v2398 = vadd.f32 %v2396, %v2397
      %v2399 = vsel %vm2219, %v2345, 0.0
      %v2400 = vadd.f32 %v2398, %v2399
      %v2401 = vsel %vm2219, %v2346, 0.0
      %v2402 = vadd.f32 %v2400, %v2401
      %v2403 = vsel %vm2219, %v2347, 0.0
      %v2404 = vadd.f32 %v2402, %v2403
      %v2405 = vsel %vm2219, %v2348, 0.0
      %v2406 = vadd.f32 %v2404, %v2405
      %v2407 = vsel %vm2219, %v2349, 0.0
      %v2408 = vadd.f32 %v2406, %v2407
      %v2409 = vsel %vm2219, %v2350, 0.0
      %v2410 = vadd.f32 %v2408, %v2409
      %v2411 = vsel %vm2219, %v2351, 0.0
      %v2412 = vadd.f32 %v2410, %v2411
      %v2413 = vsel %vm2219, %v2352, 0.0
      %v2414 = vadd.f32 %v2412, %v2413
      %v2415 = vsel %vm2219, %v2353, 0.0
      %v2416 = vadd.f32 %v2414, %v2415
      %v2417 = vrot.slane %v2416, 4
      %v2418 = vadd.f32 %v2416, %v2417
      %v2419 = vrot.slane %v2418, 2
      %v2420 = vadd.f32 %v2418, %v2419
      %v2421 = vrot.slane %v2420, 1
      %v2422 = vadd.f32 %v2420, %v2421
      %vm2423 = vcmask 1040384
      %v2424 = vsel %vm2423, %v2288, %v2422
      %vm2425 = vcmask 58368
      %2426 = vst.msk [vmem:[%s208] sm:$0x3] %vm2425, %v2424
      %v2427 = vpack.c.bf16 %v2096, %v2093
      %v2428 = vpack.c.bf16 %v2104, %v2101
      %v2429 = vpack.c.bf16 %v2112, %v2109
      %v2430 = vpack.c.bf16 %v2120, %v2117
      %v2431 = vpack.c.bf16 %v2128, %v2125
      %v2432 = vpack.c.bf16 %v2136, %v2133
      %v2433 = vpack.c.bf16 %v2144, %v2141
      %v2434 = vpack.c.bf16 %v2152, %v2149
      %v2435 = vpack.c.bf16 %v2160, %v2157
      %v2436 = vpack.c.bf16 %v2168, %v2165
      %v2437 = vpack.c.bf16 %v2176, %v2173
      %v2438 = vpack.c.bf16 %v2184, %v2181
      %v2439 = vpack.c.bf16 %v2192, %v2189
      %v2440 = vpack.c.bf16 %v2200, %v2197
      %v2441 = vpack.c.bf16 %v2208, %v2205
      %v2442 = vpack.c.bf16 %v2216, %v2213
      %v2459 = vunpack.c.l.b16 %v2427
      %v2460 = vunpack.c.h.b16 %v2427
      %v2461 = vunpack.c.l.b16 %v2428
      %v2462 = vunpack.c.h.b16 %v2428
      %v2463 = vunpack.c.l.b16 %v2429
      %v2464 = vunpack.c.h.b16 %v2429
      %v2465 = vunpack.c.l.b16 %v2430
      %v2466 = vunpack.c.h.b16 %v2430
      %v2467 = vunpack.c.l.b16 %v2431
      %v2468 = vunpack.c.h.b16 %v2431
      %v2469 = vunpack.c.l.b16 %v2432
      %v2470 = vunpack.c.h.b16 %v2432
      %v2471 = vunpack.c.l.b16 %v2433
      %v2472 = vunpack.c.h.b16 %v2433
      %v2473 = vunpack.c.l.b16 %v2434
      %v2474 = vunpack.c.h.b16 %v2434
      %v2475 = vunpack.c.l.b16 %v2435
      %v2476 = vunpack.c.h.b16 %v2435
      %v2477 = vunpack.c.l.b16 %v2436
      %v2478 = vunpack.c.h.b16 %v2436
      %v2479 = vunpack.c.l.b16 %v2437
      %v2480 = vunpack.c.h.b16 %v2437
      %v2481 = vunpack.c.l.b16 %v2438
      %v2482 = vunpack.c.h.b16 %v2438
      %v2483 = vunpack.c.l.b16 %v2439
      %v2484 = vunpack.c.h.b16 %v2439
      %v2485 = vunpack.c.l.b16 %v2440
      %v2486 = vunpack.c.h.b16 %v2440
      %v2487 = vunpack.c.l.b16 %v2441
      %v2488 = vunpack.c.h.b16 %v2441
      %v2489 = vunpack.c.l.b16 %v2442
      %v2490 = vunpack.c.h.b16 %v2442
      %v2491 = vpack.c.b16 %v2459, %v2459
      %v2492 = vpack.c.b16 %v2460, %v2460
      %v2493 = vpack.c.b16 %v2461, %v2461
      %v2494 = vpack.c.b16 %v2462, %v2462
      %v2495 = vpack.c.b16 %v2463, %v2463
      %v2496 = vpack.c.b16 %v2464, %v2464
      %v2497 = vpack.c.b16 %v2465, %v2465
      %v2498 = vpack.c.b16 %v2466, %v2466
      %v2499 = vpack.c.b16 %v2467, %v2467
      %v2500 = vpack.c.b16 %v2468, %v2468
      %v2501 = vpack.c.b16 %v2469, %v2469
      %v2502 = vpack.c.b16 %v2470, %v2470
      %v2503 = vpack.c.b16 %v2471, %v2471
      %v2504 = vpack.c.b16 %v2472, %v2472
      %v2505 = vpack.c.b16 %v2473, %v2473
      %v2506 = vpack.c.b16 %v2474, %v2474
      %v2507 = vpack.c.b16 %v2475, %v2475
      %v2508 = vpack.c.b16 %v2476, %v2476
      %v2509 = vpack.c.b16 %v2477, %v2477
      %v2510 = vpack.c.b16 %v2478, %v2478
      %v2511 = vpack.c.b16 %v2479, %v2479
      %v2512 = vpack.c.b16 %v2480, %v2480
      %v2513 = vpack.c.b16 %v2481, %v2481
      %v2514 = vpack.c.b16 %v2482, %v2482
      %v2515 = vpack.c.b16 %v2483, %v2483
      %v2516 = vpack.c.b16 %v2484, %v2484
      %v2517 = vpack.c.b16 %v2485, %v2485
      %v2518 = vpack.c.b16 %v2486, %v2486
      %v2519 = vpack.c.b16 %v2487, %v2487
      %v2520 = vpack.c.b16 %v2488, %v2488
      %v2521 = vpack.c.b16 %v2489, %v2489
      %v2522 = vpack.c.b16 %v2490, %v2490
      %vm2555 = vcmask 60416
      %2556 = vst.msk [vmem:[%s204] sm:$0xf] %vm2555, %v2491
      %2557 = vst.msk [vmem:[%s204 + $0x4] sm:$0xf] %vm2555, %v2492
      %2558 = vst.msk [vmem:[%s204 + $0x8] sm:$0xf] %vm2555, %v2493
      %2559 = vst.msk [vmem:[%s204 + $0xc] sm:$0xf] %vm2555, %v2494
      %2560 = vst.msk [vmem:[%s204 + $0x10] sm:$0xf] %vm2555, %v2495
      %2561 = vst.msk [vmem:[%s204 + $0x14] sm:$0xf] %vm2555, %v2496
      %2562 = vst.msk [vmem:[%s204 + $0x18] sm:$0xf] %vm2555, %v2497
      %2563 = vst.msk [vmem:[%s204 + $0x1c] sm:$0xf] %vm2555, %v2498
      %2564 = vst.msk [vmem:[%s204 + $0x20] sm:$0xf] %vm2555, %v2499
      %2565 = vst.msk [vmem:[%s204 + $0x24] sm:$0xf] %vm2555, %v2500
      %2566 = vst.msk [vmem:[%s204 + $0x28] sm:$0xf] %vm2555, %v2501
      %2567 = vst.msk [vmem:[%s204 + $0x2c] sm:$0xf] %vm2555, %v2502
      %2568 = vst.msk [vmem:[%s204 + $0x30] sm:$0xf] %vm2555, %v2503
      %2569 = vst.msk [vmem:[%s204 + $0x34] sm:$0xf] %vm2555, %v2504
      %2570 = vst.msk [vmem:[%s204 + $0x38] sm:$0xf] %vm2555, %v2505
      %2571 = vst.msk [vmem:[%s204 + $0x3c] sm:$0xf] %vm2555, %v2506
      %2572 = vst.msk [vmem:[%s204 + $0x40] sm:$0xf] %vm2555, %v2507
      %2573 = vst.msk [vmem:[%s204 + $0x44] sm:$0xf] %vm2555, %v2508
      %2574 = vst.msk [vmem:[%s204 + $0x48] sm:$0xf] %vm2555, %v2509
      %2575 = vst.msk [vmem:[%s204 + $0x4c] sm:$0xf] %vm2555, %v2510
      %2576 = vst.msk [vmem:[%s204 + $0x50] sm:$0xf] %vm2555, %v2511
      %2577 = vst.msk [vmem:[%s204 + $0x54] sm:$0xf] %vm2555, %v2512
      %2578 = vst.msk [vmem:[%s204 + $0x58] sm:$0xf] %vm2555, %v2513
      %2579 = vst.msk [vmem:[%s204 + $0x5c] sm:$0xf] %vm2555, %v2514
      %2580 = vst.msk [vmem:[%s204 + $0x60] sm:$0xf] %vm2555, %v2515
      %2581 = vst.msk [vmem:[%s204 + $0x64] sm:$0xf] %vm2555, %v2516
      %2582 = vst.msk [vmem:[%s204 + $0x68] sm:$0xf] %vm2555, %v2517
      %2583 = vst.msk [vmem:[%s204 + $0x6c] sm:$0xf] %vm2555, %v2518
      %2584 = vst.msk [vmem:[%s204 + $0x70] sm:$0xf] %vm2555, %v2519
      %2585 = vst.msk [vmem:[%s204 + $0x74] sm:$0xf] %vm2555, %v2520
      %2586 = vst.msk [vmem:[%s204 + $0x78] sm:$0xf] %vm2555, %v2521
      %2587 = vst.msk [vmem:[%s204 + $0x7c] sm:$0xf] %vm2555, %v2522
      %p2588 = scmp.lt.s32.totalorder %s16, 1
      %s2589 = scalar_select %p2588, %s16, 1
      %s2590 = smul.addr %s2589, 32
      %s2591 = smul.addr %s2590, 4
      %s2592 = scalar_lea.vmem %s3, %s2591
      %p2593 = scmp.lt.s32.totalorder %s16, 1
      %s2594 = scalar_select %p2593, %s16, 1
      %s2595 = smul.addr %s2594, 2
      %s2596 = scalar_lea.vmem %s4, %s2595
      // Predicated region
      $region33: #{decoder_block_forward.2} parent=31 // pred_check
        %p2597 = pneg %p102
      $region34: #{decoder_block_forward.2} parent=31 // pred_check_branch
        %2599 = sbr.rel (%p2597) target = $region36
      $region35: #{decoder_block_forward.2} parent=31 // pred_region
        _
      $region36: #{decoder_block_forward.2} parent=31 // pred_fallthru
        _
      // Predicated region
      $region37: #{decoder_block_forward.2} parent=31 // pred_check
        %p2600 = pneg %p128
      $region38: #{decoder_block_forward.2} parent=31 // pred_check_branch
        %2602 = sbr.rel (%p2600) target = $region40
      $region39: #{decoder_block_forward.2} parent=31 // pred_region
        _
      $region40: #{decoder_block_forward.2} parent=31 // pred_fallthru
        _
    $region32: #{decoder_block_forward.2} parent=5 // pred_fallthru
      _
    %p2603 = scmp.le.s32.totalorder 2, %s11
    // Predicated region
    $region41: #{decoder_block_forward.2} parent=5 // pred_check
      %p2604 = pneg %p2603
    $region42: #{decoder_block_forward.2} parent=5 // pred_check_branch
      %2606 = sbr.rel (%p2604) target = $region44
    $region43: #{decoder_block_forward.2} parent=5 // pred_region
      %s2607 = ssub.s32 %s11, 2
      // Predicated region
      $region45: #{decoder_block_forward.2} parent=43 // pred_check
        %p2608 = pneg %p108
      $region46: #{decoder_block_forward.2} parent=43 // pred_check_branch
        %2610 = sbr.rel (%p2608) target = $region48
      $region47: #{decoder_block_forward.2} parent=43 // pred_region
        %p2611 = scmp.lt.s32.totalorder %s17, 1
        %s2612 = scalar_select %p2611, %s17, 1
        %s2613 = smul.addr %s2612, 32
        %s2614 = smul.addr %s2613, 4
        %s2615 = scalar_lea.vmem %s3, %s2614
      $region48: #{decoder_block_forward.2} parent=43 // pred_fallthru
        _
      // Predicated region
      $region49: #{decoder_block_forward.2} parent=43 // pred_check
        %p2616 = pneg %p134
      $region50: #{decoder_block_forward.2} parent=43 // pred_check_branch
        %2618 = sbr.rel (%p2616) target = $region52
      $region51: #{decoder_block_forward.2} parent=43 // pred_region
        %p2619 = scmp.lt.s32.totalorder %s17, 1
        %s2620 = scalar_select %p2619, %s17, 1
        %s2621 = smul.addr %s2620, 2
        %s2622 = scalar_lea.vmem %s4, %s2621
      $region52: #{decoder_block_forward.2} parent=43 // pred_fallthru
        _
    $region44: #{decoder_block_forward.2} parent=5 // pred_fallthru
      _
  $region6: #{decoder_block_forward.2} parent=0 // loop_footer
    %s15 = sadd.s32 1, %s11
  $region7: #{decoder_block_forward.2} parent=0 // loop_footer_branch
    %10 = sbr.rel target = $region3
  $region8: #{decoder_block_forward.2} parent=0 // loop_exit
    _

// kernel: decoder_block_forward.3
$region0: #{decoder_block_forward.3}
  #allocation0 [shape = 'u32[]', space=smem, size = 0x4, offset = 0x4, fixed_abs, tag = 'smem constant byte address 0x4 - core index']
  #allocation1 [shape = 'u32[144,128]{1,0:T(1,128)}', space=vmem, size = 0x12000, scoped, tag = 'internal scratch']
  #allocation2 [shape = 'f32[18,18,8]{2,1,0:T(8,128)}', space=vmem, size = 0x36000, scoped, tag = 'scratch operand']
  #allocation3 [shape = 'f32[256,32]{1,0:T(8,128)}', space=vmem, size = 0x20000, scoped, tag = 'scratch operand']
  %s0 = inlined_call_operand.vmem [shape: bf16[2,256,8], index: 0, kind: input, shape index: {}]
  %s1 = inlined_call_operand.vmem [shape: f32[1,8], index: 1, kind: input, shape index: {}]
  %s2 = inlined_call_operand.vmem [shape: f32[1,8], index: 2, kind: input, shape index: {}]
  %s3 = inlined_call_operand.vmem [shape: bf16[4,32,4], index: 3, kind: input, shape index: {}]
  %s4 = inlined_call_operand.vmem [shape: f32[1,4], index: 4, kind: input, shape index: {}]
  %s5 = inlined_call_operand.vmem [shape: f32[2,256,16], index: 5, kind: output, shape index: {}]
  %s6 = sld [smem:[#allocation0]]
  $region53: #{decoder_block_forward.3} parent=0
    _
  %s8 = ssub.s32 1, %s6
  %s9 = scalar_select 0, %s8, %s6
  loop: start=0, step=1, limit=4
  $region2: #{decoder_block_forward.3} parent=0 // loop_pre_header
    _
  $region3: #{decoder_block_forward.3} parent=0 // loop_header
    %s11 = sphi 0, %s15
    %p12 = scmp.ge.s32.totalorder %s11, 4
    %s21 = sphi 0, %s23
    %s24 = sphi 0, %s21
    %s25 = sphi 0, %s24
    %s41 = sphi 0, %s25
    %s45 = sphi 0, %s45
    %s47 = sphi 0, %s45
    %s48 = sphi 0, %s47
    %s62 = sphi 0, %s48
    %s66 = sphi 0, %s66
    %s68 = sphi 0, %s66
    %s69 = sphi 0, %s68
    %s83 = sphi 0, %s69
    %s87 = sphi 0, %s87
    %s89 = sphi 0, %s87
    %s90 = sphi 0, %s89
    %s104 = sphi 0, %s90
    %s108 = sphi 0, %s108
    %s110 = sphi 0, %s108
    %s111 = sphi 0, %s110
    %s125 = sphi 0, %s111
    %s131 = sphi 0, %s133
    %s134 = sphi 0, %s131
    %s135 = sphi 0, %s134
    %s151 = sphi 0, %s135
  $region4: #{decoder_block_forward.3} parent=0 // loop_header_branch
    %14 = sbr.rel (%p12) target = $region8
  $region5: #{decoder_block_forward.3} parent=0 // loop_body
    %s16 = ssub.s32 %s11, 1
    %s17 = ssub.s32 %s11, 2
    %s18 = sadd.s32 %s11, 1
    %s19 = ssub.s32 %s11, %s18
    %p20 = scmp.eq.s32.totalorder %s19, 0
    %s22 = sadd.s32 %s21, 1
    %s23 = scalar_select %p20, %s21, %s22
    %p26 = pneg %p20
    %p27 = scmp.eq.s32.totalorder %s11, 1
    %p28 = por %p26, %p27
    %p29 = scmp.ne.s32.totalorder %s21, %s24
    %p30 = scmp.eq.s32.totalorder %s11, 0
    %p31 = por %p29, %p30
    %p32 = scmp.ne.s32.totalorder %s21, %s24
    %p33 = scmp.eq.s32.totalorder %s16, 1
    %p34 = por %p32, %p33
    %p35 = scmp.ne.s32.totalorder %s24, %s25
    %p36 = scmp.eq.s32.totalorder %s16, 0
    %p37 = por %p35, %p36
    %p38 = scmp.ne.s32.totalorder %s24, %s25
    %p39 = scmp.eq.s32.totalorder %s17, 1
    %p40 = por %p38, %p39
    %p42 = scmp.ne.s32.totalorder %s25, %s41
    %p43 = scmp.eq.s32.totalorder %s17, 0
    %p44 = por %p42, %p43
    %s46 = sadd.s32 %s45, 1
    %p49 = scmp.eq.s32.totalorder %s11, 1
    %p50 = scmp.ne.s32.totalorder %s45, %s47
    %p51 = scmp.eq.s32.totalorder %s11, 0
    %p52 = por %p50, %p51
    %p53 = scmp.ne.s32.totalorder %s45, %s47
    %p54 = scmp.eq.s32.totalorder %s16, 1
    %p55 = por %p53, %p54
    %p56 = scmp.ne.s32.totalorder %s47, %s48
    %p57 = scmp.eq.s32.totalorder %s16, 0
    %p58 = por %p56, %p57
    %p59 = scmp.ne.s32.totalorder %s47, %s48
    %p60 = scmp.eq.s32.totalorder %s17, 1
    %p61 = por %p59, %p60
    %p63 = scmp.ne.s32.totalorder %s48, %s62
    %p64 = scmp.eq.s32.totalorder %s17, 0
    %p65 = por %p63, %p64
    %s67 = sadd.s32 %s66, 1
    %p70 = scmp.eq.s32.totalorder %s11, 1
    %p71 = scmp.ne.s32.totalorder %s66, %s68
    %p72 = scmp.eq.s32.totalorder %s11, 0
    %p73 = por %p71, %p72
    %p74 = scmp.ne.s32.totalorder %s66, %s68
    %p75 = scmp.eq.s32.totalorder %s16, 1
    %p76 = por %p74, %p75
    %p77 = scmp.ne.s32.totalorder %s68, %s69
    %p78 = scmp.eq.s32.totalorder %s16, 0
    %p79 = por %p77, %p78
    %p80 = scmp.ne.s32.totalorder %s68, %s69
    %p81 = scmp.eq.s32.totalorder %s17, 1
    %p82 = por %p80, %p81
    %p84 = scmp.ne.s32.totalorder %s69, %s83
    %p85 = scmp.eq.s32.totalorder %s17, 0
    %p86 = por %p84, %p85
    %s88 = sadd.s32 %s87, 1
    %p91 = scmp.eq.s32.totalorder %s11, 1
    %p92 = scmp.ne.s32.totalorder %s87, %s89
    %p93 = scmp.eq.s32.totalorder %s11, 0
    %p94 = por %p92, %p93
    %p95 = scmp.ne.s32.totalorder %s87, %s89
    %p96 = scmp.eq.s32.totalorder %s16, 1
    %p97 = por %p95, %p96
    %p98 = scmp.ne.s32.totalorder %s89, %s90
    %p99 = scmp.eq.s32.totalorder %s16, 0
    %p100 = por %p98, %p99
    %p101 = scmp.ne.s32.totalorder %s89, %s90
    %p102 = scmp.eq.s32.totalorder %s17, 1
    %p103 = por %p101, %p102
    %p105 = scmp.ne.s32.totalorder %s90, %s104
    %p106 = scmp.eq.s32.totalorder %s17, 0
    %p107 = por %p105, %p106
    %s109 = sadd.s32 %s108, 1
    %p112 = scmp.eq.s32.totalorder %s11, 1
    %p113 = scmp.ne.s32.totalorder %s108, %s110
    %p114 = scmp.eq.s32.totalorder %s11, 0
    %p115 = por %p113, %p114
    %p116 = scmp.ne.s32.totalorder %s108, %s110
    %p117 = scmp.eq.s32.totalorder %s16, 1
    %p118 = por %p116, %p117
    %p119 = scmp.ne.s32.totalorder %s110, %s111
    %p120 = scmp.eq.s32.totalorder %s16, 0
    %p121 = por %p119, %p120
    %p122 = scmp.ne.s32.totalorder %s110, %s111
    %p123 = scmp.eq.s32.totalorder %s17, 1
    %p124 = por %p122, %p123
    %p126 = scmp.ne.s32.totalorder %s111, %s125
    %p127 = scmp.eq.s32.totalorder %s17, 0
    %p128 = por %p126, %p127
    %s129 = ssub.s32 %s11, %s18
    %p130 = scmp.eq.s32.totalorder %s129, 0
    %s132 = sadd.s32 %s131, 1
    %s133 = scalar_select %p130, %s131, %s132
    %p136 = pneg %p130
    %p137 = scmp.eq.s32.totalorder %s11, 1
    %p138 = por %p136, %p137
    %p139 = scmp.ne.s32.totalorder %s131, %s134
    %p140 = scmp.eq.s32.totalorder %s11, 0
    %p141 = por %p139, %p140
    %p142 = scmp.ne.s32.totalorder %s131, %s134
    %p143 = scmp.eq.s32.totalorder %s16, 1
    %p144 = por %p142, %p143
    %p145 = scmp.ne.s32.totalorder %s134, %s135
    %p146 = scmp.eq.s32.totalorder %s16, 0
    %p147 = por %p145, %p146
    %p148 = scmp.ne.s32.totalorder %s134, %s135
    %p149 = scmp.eq.s32.totalorder %s17, 1
    %p150 = por %p148, %p149
    %p152 = scmp.ne.s32.totalorder %s135, %s151
    %p153 = scmp.eq.s32.totalorder %s17, 0
    %p154 = por %p152, %p153
    %p155 = scmp.le.s32.totalorder 1, %s11
    %p156 = scmp.lt.s32.totalorder %s11, 3
    %p157 = pnand %p155, %p156
    %p158 = pneg %p157
    // Predicated region
    $region9: #{decoder_block_forward.3} parent=5 // pred_check
      _
    $region10: #{decoder_block_forward.3} parent=5 // pred_check_branch
      %160 = sbr.rel (%p157) target = $region12
    $region11: #{decoder_block_forward.3} parent=5 // pred_region
      %s161 = ssub.s32 %s11, 1
      // Predicated region
      $region13: #{decoder_block_forward.3} parent=11 // pred_check
        %p162 = pneg %p58
      $region14: #{decoder_block_forward.3} parent=11 // pred_check_branch
        %164 = sbr.rel (%p162) target = $region16
      $region15: #{decoder_block_forward.3} parent=11 // pred_region
        _
      $region16: #{decoder_block_forward.3} parent=11 // pred_fallthru
        _
      // Predicated region
      $region17: #{decoder_block_forward.3} parent=11 // pred_check
        %p165 = pneg %p79
      $region18: #{decoder_block_forward.3} parent=11 // pred_check_branch
        %167 = sbr.rel (%p165) target = $region20
      $region19: #{decoder_block_forward.3} parent=11 // pred_region
        _
      $region20: #{decoder_block_forward.3} parent=11 // pred_fallthru
        _
      // Predicated region
      $region21: #{decoder_block_forward.3} parent=11 // pred_check
        %p168 = pneg %p100
      $region22: #{decoder_block_forward.3} parent=11 // pred_check_branch
        %170 = sbr.rel (%p168) target = $region24
      $region23: #{decoder_block_forward.3} parent=11 // pred_region
        _
      $region24: #{decoder_block_forward.3} parent=11 // pred_fallthru
        _
      // Predicated region
      $region25: #{decoder_block_forward.3} parent=11 // pred_check
        %p171 = pneg %p121
      $region26: #{decoder_block_forward.3} parent=11 // pred_check_branch
        %173 = sbr.rel (%p171) target = $region28
      $region27: #{decoder_block_forward.3} parent=11 // pred_region
        _
      $region28: #{decoder_block_forward.3} parent=11 // pred_fallthru
        _
    $region12: #{decoder_block_forward.3} parent=5 // pred_fallthru
      _
    %p174 = scmp.lt.s32.totalorder %s11, 2
    // Predicated region
    $region29: #{decoder_block_forward.3} parent=5 // pred_check
      %p175 = pneg %p174
    $region30: #{decoder_block_forward.3} parent=5 // pred_check_branch
      %177 = sbr.rel (%p175) target = $region32
    $region31: #{decoder_block_forward.3} parent=5 // pred_region
      // Predicated region
      $region33: #{decoder_block_forward.3} parent=31 // pred_check
        %p178 = pneg %p31
      $region34: #{decoder_block_forward.3} parent=31 // pred_check_branch
        %180 = sbr.rel (%p178) target = $region36
      $region35: #{decoder_block_forward.3} parent=31 // pred_region
        %p181 = scmp.lt.s32.totalorder %s11, 1
        %s182 = scalar_select %p181, %s11, 1
        %s183 = smul.addr %s182, 32
        %s184 = smul.addr %s183, 4
        %s185 = scalar_lea.vmem %s0, %s184
      $region36: #{decoder_block_forward.3} parent=31 // pred_fallthru
        _
    $region32: #{decoder_block_forward.3} parent=5 // pred_fallthru
      _
    %p186 = scmp.le.s32.totalorder 1, %s11
    %p187 = scmp.lt.s32.totalorder %s11, 3
    %p188 = pnand %p186, %p187
    %p189 = pneg %p188
    // Predicated region
    $region37: #{decoder_block_forward.3} parent=5 // pred_check
      _
    $region38: #{decoder_block_forward.3} parent=5 // pred_check_branch
      %191 = sbr.rel (%p188) target = $region40
    $region39: #{decoder_block_forward.3} parent=5 // pred_region
      %s192 = ssub.s32 %s11, 1
      %p193 = scmp.lt.s32.totalorder %s16, 1
      %s194 = scalar_select %p193, %s16, 1
      %s195 = smul.addr %s194, 32
      %s196 = smul.addr %s195, 4
      %s197 = scalar_lea.vmem %s0, %s196
      %p198 = pneg %p37
      %p199 = pneg %p34
      %p200 = pneg %p58
      %p201 = pneg %p55
      %p202 = pneg %p79
      %p203 = pneg %p76
      %p204 = pneg %p100
      %p205 = pneg %p97
      %p206 = pneg %p121
      %p207 = pneg %p118
      %p208 = pneg %p147
      %p209 = pneg %p144
      %p210 = scmp.lt.s32.totalorder %s16, 1
      %s211 = scalar_select %p210, %s16, 1
      %s212 = smul.addr %s211, 32
      %s213 = smul.addr %s212, 8
      %s214 = scalar_lea.vmem %s5, %s213
      %p215 = scmp.lt.s32.totalorder %s16, 1
      %s216 = scalar_select %p215, %s16, 1
      %s217 = smul.addr %s216, 32
      %s218 = smul.addr %s217, 4
      %s219 = scalar_lea.vmem %s0, %s218
      %p220 = scmp.lt.s32.totalorder %s16, 1
      %s221 = scalar_select %p220, %s16, 1
      %s222 = smul.addr %s221, 32
      %s223 = smul.addr %s222, 8
      %s224 = scalar_lea.vmem %s5, %s223
      %v226 = vld [vmem:[%s219] sm:$0xf]
      %v227 = vld [vmem:[%s219 + $0x4] sm:$0xf]
      %v228 = vld [vmem:[%s219 + $0x8] sm:$0xf]
      %v229 = vld [vmem:[%s219 + $0xc] sm:$0xf]
      %v230 = vld [vmem:[%s219 + $0x10] sm:$0xf]
      %v231 = vld [vmem:[%s219 + $0x14] sm:$0xf]
      %v232 = vld [vmem:[%s219 + $0x18] sm:$0xf]
      %v233 = vld [vmem:[%s219 + $0x1c] sm:$0xf]
      %v234 = vld [vmem:[%s219 + $0x20] sm:$0xf]
      %v235 = vld [vmem:[%s219 + $0x24] sm:$0xf]
      %v236 = vld [vmem:[%s219 + $0x28] sm:$0xf]
      %v237 = vld [vmem:[%s219 + $0x2c] sm:$0xf]
      %v238 = vld [vmem:[%s219 + $0x30] sm:$0xf]
      %v239 = vld [vmem:[%s219 + $0x34] sm:$0xf]
      %v240 = vld [vmem:[%s219 + $0x38] sm:$0xf]
      %v241 = vld [vmem:[%s219 + $0x3c] sm:$0xf]
      %v242 = vld [vmem:[%s219 + $0x40] sm:$0xf]
      %v243 = vld [vmem:[%s219 + $0x44] sm:$0xf]
      %v244 = vld [vmem:[%s219 + $0x48] sm:$0xf]
      %v245 = vld [vmem:[%s219 + $0x4c] sm:$0xf]
      %v246 = vld [vmem:[%s219 + $0x50] sm:$0xf]
      %v247 = vld [vmem:[%s219 + $0x54] sm:$0xf]
      %v248 = vld [vmem:[%s219 + $0x58] sm:$0xf]
      %v249 = vld [vmem:[%s219 + $0x5c] sm:$0xf]
      %v250 = vld [vmem:[%s219 + $0x60] sm:$0xf]
      %v251 = vld [vmem:[%s219 + $0x64] sm:$0xf]
      %v252 = vld [vmem:[%s219 + $0x68] sm:$0xf]
      %v253 = vld [vmem:[%s219 + $0x6c] sm:$0xf]
      %v254 = vld [vmem:[%s219 + $0x70] sm:$0xf]
      %v255 = vld [vmem:[%s219 + $0x74] sm:$0xf]
      %v256 = vld [vmem:[%s219 + $0x78] sm:$0xf]
      %v257 = vld [vmem:[%s219 + $0x7c] sm:$0xf]
      %v258 = vunpack.c.l.bf16 %v226
      %v259 = vunpack.c.l.bf16 %v227
      %v260 = vunpack.c.l.bf16 %v228
      %v261 = vunpack.c.l.bf16 %v229
      %v262 = vunpack.c.l.bf16 %v230
      %v263 = vunpack.c.l.bf16 %v231
      %v264 = vunpack.c.l.bf16 %v232
      %v265 = vunpack.c.l.bf16 %v233
      %v266 = vunpack.c.l.bf16 %v234
      %v267 = vunpack.c.l.bf16 %v235
      %v268 = vunpack.c.l.bf16 %v236
      %v269 = vunpack.c.l.bf16 %v237
      %v270 = vunpack.c.l.bf16 %v238
      %v271 = vunpack.c.l.bf16 %v239
      %v272 = vunpack.c.l.bf16 %v240
      %v273 = vunpack.c.l.bf16 %v241
      %v274 = vunpack.c.l.bf16 %v242
      %v275 = vunpack.c.l.bf16 %v243
      %v276 = vunpack.c.l.bf16 %v244
      %v277 = vunpack.c.l.bf16 %v245
      %v278 = vunpack.c.l.bf16 %v246
      %v279 = vunpack.c.l.bf16 %v247
      %v280 = vunpack.c.l.bf16 %v248
      %v281 = vunpack.c.l.bf16 %v249
      %v282 = vunpack.c.l.bf16 %v250
      %v283 = vunpack.c.l.bf16 %v251
      %v284 = vunpack.c.l.bf16 %v252
      %v285 = vunpack.c.l.bf16 %v253
      %v286 = vunpack.c.l.bf16 %v254
      %v287 = vunpack.c.l.bf16 %v255
      %v288 = vunpack.c.l.bf16 %v256
      %v289 = vunpack.c.l.bf16 %v257
      %v290 = vld [vmem:[%s1] sm:$0x1]
      %v292 = vlaneseq
      %v293 = vshrl.u32 %v292, 7
      %v294 = vsub.s32 0, %v293
      %v295 = vrot.slane %v290, %v294
      %v297 = vmul.f32 %v258, %v295
      %v298 = vmul.f32 %v259, %v295
      %v299 = vmul.f32 %v260, %v295
      %v300 = vmul.f32 %v261, %v295
      %v301 = vmul.f32 %v262, %v295
      %v302 = vmul.f32 %v263, %v295
      %v303 = vmul.f32 %v264, %v295
      %v304 = vmul.f32 %v265, %v295
      %v305 = vmul.f32 %v266, %v295
      %v306 = vmul.f32 %v267, %v295
      %v307 = vmul.f32 %v268, %v295
      %v308 = vmul.f32 %v269, %v295
      %v309 = vmul.f32 %v270, %v295
      %v310 = vmul.f32 %v271, %v295
      %v311 = vmul.f32 %v272, %v295
      %v312 = vmul.f32 %v273, %v295
      %v313 = vmul.f32 %v274, %v295
      %v314 = vmul.f32 %v275, %v295
      %v315 = vmul.f32 %v276, %v295
      %v316 = vmul.f32 %v277, %v295
      %v317 = vmul.f32 %v278, %v295
      %v318 = vmul.f32 %v279, %v295
      %v319 = vmul.f32 %v280, %v295
      %v320 = vmul.f32 %v281, %v295
      %v321 = vmul.f32 %v282, %v295
      %v322 = vmul.f32 %v283, %v295
      %v323 = vmul.f32 %v284, %v295
      %v324 = vmul.f32 %v285, %v295
      %v325 = vmul.f32 %v286, %v295
      %v326 = vmul.f32 %v287, %v295
      %v327 = vmul.f32 %v288, %v295
      %v328 = vmul.f32 %v289, %v295
      %v329 = vld [vmem:[%s2] sm:$0x1]
      %v331 = vlaneseq
      %v332 = vshrl.u32 %v331, 7
      %v333 = vsub.s32 0, %v332
      %v334 = vrot.slane %v329, %v333
      %v336 = vadd.f32 %v297, %v334
      %v337 = vadd.f32 %v298, %v334
      %v338 = vadd.f32 %v299, %v334
      %v339 = vadd.f32 %v300, %v334
      %v340 = vadd.f32 %v301, %v334
      %v341 = vadd.f32 %v302, %v334
      %v342 = vadd.f32 %v303, %v334
      %v343 = vadd.f32 %v304, %v334
      %v344 = vadd.f32 %v305, %v334
      %v345 = vadd.f32 %v306, %v334
      %v346 = vadd.f32 %v307, %v334
      %v347 = vadd.f32 %v308, %v334
      %v348 = vadd.f32 %v309, %v334
      %v349 = vadd.f32 %v310, %v334
      %v350 = vadd.f32 %v311, %v334
      %v351 = vadd.f32 %v312, %v334
      %v352 = vadd.f32 %v313, %v334
      %v353 = vadd.f32 %v314, %v334
      %v354 = vadd.f32 %v315, %v334
      %v355 = vadd.f32 %v316, %v334
      %v356 = vadd.f32 %v317, %v334
      %v357 = vadd.f32 %v318, %v334
      %v358 = vadd.f32 %v319, %v334
      %v359 = vadd.f32 %v320, %v334
      %v360 = vadd.f32 %v321, %v334
      %v361 = vadd.f32 %v322, %v334
      %v362 = vadd.f32 %v323, %v334
      %v363 = vadd.f32 %v324, %v334
      %v364 = vadd.f32 %v325, %v334
      %v365 = vadd.f32 %v326, %v334
      %v366 = vadd.f32 %v327, %v334
      %v367 = vadd.f32 %v328, %v334
      %v368 = vmax.f32 %v336, 0.0
      %v369 = vmax.f32 %v337, 0.0
      %v370 = vmax.f32 %v338, 0.0
      %v371 = vmax.f32 %v339, 0.0
      %v372 = vmax.f32 %v340, 0.0
      %v373 = vmax.f32 %v341, 0.0
      %v374 = vmax.f32 %v342, 0.0
      %v375 = vmax.f32 %v343, 0.0
      %v376 = vmax.f32 %v344, 0.0
      %v377 = vmax.f32 %v345, 0.0
      %v378 = vmax.f32 %v346, 0.0
      %v379 = vmax.f32 %v347, 0.0
      %v380 = vmax.f32 %v348, 0.0
      %v381 = vmax.f32 %v349, 0.0
      %v382 = vmax.f32 %v350, 0.0
      %v383 = vmax.f32 %v351, 0.0
      %v384 = vmax.f32 %v352, 0.0
      %v385 = vmax.f32 %v353, 0.0
      %v386 = vmax.f32 %v354, 0.0
      %v387 = vmax.f32 %v355, 0.0
      %v388 = vmax.f32 %v356, 0.0
      %v389 = vmax.f32 %v357, 0.0
      %v390 = vmax.f32 %v358, 0.0
      %v391 = vmax.f32 %v359, 0.0
      %v392 = vmax.f32 %v360, 0.0
      %v393 = vmax.f32 %v361, 0.0
      %v394 = vmax.f32 %v362, 0.0
      %v395 = vmax.f32 %v363, 0.0
      %v396 = vmax.f32 %v364, 0.0
      %v397 = vmax.f32 %v365, 0.0
      %v398 = vmax.f32 %v366, 0.0
      %v399 = vmax.f32 %v367, 0.0
      %vm400 = vcmask 64512
      %401 = vst.msk [vmem:[#allocation2] sm:$0xff] %vm400, 0.0
      %402 = vst.msk [vmem:[#allocation2 + $0x8] sm:$0xff] %vm400, 0.0
      %vm403 = vcmask 58368
      %404 = vst.msk [vmem:[#allocation2 + $0x10] sm:$0x3] %vm403, 0.0
      %s405 = scalar_lea.vmem [#allocation2], 408
      %406 = vst.msk [vmem:[%s405] sm:$0xff] %vm400, 0.0
      %407 = vst.msk [vmem:[%s405 + $0x8] sm:$0xff] %vm400, 0.0
      %408 = vst.msk [vmem:[%s405 + $0x10] sm:$0x3] %vm403, 0.0
      %vm409 = vcmask 57344
      %410 = vst.msk [vmem:[#allocation2] sm:$0x1] %vm409, 0.0
      %411 = vst.msk [vmem:[#allocation2 + $0x18] sm:$0x1] %vm409, 0.0
      %412 = vst.msk [vmem:[#allocation2 + $0x30] sm:$0x1] %vm409, 0.0
      %413 = vst.msk [vmem:[#allocation2 + $0x48] sm:$0x1] %vm409, 0.0
      %414 = vst.msk [vmem:[#allocation2 + $0x60] sm:$0x1] %vm409, 0.0
      %415 = vst.msk [vmem:[#allocation2 + $0x78] sm:$0x1] %vm409, 0.0
      %416 = vst.msk [vmem:[#allocation2 + $0x90] sm:$0x1] %vm409, 0.0
      %417 = vst.msk [vmem:[#allocation2 + $0xa8] sm:$0x1] %vm409, 0.0
      %418 = vst.msk [vmem:[#allocation2 + $0xc0] sm:$0x1] %vm409, 0.0
      %419 = vst.msk [vmem:[#allocation2 + $0xd8] sm:$0x1] %vm409, 0.0
      %420 = vst.msk [vmem:[#allocation2 + $0xf0] sm:$0x1] %vm409, 0.0
      %421 = vst.msk [vmem:[#allocation2 + $0x108] sm:$0x1] %vm409, 0.0
      %422 = vst.msk [vmem:[#allocation2 + $0x120] sm:$0x1] %vm409, 0.0
      %423 = vst.msk [vmem:[#allocation2 + $0x138] sm:$0x1] %vm409, 0.0
      %424 = vst.msk [vmem:[#allocation2 + $0x150] sm:$0x1] %vm409, 0.0
      %425 = vst.msk [vmem:[#allocation2 + $0x168] sm:$0x1] %vm409, 0.0
      %426 = vst.msk [vmem:[#allocation2 + $0x180] sm:$0x1] %vm409, 0.0
      %427 = vst.msk [vmem:[#allocation2 + $0x198] sm:$0x1] %vm409, 0.0
      %428 = vst.msk [vmem:[#allocation2 + $0x11] sm:$0x1] %vm409, 0.0
      %429 = vst.msk [vmem:[#allocation2 + $0x29] sm:$0x1] %vm409, 0.0
      %430 = vst.msk [vmem:[#allocation2 + $0x41] sm:$0x1] %vm409, 0.0
      %431 = vst.msk [vmem:[#allocation2 + $0x59] sm:$0x1] %vm409, 0.0
      %432 = vst.msk [vmem:[#allocation2 + $0x71] sm:$0x1] %vm409, 0.0
      %433 = vst.msk [vmem:[#allocation2 + $0x89] sm:$0x1] %vm409, 0.0
      %434 = vst.msk [vmem:[#allocation2 + $0xa1] sm:$0x1] %vm409, 0.0
      %435 = vst.msk [vmem:[#allocation2 + $0xb9] sm:$0x1] %vm409, 0.0
      %436 = vst.msk [vmem:[#allocation2 + $0xd1] sm:$0x1] %vm409, 0.0
      %437 = vst.msk [vmem:[#allocation2 + $0xe9] sm:$0x1] %vm409, 0.0
      %438 = vst.msk [vmem:[#allocation2 + $0x101] sm:$0x1] %vm409, 0.0
      %439 = vst.msk [vmem:[#allocation2 + $0x119] sm:$0x1] %vm409, 0.0
      %440 = vst.msk [vmem:[#allocation2 + $0x131] sm:$0x1] %vm409, 0.0
      %441 = vst.msk [vmem:[#allocation2 + $0x149] sm:$0x1] %vm409, 0.0
      %442 = vst.msk [vmem:[#allocation2 + $0x161] sm:$0x1] %vm409, 0.0
      %443 = vst.msk [vmem:[#allocation2 + $0x179] sm:$0x1] %vm409, 0.0
      %444 = vst.msk [vmem:[#allocation2 + $0x191] sm:$0x1] %vm409, 0.0
      %445 = vst.msk [vmem:[#allocation2 + $0x1a9] sm:$0x1] %vm409, 0.0
      %s446 = scalar_lea.vmem [#allocation2], 24
      %447 = vst.msk [vmem:[%s446 + $0x1] sm:$0xff] %vm400, %v368
      %448 = vst.msk [vmem:[%s446 + $0x9] sm:$0xff] %vm400, %v369
      %449 = vst.msk [vmem:[%s446 + $0x19] sm:$0xff] %vm400, %v370
      %450 = vst.msk [vmem:[%s446 + $0x21] sm:$0xff] %vm400, %v371
      %451 = vst.msk [vmem:[%s446 + $0x31] sm:$0xff] %vm400, %v372
      %452 = vst.msk [vmem:[%s446 + $0x39] sm:$0xff] %vm400, %v373
      %453 = vst.msk [vmem:[%s446 + $0x49] sm:$0xff] %vm400, %v374
      %454 = vst.msk [vmem:[%s446 + $0x51] sm:$0xff] %vm400, %v375
      %455 = vst.msk [vmem:[%s446 + $0x61] sm:$0xff] %vm400, %v376
      %456 = vst.msk [vmem:[%s446 + $0x69] sm:$0xff] %vm400, %v377
      %457 = vst.msk [vmem:[%s446 + $0x79] sm:$0xff] %vm400, %v378
      %458 = vst.msk [vmem:[%s446 + $0x81] sm:$0xff] %vm400, %v379
      %459 = vst.msk [vmem:[%s446 + $0x91] sm:$0xff] %vm400, %v380
      %460 = vst.msk [vmem:[%s446 + $0x99] sm:$0xff] %vm400, %v381
      %461 = vst.msk [vmem:[%s446 + $0xa9] sm:$0xff] %vm400, %v382
      %462 = vst.msk [vmem:[%s446 + $0xb1] sm:$0xff] %vm400, %v383
      %463 = vst.msk [vmem:[%s446 + $0xc1] sm:$0xff] %vm400, %v384
      %464 = vst.msk [vmem:[%s446 + $0xc9] sm:$0xff] %vm400, %v385
      %465 = vst.msk [vmem:[%s446 + $0xd9] sm:$0xff] %vm400, %v386
      %466 = vst.msk [vmem:[%s446 + $0xe1] sm:$0xff] %vm400, %v387
      %467 = vst.msk [vmem:[%s446 + $0xf1] sm:$0xff] %vm400, %v388
      %468 = vst.msk [vmem:[%s446 + $0xf9] sm:$0xff] %vm400, %v389
      %469 = vst.msk [vmem:[%s446 + $0x109] sm:$0xff] %vm400, %v390
      %470 = vst.msk [vmem:[%s446 + $0x111] sm:$0xff] %vm400, %v391
      %471 = vst.msk [vmem:[%s446 + $0x121] sm:$0xff] %vm400, %v392
      %472 = vst.msk [vmem:[%s446 + $0x129] sm:$0xff] %vm400, %v393
      %473 = vst.msk [vmem:[%s446 + $0x139] sm:$0xff] %vm400, %v394
      %474 = vst.msk [vmem:[%s446 + $0x141] sm:$0xff] %vm400, %v395
      %475 = vst.msk [vmem:[%s446 + $0x151] sm:$0xff] %vm400, %v396
      %476 = vst.msk [vmem:[%s446 + $0x159] sm:$0xff] %vm400, %v397
      %477 = vst.msk [vmem:[%s446 + $0x169] sm:$0xff] %vm400, %v398
      %478 = vst.msk [vmem:[%s446 + $0x171] sm:$0xff] %vm400, %v399
      %v479 = vld [vmem:[#allocation2] sm:$0xff]
      %v480 = vld [vmem:[#allocation2 + $0x8] sm:$0xff]
      %v481 = vld [vmem:[#allocation2 + $0x18] sm:$0xff]
      %v482 = vld [vmem:[#allocation2 + $0x20] sm:$0xff]
      %v483 = vld [vmem:[#allocation2 + $0x30] sm:$0xff]
      %v484 = vld [vmem:[#allocation2 + $0x38] sm:$0xff]
      %v485 = vld [vmem:[#allocation2 + $0x48] sm:$0xff]
      %v486 = vld [vmem:[#allocation2 + $0x50] sm:$0xff]
      %v487 = vld [vmem:[#allocation2 + $0x60] sm:$0xff]
      %v488 = vld [vmem:[#allocation2 + $0x68] sm:$0xff]
      %v489 = vld [vmem:[#allocation2 + $0x78] sm:$0xff]
      %v490 = vld [vmem:[#allocation2 + $0x80] sm:$0xff]
      %v491 = vld [vmem:[#allocation2 + $0x90] sm:$0xff]
      %v492 = vld [vmem:[#allocation2 + $0x98] sm:$0xff]
      %v493 = vld [vmem:[#allocation2 + $0xa8] sm:$0xff]
      %v494 = vld [vmem:[#allocation2 + $0xb0] sm:$0xff]
      %v495 = vld [vmem:[#allocation2 + $0xc0] sm:$0xff]
      %v496 = vld [vmem:[#allocation2 + $0xc8] sm:$0xff]
      %v497 = vld [vmem:[#allocation2 + $0xd8] sm:$0xff]
      %v498 = vld [vmem:[#allocation2 + $0xe0] sm:$0xff]
      %v499 = vld [vmem:[#allocation2 + $0xf0] sm:$0xff]
      %v500 = vld [vmem:[#allocation2 + $0xf8] sm:$0xff]
      %v501 = vld [vmem:[#allocation2 + $0x108] sm:$0xff]
      %v502 = vld [vmem:[#allocation2 + $0x110] sm:$0xff]
      %v503 = vld [vmem:[#allocation2 + $0x120] sm:$0xff]
      %v504 = vld [vmem:[#allocation2 + $0x128] sm:$0xff]
      %v505 = vld [vmem:[#allocation2 + $0x138] sm:$0xff]
      %v506 = vld [vmem:[#allocation2 + $0x140] sm:$0xff]
      %v507 = vld [vmem:[#allocation2 + $0x150] sm:$0xff]
      %v508 = vld [vmem:[#allocation2 + $0x158] sm:$0xff]
      %v509 = vld [vmem:[#allocation2 + $0x168] sm:$0xff]
      %v510 = vld [vmem:[#allocation2 + $0x170] sm:$0xff]
      %511 = vst.msk [vmem:[#allocation3] sm:$0xff] %vm400, %v479
      %512 = vst.msk [vmem:[#allocation3 + $0x8] sm:$0xff] %vm400, %v480
      %513 = vst.msk [vmem:[#allocation3 + $0x10] sm:$0xff] %vm400, %v481
      %514 = vst.msk [vmem:[#allocation3 + $0x18] sm:$0xff] %vm400, %v482
      %515 = vst.msk [vmem:[#allocation3 + $0x20] sm:$0xff] %vm400, %v483
      %516 = vst.msk [vmem:[#allocation3 + $0x28] sm:$0xff] %vm400, %v484
      %517 = vst.msk [vmem:[#allocation3 + $0x30] sm:$0xff] %vm400, %v485
      %518 = vst.msk [vmem:[#allocation3 + $0x38] sm:$0xff] %vm400, %v486
      %519 = vst.msk [vmem:[#allocation3 + $0x40] sm:$0xff] %vm400, %v487
      %520 = vst.msk [vmem:[#allocation3 + $0x48] sm:$0xff] %vm400, %v488
      %521 = vst.msk [vmem:[#allocation3 + $0x50] sm:$0xff] %vm400, %v489
      %522 = vst.msk [vmem:[#allocation3 + $0x58] sm:$0xff] %vm400, %v490
      %523 = vst.msk [vmem:[#allocation3 + $0x60] sm:$0xff] %vm400, %v491
      %524 = vst.msk [vmem:[#allocation3 + $0x68] sm:$0xff] %vm400, %v492
      %525 = vst.msk [vmem:[#allocation3 + $0x70] sm:$0xff] %vm400, %v493
      %526 = vst.msk [vmem:[#allocation3 + $0x78] sm:$0xff] %vm400, %v494
      %527 = vst.msk [vmem:[#allocation3 + $0x80] sm:$0xff] %vm400, %v495
      %528 = vst.msk [vmem:[#allocation3 + $0x88] sm:$0xff] %vm400, %v496
      %529 = vst.msk [vmem:[#allocation3 + $0x90] sm:$0xff] %vm400, %v497
      %530 = vst.msk [vmem:[#allocation3 + $0x98] sm:$0xff] %vm400, %v498
      %531 = vst.msk [vmem:[#allocation3 + $0xa0] sm:$0xff] %vm400, %v499
      %532 = vst.msk [vmem:[#allocation3 + $0xa8] sm:$0xff] %vm400, %v500
      %533 = vst.msk [vmem:[#allocation3 + $0xb0] sm:$0xff] %vm400, %v501
      %534 = vst.msk [vmem:[#allocation3 + $0xb8] sm:$0xff] %vm400, %v502
      %535 = vst.msk [vmem:[#allocation3 + $0xc0] sm:$0xff] %vm400, %v503
      %536 = vst.msk [vmem:[#allocation3 + $0xc8] sm:$0xff] %vm400, %v504
      %537 = vst.msk [vmem:[#allocation3 + $0xd0] sm:$0xff] %vm400, %v505
      %538 = vst.msk [vmem:[#allocation3 + $0xd8] sm:$0xff] %vm400, %v506
      %539 = vst.msk [vmem:[#allocation3 + $0xe0] sm:$0xff] %vm400, %v507
      %540 = vst.msk [vmem:[#allocation3 + $0xe8] sm:$0xff] %vm400, %v508
      %541 = vst.msk [vmem:[#allocation3 + $0xf0] sm:$0xff] %vm400, %v509
      %542 = vst.msk [vmem:[#allocation3 + $0xf8] sm:$0xff] %vm400, %v510
      %v543 = vld [vmem:[#allocation2 + $0x1] sm:$0xff]
      %v544 = vld [vmem:[#allocation2 + $0x9] sm:$0xff]
      %v545 = vld [vmem:[#allocation2 + $0x19] sm:$0xff]
      %v546 = vld [vmem:[#allocation2 + $0x21] sm:$0xff]
      %v547 = vld [vmem:[#allocation2 + $0x31] sm:$0xff]
      %v548 = vld [vmem:[#allocation2 + $0x39] sm:$0xff]
      %v549 = vld [vmem:[#allocation2 + $0x49] sm:$0xff]
      %v550 = vld [vmem:[#allocation2 + $0x51] sm:$0xff]
      %v551 = vld [vmem:[#allocation2 + $0x61] sm:$0xff]
      %v552 = vld [vmem:[#allocation2 + $0x69] sm:$0xff]
      %v553 = vld [vmem:[#allocation2 + $0x79] sm:$0xff]
      %v554 = vld [vmem:[#allocation2 + $0x81] sm:$0xff]
      %v555 = vld [vmem:[#allocation2 + $0x91] sm:$0xff]
      %v556 = vld [vmem:[#allocation2 + $0x99] sm:$0xff]
      %v557 = vld [vmem:[#allocation2 + $0xa9] sm:$0xff]
      %v558 = vld [vmem:[#allocation2 + $0xb1] sm:$0xff]
      %v559 = vld [vmem:[#allocation2 + $0xc1] sm:$0xff]
      %v560 = vld [vmem:[#allocation2 + $0xc9] sm:$0xff]
      %v561 = vld [vmem:[#allocation2 + $0xd9] sm:$0xff]
      %v562 = vld [vmem:[#allocation2 + $0xe1] sm:$0xff]
      %v563 = vld [vmem:[#allocation2 + $0xf1] sm:$0xff]
      %v564 = vld [vmem:[#allocation2 + $0xf9] sm:$0xff]
      %v565 = vld [vmem:[#allocation2 + $0x109] sm:$0xff]
      %v566 = vld [vmem:[#allocation2 + $0x111] sm:$0xff]
      %v567 = vld [vmem:[#allocation2 + $0x121] sm:$0xff]
      %v568 = vld [vmem:[#allocation2 + $0x129] sm:$0xff]
      %v569 = vld [vmem:[#allocation2 + $0x139] sm:$0xff]
      %v570 = vld [vmem:[#allocation2 + $0x141] sm:$0xff]
      %v571 = vld [vmem:[#allocation2 + $0x151] sm:$0xff]
      %v572 = vld [vmem:[#allocation2 + $0x159] sm:$0xff]
      %v573 = vld [vmem:[#allocation2 + $0x169] sm:$0xff]
      %v574 = vld [vmem:[#allocation2 + $0x171] sm:$0xff]
      %607 = vrot.lane.b32.xlu0 %v543, 8
      %v608 = vpop.permute.xlu0 %607
      %609 = vrot.lane.b32.xlu0 %v544, 8
      %v610 = vpop.permute.xlu0 %609
      %611 = vrot.lane.b32.xlu0 %v545, 8
      %v612 = vpop.permute.xlu0 %611
      %613 = vrot.lane.b32.xlu0 %v546, 8
      %v614 = vpop.permute.xlu0 %613
      %615 = vrot.lane.b32.xlu0 %v547, 8
      %v616 = vpop.permute.xlu0 %615
      %617 = vrot.lane.b32.xlu0 %v548, 8
      %v618 = vpop.permute.xlu0 %617
      %619 = vrot.lane.b32.xlu0 %v549, 8
      %v620 = vpop.permute.xlu0 %619
      %621 = vrot.lane.b32.xlu0 %v550, 8
      %v622 = vpop.permute.xlu0 %621
      %623 = vrot.lane.b32.xlu0 %v551, 8
      %v624 = vpop.permute.xlu0 %623
      %625 = vrot.lane.b32.xlu0 %v552, 8
      %v626 = vpop.permute.xlu0 %625
      %627 = vrot.lane.b32.xlu0 %v553, 8
      %v628 = vpop.permute.xlu0 %627
      %629 = vrot.lane.b32.xlu0 %v554, 8
      %v630 = vpop.permute.xlu0 %629
      %631 = vrot.lane.b32.xlu0 %v555, 8
      %v632 = vpop.permute.xlu0 %631
      %633 = vrot.lane.b32.xlu0 %v556, 8
      %v634 = vpop.permute.xlu0 %633
      %635 = vrot.lane.b32.xlu0 %v557, 8
      %v636 = vpop.permute.xlu0 %635
      %637 = vrot.lane.b32.xlu0 %v558, 8
      %v638 = vpop.permute.xlu0 %637
      %639 = vrot.lane.b32.xlu0 %v559, 8
      %v640 = vpop.permute.xlu0 %639
      %641 = vrot.lane.b32.xlu0 %v560, 8
      %v642 = vpop.permute.xlu0 %641
      %643 = vrot.lane.b32.xlu0 %v561, 8
      %v644 = vpop.permute.xlu0 %643
      %645 = vrot.lane.b32.xlu0 %v562, 8
      %v646 = vpop.permute.xlu0 %645
      %647 = vrot.lane.b32.xlu0 %v563, 8
      %v648 = vpop.permute.xlu0 %647
      %649 = vrot.lane.b32.xlu0 %v564, 8
      %v650 = vpop.permute.xlu0 %649
      %651 = vrot.lane.b32.xlu0 %v565, 8
      %v652 = vpop.permute.xlu0 %651
      %653 = vrot.lane.b32.xlu0 %v566, 8
      %v654 = vpop.permute.xlu0 %653
      %655 = vrot.lane.b32.xlu0 %v567, 8
      %v656 = vpop.permute.xlu0 %655
      %657 = vrot.lane.b32.xlu0 %v568, 8
      %v658 = vpop.permute.xlu0 %657
      %659 = vrot.lane.b32.xlu0 %v569, 8
      %v660 = vpop.permute.xlu0 %659
      %661 = vrot.lane.b32.xlu0 %v570, 8
      %v662 = vpop.permute.xlu0 %661
      %663 = vrot.lane.b32.xlu0 %v571, 8
      %v664 = vpop.permute.xlu0 %663
      %665 = vrot.lane.b32.xlu0 %v572, 8
      %v666 = vpop.permute.xlu0 %665
      %667 = vrot.lane.b32.xlu0 %v573, 8
      %v668 = vpop.permute.xlu0 %667
      %669 = vrot.lane.b32.xlu0 %v574, 8
      %v670 = vpop.permute.xlu0 %669
      %vm703 = vcmask 130112
      %704 = vst.msk [vmem:[#allocation3] sm:$0xff] %vm703, %v608
      %705 = vst.msk [vmem:[#allocation3 + $0x8] sm:$0xff] %vm703, %v610
      %706 = vst.msk [vmem:[#allocation3 + $0x10] sm:$0xff] %vm703, %v612
      %707 = vst.msk [vmem:[#allocation3 + $0x18] sm:$0xff] %vm703, %v614
      %708 = vst.msk [vmem:[#allocation3 + $0x20] sm:$0xff] %vm703, %v616
      %709 = vst.msk [vmem:[#allocation3 + $0x28] sm:$0xff] %vm703, %v618
      %710 = vst.msk [vmem:[#allocation3 + $0x30] sm:$0xff] %vm703, %v620
      %711 = vst.msk [vmem:[#allocation3 + $0x38] sm:$0xff] %vm703, %v622
      %712 = vst.msk [vmem:[#allocation3 + $0x40] sm:$0xff] %vm703, %v624
      %713 = vst.msk [vmem:[#allocation3 + $0x48] sm:$0xff] %vm703, %v626
      %714 = vst.msk [vmem:[#allocation3 + $0x50] sm:$0xff] %vm703, %v628
      %715 = vst.msk [vmem:[#allocation3 + $0x58] sm:$0xff] %vm703, %v630
      %716 = vst.msk [vmem:[#allocation3 + $0x60] sm:$0xff] %vm703, %v632
      %717 = vst.msk [vmem:[#allocation3 + $0x68] sm:$0xff] %vm703, %v634
      %718 = vst.msk [vmem:[#allocation3 + $0x70] sm:$0xff] %vm703, %v636
      %719 = vst.msk [vmem:[#allocation3 + $0x78] sm:$0xff] %vm703, %v638
      %720 = vst.msk [vmem:[#allocation3 + $0x80] sm:$0xff] %vm703, %v640
      %721 = vst.msk [vmem:[#allocation3 + $0x88] sm:$0xff] %vm703, %v642
      %722 = vst.msk [vmem:[#allocation3 + $0x90] sm:$0xff] %vm703, %v644
      %723 = vst.msk [vmem:[#allocation3 + $0x98] sm:$0xff] %vm703, %v646
      %724 = vst.msk [vmem:[#allocation3 + $0xa0] sm:$0xff] %vm703, %v648
      %725 = vst.msk [vmem:[#allocation3 + $0xa8] sm:$0xff] %vm703, %v650
      %726 = vst.msk [vmem:[#allocation3 + $0xb0] sm:$0xff] %vm703, %v652
      %727 = vst.msk [vmem:[#allocation3 + $0xb8] sm:$0xff] %vm703, %v654
      %728 = vst.msk [vmem:[#allocation3 + $0xc0] sm:$0xff] %vm703, %v656
      %729 = vst.msk [vmem:[#allocation3 + $0xc8] sm:$0xff] %vm703, %v658
      %730 = vst.msk [vmem:[#allocation3 + $0xd0] sm:$0xff] %vm703, %v660
      %731 = vst.msk [vmem:[#allocation3 + $0xd8] sm:$0xff] %vm703, %v662
      %732 = vst.msk [vmem:[#allocation3 + $0xe0] sm:$0xff] %vm703, %v664
      %733 = vst.msk [vmem:[#allocation3 + $0xe8] sm:$0xff] %vm703, %v666
      %734 = vst.msk [vmem:[#allocation3 + $0xf0] sm:$0xff] %vm703, %v668
      %735 = vst.msk [vmem:[#allocation3 + $0xf8] sm:$0xff] %vm703, %v670
      %v736 = vld [vmem:[%s446] sm:$0xff]
      %v737 = vld [vmem:[%s446 + $0x8] sm:$0xff]
      %v738 = vld [vmem:[%s446 + $0x18] sm:$0xff]
      %v739 = vld [vmem:[%s446 + $0x20] sm:$0xff]
      %v740 = vld [vmem:[%s446 + $0x30] sm:$0xff]
      %v741 = vld [vmem:[%s446 + $0x38] sm:$0xff]
      %v742 = vld [vmem:[%s446 + $0x48] sm:$0xff]
      %v743 = vld [vmem:[%s446 + $0x50] sm:$0xff]
      %v744 = vld [vmem:[%s446 + $0x60] sm:$0xff]
      %v745 = vld [vmem:[%s446 + $0x68] sm:$0xff]
      %v746 = vld [vmem:[%s446 + $0x78] sm:$0xff]
      %v747 = vld [vmem:[%s446 + $0x80] sm:$0xff]
      %v748 = vld [vmem:[%s446 + $0x90] sm:$0xff]
      %v749 = vld [vmem:[%s446 + $0x98] sm:$0xff]
      %v750 = vld [vmem:[%s446 + $0xa8] sm:$0xff]
      %v751 = vld [vmem:[%s446 + $0xb0] sm:$0xff]
      %v752 = vld [vmem:[%s446 + $0xc0] sm:$0xff]
      %v753 = vld [vmem:[%s446 + $0xc8] sm:$0xff]
      %v754 = vld [vmem:[%s446 + $0xd8] sm:$0xff]
      %v755 = vld [vmem:[%s446 + $0xe0] sm:$0xff]
      %v756 = vld [vmem:[%s446 + $0xf0] sm:$0xff]
      %v757 = vld [vmem:[%s446 + $0xf8] sm:$0xff]
      %v758 = vld [vmem:[%s446 + $0x108] sm:$0xff]
      %v759 = vld [vmem:[%s446 + $0x110] sm:$0xff]
      %v760 = vld [vmem:[%s446 + $0x120] sm:$0xff]
      %v761 = vld [vmem:[%s446 + $0x128] sm:$0xff]
      %v762 = vld [vmem:[%s446 + $0x138] sm:$0xff]
      %v763 = vld [vmem:[%s446 + $0x140] sm:$0xff]
      %v764 = vld [vmem:[%s446 + $0x150] sm:$0xff]
      %v765 = vld [vmem:[%s446 + $0x158] sm:$0xff]
      %v766 = vld [vmem:[%s446 + $0x168] sm:$0xff]
      %v767 = vld [vmem:[%s446 + $0x170] sm:$0xff]
      %800 = vrot.lane.b32.xlu0 %v736, 16
      %v801 = vpop.permute.xlu0 %800
      %802 = vrot.lane.b32.xlu0 %v737, 16
      %v803 = vpop.permute.xlu0 %802
      %804 = vrot.lane.b32.xlu0 %v738, 16
      %v805 = vpop.permute.xlu0 %804
      %806 = vrot.lane.b32.xlu0 %v739, 16
      %v807 = vpop.permute.xlu0 %806
      %808 = vrot.lane.b32.xlu0 %v740, 16
      %v809 = vpop.permute.xlu0 %808
      %810 = vrot.lane.b32.xlu0 %v741, 16
      %v811 = vpop.permute.xlu0 %810
      %812 = vrot.lane.b32.xlu0 %v742, 16
      %v813 = vpop.permute.xlu0 %812
      %814 = vrot.lane.b32.xlu0 %v743, 16
      %v815 = vpop.permute.xlu0 %814
      %816 = vrot.lane.b32.xlu0 %v744, 16
      %v817 = vpop.permute.xlu0 %816
      %818 = vrot.lane.b32.xlu0 %v745, 16
      %v819 = vpop.permute.xlu0 %818
      %820 = vrot.lane.b32.xlu0 %v746, 16
      %v821 = vpop.permute.xlu0 %820
      %822 = vrot.lane.b32.xlu0 %v747, 16
      %v823 = vpop.permute.xlu0 %822
      %824 = vrot.lane.b32.xlu0 %v748, 16
      %v825 = vpop.permute.xlu0 %824
      %826 = vrot.lane.b32.xlu0 %v749, 16
      %v827 = vpop.permute.xlu0 %826
      %828 = vrot.lane.b32.xlu0 %v750, 16
      %v829 = vpop.permute.xlu0 %828
      %830 = vrot.lane.b32.xlu0 %v751, 16
      %v831 = vpop.permute.xlu0 %830
      %832 = vrot.lane.b32.xlu0 %v752, 16
      %v833 = vpop.permute.xlu0 %832
      %834 = vrot.lane.b32.xlu0 %v753, 16
      %v835 = vpop.permute.xlu0 %834
      %836 = vrot.lane.b32.xlu0 %v754, 16
      %v837 = vpop.permute.xlu0 %836
      %838 = vrot.lane.b32.xlu0 %v755, 16
      %v839 = vpop.permute.xlu0 %838
      %840 = vrot.lane.b32.xlu0 %v756, 16
      %v841 = vpop.permute.xlu0 %840
      %842 = vrot.lane.b32.xlu0 %v757, 16
      %v843 = vpop.permute.xlu0 %842
      %844 = vrot.lane.b32.xlu0 %v758, 16
      %v845 = vpop.permute.xlu0 %844
      %846 = vrot.lane.b32.xlu0 %v759, 16
      %v847 = vpop.permute.xlu0 %846
      %848 = vrot.lane.b32.xlu0 %v760, 16
      %v849 = vpop.permute.xlu0 %848
      %850 = vrot.lane.b32.xlu0 %v761, 16
      %v851 = vpop.permute.xlu0 %850
      %852 = vrot.lane.b32.xlu0 %v762, 16
      %v853 = vpop.permute.xlu0 %852
      %854 = vrot.lane.b32.xlu0 %v763, 16
      %v855 = vpop.permute.xlu0 %854
      %856 = vrot.lane.b32.xlu0 %v764, 16
      %v857 = vpop.permute.xlu0 %856
      %858 = vrot.lane.b32.xlu0 %v765, 16
      %v859 = vpop.permute.xlu0 %858
      %860 = vrot.lane.b32.xlu0 %v766, 16
      %v861 = vpop.permute.xlu0 %860
      %862 = vrot.lane.b32.xlu0 %v767, 16
      %v863 = vpop.permute.xlu0 %862
      %vm896 = vcmask 195712
      %897 = vst.msk [vmem:[#allocation3] sm:$0xff] %vm896, %v801
      %898 = vst.msk [vmem:[#allocation3 + $0x8] sm:$0xff] %vm896, %v803
      %899 = vst.msk [vmem:[#allocation3 + $0x10] sm:$0xff] %vm896, %v805
      %900 = vst.msk [vmem:[#allocation3 + $0x18] sm:$0xff] %vm896, %v807
      %901 = vst.msk [vmem:[#allocation3 + $0x20] sm:$0xff] %vm896, %v809
      %902 = vst.msk [vmem:[#allocation3 + $0x28] sm:$0xff] %vm896, %v811
      %903 = vst.msk [vmem:[#allocation3 + $0x30] sm:$0xff] %vm896, %v813
      %904 = vst.msk [vmem:[#allocation3 + $0x38] sm:$0xff] %vm896, %v815
      %905 = vst.msk [vmem:[#allocation3 + $0x40] sm:$0xff] %vm896, %v817
      %906 = vst.msk [vmem:[#allocation3 + $0x48] sm:$0xff] %vm896, %v819
      %907 = vst.msk [vmem:[#allocation3 + $0x50] sm:$0xff] %vm896, %v821
      %908 = vst.msk [vmem:[#allocation3 + $0x58] sm:$0xff] %vm896, %v823
      %909 = vst.msk [vmem:[#allocation3 + $0x60] sm:$0xff] %vm896, %v825
      %910 = vst.msk [vmem:[#allocation3 + $0x68] sm:$0xff] %vm896, %v827
      %911 = vst.msk [vmem:[#allocation3 + $0x70] sm:$0xff] %vm896, %v829
      %912 = vst.msk [vmem:[#allocation3 + $0x78] sm:$0xff] %vm896, %v831
      %913 = vst.msk [vmem:[#allocation3 + $0x80] sm:$0xff] %vm896, %v833
      %914 = vst.msk [vmem:[#allocation3 + $0x88] sm:$0xff] %vm896, %v835
      %915 = vst.msk [vmem:[#allocation3 + $0x90] sm:$0xff] %vm896, %v837
      %916 = vst.msk [vmem:[#allocation3 + $0x98] sm:$0xff] %vm896, %v839
      %917 = vst.msk [vmem:[#allocation3 + $0xa0] sm:$0xff] %vm896, %v841
      %918 = vst.msk [vmem:[#allocation3 + $0xa8] sm:$0xff] %vm896, %v843
      %919 = vst.msk [vmem:[#allocation3 + $0xb0] sm:$0xff] %vm896, %v845
      %920 = vst.msk [vmem:[#allocation3 + $0xb8] sm:$0xff] %vm896, %v847
      %921 = vst.msk [vmem:[#allocation3 + $0xc0] sm:$0xff] %vm896, %v849
      %922 = vst.msk [vmem:[#allocation3 + $0xc8] sm:$0xff] %vm896, %v851
      %923 = vst.msk [vmem:[#allocation3 + $0xd0] sm:$0xff] %vm896, %v853
      %924 = vst.msk [vmem:[#allocation3 + $0xd8] sm:$0xff] %vm896, %v855
      %925 = vst.msk [vmem:[#allocation3 + $0xe0] sm:$0xff] %vm896, %v857
      %926 = vst.msk [vmem:[#allocation3 + $0xe8] sm:$0xff] %vm896, %v859
      %927 = vst.msk [vmem:[#allocation3 + $0xf0] sm:$0xff] %vm896, %v861
      %928 = vst.msk [vmem:[#allocation3 + $0xf8] sm:$0xff] %vm896, %v863
      %v929 = vld [vmem:[%s446 + $0x1] sm:$0xff]
      %v930 = vld [vmem:[%s446 + $0x9] sm:$0xff]
      %v931 = vld [vmem:[%s446 + $0x19] sm:$0xff]
      %v932 = vld [vmem:[%s446 + $0x21] sm:$0xff]
      %v933 = vld [vmem:[%s446 + $0x31] sm:$0xff]
      %v934 = vld [vmem:[%s446 + $0x39] sm:$0xff]
      %v935 = vld [vmem:[%s446 + $0x49] sm:$0xff]
      %v936 = vld [vmem:[%s446 + $0x51] sm:$0xff]
      %v937 = vld [vmem:[%s446 + $0x61] sm:$0xff]
      %v938 = vld [vmem:[%s446 + $0x69] sm:$0xff]
      %v939 = vld [vmem:[%s446 + $0x79] sm:$0xff]
      %v940 = vld [vmem:[%s446 + $0x81] sm:$0xff]
      %v941 = vld [vmem:[%s446 + $0x91] sm:$0xff]
      %v942 = vld [vmem:[%s446 + $0x99] sm:$0xff]
      %v943 = vld [vmem:[%s446 + $0xa9] sm:$0xff]
      %v944 = vld [vmem:[%s446 + $0xb1] sm:$0xff]
      %v945 = vld [vmem:[%s446 + $0xc1] sm:$0xff]
      %v946 = vld [vmem:[%s446 + $0xc9] sm:$0xff]
      %v947 = vld [vmem:[%s446 + $0xd9] sm:$0xff]
      %v948 = vld [vmem:[%s446 + $0xe1] sm:$0xff]
      %v949 = vld [vmem:[%s446 + $0xf1] sm:$0xff]
      %v950 = vld [vmem:[%s446 + $0xf9] sm:$0xff]
      %v951 = vld [vmem:[%s446 + $0x109] sm:$0xff]
      %v952 = vld [vmem:[%s446 + $0x111] sm:$0xff]
      %v953 = vld [vmem:[%s446 + $0x121] sm:$0xff]
      %v954 = vld [vmem:[%s446 + $0x129] sm:$0xff]
      %v955 = vld [vmem:[%s446 + $0x139] sm:$0xff]
      %v956 = vld [vmem:[%s446 + $0x141] sm:$0xff]
      %v957 = vld [vmem:[%s446 + $0x151] sm:$0xff]
      %v958 = vld [vmem:[%s446 + $0x159] sm:$0xff]
      %v959 = vld [vmem:[%s446 + $0x169] sm:$0xff]
      %v960 = vld [vmem:[%s446 + $0x171] sm:$0xff]
      %993 = vrot.lane.b32.xlu0 %v929, 24
      %v994 = vpop.permute.xlu0 %993
      %995 = vrot.lane.b32.xlu0 %v930, 24
      %v996 = vpop.permute.xlu0 %995
      %997 = vrot.lane.b32.xlu0 %v931, 24
      %v998 = vpop.permute.xlu0 %997
      %999 = vrot.lane.b32.xlu0 %v932, 24
      %v1000 = vpop.permute.xlu0 %999
      %1001 = vrot.lane.b32.xlu0 %v933, 24
      %v1002 = vpop.permute.xlu0 %1001
      %1003 = vrot.lane.b32.xlu0 %v934, 24
      %v1004 = vpop.permute.xlu0 %1003
      %1005 = vrot.lane.b32.xlu0 %v935, 24
      %v1006 = vpop.permute.xlu0 %1005
      %1007 = vrot.lane.b32.xlu0 %v936, 24
      %v1008 = vpop.permute.xlu0 %1007
      %1009 = vrot.lane.b32.xlu0 %v937, 24
      %v1010 = vpop.permute.xlu0 %1009
      %1011 = vrot.lane.b32.xlu0 %v938, 24
      %v1012 = vpop.permute.xlu0 %1011
      %1013 = vrot.lane.b32.xlu0 %v939, 24
      %v1014 = vpop.permute.xlu0 %1013
      %1015 = vrot.lane.b32.xlu0 %v940, 24
      %v1016 = vpop.permute.xlu0 %1015
      %1017 = vrot.lane.b32.xlu0 %v941, 24
      %v1018 = vpop.permute.xlu0 %1017
      %1019 = vrot.lane.b32.xlu0 %v942, 24
      %v1020 = vpop.permute.xlu0 %1019
      %1021 = vrot.lane.b32.xlu0 %v943, 24
      %v1022 = vpop.permute.xlu0 %1021
      %1023 = vrot.lane.b32.xlu0 %v944, 24
      %v1024 = vpop.permute.xlu0 %1023
      %1025 = vrot.lane.b32.xlu0 %v945, 24
      %v1026 = vpop.permute.xlu0 %1025
      %1027 = vrot.lane.b32.xlu0 %v946, 24
      %v1028 = vpop.permute.xlu0 %1027
      %1029 = vrot.lane.b32.xlu0 %v947, 24
      %v1030 = vpop.permute.xlu0 %1029
      %1031 = vrot.lane.b32.xlu0 %v948, 24
      %v1032 = vpop.permute.xlu0 %1031
      %1033 = vrot.lane.b32.xlu0 %v949, 24
      %v1034 = vpop.permute.xlu0 %1033
      %1035 = vrot.lane.b32.xlu0 %v950, 24
      %v1036 = vpop.permute.xlu0 %1035
      %1037 = vrot.lane.b32.xlu0 %v951, 24
      %v1038 = vpop.permute.xlu0 %1037
      %1039 = vrot.lane.b32.xlu0 %v952, 24
      %v1040 = vpop.permute.xlu0 %1039
      %1041 = vrot.lane.b32.xlu0 %v953, 24
      %v1042 = vpop.permute.xlu0 %1041
      %1043 = vrot.lane.b32.xlu0 %v954, 24
      %v1044 = vpop.permute.xlu0 %1043
      %1045 = vrot.lane.b32.xlu0 %v955, 24
      %v1046 = vpop.permute.xlu0 %1045
      %1047 = vrot.lane.b32.xlu0 %v956, 24
      %v1048 = vpop.permute.xlu0 %1047
      %1049 = vrot.lane.b32.xlu0 %v957, 24
      %v1050 = vpop.permute.xlu0 %1049
      %1051 = vrot.lane.b32.xlu0 %v958, 24
      %v1052 = vpop.permute.xlu0 %1051
      %1053 = vrot.lane.b32.xlu0 %v959, 24
      %v1054 = vpop.permute.xlu0 %1053
      %1055 = vrot.lane.b32.xlu0 %v960, 24
      %v1056 = vpop.permute.xlu0 %1055
      %vm1089 = vcmask 261312
      %1090 = vst.msk [vmem:[#allocation3] sm:$0xff] %vm1089, %v994
      %1091 = vst.msk [vmem:[#allocation3 + $0x8] sm:$0xff] %vm1089, %v996
      %1092 = vst.msk [vmem:[#allocation3 + $0x10] sm:$0xff] %vm1089, %v998
      %1093 = vst.msk [vmem:[#allocation3 + $0x18] sm:$0xff] %vm1089, %v1000
      %1094 = vst.msk [vmem:[#allocation3 + $0x20] sm:$0xff] %vm1089, %v1002
      %1095 = vst.msk [vmem:[#allocation3 + $0x28] sm:$0xff] %vm1089, %v1004
      %1096 = vst.msk [vmem:[#allocation3 + $0x30] sm:$0xff] %vm1089, %v1006
      %1097 = vst.msk [vmem:[#allocation3 + $0x38] sm:$0xff] %vm1089, %v1008
      %1098 = vst.msk [vmem:[#allocation3 + $0x40] sm:$0xff] %vm1089, %v1010
      %1099 = vst.msk [vmem:[#allocation3 + $0x48] sm:$0xff] %vm1089, %v1012
      %1100 = vst.msk [vmem:[#allocation3 + $0x50] sm:$0xff] %vm1089, %v1014
      %1101 = vst.msk [vmem:[#allocation3 + $0x58] sm:$0xff] %vm1089, %v1016
      %1102 = vst.msk [vmem:[#allocation3 + $0x60] sm:$0xff] %vm1089, %v1018
      %1103 = vst.msk [vmem:[#allocation3 + $0x68] sm:$0xff] %vm1089, %v1020
      %1104 = vst.msk [vmem:[#allocation3 + $0x70] sm:$0xff] %vm1089, %v1022
      %1105 = vst.msk [vmem:[#allocation3 + $0x78] sm:$0xff] %vm1089, %v1024
      %1106 = vst.msk [vmem:[#allocation3 + $0x80] sm:$0xff] %vm1089, %v1026
      %1107 = vst.msk [vmem:[#allocation3 + $0x88] sm:$0xff] %vm1089, %v1028
      %1108 = vst.msk [vmem:[#allocation3 + $0x90] sm:$0xff] %vm1089, %v1030
      %1109 = vst.msk [vmem:[#allocation3 + $0x98] sm:$0xff] %vm1089, %v1032
      %1110 = vst.msk [vmem:[#allocation3 + $0xa0] sm:$0xff] %vm1089, %v1034
      %1111 = vst.msk [vmem:[#allocation3 + $0xa8] sm:$0xff] %vm1089, %v1036
      %1112 = vst.msk [vmem:[#allocation3 + $0xb0] sm:$0xff] %vm1089, %v1038
      %1113 = vst.msk [vmem:[#allocation3 + $0xb8] sm:$0xff] %vm1089, %v1040
      %1114 = vst.msk [vmem:[#allocation3 + $0xc0] sm:$0xff] %vm1089, %v1042
      %1115 = vst.msk [vmem:[#allocation3 + $0xc8] sm:$0xff] %vm1089, %v1044
      %1116 = vst.msk [vmem:[#allocation3 + $0xd0] sm:$0xff] %vm1089, %v1046
      %1117 = vst.msk [vmem:[#allocation3 + $0xd8] sm:$0xff] %vm1089, %v1048
      %1118 = vst.msk [vmem:[#allocation3 + $0xe0] sm:$0xff] %vm1089, %v1050
      %1119 = vst.msk [vmem:[#allocation3 + $0xe8] sm:$0xff] %vm1089, %v1052
      %1120 = vst.msk [vmem:[#allocation3 + $0xf0] sm:$0xff] %vm1089, %v1054
      %1121 = vst.msk [vmem:[#allocation3 + $0xf8] sm:$0xff] %vm1089, %v1056
      %v1122 = vld [vmem:[#allocation3] sm:$0xff]
      %v1123 = vld [vmem:[#allocation3 + $0x8] sm:$0xff]
      %v1124 = vld [vmem:[#allocation3 + $0x10] sm:$0xff]
      %v1125 = vld [vmem:[#allocation3 + $0x18] sm:$0xff]
      %v1126 = vld [vmem:[#allocation3 + $0x20] sm:$0xff]
      %v1127 = vld [vmem:[#allocation3 + $0x28] sm:$0xff]
      %v1128 = vld [vmem:[#allocation3 + $0x30] sm:$0xff]
      %v1129 = vld [vmem:[#allocation3 + $0x38] sm:$0xff]
      %v1130 = vld [vmem:[#allocation3 + $0x40] sm:$0xff]
      %v1131 = vld [vmem:[#allocation3 + $0x48] sm:$0xff]
      %v1132 = vld [vmem:[#allocation3 + $0x50] sm:$0xff]
      %v1133 = vld [vmem:[#allocation3 + $0x58] sm:$0xff]
      %v1134 = vld [vmem:[#allocation3 + $0x60] sm:$0xff]
      %v1135 = vld [vmem:[#allocation3 + $0x68] sm:$0xff]
      %v1136 = vld [vmem:[#allocation3 + $0x70] sm:$0xff]
      %v1137 = vld [vmem:[#allocation3 + $0x78] sm:$0xff]
      %v1138 = vld [vmem:[#allocation3 + $0x80] sm:$0xff]
      %v1139 = vld [vmem:[#allocation3 + $0x88] sm:$0xff]
      %v1140 = vld [vmem:[#allocation3 + $0x90] sm:$0xff]
      %v1141 = vld [vmem:[#allocation3 + $0x98] sm:$0xff]
      %v1142 = vld [vmem:[#allocation3 + $0xa0] sm:$0xff]
      %v1143 = vld [vmem:[#allocation3 + $0xa8] sm:$0xff]
      %v1144 = vld [vmem:[#allocation3 + $0xb0] sm:$0xff]
      %v1145 = vld [vmem:[#allocation3 + $0xb8] sm:$0xff]
      %v1146 = vld [vmem:[#allocation3 + $0xc0] sm:$0xff]
      %v1147 = vld [vmem:[#allocation3 + $0xc8] sm:$0xff]
      %v1148 = vld [vmem:[#allocation3 + $0xd0] sm:$0xff]
      %v1149 = vld [vmem:[#allocation3 + $0xd8] sm:$0xff]
      %v1150 = vld [vmem:[#allocation3 + $0xe0] sm:$0xff]
      %v1151 = vld [vmem:[#allocation3 + $0xe8] sm:$0xff]
      %v1152 = vld [vmem:[#allocation3 + $0xf0] sm:$0xff]
      %v1153 = vld [vmem:[#allocation3 + $0xf8] sm:$0xff]
      %v1154 = vpack.c.bf16 %v1123, %v1122
      %v1155 = vpack.c.bf16 %v1125, %v1124
      %v1156 = vpack.c.bf16 %v1127, %v1126
      %v1157 = vpack.c.bf16 %v1129, %v1128
      %v1158 = vpack.c.bf16 %v1131, %v1130
      %v1159 = vpack.c.bf16 %v1133, %v1132
      %v1160 = vpack.c.bf16 %v1135, %v1134
      %v1161 = vpack.c.bf16 %v1137, %v1136
      %v1162 = vpack.c.bf16 %v1139, %v1138
      %v1163 = vpack.c.bf16 %v1141, %v1140
      %v1164 = vpack.c.bf16 %v1143, %v1142
      %v1165 = vpack.c.bf16 %v1145, %v1144
      %v1166 = vpack.c.bf16 %v1147, %v1146
      %v1167 = vpack.c.bf16 %v1149, %v1148
      %v1168 = vpack.c.bf16 %v1151, %v1150
      %v1169 = vpack.c.bf16 %v1153, %v1152
      %v1170 = vld [vmem:[%s3] sm:$0xf]
      %v1171 = vld [vmem:[%s3 + $0x4] sm:$0xf]
      %v1172 = vld [vmem:[%s3 + $0x8] sm:$0xf]
      %v1173 = vld [vmem:[%s3 + $0xc] sm:$0xf]
      %v1174 = vld [vmem:[%s4] sm:$0x1]
      %v1176 = vlaneseq
      %v1177 = vshrl.u32 %v1176, 7
      %v1178 = vsub.s32 0, %v1177
      %v1179 = vrot.slane %v1174, %v1178
      %v1185 = vunpack.c.l.b16 %v1170
      %v1186 = vunpack.c.l.b16 %v1171
      %v1187 = vunpack.c.l.b16 %v1172
      %v1188 = vunpack.c.l.b16 %v1173
      %v1189 = vpack.c.b16 %v1186, %v1185
      %v1190 = vpack.c.b16 %v1188, %v1187
      %vm1193 = vcmask 261120
      %v1195 = vsel %vm1193, %v1154, 0
      %v1198 = vsel %vm1193, %v1155, 0
      %v1201 = vsel %vm1193, %v1156, 0
      %v1204 = vsel %vm1193, %v1157, 0
      %v1207 = vsel %vm1193, %v1158, 0
      %v1210 = vsel %vm1193, %v1159, 0
      %v1213 = vsel %vm1193, %v1160, 0
      %v1216 = vsel %vm1193, %v1161, 0
      %v1219 = vsel %vm1193, %v1162, 0
      %v1222 = vsel %vm1193, %v1163, 0
      %v1225 = vsel %vm1193, %v1164, 0
      %v1228 = vsel %vm1193, %v1165, 0
      %v1231 = vsel %vm1193, %v1166, 0
      %v1234 = vsel %vm1193, %v1167, 0
      %v1237 = vsel %vm1193, %v1168, 0
      %v1240 = vsel %vm1193, %v1169, 0
      %1242 = vmatprep.subr.bf16.mxu0 0
      %1243 = vmatpush1.bf16.msra.mxu0 %v1189
      %1244 = vmatprep.subr.bf16.mxu0 0
      %1245 = vmatpush1.bf16.msra.mxu0 %v1190
      %1246 = vmatprep.subr.bf16.mxu0 0
      %1247 = vmatpush1.bf16.msra.mxu0 0
      %1248 = vmatprep.subr.bf16.mxu0 0
      %1249 = vmatpush1.bf16.msra.mxu0 0
      %1250 = vmatprep.subr.bf16.mxu0 0
      %1251 = vmatpush1.bf16.msra.mxu0 0
      %1252 = vmatprep.subr.bf16.mxu0 0
      %1253 = vmatpush1.bf16.msra.mxu0 0
      %1254 = vmatprep.subr.bf16.mxu0 0
      %1255 = vmatpush1.bf16.msra.mxu0 0
      %1256 = vmatprep.subr.bf16.mxu0 0
      %1257 = vmatpush1.bf16.msra.mxu0 0
      %1258 = vmatprep.subr.bf16.mxu0 0
      %1259 = vmatpush1.bf16.msra.mxu0 0
      %1260 = vmatprep.subr.bf16.mxu0 0
      %1261 = vmatpush1.bf16.msra.mxu0 0
      %1262 = vmatprep.subr.bf16.mxu0 0
      %1263 = vmatpush1.bf16.msra.mxu0 0
      %1264 = vmatprep.subr.bf16.mxu0 0
      %1265 = vmatpush1.bf16.msra.mxu0 0
      %1266 = vmatprep.subr.bf16.mxu0 0
      %1267 = vmatpush1.bf16.msra.mxu0 0
      %1268 = vmatprep.subr.bf16.mxu0 0
      %1269 = vmatpush1.bf16.msra.mxu0 0
      %1270 = vmatprep.subr.bf16.mxu0 0
      %1271 = vmatpush1.bf16.msra.mxu0 0
      %1272 = vmatprep.subr.bf16.mxu0 0
      %1273 = vmatpush1.bf16.msra.mxu0 0
      %1274 = vmatprep.mubr.bf16.mxu0 0
      %1275 = vmatmul.mubr.bf16.gmra.mrb[0].mxu0 %v1195
      %v1276 = vpop.f32.mrb[0].mxu0
      %v1277 = vadd.f32 %v1179, %v1276
      %v1278 = vpop.f32.mrb[0].mxu0
      %v1279 = vpop.f32.mrb[0].mxu0
      %v1280 = vadd.f32 %v1179, %v1279
      %v1281 = vpop.f32.mrb[0].mxu0
      %1282 = vmatprep.mubr.bf16.mxu0 0
      %1283 = vmatmul.mubr.bf16.gmra.mrb[0].mxu0 %v1198
      %v1284 = vpop.f32.mrb[0].mxu0
      %v1285 = vadd.f32 %v1179, %v1284
      %v1286 = vpop.f32.mrb[0].mxu0
      %v1287 = vpop.f32.mrb[0].mxu0
      %v1288 = vadd.f32 %v1179, %v1287
      %v1289 = vpop.f32.mrb[0].mxu0
      %1290 = vmatprep.mubr.bf16.mxu0 0
      %1291 = vmatmul.mubr.bf16.gmra.mrb[0].mxu0 %v1201
      %v1292 = vpop.f32.mrb[0].mxu0
      %v1293 = vadd.f32 %v1179, %v1292
      %v1294 = vpop.f32.mrb[0].mxu0
      %v1295 = vpop.f32.mrb[0].mxu0
      %v1296 = vadd.f32 %v1179, %v1295
      %v1297 = vpop.f32.mrb[0].mxu0
      %1298 = vmatprep.mubr.bf16.mxu0 0
      %1299 = vmatmul.mubr.bf16.gmra.mrb[0].mxu0 %v1204
      %v1300 = vpop.f32.mrb[0].mxu0
      %v1301 = vadd.f32 %v1179, %v1300
      %v1302 = vpop.f32.mrb[0].mxu0
      %v1303 = vpop.f32.mrb[0].mxu0
      %v1304 = vadd.f32 %v1179, %v1303
      %v1305 = vpop.f32.mrb[0].mxu0
      %1306 = vmatprep.mubr.bf16.mxu0 0
      %1307 = vmatmul.mubr.bf16.gmra.mrb[0].mxu0 %v1207
      %v1308 = vpop.f32.mrb[0].mxu0
      %v1309 = vadd.f32 %v1179, %v1308
      %v1310 = vpop.f32.mrb[0].mxu0
      %v1311 = vpop.f32.mrb[0].mxu0
      %v1312 = vadd.f32 %v1179, %v1311
      %v1313 = vpop.f32.mrb[0].mxu0
      %1314 = vmatprep.mubr.bf16.mxu0 0
      %1315 = vmatmul.mubr.bf16.gmra.mrb[0].mxu0 %v1210
      %v1316 = vpop.f32.mrb[0].mxu0
      %v1317 = vadd.f32 %v1179, %v1316
      %v1318 = vpop.f32.mrb[0].mxu0
      %v1319 = vpop.f32.mrb[0].mxu0
      %v1320 = vadd.f32 %v1179, %v1319
      %v1321 = vpop.f32.mrb[0].mxu0
      %1322 = vmatprep.mubr.bf16.mxu0 0
      %1323 = vmatmul.mubr.bf16.gmra.mrb[0].mxu0 %v1213
      %v1324 = vpop.f32.mrb[0].mxu0
      %v1325 = vadd.f32 %v1179, %v1324
      %v1326 = vpop.f32.mrb[0].mxu0
      %v1327 = vpop.f32.mrb[0].mxu0
      %v1328 = vadd.f32 %v1179, %v1327
      %v1329 = vpop.f32.mrb[0].mxu0
      %1330 = vmatprep.mubr.bf16.mxu0 0
      %1331 = vmatmul.mubr.bf16.gmra.mrb[0].mxu0 %v1216
      %v1332 = vpop.f32.mrb[0].mxu0
      %v1333 = vadd.f32 %v1179, %v1332
      %v1334 = vpop.f32.mrb[0].mxu0
      %v1335 = vpop.f32.mrb[0].mxu0
      %v1336 = vadd.f32 %v1179, %v1335
      %v1337 = vpop.f32.mrb[0].mxu0
      %1338 = vmatprep.mubr.bf16.mxu0 0
      %1339 = vmatmul.mubr.bf16.gmra.mrb[0].mxu0 %v1219
      %v1340 = vpop.f32.mrb[0].mxu0
      %v1341 = vadd.f32 %v1179, %v1340
      %v1342 = vpop.f32.mrb[0].mxu0
      %v1343 = vpop.f32.mrb[0].mxu0
      %v1344 = vadd.f32 %v1179, %v1343
      %v1345 = vpop.f32.mrb[0].mxu0
      %1346 = vmatprep.mubr.bf16.mxu0 0
      %1347 = vmatmul.mubr.bf16.gmra.mrb[0].mxu0 %v1222
      %v1348 = vpop.f32.mrb[0].mxu0
      %v1349 = vadd.f32 %v1179, %v1348
      %v1350 = vpop.f32.mrb[0].mxu0
      %v1351 = vpop.f32.mrb[0].mxu0
      %v1352 = vadd.f32 %v1179, %v1351
      %v1353 = vpop.f32.mrb[0].mxu0
      %1354 = vmatprep.mubr.bf16.mxu0 0
      %1355 = vmatmul.mubr.bf16.gmra.mrb[0].mxu0 %v1225
      %v1356 = vpop.f32.mrb[0].mxu0
      %v1357 = vadd.f32 %v1179, %v1356
      %v1358 = vpop.f32.mrb[0].mxu0
      %v1359 = vpop.f32.mrb[0].mxu0
      %v1360 = vadd.f32 %v1179, %v1359
      %v1361 = vpop.f32.mrb[0].mxu0
      %1362 = vmatprep.mubr.bf16.mxu0 0
      %1363 = vmatmul.mubr.bf16.gmra.mrb[0].mxu0 %v1228
      %v1364 = vpop.f32.mrb[0].mxu0
      %v1365 = vadd.f32 %v1179, %v1364
      %v1366 = vpop.f32.mrb[0].mxu0
      %v1367 = vpop.f32.mrb[0].mxu0
      %v1368 = vadd.f32 %v1179, %v1367
      %v1369 = vpop.f32.mrb[0].mxu0
      %1370 = vmatprep.mubr.bf16.mxu0 0
      %1371 = vmatmul.mubr.bf16.gmra.mrb[0].mxu0 %v1231
      %v1372 = vpop.f32.mrb[0].mxu0
      %v1373 = vadd.f32 %v1179, %v1372
      %v1374 = vpop.f32.mrb[0].mxu0
      %v1375 = vpop.f32.mrb[0].mxu0
      %v1376 = vadd.f32 %v1179, %v1375
      %v1377 = vpop.f32.mrb[0].mxu0
      %1378 = vmatprep.mubr.bf16.mxu0 0
      %1379 = vmatmul.mubr.bf16.gmra.mrb[0].mxu0 %v1234
      %v1380 = vpop.f32.mrb[0].mxu0
      %v1381 = vadd.f32 %v1179, %v1380
      %v1382 = vpop.f32.mrb[0].mxu0
      %v1383 = vpop.f32.mrb[0].mxu0
      %v1384 = vadd.f32 %v1179, %v1383
      %v1385 = vpop.f32.mrb[0].mxu0
      %1386 = vmatprep.mubr.bf16.mxu0 0
      %1387 = vmatmul.mubr.bf16.gmra.mrb[0].mxu0 %v1237
      %v1388 = vpop.f32.mrb[0].mxu0
      %v1389 = vadd.f32 %v1179, %v1388
      %v1390 = vpop.f32.mrb[0].mxu0
      %v1391 = vpop.f32.mrb[0].mxu0
      %v1392 = vadd.f32 %v1179, %v1391
      %v1393 = vpop.f32.mrb[0].mxu0
      %1394 = vmatprep.mubr.bf16.mxu0 0
      %1395 = vmatmul.mubr.bf16.gmra.mrb[0].mxu0 %v1240
      %v1396 = vpop.f32.mrb[0].mxu0
      %v1397 = vadd.f32 %v1179, %v1396
      %v1398 = vpop.f32.mrb[0].mxu0
      %v1399 = vpop.f32.mrb[0].mxu0
      %v1400 = vadd.f32 %v1179, %v1399
      %v1401 = vpop.f32.mrb[0].mxu0
      %1402 = vdwg.mxu0
      %v1403 = vmax.f32 %v1277, 0.0
      %v1404 = vmax.f32 %v1280, 0.0
      %v1405 = vmax.f32 %v1285, 0.0
      %v1406 = vmax.f32 %v1288, 0.0
      %v1407 = vmax.f32 %v1293, 0.0
      %v1408 = vmax.f32 %v1296, 0.0
      %v1409 = vmax.f32 %v1301, 0.0
      %v1410 = vmax.f32 %v1304, 0.0
      %v1411 = vmax.f32 %v1309, 0.0
      %v1412 = vmax.f32 %v1312, 0.0
      %v1413 = vmax.f32 %v1317, 0.0
      %v1414 = vmax.f32 %v1320, 0.0
      %v1415 = vmax.f32 %v1325, 0.0
      %v1416 = vmax.f32 %v1328, 0.0
      %v1417 = vmax.f32 %v1333, 0.0
      %v1418 = vmax.f32 %v1336, 0.0
      %v1419 = vmax.f32 %v1341, 0.0
      %v1420 = vmax.f32 %v1344, 0.0
      %v1421 = vmax.f32 %v1349, 0.0
      %v1422 = vmax.f32 %v1352, 0.0
      %v1423 = vmax.f32 %v1357, 0.0
      %v1424 = vmax.f32 %v1360, 0.0
      %v1425 = vmax.f32 %v1365, 0.0
      %v1426 = vmax.f32 %v1368, 0.0
      %v1427 = vmax.f32 %v1373, 0.0
      %v1428 = vmax.f32 %v1376, 0.0
      %v1429 = vmax.f32 %v1381, 0.0
      %v1430 = vmax.f32 %v1384, 0.0
      %v1431 = vmax.f32 %v1389, 0.0
      %v1432 = vmax.f32 %v1392, 0.0
      %v1433 = vmax.f32 %v1397, 0.0
      %v1434 = vmax.f32 %v1400, 0.0
      %v1435 = vld [vmem:[#allocation2 + $0x1] sm:$0xff]
      %v1436 = vld [vmem:[#allocation2 + $0x9] sm:$0xff]
      %v1437 = vld [vmem:[#allocation2 + $0x19] sm:$0xff]
      %v1438 = vld [vmem:[#allocation2 + $0x21] sm:$0xff]
      %v1439 = vld [vmem:[#allocation2 + $0x31] sm:$0xff]
      %v1440 = vld [vmem:[#allocation2 + $0x39] sm:$0xff]
      %v1441 = vld [vmem:[#allocation2 + $0x49] sm:$0xff]
      %v1442 = vld [vmem:[#allocation2 + $0x51] sm:$0xff]
      %v1443 = vld [vmem:[#allocation2 + $0x61] sm:$0xff]
      %v1444 = vld [vmem:[#allocation2 + $0x69] sm:$0xff]
      %v1445 = vld [vmem:[#allocation2 + $0x79] sm:$0xff]
      %v1446 = vld [vmem:[#allocation2 + $0x81] sm:$0xff]
      %v1447 = vld [vmem:[#allocation2 + $0x91] sm:$0xff]
      %v1448 = vld [vmem:[#allocation2 + $0x99] sm:$0xff]
      %v1449 = vld [vmem:[#allocation2 + $0xa9] sm:$0xff]
      %v1450 = vld [vmem:[#allocation2 + $0xb1] sm:$0xff]
      %v1451 = vld [vmem:[#allocation2 + $0xc1] sm:$0xff]
      %v1452 = vld [vmem:[#allocation2 + $0xc9] sm:$0xff]
      %v1453 = vld [vmem:[#allocation2 + $0xd9] sm:$0xff]
      %v1454 = vld [vmem:[#allocation2 + $0xe1] sm:$0xff]
      %v1455 = vld [vmem:[#allocation2 + $0xf1] sm:$0xff]
      %v1456 = vld [vmem:[#allocation2 + $0xf9] sm:$0xff]
      %v1457 = vld [vmem:[#allocation2 + $0x109] sm:$0xff]
      %v1458 = vld [vmem:[#allocation2 + $0x111] sm:$0xff]
      %v1459 = vld [vmem:[#allocation2 + $0x121] sm:$0xff]
      %v1460 = vld [vmem:[#allocation2 + $0x129] sm:$0xff]
      %v1461 = vld [vmem:[#allocation2 + $0x139] sm:$0xff]
      %v1462 = vld [vmem:[#allocation2 + $0x141] sm:$0xff]
      %v1463 = vld [vmem:[#allocation2 + $0x151] sm:$0xff]
      %v1464 = vld [vmem:[#allocation2 + $0x159] sm:$0xff]
      %v1465 = vld [vmem:[#allocation2 + $0x169] sm:$0xff]
      %v1466 = vld [vmem:[#allocation2 + $0x171] sm:$0xff]
      %1467 = vst.msk [vmem:[#allocation3] sm:$0xff] %vm400, %v1435
      %1468 = vst.msk [vmem:[#allocation3 + $0x8] sm:$0xff] %vm400, %v1436
      %1469 = vst.msk [vmem:[#allocation3 + $0x10] sm:$0xff] %vm400, %v1437
      %1470 = vst.msk [vmem:[#allocation3 + $0x18] sm:$0xff] %vm400, %v1438
      %1471 = vst.msk [vmem:[#allocation3 + $0x20] sm:$0xff] %vm400, %v1439
      %1472 = vst.msk [vmem:[#allocation3 + $0x28] sm:$0xff] %vm400, %v1440
      %1473 = vst.msk [vmem:[#allocation3 + $0x30] sm:$0xff] %vm400, %v1441
      %1474 = vst.msk [vmem:[#allocation3 + $0x38] sm:$0xff] %vm400, %v1442
      %1475 = vst.msk [vmem:[#allocation3 + $0x40] sm:$0xff] %vm400, %v1443
      %1476 = vst.msk [vmem:[#allocation3 + $0x48] sm:$0xff] %vm400, %v1444
      %1477 = vst.msk [vmem:[#allocation3 + $0x50] sm:$0xff] %vm400, %v1445
      %1478 = vst.msk [vmem:[#allocation3 + $0x58] sm:$0xff] %vm400, %v1446
      %1479 = vst.msk [vmem:[#allocation3 + $0x60] sm:$0xff] %vm400, %v1447
      %1480 = vst.msk [vmem:[#allocation3 + $0x68] sm:$0xff] %vm400, %v1448
      %1481 = vst.msk [vmem:[#allocation3 + $0x70] sm:$0xff] %vm400, %v1449
      %1482 = vst.msk [vmem:[#allocation3 + $0x78] sm:$0xff] %vm400, %v1450
      %1483 = vst.msk [vmem:[#allocation3 + $0x80] sm:$0xff] %vm400, %v1451
      %1484 = vst.msk [vmem:[#allocation3 + $0x88] sm:$0xff] %vm400, %v1452
      %1485 = vst.msk [vmem:[#allocation3 + $0x90] sm:$0xff] %vm400, %v1453
      %1486 = vst.msk [vmem:[#allocation3 + $0x98] sm:$0xff] %vm400, %v1454
      %1487 = vst.msk [vmem:[#allocation3 + $0xa0] sm:$0xff] %vm400, %v1455
      %1488 = vst.msk [vmem:[#allocation3 + $0xa8] sm:$0xff] %vm400, %v1456
      %1489 = vst.msk [vmem:[#allocation3 + $0xb0] sm:$0xff] %vm400, %v1457
      %1490 = vst.msk [vmem:[#allocation3 + $0xb8] sm:$0xff] %vm400, %v1458
      %1491 = vst.msk [vmem:[#allocation3 + $0xc0] sm:$0xff] %vm400, %v1459
      %1492 = vst.msk [vmem:[#allocation3 + $0xc8] sm:$0xff] %vm400, %v1460
      %1493 = vst.msk [vmem:[#allocation3 + $0xd0] sm:$0xff] %vm400, %v1461
      %1494 = vst.msk [vmem:[#allocation3 + $0xd8] sm:$0xff] %vm400, %v1462
      %1495 = vst.msk [vmem:[#allocation3 + $0xe0] sm:$0xff] %vm400, %v1463
      %1496 = vst.msk [vmem:[#allocation3 + $0xe8] sm:$0xff] %vm400, %v1464
      %1497 = vst.msk [vmem:[#allocation3 + $0xf0] sm:$0xff] %vm400, %v1465
      %1498 = vst.msk [vmem:[#allocation3 + $0xf8] sm:$0xff] %vm400, %v1466
      %v1499 = vld [vmem:[#allocation2 + $0x2] sm:$0xff]
      %v1500 = vld [vmem:[#allocation2 + $0xa] sm:$0xff]
      %v1501 = vld [vmem:[#allocation2 + $0x1a] sm:$0xff]
      %v1502 = vld [vmem:[#allocation2 + $0x22] sm:$0xff]
      %v1503 = vld [vmem:[#allocation2 + $0x32] sm:$0xff]
      %v1504 = vld [vmem:[#allocation2 + $0x3a] sm:$0xff]
      %v1505 = vld [vmem:[#allocation2 + $0x4a] sm:$0xff]
      %v1506 = vld [vmem:[#allocation2 + $0x52] sm:$0xff]
      %v1507 = vld [vmem:[#allocation2 + $0x62] sm:$0xff]
      %v1508 = vld [vmem:[#allocation2 + $0x6a] sm:$0xff]
      %v1509 = vld [vmem:[#allocation2 + $0x7a] sm:$0xff]
      %v1510 = vld [vmem:[#allocation2 + $0x82] sm:$0xff]
      %v1511 = vld [vmem:[#allocation2 + $0x92] sm:$0xff]
      %v1512 = vld [vmem:[#allocation2 + $0x9a] sm:$0xff]
      %v1513 = vld [vmem:[#allocation2 + $0xaa] sm:$0xff]
      %v1514 = vld [vmem:[#allocation2 + $0xb2] sm:$0xff]
      %v1515 = vld [vmem:[#allocation2 + $0xc2] sm:$0xff]
      %v1516 = vld [vmem:[#allocation2 + $0xca] sm:$0xff]
      %v1517 = vld [vmem:[#allocation2 + $0xda] sm:$0xff]
      %v1518 = vld [vmem:[#allocation2 + $0xe2] sm:$0xff]
      %v1519 = vld [vmem:[#allocation2 + $0xf2] sm:$0xff]
      %v1520 = vld [vmem:[#allocation2 + $0xfa] sm:$0xff]
      %v1521 = vld [vmem:[#allocation2 + $0x10a] sm:$0xff]
      %v1522 = vld [vmem:[#allocation2 + $0x112] sm:$0xff]
      %v1523 = vld [vmem:[#allocation2 + $0x122] sm:$0xff]
      %v1524 = vld [vmem:[#allocation2 + $0x12a] sm:$0xff]
      %v1525 = vld [vmem:[#allocation2 + $0x13a] sm:$0xff]
      %v1526 = vld [vmem:[#allocation2 + $0x142] sm:$0xff]
      %v1527 = vld [vmem:[#allocation2 + $0x152] sm:$0xff]
      %v1528 = vld [vmem:[#allocation2 + $0x15a] sm:$0xff]
      %v1529 = vld [vmem:[#allocation2 + $0x16a] sm:$0xff]
      %v1530 = vld [vmem:[#allocation2 + $0x172] sm:$0xff]
      %1563 = vrot.lane.b32.xlu0 %v1499, 8
      %v1564 = vpop.permute.xlu0 %1563
      %1565 = vrot.lane.b32.xlu0 %v1500, 8
      %v1566 = vpop.permute.xlu0 %1565
      %1567 = vrot.lane.b32.xlu0 %v1501, 8
      %v1568 = vpop.permute.xlu0 %1567
      %1569 = vrot.lane.b32.xlu0 %v1502, 8
      %v1570 = vpop.permute.xlu0 %1569
      %1571 = vrot.lane.b32.xlu0 %v1503, 8
      %v1572 = vpop.permute.xlu0 %1571
      %1573 = vrot.lane.b32.xlu0 %v1504, 8
      %v1574 = vpop.permute.xlu0 %1573
      %1575 = vrot.lane.b32.xlu0 %v1505, 8
      %v1576 = vpop.permute.xlu0 %1575
      %1577 = vrot.lane.b32.xlu0 %v1506, 8
      %v1578 = vpop.permute.xlu0 %1577
      %1579 = vrot.lane.b32.xlu0 %v1507, 8
      %v1580 = vpop.permute.xlu0 %1579
      %1581 = vrot.lane.b32.xlu0 %v1508, 8
      %v1582 = vpop.permute.xlu0 %1581
      %1583 = vrot.lane.b32.xlu0 %v1509, 8
      %v1584 = vpop.permute.xlu0 %1583
      %1585 = vrot.lane.b32.xlu0 %v1510, 8
      %v1586 = vpop.permute.xlu0 %1585
      %1587 = vrot.lane.b32.xlu0 %v1511, 8
      %v1588 = vpop.permute.xlu0 %1587
      %1589 = vrot.lane.b32.xlu0 %v1512, 8
      %v1590 = vpop.permute.xlu0 %1589
      %1591 = vrot.lane.b32.xlu0 %v1513, 8
      %v1592 = vpop.permute.xlu0 %1591
      %1593 = vrot.lane.b32.xlu0 %v1514, 8
      %v1594 = vpop.permute.xlu0 %1593
      %1595 = vrot.lane.b32.xlu0 %v1515, 8
      %v1596 = vpop.permute.xlu0 %1595
      %1597 = vrot.lane.b32.xlu0 %v1516, 8
      %v1598 = vpop.permute.xlu0 %1597
      %1599 = vrot.lane.b32.xlu0 %v1517, 8
      %v1600 = vpop.permute.xlu0 %1599
      %1601 = vrot.lane.b32.xlu0 %v1518, 8
      %v1602 = vpop.permute.xlu0 %1601
      %1603 = vrot.lane.b32.xlu0 %v1519, 8
      %v1604 = vpop.permute.xlu0 %1603
      %1605 = vrot.lane.b32.xlu0 %v1520, 8
      %v1606 = vpop.permute.xlu0 %1605
      %1607 = vrot.lane.b32.xlu0 %v1521, 8
      %v1608 = vpop.permute.xlu0 %1607
      %1609 = vrot.lane.b32.xlu0 %v1522, 8
      %v1610 = vpop.permute.xlu0 %1609
      %1611 = vrot.lane.b32.xlu0 %v1523, 8
      %v1612 = vpop.permute.xlu0 %1611
      %1613 = vrot.lane.b32.xlu0 %v1524, 8
      %v1614 = vpop.permute.xlu0 %1613
      %1615 = vrot.lane.b32.xlu0 %v1525, 8
      %v1616 = vpop.permute.xlu0 %1615
      %1617 = vrot.lane.b32.xlu0 %v1526, 8
      %v1618 = vpop.permute.xlu0 %1617
      %1619 = vrot.lane.b32.xlu0 %v1527, 8
      %v1620 = vpop.permute.xlu0 %1619
      %1621 = vrot.lane.b32.xlu0 %v1528, 8
      %v1622 = vpop.permute.xlu0 %1621
      %1623 = vrot.lane.b32.xlu0 %v1529, 8
      %v1624 = vpop.permute.xlu0 %1623
      %1625 = vrot.lane.b32.xlu0 %v1530, 8
      %v1626 = vpop.permute.xlu0 %1625
      %1659 = vst.msk [vmem:[#allocation3] sm:$0xff] %vm703, %v1564
      %1660 = vst.msk [vmem:[#allocation3 + $0x8] sm:$0xff] %vm703, %v1566
      %1661 = vst.msk [vmem:[#allocation3 + $0x10] sm:$0xff] %vm703, %v1568
      %1662 = vst.msk [vmem:[#allocation3 + $0x18] sm:$0xff] %vm703, %v1570
      %1663 = vst.msk [vmem:[#allocation3 + $0x20] sm:$0xff] %vm703, %v1572
      %1664 = vst.msk [vmem:[#allocation3 + $0x28] sm:$0xff] %vm703, %v1574
      %1665 = vst.msk [vmem:[#allocation3 + $0x30] sm:$0xff] %vm703, %v1576
      %1666 = vst.msk [vmem:[#allocation3 + $0x38] sm:$0xff] %vm703, %v1578
      %1667 = vst.msk [vmem:[#allocation3 + $0x40] sm:$0xff] %vm703, %v1580
      %1668 = vst.msk [vmem:[#allocation3 + $0x48] sm:$0xff] %vm703, %v1582
      %1669 = vst.msk [vmem:[#allocation3 + $0x50] sm:$0xff] %vm703, %v1584
      %1670 = vst.msk [vmem:[#allocation3 + $0x58] sm:$0xff] %vm703, %v1586
      %1671 = vst.msk [vmem:[#allocation3 + $0x60] sm:$0xff] %vm703, %v1588
      %1672 = vst.msk [vmem:[#allocation3 + $0x68] sm:$0xff] %vm703, %v1590
      %1673 = vst.msk [vmem:[#allocation3 + $0x70] sm:$0xff] %vm703, %v1592
      %1674 = vst.msk [vmem:[#allocation3 + $0x78] sm:$0xff] %vm703, %v1594
      %1675 = vst.msk [vmem:[#allocation3 + $0x80] sm:$0xff] %vm703, %v1596
      %1676 = vst.msk [vmem:[#allocation3 + $0x88] sm:$0xff] %vm703, %v1598
      %1677 = vst.msk [vmem:[#allocation3 + $0x90] sm:$0xff] %vm703, %v1600
      %1678 = vst.msk [vmem:[#allocation3 + $0x98] sm:$0xff] %vm703, %v1602
      %1679 = vst.msk [vmem:[#allocation3 + $0xa0] sm:$0xff] %vm703, %v1604
      %1680 = vst.msk [vmem:[#allocation3 + $0xa8] sm:$0xff] %vm703, %v1606
      %1681 = vst.msk [vmem:[#allocation3 + $0xb0] sm:$0xff] %vm703, %v1608
      %1682 = vst.msk [vmem:[#allocation3 + $0xb8] sm:$0xff] %vm703, %v1610
      %1683 = vst.msk [vmem:[#allocation3 + $0xc0] sm:$0xff] %vm703, %v1612
      %1684 = vst.msk [vmem:[#allocation3 + $0xc8] sm:$0xff] %vm703, %v1614
      %1685 = vst.msk [vmem:[#allocation3 + $0xd0] sm:$0xff] %vm703, %v1616
      %1686 = vst.msk [vmem:[#allocation3 + $0xd8] sm:$0xff] %vm703, %v1618
      %1687 = vst.msk [vmem:[#allocation3 + $0xe0] sm:$0xff] %vm703, %v1620
      %1688 = vst.msk [vmem:[#allocation3 + $0xe8] sm:$0xff] %vm703, %v1622
      %1689 = vst.msk [vmem:[#allocation3 + $0xf0] sm:$0xff] %vm703, %v1624
      %1690 = vst.msk [vmem:[#allocation3 + $0xf8] sm:$0xff] %vm703, %v1626
      %v1691 = vld [vmem:[%s446 + $0x1] sm:$0xff]
      %v1692 = vld [vmem:[%s446 + $0x9] sm:$0xff]
      %v1693 = vld [vmem:[%s446 + $0x19] sm:$0xff]
      %v1694 = vld [vmem:[%s446 + $0x21] sm:$0xff]
      %v1695 = vld [vmem:[%s446 + $0x31] sm:$0xff]
      %v1696 = vld [vmem:[%s446 + $0x39] sm:$0xff]
      %v1697 = vld [vmem:[%s446 + $0x49] sm:$0xff]
      %v1698 = vld [vmem:[%s446 + $0x51] sm:$0xff]
      %v1699 = vld [vmem:[%s446 + $0x61] sm:$0xff]
      %v1700 = vld [vmem:[%s446 + $0x69] sm:$0xff]
      %v1701 = vld [vmem:[%s446 + $0x79] sm:$0xff]
      %v1702 = vld [vmem:[%s446 + $0x81] sm:$0xff]
      %v1703 = vld [vmem:[%s446 + $0x91] sm:$0xff]
      %v1704 = vld [vmem:[%s446 + $0x99] sm:$0xff]
      %v1705 = vld [vmem:[%s446 + $0xa9] sm:$0xff]
      %v1706 = vld [vmem:[%s446 + $0xb1] sm:$0xff]
      %v1707 = vld [vmem:[%s446 + $0xc1] sm:$0xff]
      %v1708 = vld [vmem:[%s446 + $0xc9] sm:$0xff]
      %v1709 = vld [vmem:[%s446 + $0xd9] sm:$0xff]
      %v1710 = vld [vmem:[%s446 + $0xe1] sm:$0xff]
      %v1711 = vld [vmem:[%s446 + $0xf1] sm:$0xff]
      %v1712 = vld [vmem:[%s446 + $0xf9] sm:$0xff]
      %v1713 = vld [vmem:[%s446 + $0x109] sm:$0xff]
      %v1714 = vld [vmem:[%s446 + $0x111] sm:$0xff]
      %v1715 = vld [vmem:[%s446 + $0x121] sm:$0xff]
      %v1716 = vld [vmem:[%s446 + $0x129] sm:$0xff]
      %v1717 = vld [vmem:[%s446 + $0x139] sm:$0xff]
      %v1718 = vld [vmem:[%s446 + $0x141] sm:$0xff]
      %v1719 = vld [vmem:[%s446 + $0x151] sm:$0xff]
      %v1720 = vld [vmem:[%s446 + $0x159] sm:$0xff]
      %v1721 = vld [vmem:[%s446 + $0x169] sm:$0xff]
      %v1722 = vld [vmem:[%s446 + $0x171] sm:$0xff]
      %1755 = vrot.lane.b32.xlu0 %v1691, 16
      %v1756 = vpop.permute.xlu0 %1755
      %1757 = vrot.lane.b32.xlu0 %v1692, 16
      %v1758 = vpop.permute.xlu0 %1757
      %1759 = vrot.lane.b32.xlu0 %v1693, 16
      %v1760 = vpop.permute.xlu0 %1759
      %1761 = vrot.lane.b32.xlu0 %v1694, 16
      %v1762 = vpop.permute.xlu0 %1761
      %1763 = vrot.lane.b32.xlu0 %v1695, 16
      %v1764 = vpop.permute.xlu0 %1763
      %1765 = vrot.lane.b32.xlu0 %v1696, 16
      %v1766 = vpop.permute.xlu0 %1765
      %1767 = vrot.lane.b32.xlu0 %v1697, 16
      %v1768 = vpop.permute.xlu0 %1767
      %1769 = vrot.lane.b32.xlu0 %v1698, 16
      %v1770 = vpop.permute.xlu0 %1769
      %1771 = vrot.lane.b32.xlu0 %v1699, 16
      %v1772 = vpop.permute.xlu0 %1771
      %1773 = vrot.lane.b32.xlu0 %v1700, 16
      %v1774 = vpop.permute.xlu0 %1773
      %1775 = vrot.lane.b32.xlu0 %v1701, 16
      %v1776 = vpop.permute.xlu0 %1775
      %1777 = vrot.lane.b32.xlu0 %v1702, 16
      %v1778 = vpop.permute.xlu0 %1777
      %1779 = vrot.lane.b32.xlu0 %v1703, 16
      %v1780 = vpop.permute.xlu0 %1779
      %1781 = vrot.lane.b32.xlu0 %v1704, 16
      %v1782 = vpop.permute.xlu0 %1781
      %1783 = vrot.lane.b32.xlu0 %v1705, 16
      %v1784 = vpop.permute.xlu0 %1783
      %1785 = vrot.lane.b32.xlu0 %v1706, 16
      %v1786 = vpop.permute.xlu0 %1785
      %1787 = vrot.lane.b32.xlu0 %v1707, 16
      %v1788 = vpop.permute.xlu0 %1787
      %1789 = vrot.lane.b32.xlu0 %v1708, 16
      %v1790 = vpop.permute.xlu0 %1789
      %1791 = vrot.lane.b32.xlu0 %v1709, 16
      %v1792 = vpop.permute.xlu0 %1791
      %1793 = vrot.lane.b32.xlu0 %v1710, 16
      %v1794 = vpop.permute.xlu0 %1793
      %1795 = vrot.lane.b32.xlu0 %v1711, 16
      %v1796 = vpop.permute.xlu0 %1795
      %1797 = vrot.lane.b32.xlu0 %v1712, 16
      %v1798 = vpop.permute.xlu0 %1797
      %1799 = vrot.lane.b32.xlu0 %v1713, 16
      %v1800 = vpop.permute.xlu0 %1799
      %1801 = vrot.lane.b32.xlu0 %v1714, 16
      %v1802 = vpop.permute.xlu0 %1801
      %1803 = vrot.lane.b32.xlu0 %v1715, 16
      %v1804 = vpop.permute.xlu0 %1803
      %1805 = vrot.lane.b32.xlu0 %v1716, 16
      %v1806 = vpop.permute.xlu0 %1805
      %1807 = vrot.lane.b32.xlu0 %v1717, 16
      %v1808 = vpop.permute.xlu0 %1807
      %1809 = vrot.lane.b32.xlu0 %v1718, 16
      %v1810 = vpop.permute.xlu0 %1809
      %1811 = vrot.lane.b32.xlu0 %v1719, 16
      %v1812 = vpop.permute.xlu0 %1811
      %1813 = vrot.lane.b32.xlu0 %v1720, 16
      %v1814 = vpop.permute.xlu0 %1813
      %1815 = vrot.lane.b32.xlu0 %v1721, 16
      %v1816 = vpop.permute.xlu0 %1815
      %1817 = vrot.lane.b32.xlu0 %v1722, 16
      %v1818 = vpop.permute.xlu0 %1817
      %1851 = vst.msk [vmem:[#allocation3] sm:$0xff] %vm896, %v1756
      %1852 = vst.msk [vmem:[#allocation3 + $0x8] sm:$0xff] %vm896, %v1758
      %1853 = vst.msk [vmem:[#allocation3 + $0x10] sm:$0xff] %vm896, %v1760
      %1854 = vst.msk [vmem:[#allocation3 + $0x18] sm:$0xff] %vm896, %v1762
      %1855 = vst.msk [vmem:[#allocation3 + $0x20] sm:$0xff] %vm896, %v1764
      %1856 = vst.msk [vmem:[#allocation3 + $0x28] sm:$0xff] %vm896, %v1766
      %1857 = vst.msk [vmem:[#allocation3 + $0x30] sm:$0xff] %vm896, %v1768
      %1858 = vst.msk [vmem:[#allocation3 + $0x38] sm:$0xff] %vm896, %v1770
      %1859 = vst.msk [vmem:[#allocation3 + $0x40] sm:$0xff] %vm896, %v1772
      %1860 = vst.msk [vmem:[#allocation3 + $0x48] sm:$0xff] %vm896, %v1774
      %1861 = vst.msk [vmem:[#allocation3 + $0x50] sm:$0xff] %vm896, %v1776
      %1862 = vst.msk [vmem:[#allocation3 + $0x58] sm:$0xff] %vm896, %v1778
      %1863 = vst.msk [vmem:[#allocation3 + $0x60] sm:$0xff] %vm896, %v1780
      %1864 = vst.msk [vmem:[#allocation3 + $0x68] sm:$0xff] %vm896, %v1782
      %1865 = vst.msk [vmem:[#allocation3 + $0x70] sm:$0xff] %vm896, %v1784
      %1866 = vst.msk [vmem:[#allocation3 + $0x78] sm:$0xff] %vm896, %v1786
      %1867 = vst.msk [vmem:[#allocation3 + $0x80] sm:$0xff] %vm896, %v1788
      %1868 = vst.msk [vmem:[#allocation3 + $0x88] sm:$0xff] %vm896, %v1790
      %1869 = vst.msk [vmem:[#allocation3 + $0x90] sm:$0xff] %vm896, %v1792
      %1870 = vst.msk [vmem:[#allocation3 + $0x98] sm:$0xff] %vm896, %v1794
      %1871 = vst.msk [vmem:[#allocation3 + $0xa0] sm:$0xff] %vm896, %v1796
      %1872 = vst.msk [vmem:[#allocation3 + $0xa8] sm:$0xff] %vm896, %v1798
      %1873 = vst.msk [vmem:[#allocation3 + $0xb0] sm:$0xff] %vm896, %v1800
      %1874 = vst.msk [vmem:[#allocation3 + $0xb8] sm:$0xff] %vm896, %v1802
      %1875 = vst.msk [vmem:[#allocation3 + $0xc0] sm:$0xff] %vm896, %v1804
      %1876 = vst.msk [vmem:[#allocation3 + $0xc8] sm:$0xff] %vm896, %v1806
      %1877 = vst.msk [vmem:[#allocation3 + $0xd0] sm:$0xff] %vm896, %v1808
      %1878 = vst.msk [vmem:[#allocation3 + $0xd8] sm:$0xff] %vm896, %v1810
      %1879 = vst.msk [vmem:[#allocation3 + $0xe0] sm:$0xff] %vm896, %v1812
      %1880 = vst.msk [vmem:[#allocation3 + $0xe8] sm:$0xff] %vm896, %v1814
      %1881 = vst.msk [vmem:[#allocation3 + $0xf0] sm:$0xff] %vm896, %v1816
      %1882 = vst.msk [vmem:[#allocation3 + $0xf8] sm:$0xff] %vm896, %v1818
      %v1883 = vld [vmem:[%s446 + $0x2] sm:$0xff]
      %v1884 = vld [vmem:[%s446 + $0xa] sm:$0xff]
      %v1885 = vld [vmem:[%s446 + $0x1a] sm:$0xff]
      %v1886 = vld [vmem:[%s446 + $0x22] sm:$0xff]
      %v1887 = vld [vmem:[%s446 + $0x32] sm:$0xff]
      %v1888 = vld [vmem:[%s446 + $0x3a] sm:$0xff]
      %v1889 = vld [vmem:[%s446 + $0x4a] sm:$0xff]
      %v1890 = vld [vmem:[%s446 + $0x52] sm:$0xff]
      %v1891 = vld [vmem:[%s446 + $0x62] sm:$0xff]
      %v1892 = vld [vmem:[%s446 + $0x6a] sm:$0xff]
      %v1893 = vld [vmem:[%s446 + $0x7a] sm:$0xff]
      %v1894 = vld [vmem:[%s446 + $0x82] sm:$0xff]
      %v1895 = vld [vmem:[%s446 + $0x92] sm:$0xff]
      %v1896 = vld [vmem:[%s446 + $0x9a] sm:$0xff]
      %v1897 = vld [vmem:[%s446 + $0xaa] sm:$0xff]
      %v1898 = vld [vmem:[%s446 + $0xb2] sm:$0xff]
      %v1899 = vld [vmem:[%s446 + $0xc2] sm:$0xff]
      %v1900 = vld [vmem:[%s446 + $0xca] sm:$0xff]
      %v1901 = vld [vmem:[%s446 + $0xda] sm:$0xff]
      %v1902 = vld [vmem:[%s446 + $0xe2] sm:$0xff]
      %v1903 = vld [vmem:[%s446 + $0xf2] sm:$0xff]
      %v1904 = vld [vmem:[%s446 + $0xfa] sm:$0xff]
      %v1905 = vld [vmem:[%s446 + $0x10a] sm:$0xff]
      %v1906 = vld [vmem:[%s446 + $0x112] sm:$0xff]
      %v1907 = vld [vmem:[%s446 + $0x122] sm:$0xff]
      %v1908 = vld [vmem:[%s446 + $0x12a] sm:$0xff]
      %v1909 = vld [vmem:[%s446 + $0x13a] sm:$0xff]
      %v1910 = vld [vmem:[%s446 + $0x142] sm:$0xff]
      %v1911 = vld [vmem:[%s446 + $0x152] sm:$0xff]
      %v1912 = vld [vmem:[%s446 + $0x15a] sm:$0xff]
      %v1913 = vld [vmem:[%s446 + $0x16a] sm:$0xff]
      %v1914 = vld [vmem:[%s446 + $0x172] sm:$0xff]
      %1947 = vrot.lane.b32.xlu0 %v1883, 24
      %v1948 = vpop.permute.xlu0 %1947
      %1949 = vrot.lane.b32.xlu0 %v1884, 24
      %v1950 = vpop.permute.xlu0 %1949
      %1951 = vrot.lane.b32.xlu0 %v1885, 24
      %v1952 = vpop.permute.xlu0 %1951
      %1953 = vrot.lane.b32.xlu0 %v1886, 24
      %v1954 = vpop.permute.xlu0 %1953
      %1955 = vrot.lane.b32.xlu0 %v1887, 24
      %v1956 = vpop.permute.xlu0 %1955
      %1957 = vrot.lane.b32.xlu0 %v1888, 24
      %v1958 = vpop.permute.xlu0 %1957
      %1959 = vrot.lane.b32.xlu0 %v1889, 24
      %v1960 = vpop.permute.xlu0 %1959
      %1961 = vrot.lane.b32.xlu0 %v1890, 24
      %v1962 = vpop.permute.xlu0 %1961
      %1963 = vrot.lane.b32.xlu0 %v1891, 24
      %v1964 = vpop.permute.xlu0 %1963
      %1965 = vrot.lane.b32.xlu0 %v1892, 24
      %v1966 = vpop.permute.xlu0 %1965
      %1967 = vrot.lane.b32.xlu0 %v1893, 24
      %v1968 = vpop.permute.xlu0 %1967
      %1969 = vrot.lane.b32.xlu0 %v1894, 24
      %v1970 = vpop.permute.xlu0 %1969
      %1971 = vrot.lane.b32.xlu0 %v1895, 24
      %v1972 = vpop.permute.xlu0 %1971
      %1973 = vrot.lane.b32.xlu0 %v1896, 24
      %v1974 = vpop.permute.xlu0 %1973
      %1975 = vrot.lane.b32.xlu0 %v1897, 24
      %v1976 = vpop.permute.xlu0 %1975
      %1977 = vrot.lane.b32.xlu0 %v1898, 24
      %v1978 = vpop.permute.xlu0 %1977
      %1979 = vrot.lane.b32.xlu0 %v1899, 24
      %v1980 = vpop.permute.xlu0 %1979
      %1981 = vrot.lane.b32.xlu0 %v1900, 24
      %v1982 = vpop.permute.xlu0 %1981
      %1983 = vrot.lane.b32.xlu0 %v1901, 24
      %v1984 = vpop.permute.xlu0 %1983
      %1985 = vrot.lane.b32.xlu0 %v1902, 24
      %v1986 = vpop.permute.xlu0 %1985
      %1987 = vrot.lane.b32.xlu0 %v1903, 24
      %v1988 = vpop.permute.xlu0 %1987
      %1989 = vrot.lane.b32.xlu0 %v1904, 24
      %v1990 = vpop.permute.xlu0 %1989
      %1991 = vrot.lane.b32.xlu0 %v1905, 24
      %v1992 = vpop.permute.xlu0 %1991
      %1993 = vrot.lane.b32.xlu0 %v1906, 24
      %v1994 = vpop.permute.xlu0 %1993
      %1995 = vrot.lane.b32.xlu0 %v1907, 24
      %v1996 = vpop.permute.xlu0 %1995
      %1997 = vrot.lane.b32.xlu0 %v1908, 24
      %v1998 = vpop.permute.xlu0 %1997
      %1999 = vrot.lane.b32.xlu0 %v1909, 24
      %v2000 = vpop.permute.xlu0 %1999
      %2001 = vrot.lane.b32.xlu0 %v1910, 24
      %v2002 = vpop.permute.xlu0 %2001
      %2003 = vrot.lane.b32.xlu0 %v1911, 24
      %v2004 = vpop.permute.xlu0 %2003
      %2005 = vrot.lane.b32.xlu0 %v1912, 24
      %v2006 = vpop.permute.xlu0 %2005
      %2007 = vrot.lane.b32.xlu0 %v1913, 24
      %v2008 = vpop.permute.xlu0 %2007
      %2009 = vrot.lane.b32.xlu0 %v1914, 24
      %v2010 = vpop.permute.xlu0 %2009
      %2043 = vst.msk [vmem:[#allocation3] sm:$0xff] %vm1089, %v1948
      %2044 = vst.msk [vmem:[#allocation3 + $0x8] sm:$0xff] %vm1089, %v1950
      %2045 = vst.msk [vmem:[#allocation3 + $0x10] sm:$0xff] %vm1089, %v1952
      %2046 = vst.msk [vmem:[#allocation3 + $0x18] sm:$0xff] %vm1089, %v1954
      %2047 = vst.msk [vmem:[#allocation3 + $0x20] sm:$0xff] %vm1089, %v1956
      %2048 = vst.msk [vmem:[#allocation3 + $0x28] sm:$0xff] %vm1089, %v1958
      %2049 = vst.msk [vmem:[#allocation3 + $0x30] sm:$0xff] %vm1089, %v1960
      %2050 = vst.msk [vmem:[#allocation3 + $0x38] sm:$0xff] %vm1089, %v1962
      %2051 = vst.msk [vmem:[#allocation3 + $0x40] sm:$0xff] %vm1089, %v1964
      %2052 = vst.msk [vmem:[#allocation3 + $0x48] sm:$0xff] %vm1089, %v1966
      %2053 = vst.msk [vmem:[#allocation3 + $0x50] sm:$0xff] %vm1089, %v1968
      %2054 = vst.msk [vmem:[#allocation3 + $0x58] sm:$0xff] %vm1089, %v1970
      %2055 = vst.msk [vmem:[#allocation3 + $0x60] sm:$0xff] %vm1089, %v1972
      %2056 = vst.msk [vmem:[#allocation3 + $0x68] sm:$0xff] %vm1089, %v1974
      %2057 = vst.msk [vmem:[#allocation3 + $0x70] sm:$0xff] %vm1089, %v1976
      %2058 = vst.msk [vmem:[#allocation3 + $0x78] sm:$0xff] %vm1089, %v1978
      %2059 = vst.msk [vmem:[#allocation3 + $0x80] sm:$0xff] %vm1089, %v1980
      %2060 = vst.msk [vmem:[#allocation3 + $0x88] sm:$0xff] %vm1089, %v1982
      %2061 = vst.msk [vmem:[#allocation3 + $0x90] sm:$0xff] %vm1089, %v1984
      %2062 = vst.msk [vmem:[#allocation3 + $0x98] sm:$0xff] %vm1089, %v1986
      %2063 = vst.msk [vmem:[#allocation3 + $0xa0] sm:$0xff] %vm1089, %v1988
      %2064 = vst.msk [vmem:[#allocation3 + $0xa8] sm:$0xff] %vm1089, %v1990
      %2065 = vst.msk [vmem:[#allocation3 + $0xb0] sm:$0xff] %vm1089, %v1992
      %2066 = vst.msk [vmem:[#allocation3 + $0xb8] sm:$0xff] %vm1089, %v1994
      %2067 = vst.msk [vmem:[#allocation3 + $0xc0] sm:$0xff] %vm1089, %v1996
      %2068 = vst.msk [vmem:[#allocation3 + $0xc8] sm:$0xff] %vm1089, %v1998
      %2069 = vst.msk [vmem:[#allocation3 + $0xd0] sm:$0xff] %vm1089, %v2000
      %2070 = vst.msk [vmem:[#allocation3 + $0xd8] sm:$0xff] %vm1089, %v2002
      %2071 = vst.msk [vmem:[#allocation3 + $0xe0] sm:$0xff] %vm1089, %v2004
      %2072 = vst.msk [vmem:[#allocation3 + $0xe8] sm:$0xff] %vm1089, %v2006
      %2073 = vst.msk [vmem:[#allocation3 + $0xf0] sm:$0xff] %vm1089, %v2008
      %2074 = vst.msk [vmem:[#allocation3 + $0xf8] sm:$0xff] %vm1089, %v2010
      %v2075 = vld [vmem:[#allocation3] sm:$0xff]
      %v2076 = vld [vmem:[#allocation3 + $0x8] sm:$0xff]
      %v2077 = vld [vmem:[#allocation3 + $0x10] sm:$0xff]
      %v2078 = vld [vmem:[#allocation3 + $0x18] sm:$0xff]
      %v2079 = vld [vmem:[#allocation3 + $0x20] sm:$0xff]
      %v2080 = vld [vmem:[#allocation3 + $0x28] sm:$0xff]
      %v2081 = vld [vmem:[#allocation3 + $0x30] sm:$0xff]
      %v2082 = vld [vmem:[#allocation3 + $0x38] sm:$0xff]
      %v2083 = vld [vmem:[#allocation3 + $0x40] sm:$0xff]
      %v2084 = vld [vmem:[#allocation3 + $0x48] sm:$0xff]
      %v2085 = vld [vmem:[#allocation3 + $0x50] sm:$0xff]
      %v2086 = vld [vmem:[#allocation3 + $0x58] sm:$0xff]
      %v2087 = vld [vmem:[#allocation3 + $0x60] sm:$0xff]
      %v2088 = vld [vmem:[#allocation3 + $0x68] sm:$0xff]
      %v2089 = vld [vmem:[#allocation3 + $0x70] sm:$0xff]
      %v2090 = vld [vmem:[#allocation3 + $0x78] sm:$0xff]
      %v2091 = vld [vmem:[#allocation3 + $0x80] sm:$0xff]
      %v2092 = vld [vmem:[#allocation3 + $0x88] sm:$0xff]
      %v2093 = vld [vmem:[#allocation3 + $0x90] sm:$0xff]
      %v2094 = vld [vmem:[#allocation3 + $0x98] sm:$0xff]
      %v2095 = vld [vmem:[#allocation3 + $0xa0] sm:$0xff]
      %v2096 = vld [vmem:[#allocation3 + $0xa8] sm:$0xff]
      %v2097 = vld [vmem:[#allocation3 + $0xb0] sm:$0xff]
      %v2098 = vld [vmem:[#allocation3 + $0xb8] sm:$0xff]
      %v2099 = vld [vmem:[#allocation3 + $0xc0] sm:$0xff]
      %v2100 = vld [vmem:[#allocation3 + $0xc8] sm:$0xff]
      %v2101 = vld [vmem:[#allocation3 + $0xd0] sm:$0xff]
      %v2102 = vld [vmem:[#allocation3 + $0xd8] sm:$0xff]
      %v2103 = vld [vmem:[#allocation3 + $0xe0] sm:$0xff]
      %v2104 = vld [vmem:[#allocation3 + $0xe8] sm:$0xff]
      %v2105 = vld [vmem:[#allocation3 + $0xf0] sm:$0xff]
      %v2106 = vld [vmem:[#allocation3 + $0xf8] sm:$0xff]
      %v2107 = vpack.c.bf16 %v2076, %v2075
      %v2108 = vpack.c.bf16 %v2078, %v2077
      %v2109 = vpack.c.bf16 %v2080, %v2079
      %v2110 = vpack.c.bf16 %v2082, %v2081
      %v2111 = vpack.c.bf16 %v2084, %v2083
      %v2112 = vpack.c.bf16 %v2086, %v2085
      %v2113 = vpack.c.bf16 %v2088, %v2087
      %v2114 = vpack.c.bf16 %v2090, %v2089
      %v2115 = vpack.c.bf16 %v2092, %v2091
      %v2116 = vpack.c.bf16 %v2094, %v2093
      %v2117 = vpack.c.bf16 %v2096, %v2095
      %v2118 = vpack.c.bf16 %v2098, %v2097
      %v2119 = vpack.c.bf16 %v2100, %v2099
      %v2120 = vpack.c.bf16 %v2102, %v2101
      %v2121 = vpack.c.bf16 %v2104, %v2103
      %v2122 = vpack.c.bf16 %v2106, %v2105
      %s2123 = scalar_lea.vmem %s3, 16
      %v2124 = vld [vmem:[%s2123] sm:$0xf]
      %v2125 = vld [vmem:[%s2123 + $0x4] sm:$0xf]
      %v2126 = vld [vmem:[%s2123 + $0x8] sm:$0xf]
      %v2127 = vld [vmem:[%s2123 + $0xc] sm:$0xf]
      %v2128 = vld [vmem:[%s4] sm:$0x1]
      %v2130 = vlaneseq
      %v2131 = vshrl.u32 %v2130, 7
      %v2132 = vsub.s32 0, %v2131
      %v2133 = vrot.slane %v2128, %v2132
      %v2139 = vunpack.c.l.b16 %v2124
      %v2140 = vunpack.c.l.b16 %v2125
      %v2141 = vunpack.c.l.b16 %v2126
      %v2142 = vunpack.c.l.b16 %v2127
      %v2143 = vpack.c.b16 %v2140, %v2139
      %v2144 = vpack.c.b16 %v2142, %v2141
      %v2148 = vsel %vm1193, %v2107, 0
      %v2151 = vsel %vm1193, %v2108, 0
      %v2154 = vsel %vm1193, %v2109, 0
      %v2157 = vsel %vm1193, %v2110, 0
      %v2160 = vsel %vm1193, %v2111, 0
      %v2163 = vsel %vm1193, %v2112, 0
      %v2166 = vsel %vm1193, %v2113, 0
      %v2169 = vsel %vm1193, %v2114, 0
      %v2172 = vsel %vm1193, %v2115, 0
      %v2175 = vsel %vm1193, %v2116, 0
      %v2178 = vsel %vm1193, %v2117, 0
      %v2181 = vsel %vm1193, %v2118, 0
      %v2184 = vsel %vm1193, %v2119, 0
      %v2187 = vsel %vm1193, %v2120, 0
      %v2190 = vsel %vm1193, %v2121, 0
      %v2193 = vsel %vm1193, %v2122, 0
      %2195 = vmatprep.subr.bf16.mxu0 0
      %2196 = vmatpush1.bf16.msra.mxu0 %v2143
      %2197 = vmatprep.subr.bf16.mxu0 0
      %2198 = vmatpush1.bf16.msra.mxu0 %v2144
      %2199 = vmatprep.subr.bf16.mxu0 0
      %2200 = vmatpush1.bf16.msra.mxu0 0
      %2201 = vmatprep.subr.bf16.mxu0 0
      %2202 = vmatpush1.bf16.msra.mxu0 0
      %2203 = vmatprep.subr.bf16.mxu0 0
      %2204 = vmatpush1.bf16.msra.mxu0 0
      %2205 = vmatprep.subr.bf16.mxu0 0
      %2206 = vmatpush1.bf16.msra.mxu0 0
      %2207 = vmatprep.subr.bf16.mxu0 0
      %2208 = vmatpush1.bf16.msra.mxu0 0
      %2209 = vmatprep.subr.bf16.mxu0 0
      %2210 = vmatpush1.bf16.msra.mxu0 0
      %2211 = vmatprep.subr.bf16.mxu0 0
      %2212 = vmatpush1.bf16.msra.mxu0 0
      %2213 = vmatprep.subr.bf16.mxu0 0
      %2214 = vmatpush1.bf16.msra.mxu0 0
      %2215 = vmatprep.subr.bf16.mxu0 0
      %2216 = vmatpush1.bf16.msra.mxu0 0
      %2217 = vmatprep.subr.bf16.mxu0 0
      %2218 = vmatpush1.bf16.msra.mxu0 0
      %2219 = vmatprep.subr.bf16.mxu0 0
      %2220 = vmatpush1.bf16.msra.mxu0 0
      %2221 = vmatprep.subr.bf16.mxu0 0
      %2222 = vmatpush1.bf16.msra.mxu0 0
      %2223 = vmatprep.subr.bf16.mxu0 0
      %2224 = vmatpush1.bf16.msra.mxu0 0
      %2225 = vmatprep.subr.bf16.mxu0 0
      %2226 = vmatpush1.bf16.msra.mxu0 0
      %2227 = vmatprep.mubr.bf16.mxu0 0
      %2228 = vmatmul.mubr.bf16.gmra.mrb[0].mxu0 %v2148
      %v2229 = vpop.f32.mrb[0].mxu0
      %v2230 = vadd.f32 %v2133, %v2229
      %v2231 = vpop.f32.mrb[0].mxu0
      %v2232 = vpop.f32.mrb[0].mxu0
      %v2233 = vadd.f32 %v2133, %v2232
      %v2234 = vpop.f32.mrb[0].mxu0
      %2235 = vmatprep.mubr.bf16.mxu0 0
      %2236 = vmatmul.mubr.bf16.gmra.mrb[0].mxu0 %v2151
      %v2237 = vpop.f32.mrb[0].mxu0
      %v2238 = vadd.f32 %v2133, %v2237
      %v2239 = vpop.f32.mrb[0].mxu0
      %v2240 = vpop.f32.mrb[0].mxu0
      %v2241 = vadd.f32 %v2133, %v2240
      %v2242 = vpop.f32.mrb[0].mxu0
      %2243 = vmatprep.mubr.bf16.mxu0 0
      %2244 = vmatmul.mubr.bf16.gmra.mrb[0].mxu0 %v2154
      %v2245 = vpop.f32.mrb[0].mxu0
      %v2246 = vadd.f32 %v2133, %v2245
      %v2247 = vpop.f32.mrb[0].mxu0
      %v2248 = vpop.f32.mrb[0].mxu0
      %v2249 = vadd.f32 %v2133, %v2248
      %v2250 = vpop.f32.mrb[0].mxu0
      %2251 = vmatprep.mubr.bf16.mxu0 0
      %2252 = vmatmul.mubr.bf16.gmra.mrb[0].mxu0 %v2157
      %v2253 = vpop.f32.mrb[0].mxu0
      %v2254 = vadd.f32 %v2133, %v2253
      %v2255 = vpop.f32.mrb[0].mxu0
      %v2256 = vpop.f32.mrb[0].mxu0
      %v2257 = vadd.f32 %v2133, %v2256
      %v2258 = vpop.f32.mrb[0].mxu0
      %2259 = vmatprep.mubr.bf16.mxu0 0
      %2260 = vmatmul.mubr.bf16.gmra.mrb[0].mxu0 %v2160
      %v2261 = vpop.f32.mrb[0].mxu0
      %v2262 = vadd.f32 %v2133, %v2261
      %v2263 = vpop.f32.mrb[0].mxu0
      %v2264 = vpop.f32.mrb[0].mxu0
      %v2265 = vadd.f32 %v2133, %v2264
      %v2266 = vpop.f32.mrb[0].mxu0
      %2267 = vmatprep.mubr.bf16.mxu0 0
      %2268 = vmatmul.mubr.bf16.gmra.mrb[0].mxu0 %v2163
      %v2269 = vpop.f32.mrb[0].mxu0
      %v2270 = vadd.f32 %v2133, %v2269
      %v2271 = vpop.f32.mrb[0].mxu0
      %v2272 = vpop.f32.mrb[0].mxu0
      %v2273 = vadd.f32 %v2133, %v2272
      %v2274 = vpop.f32.mrb[0].mxu0
      %2275 = vmatprep.mubr.bf16.mxu0 0
      %2276 = vmatmul.mubr.bf16.gmra.mrb[0].mxu0 %v2166
      %v2277 = vpop.f32.mrb[0].mxu0
      %v2278 = vadd.f32 %v2133, %v2277
      %v2279 = vpop.f32.mrb[0].mxu0
      %v2280 = vpop.f32.mrb[0].mxu0
      %v2281 = vadd.f32 %v2133, %v2280
      %v2282 = vpop.f32.mrb[0].mxu0
      %2283 = vmatprep.mubr.bf16.mxu0 0
      %2284 = vmatmul.mubr.bf16.gmra.mrb[0].mxu0 %v2169
      %v2285 = vpop.f32.mrb[0].mxu0
      %v2286 = vadd.f32 %v2133, %v2285
      %v2287 = vpop.f32.mrb[0].mxu0
      %v2288 = vpop.f32.mrb[0].mxu0
      %v2289 = vadd.f32 %v2133, %v2288
      %v2290 = vpop.f32.mrb[0].mxu0
      %2291 = vmatprep.mubr.bf16.mxu0 0
      %2292 = vmatmul.mubr.bf16.gmra.mrb[0].mxu0 %v2172
      %v2293 = vpop.f32.mrb[0].mxu0
      %v2294 = vadd.f32 %v2133, %v2293
      %v2295 = vpop.f32.mrb[0].mxu0
      %v2296 = vpop.f32.mrb[0].mxu0
      %v2297 = vadd.f32 %v2133, %v2296
      %v2298 = vpop.f32.mrb[0].mxu0
      %2299 = vmatprep.mubr.bf16.mxu0 0
      %2300 = vmatmul.mubr.bf16.gmra.mrb[0].mxu0 %v2175
      %v2301 = vpop.f32.mrb[0].mxu0
      %v2302 = vadd.f32 %v2133, %v2301
      %v2303 = vpop.f32.mrb[0].mxu0
      %v2304 = vpop.f32.mrb[0].mxu0
      %v2305 = vadd.f32 %v2133, %v2304
      %v2306 = vpop.f32.mrb[0].mxu0
      %2307 = vmatprep.mubr.bf16.mxu0 0
      %2308 = vmatmul.mubr.bf16.gmra.mrb[0].mxu0 %v2178
      %v2309 = vpop.f32.mrb[0].mxu0
      %v2310 = vadd.f32 %v2133, %v2309
      %v2311 = vpop.f32.mrb[0].mxu0
      %v2312 = vpop.f32.mrb[0].mxu0
      %v2313 = vadd.f32 %v2133, %v2312
      %v2314 = vpop.f32.mrb[0].mxu0
      %2315 = vmatprep.mubr.bf16.mxu0 0
      %2316 = vmatmul.mubr.bf16.gmra.mrb[0].mxu0 %v2181
      %v2317 = vpop.f32.mrb[0].mxu0
      %v2318 = vadd.f32 %v2133, %v2317
      %v2319 = vpop.f32.mrb[0].mxu0
      %v2320 = vpop.f32.mrb[0].mxu0
      %v2321 = vadd.f32 %v2133, %v2320
      %v2322 = vpop.f32.mrb[0].mxu0
      %2323 = vmatprep.mubr.bf16.mxu0 0
      %2324 = vmatmul.mubr.bf16.gmra.mrb[0].mxu0 %v2184
      %v2325 = vpop.f32.mrb[0].mxu0
      %v2326 = vadd.f32 %v2133, %v2325
      %v2327 = vpop.f32.mrb[0].mxu0
      %v2328 = vpop.f32.mrb[0].mxu0
      %v2329 = vadd.f32 %v2133, %v2328
      %v2330 = vpop.f32.mrb[0].mxu0
      %2331 = vmatprep.mubr.bf16.mxu0 0
      %2332 = vmatmul.mubr.bf16.gmra.mrb[0].mxu0 %v2187
      %v2333 = vpop.f32.mrb[0].mxu0
      %v2334 = vadd.f32 %v2133, %v2333
      %v2335 = vpop.f32.mrb[0].mxu0
      %v2336 = vpop.f32.mrb[0].mxu0
      %v2337 = vadd.f32 %v2133, %v2336
      %v2338 = vpop.f32.mrb[0].mxu0
      %2339 = vmatprep.mubr.bf16.mxu0 0
      %2340 = vmatmul.mubr.bf16.gmra.mrb[0].mxu0 %v2190
      %v2341 = vpop.f32.mrb[0].mxu0
      %v2342 = vadd.f32 %v2133, %v2341
      %v2343 = vpop.f32.mrb[0].mxu0
      %v2344 = vpop.f32.mrb[0].mxu0
      %v2345 = vadd.f32 %v2133, %v2344
      %v2346 = vpop.f32.mrb[0].mxu0
      %2347 = vmatprep.mubr.bf16.mxu0 0
      %2348 = vmatmul.mubr.bf16.gmra.mrb[0].mxu0 %v2193
      %v2349 = vpop.f32.mrb[0].mxu0
      %v2350 = vadd.f32 %v2133, %v2349
      %v2351 = vpop.f32.mrb[0].mxu0
      %v2352 = vpop.f32.mrb[0].mxu0
      %v2353 = vadd.f32 %v2133, %v2352
      %v2354 = vpop.f32.mrb[0].mxu0
      %2355 = vdwg.mxu0
      %v2356 = vmax.f32 %v2230, 0.0
      %v2357 = vmax.f32 %v2233, 0.0
      %v2358 = vmax.f32 %v2238, 0.0
      %v2359 = vmax.f32 %v2241, 0.0
      %v2360 = vmax.f32 %v2246, 0.0
      %v2361 = vmax.f32 %v2249, 0.0
      %v2362 = vmax.f32 %v2254, 0.0
      %v2363 = vmax.f32 %v2257, 0.0
      %v2364 = vmax.f32 %v2262, 0.0
      %v2365 = vmax.f32 %v2265, 0.0
      %v2366 = vmax.f32 %v2270, 0.0
      %v2367 = vmax.f32 %v2273, 0.0
      %v2368 = vmax.f32 %v2278, 0.0
      %v2369 = vmax.f32 %v2281, 0.0
      %v2370 = vmax.f32 %v2286, 0.0
      %v2371 = vmax.f32 %v2289, 0.0
      %v2372 = vmax.f32 %v2294, 0.0
      %v2373 = vmax.f32 %v2297, 0.0
      %v2374 = vmax.f32 %v2302, 0.0
      %v2375 = vmax.f32 %v2305, 0.0
      %v2376 = vmax.f32 %v2310, 0.0
      %v2377 = vmax.f32 %v2313, 0.0
      %v2378 = vmax.f32 %v2318, 0.0
      %v2379 = vmax.f32 %v2321, 0.0
      %v2380 = vmax.f32 %v2326, 0.0
      %v2381 = vmax.f32 %v2329, 0.0
      %v2382 = vmax.f32 %v2334, 0.0
      %v2383 = vmax.f32 %v2337, 0.0
      %v2384 = vmax.f32 %v2342, 0.0
      %v2385 = vmax.f32 %v2345, 0.0
      %v2386 = vmax.f32 %v2350, 0.0
      %v2387 = vmax.f32 %v2353, 0.0
      %v2388 = vld [vmem:[%s446] sm:$0xff]
      %v2389 = vld [vmem:[%s446 + $0x8] sm:$0xff]
      %v2390 = vld [vmem:[%s446 + $0x18] sm:$0xff]
      %v2391 = vld [vmem:[%s446 + $0x20] sm:$0xff]
      %v2392 = vld [vmem:[%s446 + $0x30] sm:$0xff]
      %v2393 = vld [vmem:[%s446 + $0x38] sm:$0xff]
      %v2394 = vld [vmem:[%s446 + $0x48] sm:$0xff]
      %v2395 = vld [vmem:[%s446 + $0x50] sm:$0xff]
      %v2396 = vld [vmem:[%s446 + $0x60] sm:$0xff]
      %v2397 = vld [vmem:[%s446 + $0x68] sm:$0xff]
      %v2398 = vld [vmem:[%s446 + $0x78] sm:$0xff]
      %v2399 = vld [vmem:[%s446 + $0x80] sm:$0xff]
      %v2400 = vld [vmem:[%s446 + $0x90] sm:$0xff]
      %v2401 = vld [vmem:[%s446 + $0x98] sm:$0xff]
      %v2402 = vld [vmem:[%s446 + $0xa8] sm:$0xff]
      %v2403 = vld [vmem:[%s446 + $0xb0] sm:$0xff]
      %v2404 = vld [vmem:[%s446 + $0xc0] sm:$0xff]
      %v2405 = vld [vmem:[%s446 + $0xc8] sm:$0xff]
      %v2406 = vld [vmem:[%s446 + $0xd8] sm:$0xff]
      %v2407 = vld [vmem:[%s446 + $0xe0] sm:$0xff]
      %v2408 = vld [vmem:[%s446 + $0xf0] sm:$0xff]
      %v2409 = vld [vmem:[%s446 + $0xf8] sm:$0xff]
      %v2410 = vld [vmem:[%s446 + $0x108] sm:$0xff]
      %v2411 = vld [vmem:[%s446 + $0x110] sm:$0xff]
      %v2412 = vld [vmem:[%s446 + $0x120] sm:$0xff]
      %v2413 = vld [vmem:[%s446 + $0x128] sm:$0xff]
      %v2414 = vld [vmem:[%s446 + $0x138] sm:$0xff]
      %v2415 = vld [vmem:[%s446 + $0x140] sm:$0xff]
      %v2416 = vld [vmem:[%s446 + $0x150] sm:$0xff]
      %v2417 = vld [vmem:[%s446 + $0x158] sm:$0xff]
      %v2418 = vld [vmem:[%s446 + $0x168] sm:$0xff]
      %v2419 = vld [vmem:[%s446 + $0x170] sm:$0xff]
      %2420 = vst.msk [vmem:[#allocation3] sm:$0xff] %vm400, %v2388
      %2421 = vst.msk [vmem:[#allocation3 + $0x8] sm:$0xff] %vm400, %v2389
      %2422 = vst.msk [vmem:[#allocation3 + $0x10] sm:$0xff] %vm400, %v2390
      %2423 = vst.msk [vmem:[#allocation3 + $0x18] sm:$0xff] %vm400, %v2391
      %2424 = vst.msk [vmem:[#allocation3 + $0x20] sm:$0xff] %vm400, %v2392
      %2425 = vst.msk [vmem:[#allocation3 + $0x28] sm:$0xff] %vm400, %v2393
      %2426 = vst.msk [vmem:[#allocation3 + $0x30] sm:$0xff] %vm400, %v2394
      %2427 = vst.msk [vmem:[#allocation3 + $0x38] sm:$0xff] %vm400, %v2395
      %2428 = vst.msk [vmem:[#allocation3 + $0x40] sm:$0xff] %vm400, %v2396
      %2429 = vst.msk [vmem:[#allocation3 + $0x48] sm:$0xff] %vm400, %v2397
      %2430 = vst.msk [vmem:[#allocation3 + $0x50] sm:$0xff] %vm400, %v2398
      %2431 = vst.msk [vmem:[#allocation3 + $0x58] sm:$0xff] %vm400, %v2399
      %2432 = vst.msk [vmem:[#allocation3 + $0x60] sm:$0xff] %vm400, %v2400
      %2433 = vst.msk [vmem:[#allocation3 + $0x68] sm:$0xff] %vm400, %v2401
      %2434 = vst.msk [vmem:[#allocation3 + $0x70] sm:$0xff] %vm400, %v2402
      %2435 = vst.msk [vmem:[#allocation3 + $0x78] sm:$0xff] %vm400, %v2403
      %2436 = vst.msk [vmem:[#allocation3 + $0x80] sm:$0xff] %vm400, %v2404
      %2437 = vst.msk [vmem:[#allocation3 + $0x88] sm:$0xff] %vm400, %v2405
      %2438 = vst.msk [vmem:[#allocation3 + $0x90] sm:$0xff] %vm400, %v2406
      %2439 = vst.msk [vmem:[#allocation3 + $0x98] sm:$0xff] %vm400, %v2407
      %2440 = vst.msk [vmem:[#allocation3 + $0xa0] sm:$0xff] %vm400, %v2408
      %2441 = vst.msk [vmem:[#allocation3 + $0xa8] sm:$0xff] %vm400, %v2409
      %2442 = vst.msk [vmem:[#allocation3 + $0xb0] sm:$0xff] %vm400, %v2410
      %2443 = vst.msk [vmem:[#allocation3 + $0xb8] sm:$0xff] %vm400, %v2411
      %2444 = vst.msk [vmem:[#allocation3 + $0xc0] sm:$0xff] %vm400, %v2412
      %2445 = vst.msk [vmem:[#allocation3 + $0xc8] sm:$0xff] %vm400, %v2413
      %2446 = vst.msk [vmem:[#allocation3 + $0xd0] sm:$0xff] %vm400, %v2414
      %2447 = vst.msk [vmem:[#allocation3 + $0xd8] sm:$0xff] %vm400, %v2415
      %2448 = vst.msk [vmem:[#allocation3 + $0xe0] sm:$0xff] %vm400, %v2416
      %2449 = vst.msk [vmem:[#allocation3 + $0xe8] sm:$0xff] %vm400, %v2417
      %2450 = vst.msk [vmem:[#allocation3 + $0xf0] sm:$0xff] %vm400, %v2418
      %2451 = vst.msk [vmem:[#allocation3 + $0xf8] sm:$0xff] %vm400, %v2419
      %v2452 = vld [vmem:[%s446 + $0x1] sm:$0xff]
      %v2453 = vld [vmem:[%s446 + $0x9] sm:$0xff]
      %v2454 = vld [vmem:[%s446 + $0x19] sm:$0xff]
      %v2455 = vld [vmem:[%s446 + $0x21] sm:$0xff]
      %v2456 = vld [vmem:[%s446 + $0x31] sm:$0xff]
      %v2457 = vld [vmem:[%s446 + $0x39] sm:$0xff]
      %v2458 = vld [vmem:[%s446 + $0x49] sm:$0xff]
      %v2459 = vld [vmem:[%s446 + $0x51] sm:$0xff]
      %v2460 = vld [vmem:[%s446 + $0x61] sm:$0xff]
      %v2461 = vld [vmem:[%s446 + $0x69] sm:$0xff]
      %v2462 = vld [vmem:[%s446 + $0x79] sm:$0xff]
      %v2463 = vld [vmem:[%s446 + $0x81] sm:$0xff]
      %v2464 = vld [vmem:[%s446 + $0x91] sm:$0xff]
      %v2465 = vld [vmem:[%s446 + $0x99] sm:$0xff]
      %v2466 = vld [vmem:[%s446 + $0xa9] sm:$0xff]
      %v2467 = vld [vmem:[%s446 + $0xb1] sm:$0xff]
      %v2468 = vld [vmem:[%s446 + $0xc1] sm:$0xff]
      %v2469 = vld [vmem:[%s446 + $0xc9] sm:$0xff]
      %v2470 = vld [vmem:[%s446 + $0xd9] sm:$0xff]
      %v2471 = vld [vmem:[%s446 + $0xe1] sm:$0xff]
      %v2472 = vld [vmem:[%s446 + $0xf1] sm:$0xff]
      %v2473 = vld [vmem:[%s446 + $0xf9] sm:$0xff]
      %v2474 = vld [vmem:[%s446 + $0x109] sm:$0xff]
      %v2475 = vld [vmem:[%s446 + $0x111] sm:$0xff]
      %v2476 = vld [vmem:[%s446 + $0x121] sm:$0xff]
      %v2477 = vld [vmem:[%s446 + $0x129] sm:$0xff]
      %v2478 = vld [vmem:[%s446 + $0x139] sm:$0xff]
      %v2479 = vld [vmem:[%s446 + $0x141] sm:$0xff]
      %v2480 = vld [vmem:[%s446 + $0x151] sm:$0xff]
      %v2481 = vld [vmem:[%s446 + $0x159] sm:$0xff]
      %v2482 = vld [vmem:[%s446 + $0x169] sm:$0xff]
      %v2483 = vld [vmem:[%s446 + $0x171] sm:$0xff]
      %2516 = vrot.lane.b32.xlu0 %v2452, 8
      %v2517 = vpop.permute.xlu0 %2516
      %2518 = vrot.lane.b32.xlu0 %v2453, 8
      %v2519 = vpop.permute.xlu0 %2518
      %2520 = vrot.lane.b32.xlu0 %v2454, 8
      %v2521 = vpop.permute.xlu0 %2520
      %2522 = vrot.lane.b32.xlu0 %v2455, 8
      %v2523 = vpop.permute.xlu0 %2522
      %2524 = vrot.lane.b32.xlu0 %v2456, 8
      %v2525 = vpop.permute.xlu0 %2524
      %2526 = vrot.lane.b32.xlu0 %v2457, 8
      %v2527 = vpop.permute.xlu0 %2526
      %2528 = vrot.lane.b32.xlu0 %v2458, 8
      %v2529 = vpop.permute.xlu0 %2528
      %2530 = vrot.lane.b32.xlu0 %v2459, 8
      %v2531 = vpop.permute.xlu0 %2530
      %2532 = vrot.lane.b32.xlu0 %v2460, 8
      %v2533 = vpop.permute.xlu0 %2532
      %2534 = vrot.lane.b32.xlu0 %v2461, 8
      %v2535 = vpop.permute.xlu0 %2534
      %2536 = vrot.lane.b32.xlu0 %v2462, 8
      %v2537 = vpop.permute.xlu0 %2536
      %2538 = vrot.lane.b32.xlu0 %v2463, 8
      %v2539 = vpop.permute.xlu0 %2538
      %2540 = vrot.lane.b32.xlu0 %v2464, 8
      %v2541 = vpop.permute.xlu0 %2540
      %2542 = vrot.lane.b32.xlu0 %v2465, 8
      %v2543 = vpop.permute.xlu0 %2542
      %2544 = vrot.lane.b32.xlu0 %v2466, 8
      %v2545 = vpop.permute.xlu0 %2544
      %2546 = vrot.lane.b32.xlu0 %v2467, 8
      %v2547 = vpop.permute.xlu0 %2546
      %2548 = vrot.lane.b32.xlu0 %v2468, 8
      %v2549 = vpop.permute.xlu0 %2548
      %2550 = vrot.lane.b32.xlu0 %v2469, 8
      %v2551 = vpop.permute.xlu0 %2550
      %2552 = vrot.lane.b32.xlu0 %v2470, 8
      %v2553 = vpop.permute.xlu0 %2552
      %2554 = vrot.lane.b32.xlu0 %v2471, 8
      %v2555 = vpop.permute.xlu0 %2554
      %2556 = vrot.lane.b32.xlu0 %v2472, 8
      %v2557 = vpop.permute.xlu0 %2556
      %2558 = vrot.lane.b32.xlu0 %v2473, 8
      %v2559 = vpop.permute.xlu0 %2558
      %2560 = vrot.lane.b32.xlu0 %v2474, 8
      %v2561 = vpop.permute.xlu0 %2560
      %2562 = vrot.lane.b32.xlu0 %v2475, 8
      %v2563 = vpop.permute.xlu0 %2562
      %2564 = vrot.lane.b32.xlu0 %v2476, 8
      %v2565 = vpop.permute.xlu0 %2564
      %2566 = vrot.lane.b32.xlu0 %v2477, 8
      %v2567 = vpop.permute.xlu0 %2566
      %2568 = vrot.lane.b32.xlu0 %v2478, 8
      %v2569 = vpop.permute.xlu0 %2568
      %2570 = vrot.lane.b32.xlu0 %v2479, 8
      %v2571 = vpop.permute.xlu0 %2570
      %2572 = vrot.lane.b32.xlu0 %v2480, 8
      %v2573 = vpop.permute.xlu0 %2572
      %2574 = vrot.lane.b32.xlu0 %v2481, 8
      %v2575 = vpop.permute.xlu0 %2574
      %2576 = vrot.lane.b32.xlu0 %v2482, 8
      %v2577 = vpop.permute.xlu0 %2576
      %2578 = vrot.lane.b32.xlu0 %v2483, 8
      %v2579 = vpop.permute.xlu0 %2578
      %2612 = vst.msk [vmem:[#allocation3] sm:$0xff] %vm703, %v2517
      %2613 = vst.msk [vmem:[#allocation3 + $0x8] sm:$0xff] %vm703, %v2519
      %2614 = vst.msk [vmem:[#allocation3 + $0x10] sm:$0xff] %vm703, %v2521
      %2615 = vst.msk [vmem:[#allocation3 + $0x18] sm:$0xff] %vm703, %v2523
      %2616 = vst.msk [vmem:[#allocation3 + $0x20] sm:$0xff] %vm703, %v2525
      %2617 = vst.msk [vmem:[#allocation3 + $0x28] sm:$0xff] %vm703, %v2527
      %2618 = vst.msk [vmem:[#allocation3 + $0x30] sm:$0xff] %vm703, %v2529
      %2619 = vst.msk [vmem:[#allocation3 + $0x38] sm:$0xff] %vm703, %v2531
      %2620 = vst.msk [vmem:[#allocation3 + $0x40] sm:$0xff] %vm703, %v2533
      %2621 = vst.msk [vmem:[#allocation3 + $0x48] sm:$0xff] %vm703, %v2535
      %2622 = vst.msk [vmem:[#allocation3 + $0x50] sm:$0xff] %vm703, %v2537
      %2623 = vst.msk [vmem:[#allocation3 + $0x58] sm:$0xff] %vm703, %v2539
      %2624 = vst.msk [vmem:[#allocation3 + $0x60] sm:$0xff] %vm703, %v2541
      %2625 = vst.msk [vmem:[#allocation3 + $0x68] sm:$0xff] %vm703, %v2543
      %2626 = vst.msk [vmem:[#allocation3 + $0x70] sm:$0xff] %vm703, %v2545
      %2627 = vst.msk [vmem:[#allocation3 + $0x78] sm:$0xff] %vm703, %v2547
      %2628 = vst.msk [vmem:[#allocation3 + $0x80] sm:$0xff] %vm703, %v2549
      %2629 = vst.msk [vmem:[#allocation3 + $0x88] sm:$0xff] %vm703, %v2551
      %2630 = vst.msk [vmem:[#allocation3 + $0x90] sm:$0xff] %vm703, %v2553
      %2631 = vst.msk [vmem:[#allocation3 + $0x98] sm:$0xff] %vm703, %v2555
      %2632 = vst.msk [vmem:[#allocation3 + $0xa0] sm:$0xff] %vm703, %v2557
      %2633 = vst.msk [vmem:[#allocation3 + $0xa8] sm:$0xff] %vm703, %v2559
      %2634 = vst.msk [vmem:[#allocation3 + $0xb0] sm:$0xff] %vm703, %v2561
      %2635 = vst.msk [vmem:[#allocation3 + $0xb8] sm:$0xff] %vm703, %v2563
      %2636 = vst.msk [vmem:[#allocation3 + $0xc0] sm:$0xff] %vm703, %v2565
      %2637 = vst.msk [vmem:[#allocation3 + $0xc8] sm:$0xff] %vm703, %v2567
      %2638 = vst.msk [vmem:[#allocation3 + $0xd0] sm:$0xff] %vm703, %v2569
      %2639 = vst.msk [vmem:[#allocation3 + $0xd8] sm:$0xff] %vm703, %v2571
      %2640 = vst.msk [vmem:[#allocation3 + $0xe0] sm:$0xff] %vm703, %v2573
      %2641 = vst.msk [vmem:[#allocation3 + $0xe8] sm:$0xff] %vm703, %v2575
      %2642 = vst.msk [vmem:[#allocation3 + $0xf0] sm:$0xff] %vm703, %v2577
      %2643 = vst.msk [vmem:[#allocation3 + $0xf8] sm:$0xff] %vm703, %v2579
      %s2644 = scalar_lea.vmem [#allocation2], 48
      %v2645 = vld [vmem:[%s2644] sm:$0xff]
      %v2646 = vld [vmem:[%s2644 + $0x8] sm:$0xff]
      %v2647 = vld [vmem:[%s2644 + $0x18] sm:$0xff]
      %v2648 = vld [vmem:[%s2644 + $0x20] sm:$0xff]
      %v2649 = vld [vmem:[%s2644 + $0x30] sm:$0xff]
      %v2650 = vld [vmem:[%s2644 + $0x38] sm:$0xff]
      %v2651 = vld [vmem:[%s2644 + $0x48] sm:$0xff]
      %v2652 = vld [vmem:[%s2644 + $0x50] sm:$0xff]
      %v2653 = vld [vmem:[%s2644 + $0x60] sm:$0xff]
      %v2654 = vld [vmem:[%s2644 + $0x68] sm:$0xff]
      %v2655 = vld [vmem:[%s2644 + $0x78] sm:$0xff]
      %v2656 = vld [vmem:[%s2644 + $0x80] sm:$0xff]
      %v2657 = vld [vmem:[%s2644 + $0x90] sm:$0xff]
      %v2658 = vld [vmem:[%s2644 + $0x98] sm:$0xff]
      %v2659 = vld [vmem:[%s2644 + $0xa8] sm:$0xff]
      %v2660 = vld [vmem:[%s2644 + $0xb0] sm:$0xff]
      %v2661 = vld [vmem:[%s2644 + $0xc0] sm:$0xff]
      %v2662 = vld [vmem:[%s2644 + $0xc8] sm:$0xff]
      %v2663 = vld [vmem:[%s2644 + $0xd8] sm:$0xff]
      %v2664 = vld [vmem:[%s2644 + $0xe0] sm:$0xff]
      %v2665 = vld [vmem:[%s2644 + $0xf0] sm:$0xff]
      %v2666 = vld [vmem:[%s2644 + $0xf8] sm:$0xff]
      %v2667 = vld [vmem:[%s2644 + $0x108] sm:$0xff]
      %v2668 = vld [vmem:[%s2644 + $0x110] sm:$0xff]
      %v2669 = vld [vmem:[%s2644 + $0x120] sm:$0xff]
      %v2670 = vld [vmem:[%s2644 + $0x128] sm:$0xff]
      %v2671 = vld [vmem:[%s2644 + $0x138] sm:$0xff]
      %v2672 = vld [vmem:[%s2644 + $0x140] sm:$0xff]
      %v2673 = vld [vmem:[%s2644 + $0x150] sm:$0xff]
      %v2674 = vld [vmem:[%s2644 + $0x158] sm:$0xff]
      %v2675 = vld [vmem:[%s2644 + $0x168] sm:$0xff]
      %v2676 = vld [vmem:[%s2644 + $0x170] sm:$0xff]
      %2709 = vrot.lane.b32.xlu0 %v2645, 16
      %v2710 = vpop.permute.xlu0 %2709
      %2711 = vrot.lane.b32.xlu0 %v2646, 16
      %v2712 = vpop.permute.xlu0 %2711
      %2713 = vrot.lane.b32.xlu0 %v2647, 16
      %v2714 = vpop.permute.xlu0 %2713
      %2715 = vrot.lane.b32.xlu0 %v2648, 16
      %v2716 = vpop.permute.xlu0 %2715
      %2717 = vrot.lane.b32.xlu0 %v2649, 16
      %v2718 = vpop.permute.xlu0 %2717
      %2719 = vrot.lane.b32.xlu0 %v2650, 16
      %v2720 = vpop.permute.xlu0 %2719
      %2721 = vrot.lane.b32.xlu0 %v2651, 16
      %v2722 = vpop.permute.xlu0 %2721
      %2723 = vrot.lane.b32.xlu0 %v2652, 16
      %v2724 = vpop.permute.xlu0 %2723
      %2725 = vrot.lane.b32.xlu0 %v2653, 16
      %v2726 = vpop.permute.xlu0 %2725
      %2727 = vrot.lane.b32.xlu0 %v2654, 16
      %v2728 = vpop.permute.xlu0 %2727
      %2729 = vrot.lane.b32.xlu0 %v2655, 16
      %v2730 = vpop.permute.xlu0 %2729
      %2731 = vrot.lane.b32.xlu0 %v2656, 16
      %v2732 = vpop.permute.xlu0 %2731
      %2733 = vrot.lane.b32.xlu0 %v2657, 16
      %v2734 = vpop.permute.xlu0 %2733
      %2735 = vrot.lane.b32.xlu0 %v2658, 16
      %v2736 = vpop.permute.xlu0 %2735
      %2737 = vrot.lane.b32.xlu0 %v2659, 16
      %v2738 = vpop.permute.xlu0 %2737
      %2739 = vrot.lane.b32.xlu0 %v2660, 16
      %v2740 = vpop.permute.xlu0 %2739
      %2741 = vrot.lane.b32.xlu0 %v2661, 16
      %v2742 = vpop.permute.xlu0 %2741
      %2743 = vrot.lane.b32.xlu0 %v2662, 16
      %v2744 = vpop.permute.xlu0 %2743
      %2745 = vrot.lane.b32.xlu0 %v2663, 16
      %v2746 = vpop.permute.xlu0 %2745
      %2747 = vrot.lane.b32.xlu0 %v2664, 16
      %v2748 = vpop.permute.xlu0 %2747
      %2749 = vrot.lane.b32.xlu0 %v2665, 16
      %v2750 = vpop.permute.xlu0 %2749
      %2751 = vrot.lane.b32.xlu0 %v2666, 16
      %v2752 = vpop.permute.xlu0 %2751
      %2753 = vrot.lane.b32.xlu0 %v2667, 16
      %v2754 = vpop.permute.xlu0 %2753
      %2755 = vrot.lane.b32.xlu0 %v2668, 16
      %v2756 = vpop.permute.xlu0 %2755
      %2757 = vrot.lane.b32.xlu0 %v2669, 16
      %v2758 = vpop.permute.xlu0 %2757
      %2759 = vrot.lane.b32.xlu0 %v2670, 16
      %v2760 = vpop.permute.xlu0 %2759
      %2761 = vrot.lane.b32.xlu0 %v2671, 16
      %v2762 = vpop.permute.xlu0 %2761
      %2763 = vrot.lane.b32.xlu0 %v2672, 16
      %v2764 = vpop.permute.xlu0 %2763
      %2765 = vrot.lane.b32.xlu0 %v2673, 16
      %v2766 = vpop.permute.xlu0 %2765
      %2767 = vrot.lane.b32.xlu0 %v2674, 16
      %v2768 = vpop.permute.xlu0 %2767
      %2769 = vrot.lane.b32.xlu0 %v2675, 16
      %v2770 = vpop.permute.xlu0 %2769
      %2771 = vrot.lane.b32.xlu0 %v2676, 16
      %v2772 = vpop.permute.xlu0 %2771
      %2805 = vst.msk [vmem:[#allocation3] sm:$0xff] %vm896, %v2710
      %2806 = vst.msk [vmem:[#allocation3 + $0x8] sm:$0xff] %vm896, %v2712
      %2807 = vst.msk [vmem:[#allocation3 + $0x10] sm:$0xff] %vm896, %v2714
      %2808 = vst.msk [vmem:[#allocation3 + $0x18] sm:$0xff] %vm896, %v2716
      %2809 = vst.msk [vmem:[#allocation3 + $0x20] sm:$0xff] %vm896, %v2718
      %2810 = vst.msk [vmem:[#allocation3 + $0x28] sm:$0xff] %vm896, %v2720
      %2811 = vst.msk [vmem:[#allocation3 + $0x30] sm:$0xff] %vm896, %v2722
      %2812 = vst.msk [vmem:[#allocation3 + $0x38] sm:$0xff] %vm896, %v2724
      %2813 = vst.msk [vmem:[#allocation3 + $0x40] sm:$0xff] %vm896, %v2726
      %2814 = vst.msk [vmem:[#allocation3 + $0x48] sm:$0xff] %vm896, %v2728
      %2815 = vst.msk [vmem:[#allocation3 + $0x50] sm:$0xff] %vm896, %v2730
      %2816 = vst.msk [vmem:[#allocation3 + $0x58] sm:$0xff] %vm896, %v2732
      %2817 = vst.msk [vmem:[#allocation3 + $0x60] sm:$0xff] %vm896, %v2734
      %2818 = vst.msk [vmem:[#allocation3 + $0x68] sm:$0xff] %vm896, %v2736
      %2819 = vst.msk [vmem:[#allocation3 + $0x70] sm:$0xff] %vm896, %v2738
      %2820 = vst.msk [vmem:[#allocation3 + $0x78] sm:$0xff] %vm896, %v2740
      %2821 = vst.msk [vmem:[#allocation3 + $0x80] sm:$0xff] %vm896, %v2742
      %2822 = vst.msk [vmem:[#allocation3 + $0x88] sm:$0xff] %vm896, %v2744
      %2823 = vst.msk [vmem:[#allocation3 + $0x90] sm:$0xff] %vm896, %v2746
      %2824 = vst.msk [vmem:[#allocation3 + $0x98] sm:$0xff] %vm896, %v2748
      %2825 = vst.msk [vmem:[#allocation3 + $0xa0] sm:$0xff] %vm896, %v2750
      %2826 = vst.msk [vmem:[#allocation3 + $0xa8] sm:$0xff] %vm896, %v2752
      %2827 = vst.msk [vmem:[#allocation3 + $0xb0] sm:$0xff] %vm896, %v2754
      %2828 = vst.msk [vmem:[#allocation3 + $0xb8] sm:$0xff] %vm896, %v2756
      %2829 = vst.msk [vmem:[#allocation3 + $0xc0] sm:$0xff] %vm896, %v2758
      %2830 = vst.msk [vmem:[#allocation3 + $0xc8] sm:$0xff] %vm896, %v2760
      %2831 = vst.msk [vmem:[#allocation3 + $0xd0] sm:$0xff] %vm896, %v2762
      %2832 = vst.msk [vmem:[#allocation3 + $0xd8] sm:$0xff] %vm896, %v2764
      %2833 = vst.msk [vmem:[#allocation3 + $0xe0] sm:$0xff] %vm896, %v2766
      %2834 = vst.msk [vmem:[#allocation3 + $0xe8] sm:$0xff] %vm896, %v2768
      %2835 = vst.msk [vmem:[#allocation3 + $0xf0] sm:$0xff] %vm896, %v2770
      %2836 = vst.msk [vmem:[#allocation3 + $0xf8] sm:$0xff] %vm896, %v2772
      %v2837 = vld [vmem:[%s2644 + $0x1] sm:$0xff]
      %v2838 = vld [vmem:[%s2644 + $0x9] sm:$0xff]
      %v2839 = vld [vmem:[%s2644 + $0x19] sm:$0xff]
      %v2840 = vld [vmem:[%s2644 + $0x21] sm:$0xff]
      %v2841 = vld [vmem:[%s2644 + $0x31] sm:$0xff]
      %v2842 = vld [vmem:[%s2644 + $0x39] sm:$0xff]
      %v2843 = vld [vmem:[%s2644 + $0x49] sm:$0xff]
      %v2844 = vld [vmem:[%s2644 + $0x51] sm:$0xff]
      %v2845 = vld [vmem:[%s2644 + $0x61] sm:$0xff]
      %v2846 = vld [vmem:[%s2644 + $0x69] sm:$0xff]
      %v2847 = vld [vmem:[%s2644 + $0x79] sm:$0xff]
      %v2848 = vld [vmem:[%s2644 + $0x81] sm:$0xff]
      %v2849 = vld [vmem:[%s2644 + $0x91] sm:$0xff]
      %v2850 = vld [vmem:[%s2644 + $0x99] sm:$0xff]
      %v2851 = vld [vmem:[%s2644 + $0xa9] sm:$0xff]
      %v2852 = vld [vmem:[%s2644 + $0xb1] sm:$0xff]
      %v2853 = vld [vmem:[%s2644 + $0xc1] sm:$0xff]
      %v2854 = vld [vmem:[%s2644 + $0xc9] sm:$0xff]
      %v2855 = vld [vmem:[%s2644 + $0xd9] sm:$0xff]
      %v2856 = vld [vmem:[%s2644 + $0xe1] sm:$0xff]
      %v2857 = vld [vmem:[%s2644 + $0xf1] sm:$0xff]
      %v2858 = vld [vmem:[%s2644 + $0xf9] sm:$0xff]
      %v2859 = vld [vmem:[%s2644 + $0x109] sm:$0xff]
      %v2860 = vld [vmem:[%s2644 + $0x111] sm:$0xff]
      %v2861 = vld [vmem:[%s2644 + $0x121] sm:$0xff]
      %v2862 = vld [vmem:[%s2644 + $0x129] sm:$0xff]
      %v2863 = vld [vmem:[%s2644 + $0x139] sm:$0xff]
      %v2864 = vld [vmem:[%s2644 + $0x141] sm:$0xff]
      %v2865 = vld [vmem:[%s2644 + $0x151] sm:$0xff]
      %v2866 = vld [vmem:[%s2644 + $0x159] sm:$0xff]
      %v2867 = vld [vmem:[%s2644 + $0x169] sm:$0xff]
      %v2868 = vld [vmem:[%s2644 + $0x171] sm:$0xff]
      %2901 = vrot.lane.b32.xlu0 %v2837, 24
      %v2902 = vpop.permute.xlu0 %2901
      %2903 = vrot.lane.b32.xlu0 %v2838, 24
      %v2904 = vpop.permute.xlu0 %2903
      %2905 = vrot.lane.b32.xlu0 %v2839, 24
      %v2906 = vpop.permute.xlu0 %2905
      %2907 = vrot.lane.b32.xlu0 %v2840, 24
      %v2908 = vpop.permute.xlu0 %2907
      %2909 = vrot.lane.b32.xlu0 %v2841, 24
      %v2910 = vpop.permute.xlu0 %2909
      %2911 = vrot.lane.b32.xlu0 %v2842, 24
      %v2912 = vpop.permute.xlu0 %2911
      %2913 = vrot.lane.b32.xlu0 %v2843, 24
      %v2914 = vpop.permute.xlu0 %2913
      %2915 = vrot.lane.b32.xlu0 %v2844, 24
      %v2916 = vpop.permute.xlu0 %2915
      %2917 = vrot.lane.b32.xlu0 %v2845, 24
      %v2918 = vpop.permute.xlu0 %2917
      %2919 = vrot.lane.b32.xlu0 %v2846, 24
      %v2920 = vpop.permute.xlu0 %2919
      %2921 = vrot.lane.b32.xlu0 %v2847, 24
      %v2922 = vpop.permute.xlu0 %2921
      %2923 = vrot.lane.b32.xlu0 %v2848, 24
      %v2924 = vpop.permute.xlu0 %2923
      %2925 = vrot.lane.b32.xlu0 %v2849, 24
      %v2926 = vpop.permute.xlu0 %2925
      %2927 = vrot.lane.b32.xlu0 %v2850, 24
      %v2928 = vpop.permute.xlu0 %2927
      %2929 = vrot.lane.b32.xlu0 %v2851, 24
      %v2930 = vpop.permute.xlu0 %2929
      %2931 = vrot.lane.b32.xlu0 %v2852, 24
      %v2932 = vpop.permute.xlu0 %2931
      %2933 = vrot.lane.b32.xlu0 %v2853, 24
      %v2934 = vpop.permute.xlu0 %2933
      %2935 = vrot.lane.b32.xlu0 %v2854, 24
      %v2936 = vpop.permute.xlu0 %2935
      %2937 = vrot.lane.b32.xlu0 %v2855, 24
      %v2938 = vpop.permute.xlu0 %2937
      %2939 = vrot.lane.b32.xlu0 %v2856, 24
      %v2940 = vpop.permute.xlu0 %2939
      %2941 = vrot.lane.b32.xlu0 %v2857, 24
      %v2942 = vpop.permute.xlu0 %2941
      %2943 = vrot.lane.b32.xlu0 %v2858, 24
      %v2944 = vpop.permute.xlu0 %2943
      %2945 = vrot.lane.b32.xlu0 %v2859, 24
      %v2946 = vpop.permute.xlu0 %2945
      %2947 = vrot.lane.b32.xlu0 %v2860, 24
      %v2948 = vpop.permute.xlu0 %2947
      %2949 = vrot.lane.b32.xlu0 %v2861, 24
      %v2950 = vpop.permute.xlu0 %2949
      %2951 = vrot.lane.b32.xlu0 %v2862, 24
      %v2952 = vpop.permute.xlu0 %2951
      %2953 = vrot.lane.b32.xlu0 %v2863, 24
      %v2954 = vpop.permute.xlu0 %2953
      %2955 = vrot.lane.b32.xlu0 %v2864, 24
      %v2956 = vpop.permute.xlu0 %2955
      %2957 = vrot.lane.b32.xlu0 %v2865, 24
      %v2958 = vpop.permute.xlu0 %2957
      %2959 = vrot.lane.b32.xlu0 %v2866, 24
      %v2960 = vpop.permute.xlu0 %2959
      %2961 = vrot.lane.b32.xlu0 %v2867, 24
      %v2962 = vpop.permute.xlu0 %2961
      %2963 = vrot.lane.b32.xlu0 %v2868, 24
      %v2964 = vpop.permute.xlu0 %2963
      %2997 = vst.msk [vmem:[#allocation3] sm:$0xff] %vm1089, %v2902
      %2998 = vst.msk [vmem:[#allocation3 + $0x8] sm:$0xff] %vm1089, %v2904
      %2999 = vst.msk [vmem:[#allocation3 + $0x10] sm:$0xff] %vm1089, %v2906
      %3000 = vst.msk [vmem:[#allocation3 + $0x18] sm:$0xff] %vm1089, %v2908
      %3001 = vst.msk [vmem:[#allocation3 + $0x20] sm:$0xff] %vm1089, %v2910
      %3002 = vst.msk [vmem:[#allocation3 + $0x28] sm:$0xff] %vm1089, %v2912
      %3003 = vst.msk [vmem:[#allocation3 + $0x30] sm:$0xff] %vm1089, %v2914
      %3004 = vst.msk [vmem:[#allocation3 + $0x38] sm:$0xff] %vm1089, %v2916
      %3005 = vst.msk [vmem:[#allocation3 + $0x40] sm:$0xff] %vm1089, %v2918
      %3006 = vst.msk [vmem:[#allocation3 + $0x48] sm:$0xff] %vm1089, %v2920
      %3007 = vst.msk [vmem:[#allocation3 + $0x50] sm:$0xff] %vm1089, %v2922
      %3008 = vst.msk [vmem:[#allocation3 + $0x58] sm:$0xff] %vm1089, %v2924
      %3009 = vst.msk [vmem:[#allocation3 + $0x60] sm:$0xff] %vm1089, %v2926
      %3010 = vst.msk [vmem:[#allocation3 + $0x68] sm:$0xff] %vm1089, %v2928
      %3011 = vst.msk [vmem:[#allocation3 + $0x70] sm:$0xff] %vm1089, %v2930
      %3012 = vst.msk [vmem:[#allocation3 + $0x78] sm:$0xff] %vm1089, %v2932
      %3013 = vst.msk [vmem:[#allocation3 + $0x80] sm:$0xff] %vm1089, %v2934
      %3014 = vst.msk [vmem:[#allocation3 + $0x88] sm:$0xff] %vm1089, %v2936
      %3015 = vst.msk [vmem:[#allocation3 + $0x90] sm:$0xff] %vm1089, %v2938
      %3016 = vst.msk [vmem:[#allocation3 + $0x98] sm:$0xff] %vm1089, %v2940
      %3017 = vst.msk [vmem:[#allocation3 + $0xa0] sm:$0xff] %vm1089, %v2942
      %3018 = vst.msk [vmem:[#allocation3 + $0xa8] sm:$0xff] %vm1089, %v2944
      %3019 = vst.msk [vmem:[#allocation3 + $0xb0] sm:$0xff] %vm1089, %v2946
      %3020 = vst.msk [vmem:[#allocation3 + $0xb8] sm:$0xff] %vm1089, %v2948
      %3021 = vst.msk [vmem:[#allocation3 + $0xc0] sm:$0xff] %vm1089, %v2950
      %3022 = vst.msk [vmem:[#allocation3 + $0xc8] sm:$0xff] %vm1089, %v2952
      %3023 = vst.msk [vmem:[#allocation3 + $0xd0] sm:$0xff] %vm1089, %v2954
      %3024 = vst.msk [vmem:[#allocation3 + $0xd8] sm:$0xff] %vm1089, %v2956
      %3025 = vst.msk [vmem:[#allocation3 + $0xe0] sm:$0xff] %vm1089, %v2958
      %3026 = vst.msk [vmem:[#allocation3 + $0xe8] sm:$0xff] %vm1089, %v2960
      %3027 = vst.msk [vmem:[#allocation3 + $0xf0] sm:$0xff] %vm1089, %v2962
      %3028 = vst.msk [vmem:[#allocation3 + $0xf8] sm:$0xff] %vm1089, %v2964
      %v3029 = vld [vmem:[#allocation3] sm:$0xff]
      %v3030 = vld [vmem:[#allocation3 + $0x8] sm:$0xff]
      %v3031 = vld [vmem:[#allocation3 + $0x10] sm:$0xff]
      %v3032 = vld [vmem:[#allocation3 + $0x18] sm:$0xff]
      %v3033 = vld [vmem:[#allocation3 + $0x20] sm:$0xff]
      %v3034 = vld [vmem:[#allocation3 + $0x28] sm:$0xff]
      %v3035 = vld [vmem:[#allocation3 + $0x30] sm:$0xff]
      %v3036 = vld [vmem:[#allocation3 + $0x38] sm:$0xff]
      %v3037 = vld [vmem:[#allocation3 + $0x40] sm:$0xff]
      %v3038 = vld [vmem:[#allocation3 + $0x48] sm:$0xff]
      %v3039 = vld [vmem:[#allocation3 + $0x50] sm:$0xff]
      %v3040 = vld [vmem:[#allocation3 + $0x58] sm:$0xff]
      %v3041 = vld [vmem:[#allocation3 + $0x60] sm:$0xff]
      %v3042 = vld [vmem:[#allocation3 + $0x68] sm:$0xff]
      %v3043 = vld [vmem:[#allocation3 + $0x70] sm:$0xff]
      %v3044 = vld [vmem:[#allocation3 + $0x78] sm:$0xff]
      %v3045 = vld [vmem:[#allocation3 + $0x80] sm:$0xff]
      %v3046 = vld [vmem:[#allocation3 + $0x88] sm:$0xff]
      %v3047 = vld [vmem:[#allocation3 + $0x90] sm:$0xff]
      %v3048 = vld [vmem:[#allocation3 + $0x98] sm:$0xff]
      %v3049 = vld [vmem:[#allocation3 + $0xa0] sm:$0xff]
      %v3050 = vld [vmem:[#allocation3 + $0xa8] sm:$0xff]
      %v3051 = vld [vmem:[#allocation3 + $0xb0] sm:$0xff]
      %v3052 = vld [vmem:[#allocation3 + $0xb8] sm:$0xff]
      %v3053 = vld [vmem:[#allocation3 + $0xc0] sm:$0xff]
      %v3054 = vld [vmem:[#allocation3 + $0xc8] sm:$0xff]
      %v3055 = vld [vmem:[#allocation3 + $0xd0] sm:$0xff]
      %v3056 = vld [vmem:[#allocation3 + $0xd8] sm:$0xff]
      %v3057 = vld [vmem:[#allocation3 + $0xe0] sm:$0xff]
      %v3058 = vld [vmem:[#allocation3 + $0xe8] sm:$0xff]
      %v3059 = vld [vmem:[#allocation3 + $0xf0] sm:$0xff]
      %v3060 = vld [vmem:[#allocation3 + $0xf8] sm:$0xff]
      %v3061 = vpack.c.bf16 %v3030, %v3029
      %v3062 = vpack.c.bf16 %v3032, %v3031
      %v3063 = vpack.c.bf16 %v3034, %v3033
      %v3064 = vpack.c.bf16 %v3036, %v3035
      %v3065 = vpack.c.bf16 %v3038, %v3037
      %v3066 = vpack.c.bf16 %v3040, %v3039
      %v3067 = vpack.c.bf16 %v3042, %v3041
      %v3068 = vpack.c.bf16 %v3044, %v3043
      %v3069 = vpack.c.bf16 %v3046, %v3045
      %v3070 = vpack.c.bf16 %v3048, %v3047
      %v3071 = vpack.c.bf16 %v3050, %v3049
      %v3072 = vpack.c.bf16 %v3052, %v3051
      %v3073 = vpack.c.bf16 %v3054, %v3053
      %v3074 = vpack.c.bf16 %v3056, %v3055
      %v3075 = vpack.c.bf16 %v3058, %v3057
      %v3076 = vpack.c.bf16 %v3060, %v3059
      %s3077 = scalar_lea.vmem %s3, 32
      %v3078 = vld [vmem:[%s3077] sm:$0xf]
      %v3079 = vld [vmem:[%s3077 + $0x4] sm:$0xf]
      %v3080 = vld [vmem:[%s3077 + $0x8] sm:$0xf]
      %v3081 = vld [vmem:[%s3077 + $0xc] sm:$0xf]
      %v3082 = vld [vmem:[%s4] sm:$0x1]
      %v3084 = vlaneseq
      %v3085 = vshrl.u32 %v3084, 7
      %v3086 = vsub.s32 0, %v3085
      %v3087 = vrot.slane %v3082, %v3086
      %v3093 = vunpack.c.l.b16 %v3078
      %v3094 = vunpack.c.l.b16 %v3079
      %v3095 = vunpack.c.l.b16 %v3080
      %v3096 = vunpack.c.l.b16 %v3081
      %v3097 = vpack.c.b16 %v3094, %v3093
      %v3098 = vpack.c.b16 %v3096, %v3095
      %v3102 = vsel %vm1193, %v3061, 0
      %v3105 = vsel %vm1193, %v3062, 0
      %v3108 = vsel %vm1193, %v3063, 0
      %v3111 = vsel %vm1193, %v3064, 0
      %v3114 = vsel %vm1193, %v3065, 0
      %v3117 = vsel %vm1193, %v3066, 0
      %v3120 = vsel %vm1193, %v3067, 0
      %v3123 = vsel %vm1193, %v3068, 0
      %v3126 = vsel %vm1193, %v3069, 0
      %v3129 = vsel %vm1193, %v3070, 0
      %v3132 = vsel %vm1193, %v3071, 0
      %v3135 = vsel %vm1193, %v3072, 0
      %v3138 = vsel %vm1193, %v3073, 0
      %v3141 = vsel %vm1193, %v3074, 0
      %v3144 = vsel %vm1193, %v3075, 0
      %v3147 = vsel %vm1193, %v3076, 0
      %3149 = vmatprep.subr.bf16.mxu0 0
      %3150 = vmatpush1.bf16.msra.mxu0 %v3097
      %3151 = vmatprep.subr.bf16.mxu0 0
      %3152 = vmatpush1.bf16.msra.mxu0 %v3098
      %3153 = vmatprep.subr.bf16.mxu0 0
      %3154 = vmatpush1.bf16.msra.mxu0 0
      %3155 = vmatprep.subr.bf16.mxu0 0
      %3156 = vmatpush1.bf16.msra.mxu0 0
      %3157 = vmatprep.subr.bf16.mxu0 0
      %3158 = vmatpush1.bf16.msra.mxu0 0
      %3159 = vmatprep.subr.bf16.mxu0 0
      %3160 = vmatpush1.bf16.msra.mxu0 0
      %3161 = vmatprep.subr.bf16.mxu0 0
      %3162 = vmatpush1.bf16.msra.mxu0 0
      %3163 = vmatprep.subr.bf16.mxu0 0
      %3164 = vmatpush1.bf16.msra.mxu0 0
      %3165 = vmatprep.subr.bf16.mxu0 0
      %3166 = vmatpush1.bf16.msra.mxu0 0
      %3167 = vmatprep.subr.bf16.mxu0 0
      %3168 = vmatpush1.bf16.msra.mxu0 0
      %3169 = vmatprep.subr.bf16.mxu0 0
      %3170 = vmatpush1.bf16.msra.mxu0 0
      %3171 = vmatprep.subr.bf16.mxu0 0
      %3172 = vmatpush1.bf16.msra.mxu0 0
      %3173 = vmatprep.subr.bf16.mxu0 0
      %3174 = vmatpush1.bf16.msra.mxu0 0
      %3175 = vmatprep.subr.bf16.mxu0 0
      %3176 = vmatpush1.bf16.msra.mxu0 0
      %3177 = vmatprep.subr.bf16.mxu0 0
      %3178 = vmatpush1.bf16.msra.mxu0 0
      %3179 = vmatprep.subr.bf16.mxu0 0
      %3180 = vmatpush1.bf16.msra.mxu0 0
      %3181 = vmatprep.mubr.bf16.mxu0 0
      %3182 = vmatmul.mubr.bf16.gmra.mrb[0].mxu0 %v3102
      %v3183 = vpop.f32.mrb[0].mxu0
      %v3184 = vadd.f32 %v3087, %v3183
      %v3185 = vpop.f32.mrb[0].mxu0
      %v3186 = vpop.f32.mrb[0].mxu0
      %v3187 = vadd.f32 %v3087, %v3186
      %v3188 = vpop.f32.mrb[0].mxu0
      %3189 = vmatprep.mubr.bf16.mxu0 0
      %3190 = vmatmul.mubr.bf16.gmra.mrb[0].mxu0 %v3105
      %v3191 = vpop.f32.mrb[0].mxu0
      %v3192 = vadd.f32 %v3087, %v3191
      %v3193 = vpop.f32.mrb[0].mxu0
      %v3194 = vpop.f32.mrb[0].mxu0
      %v3195 = vadd.f32 %v3087, %v3194
      %v3196 = vpop.f32.mrb[0].mxu0
      %3197 = vmatprep.mubr.bf16.mxu0 0
      %3198 = vmatmul.mubr.bf16.gmra.mrb[0].mxu0 %v3108
      %v3199 = vpop.f32.mrb[0].mxu0
      %v3200 = vadd.f32 %v3087, %v3199
      %v3201 = vpop.f32.mrb[0].mxu0
      %v3202 = vpop.f32.mrb[0].mxu0
      %v3203 = vadd.f32 %v3087, %v3202
      %v3204 = vpop.f32.mrb[0].mxu0
      %3205 = vmatprep.mubr.bf16.mxu0 0
      %3206 = vmatmul.mubr.bf16.gmra.mrb[0].mxu0 %v3111
      %v3207 = vpop.f32.mrb[0].mxu0
      %v3208 = vadd.f32 %v3087, %v3207
      %v3209 = vpop.f32.mrb[0].mxu0
      %v3210 = vpop.f32.mrb[0].mxu0
      %v3211 = vadd.f32 %v3087, %v3210
      %v3212 = vpop.f32.mrb[0].mxu0
      %3213 = vmatprep.mubr.bf16.mxu0 0
      %3214 = vmatmul.mubr.bf16.gmra.mrb[0].mxu0 %v3114
      %v3215 = vpop.f32.mrb[0].mxu0
      %v3216 = vadd.f32 %v3087, %v3215
      %v3217 = vpop.f32.mrb[0].mxu0
      %v3218 = vpop.f32.mrb[0].mxu0
      %v3219 = vadd.f32 %v3087, %v3218
      %v3220 = vpop.f32.mrb[0].mxu0
      %3221 = vmatprep.mubr.bf16.mxu0 0
      %3222 = vmatmul.mubr.bf16.gmra.mrb[0].mxu0 %v3117
      %v3223 = vpop.f32.mrb[0].mxu0
      %v3224 = vadd.f32 %v3087, %v3223
      %v3225 = vpop.f32.mrb[0].mxu0
      %v3226 = vpop.f32.mrb[0].mxu0
      %v3227 = vadd.f32 %v3087, %v3226
      %v3228 = vpop.f32.mrb[0].mxu0
      %3229 = vmatprep.mubr.bf16.mxu0 0
      %3230 = vmatmul.mubr.bf16.gmra.mrb[0].mxu0 %v3120
      %v3231 = vpop.f32.mrb[0].mxu0
      %v3232 = vadd.f32 %v3087, %v3231
      %v3233 = vpop.f32.mrb[0].mxu0
      %v3234 = vpop.f32.mrb[0].mxu0
      %v3235 = vadd.f32 %v3087, %v3234
      %v3236 = vpop.f32.mrb[0].mxu0
      %3237 = vmatprep.mubr.bf16.mxu0 0
      %3238 = vmatmul.mubr.bf16.gmra.mrb[0].mxu0 %v3123
      %v3239 = vpop.f32.mrb[0].mxu0
      %v3240 = vadd.f32 %v3087, %v3239
      %v3241 = vpop.f32.mrb[0].mxu0
      %v3242 = vpop.f32.mrb[0].mxu0
      %v3243 = vadd.f32 %v3087, %v3242
      %v3244 = vpop.f32.mrb[0].mxu0
      %3245 = vmatprep.mubr.bf16.mxu0 0
      %3246 = vmatmul.mubr.bf16.gmra.mrb[0].mxu0 %v3126
      %v3247 = vpop.f32.mrb[0].mxu0
      %v3248 = vadd.f32 %v3087, %v3247
      %v3249 = vpop.f32.mrb[0].mxu0
      %v3250 = vpop.f32.mrb[0].mxu0
      %v3251 = vadd.f32 %v3087, %v3250
      %v3252 = vpop.f32.mrb[0].mxu0
      %3253 = vmatprep.mubr.bf16.mxu0 0
      %3254 = vmatmul.mubr.bf16.gmra.mrb[0].mxu0 %v3129
      %v3255 = vpop.f32.mrb[0].mxu0
      %v3256 = vadd.f32 %v3087, %v3255
      %v3257 = vpop.f32.mrb[0].mxu0
      %v3258 = vpop.f32.mrb[0].mxu0
      %v3259 = vadd.f32 %v3087, %v3258
      %v3260 = vpop.f32.mrb[0].mxu0
      %3261 = vmatprep.mubr.bf16.mxu0 0
      %3262 = vmatmul.mubr.bf16.gmra.mrb[0].mxu0 %v3132
      %v3263 = vpop.f32.mrb[0].mxu0
      %v3264 = vadd.f32 %v3087, %v3263
      %v3265 = vpop.f32.mrb[0].mxu0
      %v3266 = vpop.f32.mrb[0].mxu0
      %v3267 = vadd.f32 %v3087, %v3266
      %v3268 = vpop.f32.mrb[0].mxu0
      %3269 = vmatprep.mubr.bf16.mxu0 0
      %3270 = vmatmul.mubr.bf16.gmra.mrb[0].mxu0 %v3135
      %v3271 = vpop.f32.mrb[0].mxu0
      %v3272 = vadd.f32 %v3087, %v3271
      %v3273 = vpop.f32.mrb[0].mxu0
      %v3274 = vpop.f32.mrb[0].mxu0
      %v3275 = vadd.f32 %v3087, %v3274
      %v3276 = vpop.f32.mrb[0].mxu0
      %3277 = vmatprep.mubr.bf16.mxu0 0
      %3278 = vmatmul.mubr.bf16.gmra.mrb[0].mxu0 %v3138
      %v3279 = vpop.f32.mrb[0].mxu0
      %v3280 = vadd.f32 %v3087, %v3279
      %v3281 = vpop.f32.mrb[0].mxu0
      %v3282 = vpop.f32.mrb[0].mxu0
      %v3283 = vadd.f32 %v3087, %v3282
      %v3284 = vpop.f32.mrb[0].mxu0
      %3285 = vmatprep.mubr.bf16.mxu0 0
      %3286 = vmatmul.mubr.bf16.gmra.mrb[0].mxu0 %v3141
      %v3287 = vpop.f32.mrb[0].mxu0
      %v3288 = vadd.f32 %v3087, %v3287
      %v3289 = vpop.f32.mrb[0].mxu0
      %v3290 = vpop.f32.mrb[0].mxu0
      %v3291 = vadd.f32 %v3087, %v3290
      %v3292 = vpop.f32.mrb[0].mxu0
      %3293 = vmatprep.mubr.bf16.mxu0 0
      %3294 = vmatmul.mubr.bf16.gmra.mrb[0].mxu0 %v3144
      %v3295 = vpop.f32.mrb[0].mxu0
      %v3296 = vadd.f32 %v3087, %v3295
      %v3297 = vpop.f32.mrb[0].mxu0
      %v3298 = vpop.f32.mrb[0].mxu0
      %v3299 = vadd.f32 %v3087, %v3298
      %v3300 = vpop.f32.mrb[0].mxu0
      %3301 = vmatprep.mubr.bf16.mxu0 0
      %3302 = vmatmul.mubr.bf16.gmra.mrb[0].mxu0 %v3147
      %v3303 = vpop.f32.mrb[0].mxu0
      %v3304 = vadd.f32 %v3087, %v3303
      %v3305 = vpop.f32.mrb[0].mxu0
      %v3306 = vpop.f32.mrb[0].mxu0
      %v3307 = vadd.f32 %v3087, %v3306
      %v3308 = vpop.f32.mrb[0].mxu0
      %3309 = vdwg.mxu0
      %v3310 = vmax.f32 %v3184, 0.0
      %v3311 = vmax.f32 %v3187, 0.0
      %v3312 = vmax.f32 %v3192, 0.0
      %v3313 = vmax.f32 %v3195, 0.0
      %v3314 = vmax.f32 %v3200, 0.0
      %v3315 = vmax.f32 %v3203, 0.0
      %v3316 = vmax.f32 %v3208, 0.0
      %v3317 = vmax.f32 %v3211, 0.0
      %v3318 = vmax.f32 %v3216, 0.0
      %v3319 = vmax.f32 %v3219, 0.0
      %v3320 = vmax.f32 %v3224, 0.0
      %v3321 = vmax.f32 %v3227, 0.0
      %v3322 = vmax.f32 %v3232, 0.0
      %v3323 = vmax.f32 %v3235, 0.0
      %v3324 = vmax.f32 %v3240, 0.0
      %v3325 = vmax.f32 %v3243, 0.0
      %v3326 = vmax.f32 %v3248, 0.0
      %v3327 = vmax.f32 %v3251, 0.0
      %v3328 = vmax.f32 %v3256, 0.0
      %v3329 = vmax.f32 %v3259, 0.0
      %v3330 = vmax.f32 %v3264, 0.0
      %v3331 = vmax.f32 %v3267, 0.0
      %v3332 = vmax.f32 %v3272, 0.0
      %v3333 = vmax.f32 %v3275, 0.0
      %v3334 = vmax.f32 %v3280, 0.0
      %v3335 = vmax.f32 %v3283, 0.0
      %v3336 = vmax.f32 %v3288, 0.0
      %v3337 = vmax.f32 %v3291, 0.0
      %v3338 = vmax.f32 %v3296, 0.0
      %v3339 = vmax.f32 %v3299, 0.0
      %v3340 = vmax.f32 %v3304, 0.0
      %v3341 = vmax.f32 %v3307, 0.0
      %v3342 = vld [vmem:[%s446 + $0x1] sm:$0xff]
      %v3343 = vld [vmem:[%s446 + $0x9] sm:$0xff]
      %v3344 = vld [vmem:[%s446 + $0x19] sm:$0xff]
      %v3345 = vld [vmem:[%s446 + $0x21] sm:$0xff]
      %v3346 = vld [vmem:[%s446 + $0x31] sm:$0xff]
      %v3347 = vld [vmem:[%s446 + $0x39] sm:$0xff]
      %v3348 = vld [vmem:[%s446 + $0x49] sm:$0xff]
      %v3349 = vld [vmem:[%s446 + $0x51] sm:$0xff]
      %v3350 = vld [vmem:[%s446 + $0x61] sm:$0xff]
      %v3351 = vld [vmem:[%s446 + $0x69] sm:$0xff]
      %v3352 = vld [vmem:[%s446 + $0x79] sm:$0xff]
      %v3353 = vld [vmem:[%s446 + $0x81] sm:$0xff]
      %v3354 = vld [vmem:[%s446 + $0x91] sm:$0xff]
      %v3355 = vld [vmem:[%s446 + $0x99] sm:$0xff]
      %v3356 = vld [vmem:[%s446 + $0xa9] sm:$0xff]
      %v3357 = vld [vmem:[%s446 + $0xb1] sm:$0xff]
      %v3358 = vld [vmem:[%s446 + $0xc1] sm:$0xff]
      %v3359 = vld [vmem:[%s446 + $0xc9] sm:$0xff]
      %v3360 = vld [vmem:[%s446 + $0xd9] sm:$0xff]
      %v3361 = vld [vmem:[%s446 + $0xe1] sm:$0xff]
      %v3362 = vld [vmem:[%s446 + $0xf1] sm:$0xff]
      %v3363 = vld [vmem:[%s446 + $0xf9] sm:$0xff]
      %v3364 = vld [vmem:[%s446 + $0x109] sm:$0xff]
      %v3365 = vld [vmem:[%s446 + $0x111] sm:$0xff]
      %v3366 = vld [vmem:[%s446 + $0x121] sm:$0xff]
      %v3367 = vld [vmem:[%s446 + $0x129] sm:$0xff]
      %v3368 = vld [vmem:[%s446 + $0x139] sm:$0xff]
      %v3369 = vld [vmem:[%s446 + $0x141] sm:$0xff]
      %v3370 = vld [vmem:[%s446 + $0x151] sm:$0xff]
      %v3371 = vld [vmem:[%s446 + $0x159] sm:$0xff]
      %v3372 = vld [vmem:[%s446 + $0x169] sm:$0xff]
      %v3373 = vld [vmem:[%s446 + $0x171] sm:$0xff]
      %3374 = vst.msk [vmem:[#allocation3] sm:$0xff] %vm400, %v3342
      %3375 = vst.msk [vmem:[#allocation3 + $0x8] sm:$0xff] %vm400, %v3343
      %3376 = vst.msk [vmem:[#allocation3 + $0x10] sm:$0xff] %vm400, %v3344
      %3377 = vst.msk [vmem:[#allocation3 + $0x18] sm:$0xff] %vm400, %v3345
      %3378 = vst.msk [vmem:[#allocation3 + $0x20] sm:$0xff] %vm400, %v3346
      %3379 = vst.msk [vmem:[#allocation3 + $0x28] sm:$0xff] %vm400, %v3347
      %3380 = vst.msk [vmem:[#allocation3 + $0x30] sm:$0xff] %vm400, %v3348
      %3381 = vst.msk [vmem:[#allocation3 + $0x38] sm:$0xff] %vm400, %v3349
      %3382 = vst.msk [vmem:[#allocation3 + $0x40] sm:$0xff] %vm400, %v3350
      %3383 = vst.msk [vmem:[#allocation3 + $0x48] sm:$0xff] %vm400, %v3351
      %3384 = vst.msk [vmem:[#allocation3 + $0x50] sm:$0xff] %vm400, %v3352
      %3385 = vst.msk [vmem:[#allocation3 + $0x58] sm:$0xff] %vm400, %v3353
      %3386 = vst.msk [vmem:[#allocation3 + $0x60] sm:$0xff] %vm400, %v3354
      %3387 = vst.msk [vmem:[#allocation3 + $0x68] sm:$0xff] %vm400, %v3355
      %3388 = vst.msk [vmem:[#allocation3 + $0x70] sm:$0xff] %vm400, %v3356
      %3389 = vst.msk [vmem:[#allocation3 + $0x78] sm:$0xff] %vm400, %v3357
      %3390 = vst.msk [vmem:[#allocation3 + $0x80] sm:$0xff] %vm400, %v3358
      %3391 = vst.msk [vmem:[#allocation3 + $0x88] sm:$0xff] %vm400, %v3359
      %3392 = vst.msk [vmem:[#allocation3 + $0x90] sm:$0xff] %vm400, %v3360
      %3393 = vst.msk [vmem:[#allocation3 + $0x98] sm:$0xff] %vm400, %v3361
      %3394 = vst.msk [vmem:[#allocation3 + $0xa0] sm:$0xff] %vm400, %v3362
      %3395 = vst.msk [vmem:[#allocation3 + $0xa8] sm:$0xff] %vm400, %v3363
      %3396 = vst.msk [vmem:[#allocation3 + $0xb0] sm:$0xff] %vm400, %v3364
      %3397 = vst.msk [vmem:[#allocation3 + $0xb8] sm:$0xff] %vm400, %v3365
      %3398 = vst.msk [vmem:[#allocation3 + $0xc0] sm:$0xff] %vm400, %v3366
      %3399 = vst.msk [vmem:[#allocation3 + $0xc8] sm:$0xff] %vm400, %v3367
      %3400 = vst.msk [vmem:[#allocation3 + $0xd0] sm:$0xff] %vm400, %v3368
      %3401 = vst.msk [vmem:[#allocation3 + $0xd8] sm:$0xff] %vm400, %v3369
      %3402 = vst.msk [vmem:[#allocation3 + $0xe0] sm:$0xff] %vm400, %v3370
      %3403 = vst.msk [vmem:[#allocation3 + $0xe8] sm:$0xff] %vm400, %v3371
      %3404 = vst.msk [vmem:[#allocation3 + $0xf0] sm:$0xff] %vm400, %v3372
      %3405 = vst.msk [vmem:[#allocation3 + $0xf8] sm:$0xff] %vm400, %v3373
      %v3406 = vld [vmem:[%s446 + $0x2] sm:$0xff]
      %v3407 = vld [vmem:[%s446 + $0xa] sm:$0xff]
      %v3408 = vld [vmem:[%s446 + $0x1a] sm:$0xff]
      %v3409 = vld [vmem:[%s446 + $0x22] sm:$0xff]
      %v3410 = vld [vmem:[%s446 + $0x32] sm:$0xff]
      %v3411 = vld [vmem:[%s446 + $0x3a] sm:$0xff]
      %v3412 = vld [vmem:[%s446 + $0x4a] sm:$0xff]
      %v3413 = vld [vmem:[%s446 + $0x52] sm:$0xff]
      %v3414 = vld [vmem:[%s446 + $0x62] sm:$0xff]
      %v3415 = vld [vmem:[%s446 + $0x6a] sm:$0xff]
      %v3416 = vld [vmem:[%s446 + $0x7a] sm:$0xff]
      %v3417 = vld [vmem:[%s446 + $0x82] sm:$0xff]
      %v3418 = vld [vmem:[%s446 + $0x92] sm:$0xff]
      %v3419 = vld [vmem:[%s446 + $0x9a] sm:$0xff]
      %v3420 = vld [vmem:[%s446 + $0xaa] sm:$0xff]
      %v3421 = vld [vmem:[%s446 + $0xb2] sm:$0xff]
      %v3422 = vld [vmem:[%s446 + $0xc2] sm:$0xff]
      %v3423 = vld [vmem:[%s446 + $0xca] sm:$0xff]
      %v3424 = vld [vmem:[%s446 + $0xda] sm:$0xff]
      %v3425 = vld [vmem:[%s446 + $0xe2] sm:$0xff]
      %v3426 = vld [vmem:[%s446 + $0xf2] sm:$0xff]
      %v3427 = vld [vmem:[%s446 + $0xfa] sm:$0xff]
      %v3428 = vld [vmem:[%s446 + $0x10a] sm:$0xff]
      %v3429 = vld [vmem:[%s446 + $0x112] sm:$0xff]
      %v3430 = vld [vmem:[%s446 + $0x122] sm:$0xff]
      %v3431 = vld [vmem:[%s446 + $0x12a] sm:$0xff]
      %v3432 = vld [vmem:[%s446 + $0x13a] sm:$0xff]
      %v3433 = vld [vmem:[%s446 + $0x142] sm:$0xff]
      %v3434 = vld [vmem:[%s446 + $0x152] sm:$0xff]
      %v3435 = vld [vmem:[%s446 + $0x15a] sm:$0xff]
      %v3436 = vld [vmem:[%s446 + $0x16a] sm:$0xff]
      %v3437 = vld [vmem:[%s446 + $0x172] sm:$0xff]
      %3470 = vrot.lane.b32.xlu0 %v3406, 8
      %v3471 = vpop.permute.xlu0 %3470
      %3472 = vrot.lane.b32.xlu0 %v3407, 8
      %v3473 = vpop.permute.xlu0 %3472
      %3474 = vrot.lane.b32.xlu0 %v3408, 8
      %v3475 = vpop.permute.xlu0 %3474
      %3476 = vrot.lane.b32.xlu0 %v3409, 8
      %v3477 = vpop.permute.xlu0 %3476
      %3478 = vrot.lane.b32.xlu0 %v3410, 8
      %v3479 = vpop.permute.xlu0 %3478
      %3480 = vrot.lane.b32.xlu0 %v3411, 8
      %v3481 = vpop.permute.xlu0 %3480
      %3482 = vrot.lane.b32.xlu0 %v3412, 8
      %v3483 = vpop.permute.xlu0 %3482
      %3484 = vrot.lane.b32.xlu0 %v3413, 8
      %v3485 = vpop.permute.xlu0 %3484
      %3486 = vrot.lane.b32.xlu0 %v3414, 8
      %v3487 = vpop.permute.xlu0 %3486
      %3488 = vrot.lane.b32.xlu0 %v3415, 8
      %v3489 = vpop.permute.xlu0 %3488
      %3490 = vrot.lane.b32.xlu0 %v3416, 8
      %v3491 = vpop.permute.xlu0 %3490
      %3492 = vrot.lane.b32.xlu0 %v3417, 8
      %v3493 = vpop.permute.xlu0 %3492
      %3494 = vrot.lane.b32.xlu0 %v3418, 8
      %v3495 = vpop.permute.xlu0 %3494
      %3496 = vrot.lane.b32.xlu0 %v3419, 8
      %v3497 = vpop.permute.xlu0 %3496
      %3498 = vrot.lane.b32.xlu0 %v3420, 8
      %v3499 = vpop.permute.xlu0 %3498
      %3500 = vrot.lane.b32.xlu0 %v3421, 8
      %v3501 = vpop.permute.xlu0 %3500
      %3502 = vrot.lane.b32.xlu0 %v3422, 8
      %v3503 = vpop.permute.xlu0 %3502
      %3504 = vrot.lane.b32.xlu0 %v3423, 8
      %v3505 = vpop.permute.xlu0 %3504
      %3506 = vrot.lane.b32.xlu0 %v3424, 8
      %v3507 = vpop.permute.xlu0 %3506
      %3508 = vrot.lane.b32.xlu0 %v3425, 8
      %v3509 = vpop.permute.xlu0 %3508
      %3510 = vrot.lane.b32.xlu0 %v3426, 8
      %v3511 = vpop.permute.xlu0 %3510
      %3512 = vrot.lane.b32.xlu0 %v3427, 8
      %v3513 = vpop.permute.xlu0 %3512
      %3514 = vrot.lane.b32.xlu0 %v3428, 8
      %v3515 = vpop.permute.xlu0 %3514
      %3516 = vrot.lane.b32.xlu0 %v3429, 8
      %v3517 = vpop.permute.xlu0 %3516
      %3518 = vrot.lane.b32.xlu0 %v3430, 8
      %v3519 = vpop.permute.xlu0 %3518
      %3520 = vrot.lane.b32.xlu0 %v3431, 8
      %v3521 = vpop.permute.xlu0 %3520
      %3522 = vrot.lane.b32.xlu0 %v3432, 8
      %v3523 = vpop.permute.xlu0 %3522
      %3524 = vrot.lane.b32.xlu0 %v3433, 8
      %v3525 = vpop.permute.xlu0 %3524
      %3526 = vrot.lane.b32.xlu0 %v3434, 8
      %v3527 = vpop.permute.xlu0 %3526
      %3528 = vrot.lane.b32.xlu0 %v3435, 8
      %v3529 = vpop.permute.xlu0 %3528
      %3530 = vrot.lane.b32.xlu0 %v3436, 8
      %v3531 = vpop.permute.xlu0 %3530
      %3532 = vrot.lane.b32.xlu0 %v3437, 8
      %v3533 = vpop.permute.xlu0 %3532
      %3566 = vst.msk [vmem:[#allocation3] sm:$0xff] %vm703, %v3471
      %3567 = vst.msk [vmem:[#allocation3 + $0x8] sm:$0xff] %vm703, %v3473
      %3568 = vst.msk [vmem:[#allocation3 + $0x10] sm:$0xff] %vm703, %v3475
      %3569 = vst.msk [vmem:[#allocation3 + $0x18] sm:$0xff] %vm703, %v3477
      %3570 = vst.msk [vmem:[#allocation3 + $0x20] sm:$0xff] %vm703, %v3479
      %3571 = vst.msk [vmem:[#allocation3 + $0x28] sm:$0xff] %vm703, %v3481
      %3572 = vst.msk [vmem:[#allocation3 + $0x30] sm:$0xff] %vm703, %v3483
      %3573 = vst.msk [vmem:[#allocation3 + $0x38] sm:$0xff] %vm703, %v3485
      %3574 = vst.msk [vmem:[#allocation3 + $0x40] sm:$0xff] %vm703, %v3487
      %3575 = vst.msk [vmem:[#allocation3 + $0x48] sm:$0xff] %vm703, %v3489
      %3576 = vst.msk [vmem:[#allocation3 + $0x50] sm:$0xff] %vm703, %v3491
      %3577 = vst.msk [vmem:[#allocation3 + $0x58] sm:$0xff] %vm703, %v3493
      %3578 = vst.msk [vmem:[#allocation3 + $0x60] sm:$0xff] %vm703, %v3495
      %3579 = vst.msk [vmem:[#allocation3 + $0x68] sm:$0xff] %vm703, %v3497
      %3580 = vst.msk [vmem:[#allocation3 + $0x70] sm:$0xff] %vm703, %v3499
      %3581 = vst.msk [vmem:[#allocation3 + $0x78] sm:$0xff] %vm703, %v3501
      %3582 = vst.msk [vmem:[#allocation3 + $0x80] sm:$0xff] %vm703, %v3503
      %3583 = vst.msk [vmem:[#allocation3 + $0x88] sm:$0xff] %vm703, %v3505
      %3584 = vst.msk [vmem:[#allocation3 + $0x90] sm:$0xff] %vm703, %v3507
      %3585 = vst.msk [vmem:[#allocation3 + $0x98] sm:$0xff] %vm703, %v3509
      %3586 = vst.msk [vmem:[#allocation3 + $0xa0] sm:$0xff] %vm703, %v3511
      %3587 = vst.msk [vmem:[#allocation3 + $0xa8] sm:$0xff] %vm703, %v3513
      %3588 = vst.msk [vmem:[#allocation3 + $0xb0] sm:$0xff] %vm703, %v3515
      %3589 = vst.msk [vmem:[#allocation3 + $0xb8] sm:$0xff] %vm703, %v3517
      %3590 = vst.msk [vmem:[#allocation3 + $0xc0] sm:$0xff] %vm703, %v3519
      %3591 = vst.msk [vmem:[#allocation3 + $0xc8] sm:$0xff] %vm703, %v3521
      %3592 = vst.msk [vmem:[#allocation3 + $0xd0] sm:$0xff] %vm703, %v3523
      %3593 = vst.msk [vmem:[#allocation3 + $0xd8] sm:$0xff] %vm703, %v3525
      %3594 = vst.msk [vmem:[#allocation3 + $0xe0] sm:$0xff] %vm703, %v3527
      %3595 = vst.msk [vmem:[#allocation3 + $0xe8] sm:$0xff] %vm703, %v3529
      %3596 = vst.msk [vmem:[#allocation3 + $0xf0] sm:$0xff] %vm703, %v3531
      %3597 = vst.msk [vmem:[#allocation3 + $0xf8] sm:$0xff] %vm703, %v3533
      %v3598 = vld [vmem:[%s2644 + $0x1] sm:$0xff]
      %v3599 = vld [vmem:[%s2644 + $0x9] sm:$0xff]
      %v3600 = vld [vmem:[%s2644 + $0x19] sm:$0xff]
      %v3601 = vld [vmem:[%s2644 + $0x21] sm:$0xff]
      %v3602 = vld [vmem:[%s2644 + $0x31] sm:$0xff]
      %v3603 = vld [vmem:[%s2644 + $0x39] sm:$0xff]
      %v3604 = vld [vmem:[%s2644 + $0x49] sm:$0xff]
      %v3605 = vld [vmem:[%s2644 + $0x51] sm:$0xff]
      %v3606 = vld [vmem:[%s2644 + $0x61] sm:$0xff]
      %v3607 = vld [vmem:[%s2644 + $0x69] sm:$0xff]
      %v3608 = vld [vmem:[%s2644 + $0x79] sm:$0xff]
      %v3609 = vld [vmem:[%s2644 + $0x81] sm:$0xff]
      %v3610 = vld [vmem:[%s2644 + $0x91] sm:$0xff]
      %v3611 = vld [vmem:[%s2644 + $0x99] sm:$0xff]
      %v3612 = vld [vmem:[%s2644 + $0xa9] sm:$0xff]
      %v3613 = vld [vmem:[%s2644 + $0xb1] sm:$0xff]
      %v3614 = vld [vmem:[%s2644 + $0xc1] sm:$0xff]
      %v3615 = vld [vmem:[%s2644 + $0xc9] sm:$0xff]
      %v3616 = vld [vmem:[%s2644 + $0xd9] sm:$0xff]
      %v3617 = vld [vmem:[%s2644 + $0xe1] sm:$0xff]
      %v3618 = vld [vmem:[%s2644 + $0xf1] sm:$0xff]
      %v3619 = vld [vmem:[%s2644 + $0xf9] sm:$0xff]
      %v3620 = vld [vmem:[%s2644 + $0x109] sm:$0xff]
      %v3621 = vld [vmem:[%s2644 + $0x111] sm:$0xff]
      %v3622 = vld [vmem:[%s2644 + $0x121] sm:$0xff]
      %v3623 = vld [vmem:[%s2644 + $0x129] sm:$0xff]
      %v3624 = vld [vmem:[%s2644 + $0x139] sm:$0xff]
      %v3625 = vld [vmem:[%s2644 + $0x141] sm:$0xff]
      %v3626 = vld [vmem:[%s2644 + $0x151] sm:$0xff]
      %v3627 = vld [vmem:[%s2644 + $0x159] sm:$0xff]
      %v3628 = vld [vmem:[%s2644 + $0x169] sm:$0xff]
      %v3629 = vld [vmem:[%s2644 + $0x171] sm:$0xff]
      %3662 = vrot.lane.b32.xlu0 %v3598, 16
      %v3663 = vpop.permute.xlu0 %3662
      %3664 = vrot.lane.b32.xlu0 %v3599, 16
      %v3665 = vpop.permute.xlu0 %3664
      %3666 = vrot.lane.b32.xlu0 %v3600, 16
      %v3667 = vpop.permute.xlu0 %3666
      %3668 = vrot.lane.b32.xlu0 %v3601, 16
      %v3669 = vpop.permute.xlu0 %3668
      %3670 = vrot.lane.b32.xlu0 %v3602, 16
      %v3671 = vpop.permute.xlu0 %3670
      %3672 = vrot.lane.b32.xlu0 %v3603, 16
      %v3673 = vpop.permute.xlu0 %3672
      %3674 = vrot.lane.b32.xlu0 %v3604, 16
      %v3675 = vpop.permute.xlu0 %3674
      %3676 = vrot.lane.b32.xlu0 %v3605, 16
      %v3677 = vpop.permute.xlu0 %3676
      %3678 = vrot.lane.b32.xlu0 %v3606, 16
      %v3679 = vpop.permute.xlu0 %3678
      %3680 = vrot.lane.b32.xlu0 %v3607, 16
      %v3681 = vpop.permute.xlu0 %3680
      %3682 = vrot.lane.b32.xlu0 %v3608, 16
      %v3683 = vpop.permute.xlu0 %3682
      %3684 = vrot.lane.b32.xlu0 %v3609, 16
      %v3685 = vpop.permute.xlu0 %3684
      %3686 = vrot.lane.b32.xlu0 %v3610, 16
      %v3687 = vpop.permute.xlu0 %3686
      %3688 = vrot.lane.b32.xlu0 %v3611, 16
      %v3689 = vpop.permute.xlu0 %3688
      %3690 = vrot.lane.b32.xlu0 %v3612, 16
      %v3691 = vpop.permute.xlu0 %3690
      %3692 = vrot.lane.b32.xlu0 %v3613, 16
      %v3693 = vpop.permute.xlu0 %3692
      %3694 = vrot.lane.b32.xlu0 %v3614, 16
      %v3695 = vpop.permute.xlu0 %3694
      %3696 = vrot.lane.b32.xlu0 %v3615, 16
      %v3697 = vpop.permute.xlu0 %3696
      %3698 = vrot.lane.b32.xlu0 %v3616, 16
      %v3699 = vpop.permute.xlu0 %3698
      %3700 = vrot.lane.b32.xlu0 %v3617, 16
      %v3701 = vpop.permute.xlu0 %3700
      %3702 = vrot.lane.b32.xlu0 %v3618, 16
      %v3703 = vpop.permute.xlu0 %3702
      %3704 = vrot.lane.b32.xlu0 %v3619, 16
      %v3705 = vpop.permute.xlu0 %3704
      %3706 = vrot.lane.b32.xlu0 %v3620, 16
      %v3707 = vpop.permute.xlu0 %3706
      %3708 = vrot.lane.b32.xlu0 %v3621, 16
      %v3709 = vpop.permute.xlu0 %3708
      %3710 = vrot.lane.b32.xlu0 %v3622, 16
      %v3711 = vpop.permute.xlu0 %3710
      %3712 = vrot.lane.b32.xlu0 %v3623, 16
      %v3713 = vpop.permute.xlu0 %3712
      %3714 = vrot.lane.b32.xlu0 %v3624, 16
      %v3715 = vpop.permute.xlu0 %3714
      %3716 = vrot.lane.b32.xlu0 %v3625, 16
      %v3717 = vpop.permute.xlu0 %3716
      %3718 = vrot.lane.b32.xlu0 %v3626, 16
      %v3719 = vpop.permute.xlu0 %3718
      %3720 = vrot.lane.b32.xlu0 %v3627, 16
      %v3721 = vpop.permute.xlu0 %3720
      %3722 = vrot.lane.b32.xlu0 %v3628, 16
      %v3723 = vpop.permute.xlu0 %3722
      %3724 = vrot.lane.b32.xlu0 %v3629, 16
      %v3725 = vpop.permute.xlu0 %3724
      %3758 = vst.msk [vmem:[#allocation3] sm:$0xff] %vm896, %v3663
      %3759 = vst.msk [vmem:[#allocation3 + $0x8] sm:$0xff] %vm896, %v3665
      %3760 = vst.msk [vmem:[#allocation3 + $0x10] sm:$0xff] %vm896, %v3667
      %3761 = vst.msk [vmem:[#allocation3 + $0x18] sm:$0xff] %vm896, %v3669
      %3762 = vst.msk [vmem:[#allocation3 + $0x20] sm:$0xff] %vm896, %v3671
      %3763 = vst.msk [vmem:[#allocation3 + $0x28] sm:$0xff] %vm896, %v3673
      %3764 = vst.msk [vmem:[#allocation3 + $0x30] sm:$0xff] %vm896, %v3675
      %3765 = vst.msk [vmem:[#allocation3 + $0x38] sm:$0xff] %vm896, %v3677
      %3766 = vst.msk [vmem:[#allocation3 + $0x40] sm:$0xff] %vm896, %v3679
      %3767 = vst.msk [vmem:[#allocation3 + $0x48] sm:$0xff] %vm896, %v3681
      %3768 = vst.msk [vmem:[#allocation3 + $0x50] sm:$0xff] %vm896, %v3683
      %3769 = vst.msk [vmem:[#allocation3 + $0x58] sm:$0xff] %vm896, %v3685
      %3770 = vst.msk [vmem:[#allocation3 + $0x60] sm:$0xff] %vm896, %v3687
      %3771 = vst.msk [vmem:[#allocation3 + $0x68] sm:$0xff] %vm896, %v3689
      %3772 = vst.msk [vmem:[#allocation3 + $0x70] sm:$0xff] %vm896, %v3691
      %3773 = vst.msk [vmem:[#allocation3 + $0x78] sm:$0xff] %vm896, %v3693
      %3774 = vst.msk [vmem:[#allocation3 + $0x80] sm:$0xff] %vm896, %v3695
      %3775 = vst.msk [vmem:[#allocation3 + $0x88] sm:$0xff] %vm896, %v3697
      %3776 = vst.msk [vmem:[#allocation3 + $0x90] sm:$0xff] %vm896, %v3699
      %3777 = vst.msk [vmem:[#allocation3 + $0x98] sm:$0xff] %vm896, %v3701
      %3778 = vst.msk [vmem:[#allocation3 + $0xa0] sm:$0xff] %vm896, %v3703
      %3779 = vst.msk [vmem:[#allocation3 + $0xa8] sm:$0xff] %vm896, %v3705
      %3780 = vst.msk [vmem:[#allocation3 + $0xb0] sm:$0xff] %vm896, %v3707
      %3781 = vst.msk [vmem:[#allocation3 + $0xb8] sm:$0xff] %vm896, %v3709
      %3782 = vst.msk [vmem:[#allocation3 + $0xc0] sm:$0xff] %vm896, %v3711
      %3783 = vst.msk [vmem:[#allocation3 + $0xc8] sm:$0xff] %vm896, %v3713
      %3784 = vst.msk [vmem:[#allocation3 + $0xd0] sm:$0xff] %vm896, %v3715
      %3785 = vst.msk [vmem:[#allocation3 + $0xd8] sm:$0xff] %vm896, %v3717
      %3786 = vst.msk [vmem:[#allocation3 + $0xe0] sm:$0xff] %vm896, %v3719
      %3787 = vst.msk [vmem:[#allocation3 + $0xe8] sm:$0xff] %vm896, %v3721
      %3788 = vst.msk [vmem:[#allocation3 + $0xf0] sm:$0xff] %vm896, %v3723
      %3789 = vst.msk [vmem:[#allocation3 + $0xf8] sm:$0xff] %vm896, %v3725
      %v3790 = vld [vmem:[%s2644 + $0x2] sm:$0xff]
      %v3791 = vld [vmem:[%s2644 + $0xa] sm:$0xff]
      %v3792 = vld [vmem:[%s2644 + $0x1a] sm:$0xff]
      %v3793 = vld [vmem:[%s2644 + $0x22] sm:$0xff]
      %v3794 = vld [vmem:[%s2644 + $0x32] sm:$0xff]
      %v3795 = vld [vmem:[%s2644 + $0x3a] sm:$0xff]
      %v3796 = vld [vmem:[%s2644 + $0x4a] sm:$0xff]
      %v3797 = vld [vmem:[%s2644 + $0x52] sm:$0xff]
      %v3798 = vld [vmem:[%s2644 + $0x62] sm:$0xff]
      %v3799 = vld [vmem:[%s2644 + $0x6a] sm:$0xff]
      %v3800 = vld [vmem:[%s2644 + $0x7a] sm:$0xff]
      %v3801 = vld [vmem:[%s2644 + $0x82] sm:$0xff]
      %v3802 = vld [vmem:[%s2644 + $0x92] sm:$0xff]
      %v3803 = vld [vmem:[%s2644 + $0x9a] sm:$0xff]
      %v3804 = vld [vmem:[%s2644 + $0xaa] sm:$0xff]
      %v3805 = vld [vmem:[%s2644 + $0xb2] sm:$0xff]
      %v3806 = vld [vmem:[%s2644 + $0xc2] sm:$0xff]
      %v3807 = vld [vmem:[%s2644 + $0xca] sm:$0xff]
      %v3808 = vld [vmem:[%s2644 + $0xda] sm:$0xff]
      %v3809 = vld [vmem:[%s2644 + $0xe2] sm:$0xff]
      %v3810 = vld [vmem:[%s2644 + $0xf2] sm:$0xff]
      %v3811 = vld [vmem:[%s2644 + $0xfa] sm:$0xff]
      %v3812 = vld [vmem:[%s2644 + $0x10a] sm:$0xff]
      %v3813 = vld [vmem:[%s2644 + $0x112] sm:$0xff]
      %v3814 = vld [vmem:[%s2644 + $0x122] sm:$0xff]
      %v3815 = vld [vmem:[%s2644 + $0x12a] sm:$0xff]
      %v3816 = vld [vmem:[%s2644 + $0x13a] sm:$0xff]
      %v3817 = vld [vmem:[%s2644 + $0x142] sm:$0xff]
      %v3818 = vld [vmem:[%s2644 + $0x152] sm:$0xff]
      %v3819 = vld [vmem:[%s2644 + $0x15a] sm:$0xff]
      %v3820 = vld [vmem:[%s2644 + $0x16a] sm:$0xff]
      %v3821 = vld [vmem:[%s2644 + $0x172] sm:$0xff]
      %3854 = vrot.lane.b32.xlu0 %v3790, 24
      %v3855 = vpop.permute.xlu0 %3854
      %3856 = vrot.lane.b32.xlu0 %v3791, 24
      %v3857 = vpop.permute.xlu0 %3856
      %3858 = vrot.lane.b32.xlu0 %v3792, 24
      %v3859 = vpop.permute.xlu0 %3858
      %3860 = vrot.lane.b32.xlu0 %v3793, 24
      %v3861 = vpop.permute.xlu0 %3860
      %3862 = vrot.lane.b32.xlu0 %v3794, 24
      %v3863 = vpop.permute.xlu0 %3862
      %3864 = vrot.lane.b32.xlu0 %v3795, 24
      %v3865 = vpop.permute.xlu0 %3864
      %3866 = vrot.lane.b32.xlu0 %v3796, 24
      %v3867 = vpop.permute.xlu0 %3866
      %3868 = vrot.lane.b32.xlu0 %v3797, 24
      %v3869 = vpop.permute.xlu0 %3868
      %3870 = vrot.lane.b32.xlu0 %v3798, 24
      %v3871 = vpop.permute.xlu0 %3870
      %3872 = vrot.lane.b32.xlu0 %v3799, 24
      %v3873 = vpop.permute.xlu0 %3872
      %3874 = vrot.lane.b32.xlu0 %v3800, 24
      %v3875 = vpop.permute.xlu0 %3874
      %3876 = vrot.lane.b32.xlu0 %v3801, 24
      %v3877 = vpop.permute.xlu0 %3876
      %3878 = vrot.lane.b32.xlu0 %v3802, 24
      %v3879 = vpop.permute.xlu0 %3878
      %3880 = vrot.lane.b32.xlu0 %v3803, 24
      %v3881 = vpop.permute.xlu0 %3880
      %3882 = vrot.lane.b32.xlu0 %v3804, 24
      %v3883 = vpop.permute.xlu0 %3882
      %3884 = vrot.lane.b32.xlu0 %v3805, 24
      %v3885 = vpop.permute.xlu0 %3884
      %3886 = vrot.lane.b32.xlu0 %v3806, 24
      %v3887 = vpop.permute.xlu0 %3886
      %3888 = vrot.lane.b32.xlu0 %v3807, 24
      %v3889 = vpop.permute.xlu0 %3888
      %3890 = vrot.lane.b32.xlu0 %v3808, 24
      %v3891 = vpop.permute.xlu0 %3890
      %3892 = vrot.lane.b32.xlu0 %v3809, 24
      %v3893 = vpop.permute.xlu0 %3892
      %3894 = vrot.lane.b32.xlu0 %v3810, 24
      %v3895 = vpop.permute.xlu0 %3894
      %3896 = vrot.lane.b32.xlu0 %v3811, 24
      %v3897 = vpop.permute.xlu0 %3896
      %3898 = vrot.lane.b32.xlu0 %v3812, 24
      %v3899 = vpop.permute.xlu0 %3898
      %3900 = vrot.lane.b32.xlu0 %v3813, 24
      %v3901 = vpop.permute.xlu0 %3900
      %3902 = vrot.lane.b32.xlu0 %v3814, 24
      %v3903 = vpop.permute.xlu0 %3902
      %3904 = vrot.lane.b32.xlu0 %v3815, 24
      %v3905 = vpop.permute.xlu0 %3904
      %3906 = vrot.lane.b32.xlu0 %v3816, 24
      %v3907 = vpop.permute.xlu0 %3906
      %3908 = vrot.lane.b32.xlu0 %v3817, 24
      %v3909 = vpop.permute.xlu0 %3908
      %3910 = vrot.lane.b32.xlu0 %v3818, 24
      %v3911 = vpop.permute.xlu0 %3910
      %3912 = vrot.lane.b32.xlu0 %v3819, 24
      %v3913 = vpop.permute.xlu0 %3912
      %3914 = vrot.lane.b32.xlu0 %v3820, 24
      %v3915 = vpop.permute.xlu0 %3914
      %3916 = vrot.lane.b32.xlu0 %v3821, 24
      %v3917 = vpop.permute.xlu0 %3916
      %3950 = vst.msk [vmem:[#allocation3] sm:$0xff] %vm1089, %v3855
      %3951 = vst.msk [vmem:[#allocation3 + $0x8] sm:$0xff] %vm1089, %v3857
      %3952 = vst.msk [vmem:[#allocation3 + $0x10] sm:$0xff] %vm1089, %v3859
      %3953 = vst.msk [vmem:[#allocation3 + $0x18] sm:$0xff] %vm1089, %v3861
      %3954 = vst.msk [vmem:[#allocation3 + $0x20] sm:$0xff] %vm1089, %v3863
      %3955 = vst.msk [vmem:[#allocation3 + $0x28] sm:$0xff] %vm1089, %v3865
      %3956 = vst.msk [vmem:[#allocation3 + $0x30] sm:$0xff] %vm1089, %v3867
      %3957 = vst.msk [vmem:[#allocation3 + $0x38] sm:$0xff] %vm1089, %v3869
      %3958 = vst.msk [vmem:[#allocation3 + $0x40] sm:$0xff] %vm1089, %v3871
      %3959 = vst.msk [vmem:[#allocation3 + $0x48] sm:$0xff] %vm1089, %v3873
      %3960 = vst.msk [vmem:[#allocation3 + $0x50] sm:$0xff] %vm1089, %v3875
      %3961 = vst.msk [vmem:[#allocation3 + $0x58] sm:$0xff] %vm1089, %v3877
      %3962 = vst.msk [vmem:[#allocation3 + $0x60] sm:$0xff] %vm1089, %v3879
      %3963 = vst.msk [vmem:[#allocation3 + $0x68] sm:$0xff] %vm1089, %v3881
      %3964 = vst.msk [vmem:[#allocation3 + $0x70] sm:$0xff] %vm1089, %v3883
      %3965 = vst.msk [vmem:[#allocation3 + $0x78] sm:$0xff] %vm1089, %v3885
      %3966 = vst.msk [vmem:[#allocation3 + $0x80] sm:$0xff] %vm1089, %v3887
      %3967 = vst.msk [vmem:[#allocation3 + $0x88] sm:$0xff] %vm1089, %v3889
      %3968 = vst.msk [vmem:[#allocation3 + $0x90] sm:$0xff] %vm1089, %v3891
      %3969 = vst.msk [vmem:[#allocation3 + $0x98] sm:$0xff] %vm1089, %v3893
      %3970 = vst.msk [vmem:[#allocation3 + $0xa0] sm:$0xff] %vm1089, %v3895
      %3971 = vst.msk [vmem:[#allocation3 + $0xa8] sm:$0xff] %vm1089, %v3897
      %3972 = vst.msk [vmem:[#allocation3 + $0xb0] sm:$0xff] %vm1089, %v3899
      %3973 = vst.msk [vmem:[#allocation3 + $0xb8] sm:$0xff] %vm1089, %v3901
      %3974 = vst.msk [vmem:[#allocation3 + $0xc0] sm:$0xff] %vm1089, %v3903
      %3975 = vst.msk [vmem:[#allocation3 + $0xc8] sm:$0xff] %vm1089, %v3905
      %3976 = vst.msk [vmem:[#allocation3 + $0xd0] sm:$0xff] %vm1089, %v3907
      %3977 = vst.msk [vmem:[#allocation3 + $0xd8] sm:$0xff] %vm1089, %v3909
      %3978 = vst.msk [vmem:[#allocation3 + $0xe0] sm:$0xff] %vm1089, %v3911
      %3979 = vst.msk [vmem:[#allocation3 + $0xe8] sm:$0xff] %vm1089, %v3913
      %3980 = vst.msk [vmem:[#allocation3 + $0xf0] sm:$0xff] %vm1089, %v3915
      %3981 = vst.msk [vmem:[#allocation3 + $0xf8] sm:$0xff] %vm1089, %v3917
      %v3982 = vld [vmem:[#allocation3] sm:$0xff]
      %v3983 = vld [vmem:[#allocation3 + $0x8] sm:$0xff]
      %v3984 = vld [vmem:[#allocation3 + $0x10] sm:$0xff]
      %v3985 = vld [vmem:[#allocation3 + $0x18] sm:$0xff]
      %v3986 = vld [vmem:[#allocation3 + $0x20] sm:$0xff]
      %v3987 = vld [vmem:[#allocation3 + $0x28] sm:$0xff]
      %v3988 = vld [vmem:[#allocation3 + $0x30] sm:$0xff]
      %v3989 = vld [vmem:[#allocation3 + $0x38] sm:$0xff]
      %v3990 = vld [vmem:[#allocation3 + $0x40] sm:$0xff]
      %v3991 = vld [vmem:[#allocation3 + $0x48] sm:$0xff]
      %v3992 = vld [vmem:[#allocation3 + $0x50] sm:$0xff]
      %v3993 = vld [vmem:[#allocation3 + $0x58] sm:$0xff]
      %v3994 = vld [vmem:[#allocation3 + $0x60] sm:$0xff]
      %v3995 = vld [vmem:[#allocation3 + $0x68] sm:$0xff]
      %v3996 = vld [vmem:[#allocation3 + $0x70] sm:$0xff]
      %v3997 = vld [vmem:[#allocation3 + $0x78] sm:$0xff]
      %v3998 = vld [vmem:[#allocation3 + $0x80] sm:$0xff]
      %v3999 = vld [vmem:[#allocation3 + $0x88] sm:$0xff]
      %v4000 = vld [vmem:[#allocation3 + $0x90] sm:$0xff]
      %v4001 = vld [vmem:[#allocation3 + $0x98] sm:$0xff]
      %v4002 = vld [vmem:[#allocation3 + $0xa0] sm:$0xff]
      %v4003 = vld [vmem:[#allocation3 + $0xa8] sm:$0xff]
      %v4004 = vld [vmem:[#allocation3 + $0xb0] sm:$0xff]
      %v4005 = vld [vmem:[#allocation3 + $0xb8] sm:$0xff]
      %v4006 = vld [vmem:[#allocation3 + $0xc0] sm:$0xff]
      %v4007 = vld [vmem:[#allocation3 + $0xc8] sm:$0xff]
      %v4008 = vld [vmem:[#allocation3 + $0xd0] sm:$0xff]
      %v4009 = vld [vmem:[#allocation3 + $0xd8] sm:$0xff]
      %v4010 = vld [vmem:[#allocation3 + $0xe0] sm:$0xff]
      %v4011 = vld [vmem:[#allocation3 + $0xe8] sm:$0xff]
      %v4012 = vld [vmem:[#allocation3 + $0xf0] sm:$0xff]
      %v4013 = vld [vmem:[#allocation3 + $0xf8] sm:$0xff]
      %v4014 = vpack.c.bf16 %v3983, %v3982
      %v4015 = vpack.c.bf16 %v3985, %v3984
      %v4016 = vpack.c.bf16 %v3987, %v3986
      %v4017 = vpack.c.bf16 %v3989, %v3988
      %v4018 = vpack.c.bf16 %v3991, %v3990
      %v4019 = vpack.c.bf16 %v3993, %v3992
      %v4020 = vpack.c.bf16 %v3995, %v3994
      %v4021 = vpack.c.bf16 %v3997, %v3996
      %v4022 = vpack.c.bf16 %v3999, %v3998
      %v4023 = vpack.c.bf16 %v4001, %v4000
      %v4024 = vpack.c.bf16 %v4003, %v4002
      %v4025 = vpack.c.bf16 %v4005, %v4004
      %v4026 = vpack.c.bf16 %v4007, %v4006
      %v4027 = vpack.c.bf16 %v4009, %v4008
      %v4028 = vpack.c.bf16 %v4011, %v4010
      %v4029 = vpack.c.bf16 %v4013, %v4012
      %s4030 = scalar_lea.vmem %s3, 48
      %v4031 = vld [vmem:[%s4030] sm:$0xf]
      %v4032 = vld [vmem:[%s4030 + $0x4] sm:$0xf]
      %v4033 = vld [vmem:[%s4030 + $0x8] sm:$0xf]
      %v4034 = vld [vmem:[%s4030 + $0xc] sm:$0xf]
      %v4035 = vld [vmem:[%s4] sm:$0x1]
      %v4037 = vlaneseq
      %v4038 = vshrl.u32 %v4037, 7
      %v4039 = vsub.s32 0, %v4038
      %v4040 = vrot.slane %v4035, %v4039
      %v4046 = vunpack.c.l.b16 %v4031
      %v4047 = vunpack.c.l.b16 %v4032
      %v4048 = vunpack.c.l.b16 %v4033
      %v4049 = vunpack.c.l.b16 %v4034
      %v4050 = vpack.c.b16 %v4047, %v4046
      %v4051 = vpack.c.b16 %v4049, %v4048
      %v4055 = vsel %vm1193, %v4014, 0
      %v4058 = vsel %vm1193, %v4015, 0
      %v4061 = vsel %vm1193, %v4016, 0
      %v4064 = vsel %vm1193, %v4017, 0
      %v4067 = vsel %vm1193, %v4018, 0
      %v4070 = vsel %vm1193, %v4019, 0
      %v4073 = vsel %vm1193, %v4020, 0
      %v4076 = vsel %vm1193, %v4021, 0
      %v4079 = vsel %vm1193, %v4022, 0
      %v4082 = vsel %vm1193, %v4023, 0
      %v4085 = vsel %vm1193, %v4024, 0
      %v4088 = vsel %vm1193, %v4025, 0
      %v4091 = vsel %vm1193, %v4026, 0
      %v4094 = vsel %vm1193, %v4027, 0
      %v4097 = vsel %vm1193, %v4028, 0
      %v4100 = vsel %vm1193, %v4029, 0
      %4102 = vmatprep.subr.bf16.mxu0 0
      %4103 = vmatpush1.bf16.msra.mxu0 %v4050
      %4104 = vmatprep.subr.bf16.mxu0 0
      %4105 = vmatpush1.bf16.msra.mxu0 %v4051
      %4106 = vmatprep.subr.bf16.mxu0 0
      %4107 = vmatpush1.bf16.msra.mxu0 0
      %4108 = vmatprep.subr.bf16.mxu0 0
      %4109 = vmatpush1.bf16.msra.mxu0 0
      %4110 = vmatprep.subr.bf16.mxu0 0
      %4111 = vmatpush1.bf16.msra.mxu0 0
      %4112 = vmatprep.subr.bf16.mxu0 0
      %4113 = vmatpush1.bf16.msra.mxu0 0
      %4114 = vmatprep.subr.bf16.mxu0 0
      %4115 = vmatpush1.bf16.msra.mxu0 0
      %4116 = vmatprep.subr.bf16.mxu0 0
      %4117 = vmatpush1.bf16.msra.mxu0 0
      %4118 = vmatprep.subr.bf16.mxu0 0
      %4119 = vmatpush1.bf16.msra.mxu0 0
      %4120 = vmatprep.subr.bf16.mxu0 0
      %4121 = vmatpush1.bf16.msra.mxu0 0
      %4122 = vmatprep.subr.bf16.mxu0 0
      %4123 = vmatpush1.bf16.msra.mxu0 0
      %4124 = vmatprep.subr.bf16.mxu0 0
      %4125 = vmatpush1.bf16.msra.mxu0 0
      %4126 = vmatprep.subr.bf16.mxu0 0
      %4127 = vmatpush1.bf16.msra.mxu0 0
      %4128 = vmatprep.subr.bf16.mxu0 0
      %4129 = vmatpush1.bf16.msra.mxu0 0
      %4130 = vmatprep.subr.bf16.mxu0 0
      %4131 = vmatpush1.bf16.msra.mxu0 0
      %4132 = vmatprep.subr.bf16.mxu0 0
      %4133 = vmatpush1.bf16.msra.mxu0 0
      %4134 = vmatprep.mubr.bf16.mxu0 0
      %4135 = vmatmul.mubr.bf16.gmra.mrb[0].mxu0 %v4055
      %v4136 = vpop.f32.mrb[0].mxu0
      %v4137 = vadd.f32 %v4040, %v4136
      %v4138 = vpop.f32.mrb[0].mxu0
      %v4139 = vpop.f32.mrb[0].mxu0
      %v4140 = vadd.f32 %v4040, %v4139
      %v4141 = vpop.f32.mrb[0].mxu0
      %4142 = vmatprep.mubr.bf16.mxu0 0
      %4143 = vmatmul.mubr.bf16.gmra.mrb[0].mxu0 %v4058
      %v4144 = vpop.f32.mrb[0].mxu0
      %v4145 = vadd.f32 %v4040, %v4144
      %v4146 = vpop.f32.mrb[0].mxu0
      %v4147 = vpop.f32.mrb[0].mxu0
      %v4148 = vadd.f32 %v4040, %v4147
      %v4149 = vpop.f32.mrb[0].mxu0
      %4150 = vmatprep.mubr.bf16.mxu0 0
      %4151 = vmatmul.mubr.bf16.gmra.mrb[0].mxu0 %v4061
      %v4152 = vpop.f32.mrb[0].mxu0
      %v4153 = vadd.f32 %v4040, %v4152
      %v4154 = vpop.f32.mrb[0].mxu0
      %v4155 = vpop.f32.mrb[0].mxu0
      %v4156 = vadd.f32 %v4040, %v4155
      %v4157 = vpop.f32.mrb[0].mxu0
      %4158 = vmatprep.mubr.bf16.mxu0 0
      %4159 = vmatmul.mubr.bf16.gmra.mrb[0].mxu0 %v4064
      %v4160 = vpop.f32.mrb[0].mxu0
      %v4161 = vadd.f32 %v4040, %v4160
      %v4162 = vpop.f32.mrb[0].mxu0
      %v4163 = vpop.f32.mrb[0].mxu0
      %v4164 = vadd.f32 %v4040, %v4163
      %v4165 = vpop.f32.mrb[0].mxu0
      %4166 = vmatprep.mubr.bf16.mxu0 0
      %4167 = vmatmul.mubr.bf16.gmra.mrb[0].mxu0 %v4067
      %v4168 = vpop.f32.mrb[0].mxu0
      %v4169 = vadd.f32 %v4040, %v4168
      %v4170 = vpop.f32.mrb[0].mxu0
      %v4171 = vpop.f32.mrb[0].mxu0
      %v4172 = vadd.f32 %v4040, %v4171
      %v4173 = vpop.f32.mrb[0].mxu0
      %4174 = vmatprep.mubr.bf16.mxu0 0
      %4175 = vmatmul.mubr.bf16.gmra.mrb[0].mxu0 %v4070
      %v4176 = vpop.f32.mrb[0].mxu0
      %v4177 = vadd.f32 %v4040, %v4176
      %v4178 = vpop.f32.mrb[0].mxu0
      %v4179 = vpop.f32.mrb[0].mxu0
      %v4180 = vadd.f32 %v4040, %v4179
      %v4181 = vpop.f32.mrb[0].mxu0
      %4182 = vmatprep.mubr.bf16.mxu0 0
      %4183 = vmatmul.mubr.bf16.gmra.mrb[0].mxu0 %v4073
      %v4184 = vpop.f32.mrb[0].mxu0
      %v4185 = vadd.f32 %v4040, %v4184
      %v4186 = vpop.f32.mrb[0].mxu0
      %v4187 = vpop.f32.mrb[0].mxu0
      %v4188 = vadd.f32 %v4040, %v4187
      %v4189 = vpop.f32.mrb[0].mxu0
      %4190 = vmatprep.mubr.bf16.mxu0 0
      %4191 = vmatmul.mubr.bf16.gmra.mrb[0].mxu0 %v4076
      %v4192 = vpop.f32.mrb[0].mxu0
      %v4193 = vadd.f32 %v4040, %v4192
      %v4194 = vpop.f32.mrb[0].mxu0
      %v4195 = vpop.f32.mrb[0].mxu0
      %v4196 = vadd.f32 %v4040, %v4195
      %v4197 = vpop.f32.mrb[0].mxu0
      %4198 = vmatprep.mubr.bf16.mxu0 0
      %4199 = vmatmul.mubr.bf16.gmra.mrb[0].mxu0 %v4079
      %v4200 = vpop.f32.mrb[0].mxu0
      %v4201 = vadd.f32 %v4040, %v4200
      %v4202 = vpop.f32.mrb[0].mxu0
      %v4203 = vpop.f32.mrb[0].mxu0
      %v4204 = vadd.f32 %v4040, %v4203
      %v4205 = vpop.f32.mrb[0].mxu0
      %4206 = vmatprep.mubr.bf16.mxu0 0
      %4207 = vmatmul.mubr.bf16.gmra.mrb[0].mxu0 %v4082
      %v4208 = vpop.f32.mrb[0].mxu0
      %v4209 = vadd.f32 %v4040, %v4208
      %v4210 = vpop.f32.mrb[0].mxu0
      %v4211 = vpop.f32.mrb[0].mxu0
      %v4212 = vadd.f32 %v4040, %v4211
      %v4213 = vpop.f32.mrb[0].mxu0
      %4214 = vmatprep.mubr.bf16.mxu0 0
      %4215 = vmatmul.mubr.bf16.gmra.mrb[0].mxu0 %v4085
      %v4216 = vpop.f32.mrb[0].mxu0
      %v4217 = vadd.f32 %v4040, %v4216
      %v4218 = vpop.f32.mrb[0].mxu0
      %v4219 = vpop.f32.mrb[0].mxu0
      %v4220 = vadd.f32 %v4040, %v4219
      %v4221 = vpop.f32.mrb[0].mxu0
      %4222 = vmatprep.mubr.bf16.mxu0 0
      %4223 = vmatmul.mubr.bf16.gmra.mrb[0].mxu0 %v4088
      %v4224 = vpop.f32.mrb[0].mxu0
      %v4225 = vadd.f32 %v4040, %v4224
      %v4226 = vpop.f32.mrb[0].mxu0
      %v4227 = vpop.f32.mrb[0].mxu0
      %v4228 = vadd.f32 %v4040, %v4227
      %v4229 = vpop.f32.mrb[0].mxu0
      %4230 = vmatprep.mubr.bf16.mxu0 0
      %4231 = vmatmul.mubr.bf16.gmra.mrb[0].mxu0 %v4091
      %v4232 = vpop.f32.mrb[0].mxu0
      %v4233 = vadd.f32 %v4040, %v4232
      %v4234 = vpop.f32.mrb[0].mxu0
      %v4235 = vpop.f32.mrb[0].mxu0
      %v4236 = vadd.f32 %v4040, %v4235
      %v4237 = vpop.f32.mrb[0].mxu0
      %4238 = vmatprep.mubr.bf16.mxu0 0
      %4239 = vmatmul.mubr.bf16.gmra.mrb[0].mxu0 %v4094
      %v4240 = vpop.f32.mrb[0].mxu0
      %v4241 = vadd.f32 %v4040, %v4240
      %v4242 = vpop.f32.mrb[0].mxu0
      %v4243 = vpop.f32.mrb[0].mxu0
      %v4244 = vadd.f32 %v4040, %v4243
      %v4245 = vpop.f32.mrb[0].mxu0
      %4246 = vmatprep.mubr.bf16.mxu0 0
      %4247 = vmatmul.mubr.bf16.gmra.mrb[0].mxu0 %v4097
      %v4248 = vpop.f32.mrb[0].mxu0
      %v4249 = vadd.f32 %v4040, %v4248
      %v4250 = vpop.f32.mrb[0].mxu0
      %v4251 = vpop.f32.mrb[0].mxu0
      %v4252 = vadd.f32 %v4040, %v4251
      %v4253 = vpop.f32.mrb[0].mxu0
      %4254 = vmatprep.mubr.bf16.mxu0 0
      %4255 = vmatmul.mubr.bf16.gmra.mrb[0].mxu0 %v4100
      %v4256 = vpop.f32.mrb[0].mxu0
      %v4257 = vadd.f32 %v4040, %v4256
      %v4258 = vpop.f32.mrb[0].mxu0
      %v4259 = vpop.f32.mrb[0].mxu0
      %v4260 = vadd.f32 %v4040, %v4259
      %v4261 = vpop.f32.mrb[0].mxu0
      %4262 = vdwg.mxu0
      %v4263 = vmax.f32 %v4137, 0.0
      %v4264 = vmax.f32 %v4140, 0.0
      %v4265 = vmax.f32 %v4145, 0.0
      %v4266 = vmax.f32 %v4148, 0.0
      %v4267 = vmax.f32 %v4153, 0.0
      %v4268 = vmax.f32 %v4156, 0.0
      %v4269 = vmax.f32 %v4161, 0.0
      %v4270 = vmax.f32 %v4164, 0.0
      %v4271 = vmax.f32 %v4169, 0.0
      %v4272 = vmax.f32 %v4172, 0.0
      %v4273 = vmax.f32 %v4177, 0.0
      %v4274 = vmax.f32 %v4180, 0.0
      %v4275 = vmax.f32 %v4185, 0.0
      %v4276 = vmax.f32 %v4188, 0.0
      %v4277 = vmax.f32 %v4193, 0.0
      %v4278 = vmax.f32 %v4196, 0.0
      %v4279 = vmax.f32 %v4201, 0.0
      %v4280 = vmax.f32 %v4204, 0.0
      %v4281 = vmax.f32 %v4209, 0.0
      %v4282 = vmax.f32 %v4212, 0.0
      %v4283 = vmax.f32 %v4217, 0.0
      %v4284 = vmax.f32 %v4220, 0.0
      %v4285 = vmax.f32 %v4225, 0.0
      %v4286 = vmax.f32 %v4228, 0.0
      %v4287 = vmax.f32 %v4233, 0.0
      %v4288 = vmax.f32 %v4236, 0.0
      %v4289 = vmax.f32 %v4241, 0.0
      %v4290 = vmax.f32 %v4244, 0.0
      %v4291 = vmax.f32 %v4249, 0.0
      %v4292 = vmax.f32 %v4252, 0.0
      %v4293 = vmax.f32 %v4257, 0.0
      %v4294 = vmax.f32 %v4260, 0.0
      %4327 = vrot.lane.b32.xlu0 %v2356, 4
      %v4328 = vpop.permute.xlu0 %4327
      %4329 = vrot.lane.b32.xlu0 %v2357, 4
      %v4330 = vpop.permute.xlu0 %4329
      %4331 = vrot.lane.b32.xlu0 %v2358, 4
      %v4332 = vpop.permute.xlu0 %4331
      %4333 = vrot.lane.b32.xlu0 %v2359, 4
      %v4334 = vpop.permute.xlu0 %4333
      %4335 = vrot.lane.b32.xlu0 %v2360, 4
      %v4336 = vpop.permute.xlu0 %4335
      %4337 = vrot.lane.b32.xlu0 %v2361, 4
      %v4338 = vpop.permute.xlu0 %4337
      %4339 = vrot.lane.b32.xlu0 %v2362, 4
      %v4340 = vpop.permute.xlu0 %4339
      %4341 = vrot.lane.b32.xlu0 %v2363, 4
      %v4342 = vpop.permute.xlu0 %4341
      %4343 = vrot.lane.b32.xlu0 %v2364, 4
      %v4344 = vpop.permute.xlu0 %4343
      %4345 = vrot.lane.b32.xlu0 %v2365, 4
      %v4346 = vpop.permute.xlu0 %4345
      %4347 = vrot.lane.b32.xlu0 %v2366, 4
      %v4348 = vpop.permute.xlu0 %4347
      %4349 = vrot.lane.b32.xlu0 %v2367, 4
      %v4350 = vpop.permute.xlu0 %4349
      %4351 = vrot.lane.b32.xlu0 %v2368, 4
      %v4352 = vpop.permute.xlu0 %4351
      %4353 = vrot.lane.b32.xlu0 %v2369, 4
      %v4354 = vpop.permute.xlu0 %4353
      %4355 = vrot.lane.b32.xlu0 %v2370, 4
      %v4356 = vpop.permute.xlu0 %4355
      %4357 = vrot.lane.b32.xlu0 %v2371, 4
      %v4358 = vpop.permute.xlu0 %4357
      %4359 = vrot.lane.b32.xlu0 %v2372, 4
      %v4360 = vpop.permute.xlu0 %4359
      %4361 = vrot.lane.b32.xlu0 %v2373, 4
      %v4362 = vpop.permute.xlu0 %4361
      %4363 = vrot.lane.b32.xlu0 %v2374, 4
      %v4364 = vpop.permute.xlu0 %4363
      %4365 = vrot.lane.b32.xlu0 %v2375, 4
      %v4366 = vpop.permute.xlu0 %4365
      %4367 = vrot.lane.b32.xlu0 %v2376, 4
      %v4368 = vpop.permute.xlu0 %4367
      %4369 = vrot.lane.b32.xlu0 %v2377, 4
      %v4370 = vpop.permute.xlu0 %4369
      %4371 = vrot.lane.b32.xlu0 %v2378, 4
      %v4372 = vpop.permute.xlu0 %4371
      %4373 = vrot.lane.b32.xlu0 %v2379, 4
      %v4374 = vpop.permute.xlu0 %4373
      %4375 = vrot.lane.b32.xlu0 %v2380, 4
      %v4376 = vpop.permute.xlu0 %4375
      %4377 = vrot.lane.b32.xlu0 %v2381, 4
      %v4378 = vpop.permute.xlu0 %4377
      %4379 = vrot.lane.b32.xlu0 %v2382, 4
      %v4380 = vpop.permute.xlu0 %4379
      %4381 = vrot.lane.b32.xlu0 %v2383, 4
      %v4382 = vpop.permute.xlu0 %4381
      %4383 = vrot.lane.b32.xlu0 %v2384, 4
      %v4384 = vpop.permute.xlu0 %4383
      %4385 = vrot.lane.b32.xlu0 %v2385, 4
      %v4386 = vpop.permute.xlu0 %4385
      %4387 = vrot.lane.b32.xlu0 %v2386, 4
      %v4388 = vpop.permute.xlu0 %4387
      %4389 = vrot.lane.b32.xlu0 %v2387, 4
      %v4390 = vpop.permute.xlu0 %4389
      %4455 = vrot.lane.b32.xlu0 %v3310, 8
      %v4456 = vpop.permute.xlu0 %4455
      %4457 = vrot.lane.b32.xlu0 %v3311, 8
      %v4458 = vpop.permute.xlu0 %4457
      %4459 = vrot.lane.b32.xlu0 %v3312, 8
      %v4460 = vpop.permute.xlu0 %4459
      %4461 = vrot.lane.b32.xlu0 %v3313, 8
      %v4462 = vpop.permute.xlu0 %4461
      %4463 = vrot.lane.b32.xlu0 %v3314, 8
      %v4464 = vpop.permute.xlu0 %4463
      %4465 = vrot.lane.b32.xlu0 %v3315, 8
      %v4466 = vpop.permute.xlu0 %4465
      %4467 = vrot.lane.b32.xlu0 %v3316, 8
      %v4468 = vpop.permute.xlu0 %4467
      %4469 = vrot.lane.b32.xlu0 %v3317, 8
      %v4470 = vpop.permute.xlu0 %4469
      %4471 = vrot.lane.b32.xlu0 %v3318, 8
      %v4472 = vpop.permute.xlu0 %4471
      %4473 = vrot.lane.b32.xlu0 %v3319, 8
      %v4474 = vpop.permute.xlu0 %4473
      %4475 = vrot.lane.b32.xlu0 %v3320, 8
      %v4476 = vpop.permute.xlu0 %4475
      %4477 = vrot.lane.b32.xlu0 %v3321, 8
      %v4478 = vpop.permute.xlu0 %4477
      %4479 = vrot.lane.b32.xlu0 %v3322, 8
      %v4480 = vpop.permute.xlu0 %4479
      %4481 = vrot.lane.b32.xlu0 %v3323, 8
      %v4482 = vpop.permute.xlu0 %4481
      %4483 = vrot.lane.b32.xlu0 %v3324, 8
      %v4484 = vpop.permute.xlu0 %4483
      %4485 = vrot.lane.b32.xlu0 %v3325, 8
      %v4486 = vpop.permute.xlu0 %4485
      %4487 = vrot.lane.b32.xlu0 %v3326, 8
      %v4488 = vpop.permute.xlu0 %4487
      %4489 = vrot.lane.b32.xlu0 %v3327, 8
      %v4490 = vpop.permute.xlu0 %4489
      %4491 = vrot.lane.b32.xlu0 %v3328, 8
      %v4492 = vpop.permute.xlu0 %4491
      %4493 = vrot.lane.b32.xlu0 %v3329, 8
      %v4494 = vpop.permute.xlu0 %4493
      %4495 = vrot.lane.b32.xlu0 %v3330, 8
      %v4496 = vpop.permute.xlu0 %4495
      %4497 = vrot.lane.b32.xlu0 %v3331, 8
      %v4498 = vpop.permute.xlu0 %4497
      %4499 = vrot.lane.b32.xlu0 %v3332, 8
      %v4500 = vpop.permute.xlu0 %4499
      %4501 = vrot.lane.b32.xlu0 %v3333, 8
      %v4502 = vpop.permute.xlu0 %4501
      %4503 = vrot.lane.b32.xlu0 %v3334, 8
      %v4504 = vpop.permute.xlu0 %4503
      %4505 = vrot.lane.b32.xlu0 %v3335, 8
      %v4506 = vpop.permute.xlu0 %4505
      %4507 = vrot.lane.b32.xlu0 %v3336, 8
      %v4508 = vpop.permute.xlu0 %4507
      %4509 = vrot.lane.b32.xlu0 %v3337, 8
      %v4510 = vpop.permute.xlu0 %4509
      %4511 = vrot.lane.b32.xlu0 %v3338, 8
      %v4512 = vpop.permute.xlu0 %4511
      %4513 = vrot.lane.b32.xlu0 %v3339, 8
      %v4514 = vpop.permute.xlu0 %4513
      %4515 = vrot.lane.b32.xlu0 %v3340, 8
      %v4516 = vpop.permute.xlu0 %4515
      %4517 = vrot.lane.b32.xlu0 %v3341, 8
      %v4518 = vpop.permute.xlu0 %4517
      %4583 = vrot.lane.b32.xlu0 %v4263, 12
      %v4584 = vpop.permute.xlu0 %4583
      %4585 = vrot.lane.b32.xlu0 %v4264, 12
      %v4586 = vpop.permute.xlu0 %4585
      %4587 = vrot.lane.b32.xlu0 %v4265, 12
      %v4588 = vpop.permute.xlu0 %4587
      %4589 = vrot.lane.b32.xlu0 %v4266, 12
      %v4590 = vpop.permute.xlu0 %4589
      %4591 = vrot.lane.b32.xlu0 %v4267, 12
      %v4592 = vpop.permute.xlu0 %4591
      %4593 = vrot.lane.b32.xlu0 %v4268, 12
      %v4594 = vpop.permute.xlu0 %4593
      %4595 = vrot.lane.b32.xlu0 %v4269, 12
      %v4596 = vpop.permute.xlu0 %4595
      %4597 = vrot.lane.b32.xlu0 %v4270, 12
      %v4598 = vpop.permute.xlu0 %4597
      %4599 = vrot.lane.b32.xlu0 %v4271, 12
      %v4600 = vpop.permute.xlu0 %4599
      %4601 = vrot.lane.b32.xlu0 %v4272, 12
      %v4602 = vpop.permute.xlu0 %4601
      %4603 = vrot.lane.b32.xlu0 %v4273, 12
      %v4604 = vpop.permute.xlu0 %4603
      %4605 = vrot.lane.b32.xlu0 %v4274, 12
      %v4606 = vpop.permute.xlu0 %4605
      %4607 = vrot.lane.b32.xlu0 %v4275, 12
      %v4608 = vpop.permute.xlu0 %4607
      %4609 = vrot.lane.b32.xlu0 %v4276, 12
      %v4610 = vpop.permute.xlu0 %4609
      %4611 = vrot.lane.b32.xlu0 %v4277, 12
      %v4612 = vpop.permute.xlu0 %4611
      %4613 = vrot.lane.b32.xlu0 %v4278, 12
      %v4614 = vpop.permute.xlu0 %4613
      %4615 = vrot.lane.b32.xlu0 %v4279, 12
      %v4616 = vpop.permute.xlu0 %4615
      %4617 = vrot.lane.b32.xlu0 %v4280, 12
      %v4618 = vpop.permute.xlu0 %4617
      %4619 = vrot.lane.b32.xlu0 %v4281, 12
      %v4620 = vpop.permute.xlu0 %4619
      %4621 = vrot.lane.b32.xlu0 %v4282, 12
      %v4622 = vpop.permute.xlu0 %4621
      %4623 = vrot.lane.b32.xlu0 %v4283, 12
      %v4624 = vpop.permute.xlu0 %4623
      %4625 = vrot.lane.b32.xlu0 %v4284, 12
      %v4626 = vpop.permute.xlu0 %4625
      %4627 = vrot.lane.b32.xlu0 %v4285, 12
      %v4628 = vpop.permute.xlu0 %4627
      %4629 = vrot.lane.b32.xlu0 %v4286, 12
      %v4630 = vpop.permute.xlu0 %4629
      %4631 = vrot.lane.b32.xlu0 %v4287, 12
      %v4632 = vpop.permute.xlu0 %4631
      %4633 = vrot.lane.b32.xlu0 %v4288, 12
      %v4634 = vpop.permute.xlu0 %4633
      %4635 = vrot.lane.b32.xlu0 %v4289, 12
      %v4636 = vpop.permute.xlu0 %4635
      %4637 = vrot.lane.b32.xlu0 %v4290, 12
      %v4638 = vpop.permute.xlu0 %4637
      %4639 = vrot.lane.b32.xlu0 %v4291, 12
      %v4640 = vpop.permute.xlu0 %4639
      %4641 = vrot.lane.b32.xlu0 %v4292, 12
      %v4642 = vpop.permute.xlu0 %4641
      %4643 = vrot.lane.b32.xlu0 %v4293, 12
      %v4644 = vpop.permute.xlu0 %4643
      %4645 = vrot.lane.b32.xlu0 %v4294, 12
      %v4646 = vpop.permute.xlu0 %4645
      %vm4679 = vcmask 31744
      %v4680 = vsel %vm4679, %v1403, %v4328
      %v4681 = vsel %vm4679, %v1404, %v4330
      %v4682 = vsel %vm4679, %v1405, %v4332
      %v4683 = vsel %vm4679, %v1406, %v4334
      %v4684 = vsel %vm4679, %v1407, %v4336
      %v4685 = vsel %vm4679, %v1408, %v4338
      %v4686 = vsel %vm4679, %v1409, %v4340
      %v4687 = vsel %vm4679, %v1410, %v4342
      %v4688 = vsel %vm4679, %v1411, %v4344
      %v4689 = vsel %vm4679, %v1412, %v4346
      %v4690 = vsel %vm4679, %v1413, %v4348
      %v4691 = vsel %vm4679, %v1414, %v4350
      %v4692 = vsel %vm4679, %v1415, %v4352
      %v4693 = vsel %vm4679, %v1416, %v4354
      %v4694 = vsel %vm4679, %v1417, %v4356
      %v4695 = vsel %vm4679, %v1418, %v4358
      %v4696 = vsel %vm4679, %v1419, %v4360
      %v4697 = vsel %vm4679, %v1420, %v4362
      %v4698 = vsel %vm4679, %v1421, %v4364
      %v4699 = vsel %vm4679, %v1422, %v4366
      %v4700 = vsel %vm4679, %v1423, %v4368
      %v4701 = vsel %vm4679, %v1424, %v4370
      %v4702 = vsel %vm4679, %v1425, %v4372
      %v4703 = vsel %vm4679, %v1426, %v4374
      %v4704 = vsel %vm4679, %v1427, %v4376
      %v4705 = vsel %vm4679, %v1428, %v4378
      %v4706 = vsel %vm4679, %v1429, %v4380
      %v4707 = vsel %vm4679, %v1430, %v4382
      %v4708 = vsel %vm4679, %v1431, %v4384
      %v4709 = vsel %vm4679, %v1432, %v4386
      %v4710 = vsel %vm4679, %v1433, %v4388
      %v4711 = vsel %vm4679, %v1434, %v4390
      %v4712 = vsel %vm400, %v4680, %v4456
      %v4713 = vsel %vm400, %v4681, %v4458
      %v4714 = vsel %vm400, %v4682, %v4460
      %v4715 = vsel %vm400, %v4683, %v4462
      %v4716 = vsel %vm400, %v4684, %v4464
      %v4717 = vsel %vm400, %v4685, %v4466
      %v4718 = vsel %vm400, %v4686, %v4468
      %v4719 = vsel %vm400, %v4687, %v4470
      %v4720 = vsel %vm400, %v4688, %v4472
      %v4721 = vsel %vm400, %v4689, %v4474
      %v4722 = vsel %vm400, %v4690, %v4476
      %v4723 = vsel %vm400, %v4691, %v4478
      %v4724 = vsel %vm400, %v4692, %v4480
      %v4725 = vsel %vm400, %v4693, %v4482
      %v4726 = vsel %vm400, %v4694, %v4484
      %v4727 = vsel %vm400, %v4695, %v4486
      %v4728 = vsel %vm400, %v4696, %v4488
      %v4729 = vsel %vm400, %v4697, %v4490
      %v4730 = vsel %vm400, %v4698, %v4492
      %v4731 = vsel %vm400, %v4699, %v4494
      %v4732 = vsel %vm400, %v4700, %v4496
      %v4733 = vsel %vm400, %v4701, %v4498
      %v4734 = vsel %vm400, %v4702, %v4500
      %v4735 = vsel %vm400, %v4703, %v4502
      %v4736 = vsel %vm400, %v4704, %v4504
      %v4737 = vsel %vm400, %v4705, %v4506
      %v4738 = vsel %vm400, %v4706, %v4508
      %v4739 = vsel %vm400, %v4707, %v4510
      %v4740 = vsel %vm400, %v4708, %v4512
      %v4741 = vsel %vm400, %v4709, %v4514
      %v4742 = vsel %vm400, %v4710, %v4516
      %v4743 = vsel %vm400, %v4711, %v4518
      %vm4744 = vcmask 97280
      %v4745 = vsel %vm4744, %v4712, %v4584
      %v4746 = vsel %vm4744, %v4713, %v4586
      %v4747 = vsel %vm4744, %v4714, %v4588
      %v4748 = vsel %vm4744, %v4715, %v4590
      %v4749 = vsel %vm4744, %v4716, %v4592
      %v4750 = vsel %vm4744, %v4717, %v4594
      %v4751 = vsel %vm4744, %v4718, %v4596
      %v4752 = vsel %vm4744, %v4719, %v4598
      %v4753 = vsel %vm4744, %v4720, %v4600
      %v4754 = vsel %vm4744, %v4721, %v4602
      %v4755 = vsel %vm4744, %v4722, %v4604
      %v4756 = vsel %vm4744, %v4723, %v4606
      %v4757 = vsel %vm4744, %v4724, %v4608
      %v4758 = vsel %vm4744, %v4725, %v4610
      %v4759 = vsel %vm4744, %v4726, %v4612
      %v4760 = vsel %vm4744, %v4727, %v4614
      %v4761 = vsel %vm4744, %v4728, %v4616
      %v4762 = vsel %vm4744, %v4729, %v4618
      %v4763 = vsel %vm4744, %v4730, %v4620
      %v4764 = vsel %vm4744, %v4731, %v4622
      %v4765 = vsel %vm4744, %v4732, %v4624
      %v4766 = vsel %vm4744, %v4733, %v4626
      %v4767 = vsel %vm4744, %v4734, %v4628
      %v4768 = vsel %vm4744, %v4735, %v4630
      %v4769 = vsel %vm4744, %v4736, %v4632
      %v4770 = vsel %vm4744, %v4737, %v4634
      %v4771 = vsel %vm4744, %v4738, %v4636
      %v4772 = vsel %vm4744, %v4739, %v4638
      %v4773 = vsel %vm4744, %v4740, %v4640
      %v4774 = vsel %vm4744, %v4741, %v4642
      %v4775 = vsel %vm4744, %v4742, %v4644
      %v4776 = vsel %vm4744, %v4743, %v4646
      %vm4777 = vcmask 130048
      %4778 = vst.msk [vmem:[%s224] sm:$0xff] %vm4777, %v4745
      %4779 = vst.msk [vmem:[%s224 + $0x8] sm:$0xff] %vm4777, %v4746
      %4780 = vst.msk [vmem:[%s224 + $0x10] sm:$0xff] %vm4777, %v4747
      %4781 = vst.msk [vmem:[%s224 + $0x18] sm:$0xff] %vm4777, %v4748
      %4782 = vst.msk [vmem:[%s224 + $0x20] sm:$0xff] %vm4777, %v4749
      %4783 = vst.msk [vmem:[%s224 + $0x28] sm:$0xff] %vm4777, %v4750
      %4784 = vst.msk [vmem:[%s224 + $0x30] sm:$0xff] %vm4777, %v4751
      %4785 = vst.msk [vmem:[%s224 + $0x38] sm:$0xff] %vm4777, %v4752
      %4786 = vst.msk [vmem:[%s224 + $0x40] sm:$0xff] %vm4777, %v4753
      %4787 = vst.msk [vmem:[%s224 + $0x48] sm:$0xff] %vm4777, %v4754
      %4788 = vst.msk [vmem:[%s224 + $0x50] sm:$0xff] %vm4777, %v4755
      %4789 = vst.msk [vmem:[%s224 + $0x58] sm:$0xff] %vm4777, %v4756
      %4790 = vst.msk [vmem:[%s224 + $0x60] sm:$0xff] %vm4777, %v4757
      %4791 = vst.msk [vmem:[%s224 + $0x68] sm:$0xff] %vm4777, %v4758
      %4792 = vst.msk [vmem:[%s224 + $0x70] sm:$0xff] %vm4777, %v4759
      %4793 = vst.msk [vmem:[%s224 + $0x78] sm:$0xff] %vm4777, %v4760
      %4794 = vst.msk [vmem:[%s224 + $0x80] sm:$0xff] %vm4777, %v4761
      %4795 = vst.msk [vmem:[%s224 + $0x88] sm:$0xff] %vm4777, %v4762
      %4796 = vst.msk [vmem:[%s224 + $0x90] sm:$0xff] %vm4777, %v4763
      %4797 = vst.msk [vmem:[%s224 + $0x98] sm:$0xff] %vm4777, %v4764
      %4798 = vst.msk [vmem:[%s224 + $0xa0] sm:$0xff] %vm4777, %v4765
      %4799 = vst.msk [vmem:[%s224 + $0xa8] sm:$0xff] %vm4777, %v4766
      %4800 = vst.msk [vmem:[%s224 + $0xb0] sm:$0xff] %vm4777, %v4767
      %4801 = vst.msk [vmem:[%s224 + $0xb8] sm:$0xff] %vm4777, %v4768
      %4802 = vst.msk [vmem:[%s224 + $0xc0] sm:$0xff] %vm4777, %v4769
      %4803 = vst.msk [vmem:[%s224 + $0xc8] sm:$0xff] %vm4777, %v4770
      %4804 = vst.msk [vmem:[%s224 + $0xd0] sm:$0xff] %vm4777, %v4771
      %4805 = vst.msk [vmem:[%s224 + $0xd8] sm:$0xff] %vm4777, %v4772
      %4806 = vst.msk [vmem:[%s224 + $0xe0] sm:$0xff] %vm4777, %v4773
      %4807 = vst.msk [vmem:[%s224 + $0xe8] sm:$0xff] %vm4777, %v4774
      %4808 = vst.msk [vmem:[%s224 + $0xf0] sm:$0xff] %vm4777, %v4775
      %4809 = vst.msk [vmem:[%s224 + $0xf8] sm:$0xff] %vm4777, %v4776
      %p4810 = scmp.lt.s32.totalorder %s16, 1
      %s4811 = scalar_select %p4810, %s16, 1
      %s4812 = smul.addr %s4811, 32
      %s4813 = smul.addr %s4812, 8
      %s4814 = scalar_lea.vmem %s5, %s4813
      // Predicated region
      $region41: #{decoder_block_forward.3} parent=39 // pred_check
        %p4815 = pneg %p144
      $region42: #{decoder_block_forward.3} parent=39 // pred_check_branch
        %4817 = sbr.rel (%p4815) target = $region44
      $region43: #{decoder_block_forward.3} parent=39 // pred_region
        _
      $region44: #{decoder_block_forward.3} parent=39 // pred_fallthru
        _
    $region40: #{decoder_block_forward.3} parent=5 // pred_fallthru
      _
    %p4818 = scmp.le.s32.totalorder 2, %s11
    // Predicated region
    $region45: #{decoder_block_forward.3} parent=5 // pred_check
      %p4819 = pneg %p4818
    $region46: #{decoder_block_forward.3} parent=5 // pred_check_branch
      %4821 = sbr.rel (%p4819) target = $region48
    $region47: #{decoder_block_forward.3} parent=5 // pred_region
      %s4822 = ssub.s32 %s11, 2
      // Predicated region
      $region49: #{decoder_block_forward.3} parent=47 // pred_check
        %p4823 = pneg %p150
      $region50: #{decoder_block_forward.3} parent=47 // pred_check_branch
        %4825 = sbr.rel (%p4823) target = $region52
      $region51: #{decoder_block_forward.3} parent=47 // pred_region
        %p4826 = scmp.lt.s32.totalorder %s17, 1
        %s4827 = scalar_select %p4826, %s17, 1
        %s4828 = smul.addr %s4827, 32
        %s4829 = smul.addr %s4828, 8
        %s4830 = scalar_lea.vmem %s5, %s4829
      $region52: #{decoder_block_forward.3} parent=47 // pred_fallthru
        _
    $region48: #{decoder_block_forward.3} parent=5 // pred_fallthru
      _
  $region6: #{decoder_block_forward.3} parent=0 // loop_footer
    %s15 = sadd.s32 1, %s11
  $region7: #{decoder_block_forward.3} parent=0 // loop_footer_branch
    %10 = sbr.rel target = $region3
  $region8: #{decoder_block_forward.3} parent=0 // loop_exit
    _

</llo_original>
